<compile_context>
chip_gen: v7x
topology: tpu7x:2x2x1
jax: 0.10.0
libtpu: 0.0.40
codegen_flags: <defaults>
</compile_context>

<pallas_src>
import jax
import jax.numpy as jnp
from jax.experimental import pallas as pl
from jax.experimental.pallas import tpu as pltpu

LANE = 128


def _basic_block_kernel(x_ref, w1_ref, s1_ref, b1_ref, w2_ref, s2_ref, b2_ref,
                        o_ref, xpad_ref, mid_ref, acc_ref):
    """One batch element of a full BasicBlock.

    x_ref:   (1, H, W, Cp)       channel-padded input (NHWC)
    w1_ref:  (3, 3*Cp, Cp)       conv1 weights, dx taps folded into K
    s1_ref:  (1, Cp)  b1_ref: (1, Cp)   folded BN1 scale / bias
    w2_ref:  (3, 3*Cp, Cp)       conv2 weights, dx taps folded into K
    s2_ref:  (1, Cp)  b2_ref: (1, Cp)   folded BN2 scale / bias
    o_ref:   (1, H, W, Cp)       output
    xpad_ref:(H+2, W+2, Cp)      VMEM scratch: zero-halo padded input
    mid_ref: (H+2, W+2, Cp)      VMEM scratch: zero-halo padded intermediate
    acc_ref: (H, W, Cp) f32      VMEM scratch: conv accumulator
    """
    H = o_ref.shape[1]
    W = o_ref.shape[2]

    # ---- build the pad=1 halo inside VMEM (no HBM-side padded copy) ----
    xpad_ref[...] = jnp.zeros_like(xpad_ref)
    xpad_ref[1:H + 1, 1:W + 1, :] = x_ref[0]

    def conv3x3(src_ref, w_ref):
        # 3x3 conv = 3 MXU matmuls (one per dy) with contraction depth 3*Cp:
        # the three dx-shifted patches are concatenated along the lane axis.
        acc_ref[...] = jnp.zeros_like(acc_ref)
        for dy in range(3):
            patch = jnp.concatenate(
                [src_ref[dy:dy + H, dx:dx + W, :] for dx in range(3)],
                axis=-1)                                   # (H, W, 3*Cp)
            acc_ref[...] += jnp.dot(patch, w_ref[dy],
                                    preferred_element_type=jnp.float32)

    # ---- conv1 + bn1 + relu -> padded intermediate, VMEM-resident only ----
    conv3x3(xpad_ref, w1_ref)
    h1 = jnp.maximum(acc_ref[...] * s1_ref[0] + b1_ref[0], 0.0)
    mid_ref[...] = jnp.zeros_like(mid_ref)
    mid_ref[1:H + 1, 1:W + 1, :] = h1

    # ---- conv2 + bn2 + identity residual + relu ----
    conv3x3(mid_ref, w2_ref)
    h2 = acc_ref[...] * s2_ref[0] + b2_ref[0] + x_ref[0].astype(jnp.float32)
    o_ref[0] = jnp.maximum(h2, 0.0).astype(o_ref.dtype)


def fold_bn(gamma, beta, running_mean, running_var, eps=1e-5):
    scale = gamma / jnp.sqrt(running_var + eps)
    bias = beta - running_mean * scale
    return scale, bias


def _round_up(n, m):
    return ((n + m - 1) // m) * m


def basic_block_forward(x_nchw, params):
    """Full BasicBlock forward (stride=1, downsample=None), one fused Pallas
    kernel call. Input/output are NCHW float32 to match PyTorch."""
    x = jnp.transpose(x_nchw, (0, 2, 3, 1)).astype(jnp.float32)   # NCHW -> NHWC
    B, H, W, C = x.shape
    Cout = params["w1"].shape[-1]
    assert C == Cout, "identity residual requires inplanes == planes"

    Cp = max(_round_up(C, LANE), LANE)
    pc_in = Cp - C
    pc_out = Cp - Cout

    s1, b1 = fold_bn(params["bn1_gamma"], params["bn1_beta"],
                     params["bn1_mean"], params["bn1_var"])
    s2, b2 = fold_bn(params["bn2_gamma"], params["bn2_beta"],
                     params["bn2_mean"], params["bn2_var"])

    # --- pad channels to the 128-lane width (lane/MXU-dense kernel) ---
    xp = jnp.pad(x, ((0, 0), (0, 0), (0, 0), (0, pc_in)))
    w1p = jnp.pad(params["w1"], ((0, 0), (0, 0), (0, pc_in), (0, pc_out)))
    w2p = jnp.pad(params["w2"], ((0, 0), (0, 0), (0, pc_out), (0, pc_out)))
    s1p = jnp.pad(s1, (0, pc_out)).reshape(1, Cp)
    b1p = jnp.pad(b1, (0, pc_out)).reshape(1, Cp)
    s2p = jnp.pad(s2, (0, pc_out)).reshape(1, Cp)
    b2p = jnp.pad(b2, (0, pc_out)).reshape(1, Cp)

    # Fold the dx taps into the contraction axis: (3, 3, Cp, Cp) -> (3, 3*Cp, Cp)
    # (index order dx*Cp + cin matches the patch concatenation in the kernel).
    w1r = w1p.reshape(3, 3 * Cp, Cp)
    w2r = w2p.reshape(3, 3 * Cp, Cp)

    out = pl.pallas_call(
        _basic_block_kernel,
        out_shape=jax.ShapeDtypeStruct((B, H, W, Cp), jnp.float32),
        grid_spec=pltpu.PrefetchScalarGridSpec(
            num_scalar_prefetch=0,
            grid=(B,),
            in_specs=[
                pl.BlockSpec((1, H, W, Cp), lambda b: (b, 0, 0, 0)),
                pl.BlockSpec((3, 3 * Cp, Cp), lambda b: (0, 0, 0)),
                pl.BlockSpec((1, Cp), lambda b: (0, 0)),
                pl.BlockSpec((1, Cp), lambda b: (0, 0)),
                pl.BlockSpec((3, 3 * Cp, Cp), lambda b: (0, 0, 0)),
                pl.BlockSpec((1, Cp), lambda b: (0, 0)),
                pl.BlockSpec((1, Cp), lambda b: (0, 0)),
            ],
            out_specs=pl.BlockSpec((1, H, W, Cp), lambda b: (b, 0, 0, 0)),
            scratch_shapes=[
                pltpu.VMEM((H + 2, W + 2, Cp), jnp.float32),   # padded input
                pltpu.VMEM((H + 2, W + 2, Cp), jnp.float32),   # padded mid act
                pltpu.VMEM((H, W, Cp), jnp.float32),           # conv accumulator
            ],
        ),
        compiler_params=pltpu.CompilerParams(
            dimension_semantics=("parallel",)),
    )(xp, w1r, s1p, b1p, w2r, s2p, b2p)

    out = out[..., :Cout]                                       # drop lane padding
    return jnp.transpose(out, (0, 3, 1, 2))                     # NHWC -> NCHW


def reference_forward(x_nchw, params):
    """Plain-JAX reference (lax conv) for correctness checking."""
    x = jnp.transpose(x_nchw, (0, 2, 3, 1))

    def conv(a, w):
        return jax.lax.conv_general_dilated(
            a, w, window_strides=(1, 1), padding="SAME",
            dimension_numbers=("NHWC", "HWIO", "NHWC"))

    s1, b1 = fold_bn(params["bn1_gamma"], params["bn1_beta"],
                     params["bn1_mean"], params["bn1_var"])
    s2, b2 = fold_bn(params["bn2_gamma"], params["bn2_beta"],
                     params["bn2_mean"], params["bn2_var"])

    out = jnp.maximum(conv(x, params["w1"]) * s1 + b1, 0.0)
    out = jnp.maximum(conv(out, params["w2"]) * s2 + b2 + x, 0.0)
    return jnp.transpose(out, (0, 3, 1, 2))


if __name__ == "__main__":
    # Small shapes consistent with BasicBlock(inplanes=4, planes=4, stride=1).
    B, C, Hs, Ws = 2, 4, 16, 16
    inplanes = planes = C

    key = jax.random.PRNGKey(0)
    keys = jax.random.split(key, 10)

    # PyTorch conv weights are OIHW -> convert to HWIO for the NHWC kernel.
    w1_oihw = jax.random.normal(keys[0], (planes, inplanes, 3, 3), jnp.float32) * 0.1
    w2_oihw = jax.random.normal(keys[1], (planes, planes, 3, 3), jnp.float32) * 0.1

    params = {
        "w1": jnp.transpose(w1_oihw, (2, 3, 1, 0)),
        "w2": jnp.transpose(w2_oihw, (2, 3, 1, 0)),
        "bn1_gamma": 1.0 + 0.1 * jax.random.normal(keys[2], (planes,), jnp.float32),
        "bn1_beta": 0.1 * jax.random.normal(keys[3], (planes,), jnp.float32),
        "bn1_mean": 0.1 * jax.random.normal(keys[4], (planes,), jnp.float32),
        "bn1_var": jnp.abs(jax.random.normal(keys[5], (planes,), jnp.float32)) + 0.5,
        "bn2_gamma": 1.0 + 0.1 * jax.random.normal(keys[6], (planes,), jnp.float32),
        "bn2_beta": 0.1 * jax.random.normal(keys[7], (planes,), jnp.float32),
        "bn2_mean": 0.1 * jax.random.normal(keys[8], (planes,), jnp.float32),
        "bn2_var": jnp.abs(jax.random.normal(keys[9], (planes,), jnp.float32)) + 0.5,
    }

    x = jax.random.normal(jax.random.PRNGKey(42), (B, C, Hs, Ws), jnp.float32)

    out = jax.block_until_ready(basic_block_forward(x, params))
    ref = jax.block_until_ready(reference_forward(x, params))

    assert out.shape == (B, planes, Hs, Ws), out.shape
    assert jnp.allclose(out, ref, atol=1e-4, rtol=1e-4), \
        float(jnp.max(jnp.abs(out - ref)))

    print("KERNEL_OK")
</pallas_src>

<mosaic_0001>
module attributes {stable_mosaic.version = 11 : i64} {
  func.func @_basic_block_kernel(%arg0: i32, %arg1: memref<1x16x16x128xf32, #tpu.memory_space<vmem>>, %arg2: memref<3x384x128xf32, #tpu.memory_space<vmem>>, %arg3: memref<1x128xf32, #tpu.memory_space<vmem>>, %arg4: memref<1x128xf32, #tpu.memory_space<vmem>>, %arg5: memref<3x384x128xf32, #tpu.memory_space<vmem>>, %arg6: memref<1x128xf32, #tpu.memory_space<vmem>>, %arg7: memref<1x128xf32, #tpu.memory_space<vmem>>, %arg8: memref<1x16x16x128xf32, #tpu.memory_space<vmem>>, %arg9: memref<18x18x128xf32, #tpu.memory_space<vmem>>, %arg10: memref<18x18x128xf32, #tpu.memory_space<vmem>>, %arg11: memref<16x16x128xf32, #tpu.memory_space<vmem>>) attributes {dimension_semantics = [#tpu.dimension_semantics<parallel>], iteration_bounds = array<i64: 2>, scalar_prefetch = 0 : i64, scratch_operands = 3 : i64, tpu.core_type = #tpu.core_type<tc>, window_params = [{transform_indices = @transform_0, window_bounds = array<i64: 1, 16, 16, 128>}, {pipeline_mode = #tpu.pipeline_mode<synchronous>, transform_indices = @transform_1, window_bounds = array<i64: 3, 384, 128>}, {pipeline_mode = #tpu.pipeline_mode<synchronous>, transform_indices = @transform_2, window_bounds = array<i64: 1, 128>}, {pipeline_mode = #tpu.pipeline_mode<synchronous>, transform_indices = @transform_3, window_bounds = array<i64: 1, 128>}, {pipeline_mode = #tpu.pipeline_mode<synchronous>, transform_indices = @transform_4, window_bounds = array<i64: 3, 384, 128>}, {pipeline_mode = #tpu.pipeline_mode<synchronous>, transform_indices = @transform_5, window_bounds = array<i64: 1, 128>}, {pipeline_mode = #tpu.pipeline_mode<synchronous>, transform_indices = @transform_6, window_bounds = array<i64: 1, 128>}, {transform_indices = @transform_7, window_bounds = array<i64: 1, 16, 16, 128>}]} {
    %cst = arith.constant 0.000000e+00 : f32
    %0 = vector.broadcast %cst : f32 to vector<18x18x128xf32>
    %c0 = arith.constant 0 : index
    %c0_0 = arith.constant 0 : index
    %c0_1 = arith.constant 0 : index
    %1 = vector.load %arg9[%c0, %c0_0, %c0_1] : memref<18x18x128xf32, #tpu.memory_space<vmem>>, vector<18x18x128xf32>
    tpu.vector_store %arg9[%c0, %c0_0, %c0_1], %0 {strides = array<i32>} : memref<18x18x128xf32, #tpu.memory_space<vmem>>, vector<18x18x128xf32>,
    %c0_2 = arith.constant 0 : index
    %c0_3 = arith.constant 0 : index
    %c0_4 = arith.constant 0 : index
    %c0_5 = arith.constant 0 : index
    %2 = vector.load %arg1[%c0_2, %c0_3, %c0_4, %c0_5] : memref<1x16x16x128xf32, #tpu.memory_space<vmem>>, vector<1x16x16x128xf32>
    %3 = vector.shape_cast %2 : vector<1x16x16x128xf32> to vector<16x16x128xf32>
    %c1 = arith.constant 1 : index
    %c1_6 = arith.constant 1 : index
    %c0_7 = arith.constant 0 : index
    %4 = vector.load %arg9[%c1, %c1_6, %c0_7] : memref<18x18x128xf32, #tpu.memory_space<vmem>>, vector<16x16x128xf32>
    tpu.vector_store %arg9[%c1, %c1_6, %c0_7], %3 {strides = array<i32>} : memref<18x18x128xf32, #tpu.memory_space<vmem>>, vector<16x16x128xf32>,
    %cst_8 = arith.constant 0.000000e+00 : f32
    %5 = vector.broadcast %cst_8 : f32 to vector<16x16x128xf32>
    %c0_9 = arith.constant 0 : index
    %c0_10 = arith.constant 0 : index
    %c0_11 = arith.constant 0 : index
    %6 = vector.load %arg11[%c0_9, %c0_10, %c0_11] : memref<16x16x128xf32, #tpu.memory_space<vmem>>, vector<16x16x128xf32>
    tpu.vector_store %arg11[%c0_9, %c0_10, %c0_11], %5 {strides = array<i32>} : memref<16x16x128xf32, #tpu.memory_space<vmem>>, vector<16x16x128xf32>,
    %c0_12 = arith.constant 0 : index
    %c0_13 = arith.constant 0 : index
    %c0_14 = arith.constant 0 : index
    %7 = vector.load %arg9[%c0_12, %c0_13, %c0_14] : memref<18x18x128xf32, #tpu.memory_space<vmem>>, vector<16x16x128xf32>
    %c0_15 = arith.constant 0 : index
    %c1_16 = arith.constant 1 : index
    %c0_17 = arith.constant 0 : index
    %8 = vector.load %arg9[%c0_15, %c1_16, %c0_17] : memref<18x18x128xf32, #tpu.memory_space<vmem>>, vector<16x16x128xf32>
    %c0_18 = arith.constant 0 : index
    %c2 = arith.constant 2 : index
    %c0_19 = arith.constant 0 : index
    %9 = vector.load %arg9[%c0_18, %c2, %c0_19] : memref<18x18x128xf32, #tpu.memory_space<vmem>>, vector<16x16x128xf32>
    %10 = tpu.concatenate %7, %8, %9 in 2 : vector<16x16x128xf32>, vector<16x16x128xf32>, vector<16x16x128xf32> -> vector<16x16x384xf32>
    %c0_20 = arith.constant 0 : index
    %c0_21 = arith.constant 0 : index
    %c0_22 = arith.constant 0 : index
    %11 = vector.load %arg11[%c0_20, %c0_21, %c0_22] : memref<16x16x128xf32, #tpu.memory_space<vmem>>, vector<16x16x128xf32>
    %c0_23 = arith.constant 0 : index
    %c0_24 = arith.constant 0 : index
    %c0_25 = arith.constant 0 : index
    %12 = vector.load %arg2[%c0_23, %c0_24, %c0_25] : memref<3x384x128xf32, #tpu.memory_space<vmem>>, vector<1x384x128xf32>
    %13 = vector.shape_cast %12 : vector<1x384x128xf32> to vector<384x128xf32>
    %cst_26 = arith.constant dense<0.000000e+00> : vector<16x16x128xf32>
    %14 = tpu.matmul %10, %13, %cst_26 {dimension_numbers = #tpu.dot_dimension_numbers<[2], [0], [0, 1], [1], [0, 0, 0, 1, 1, 1], [], []>} : vector<16x16x384xf32>, vector<384x128xf32>, vector<16x16x128xf32> -> vector<16x16x128xf32>
    %15 = arith.addf %11, %14 : vector<16x16x128xf32>
    %c0_27 = arith.constant 0 : index
    %c0_28 = arith.constant 0 : index
    %c0_29 = arith.constant 0 : index
    %16 = vector.load %arg11[%c0_27, %c0_28, %c0_29] : memref<16x16x128xf32, #tpu.memory_space<vmem>>, vector<16x16x128xf32>
    tpu.vector_store %arg11[%c0_27, %c0_28, %c0_29], %15 {strides = array<i32>} : memref<16x16x128xf32, #tpu.memory_space<vmem>>, vector<16x16x128xf32>,
    %c1_30 = arith.constant 1 : index
    %c0_31 = arith.constant 0 : index
    %c0_32 = arith.constant 0 : index
    %17 = vector.load %arg9[%c1_30, %c0_31, %c0_32] : memref<18x18x128xf32, #tpu.memory_space<vmem>>, vector<16x16x128xf32>
    %c1_33 = arith.constant 1 : index
    %c1_34 = arith.constant 1 : index
    %c0_35 = arith.constant 0 : index
    %18 = vector.load %arg9[%c1_33, %c1_34, %c0_35] : memref<18x18x128xf32, #tpu.memory_space<vmem>>, vector<16x16x128xf32>
    %c1_36 = arith.constant 1 : index
    %c2_37 = arith.constant 2 : index
    %c0_38 = arith.constant 0 : index
    %19 = vector.load %arg9[%c1_36, %c2_37, %c0_38] : memref<18x18x128xf32, #tpu.memory_space<vmem>>, vector<16x16x128xf32>
    %20 = tpu.concatenate %17, %18, %19 in 2 : vector<16x16x128xf32>, vector<16x16x128xf32>, vector<16x16x128xf32> -> vector<16x16x384xf32>
    %c0_39 = arith.constant 0 : index
    %c0_40 = arith.constant 0 : index
    %c0_41 = arith.constant 0 : index
    %21 = vector.load %arg11[%c0_39, %c0_40, %c0_41] : memref<16x16x128xf32, #tpu.memory_space<vmem>>, vector<16x16x128xf32>
    %c1_42 = arith.constant 1 : index
    %c0_43 = arith.constant 0 : index
    %c0_44 = arith.constant 0 : index
    %22 = vector.load %arg2[%c1_42, %c0_43, %c0_44] : memref<3x384x128xf32, #tpu.memory_space<vmem>>, vector<1x384x128xf32>
    %23 = vector.shape_cast %22 : vector<1x384x128xf32> to vector<384x128xf32>
    %cst_45 = arith.constant dense<0.000000e+00> : vector<16x16x128xf32>
    %24 = tpu.matmul %20, %23, %cst_45 {dimension_numbers = #tpu.dot_dimension_numbers<[2], [0], [0, 1], [1], [0, 0, 0, 1, 1, 1], [], []>} : vector<16x16x384xf32>, vector<384x128xf32>, vector<16x16x128xf32> -> vector<16x16x128xf32>
    %25 = arith.addf %21, %24 : vector<16x16x128xf32>
    %c0_46 = arith.constant 0 : index
    %c0_47 = arith.constant 0 : index
    %c0_48 = arith.constant 0 : index
    %26 = vector.load %arg11[%c0_46, %c0_47, %c0_48] : memref<16x16x128xf32, #tpu.memory_space<vmem>>, vector<16x16x128xf32>
    tpu.vector_store %arg11[%c0_46, %c0_47, %c0_48], %25 {strides = array<i32>} : memref<16x16x128xf32, #tpu.memory_space<vmem>>, vector<16x16x128xf32>,
    %c2_49 = arith.constant 2 : index
    %c0_50 = arith.constant 0 : index
    %c0_51 = arith.constant 0 : index
    %27 = vector.load %arg9[%c2_49, %c0_50, %c0_51] : memref<18x18x128xf32, #tpu.memory_space<vmem>>, vector<16x16x128xf32>
    %c2_52 = arith.constant 2 : index
    %c1_53 = arith.constant 1 : index
    %c0_54 = arith.constant 0 : index
    %28 = vector.load %arg9[%c2_52, %c1_53, %c0_54] : memref<18x18x128xf32, #tpu.memory_space<vmem>>, vector<16x16x128xf32>
    %c2_55 = arith.constant 2 : index
    %c2_56 = arith.constant 2 : index
    %c0_57 = arith.constant 0 : index
    %29 = vector.load %arg9[%c2_55, %c2_56, %c0_57] : memref<18x18x128xf32, #tpu.memory_space<vmem>>, vector<16x16x128xf32>
    %30 = tpu.concatenate %27, %28, %29 in 2 : vector<16x16x128xf32>, vector<16x16x128xf32>, vector<16x16x128xf32> -> vector<16x16x384xf32>
    %c0_58 = arith.constant 0 : index
    %c0_59 = arith.constant 0 : index
    %c0_60 = arith.constant 0 : index
    %31 = vector.load %arg11[%c0_58, %c0_59, %c0_60] : memref<16x16x128xf32, #tpu.memory_space<vmem>>, vector<16x16x128xf32>
    %c2_61 = arith.constant 2 : index
    %c0_62 = arith.constant 0 : index
    %c0_63 = arith.constant 0 : index
    %32 = vector.load %arg2[%c2_61, %c0_62, %c0_63] : memref<3x384x128xf32, #tpu.memory_space<vmem>>, vector<1x384x128xf32>
    %33 = vector.shape_cast %32 : vector<1x384x128xf32> to vector<384x128xf32>
    %cst_64 = arith.constant dense<0.000000e+00> : vector<16x16x128xf32>
    %34 = tpu.matmul %30, %33, %cst_64 {dimension_numbers = #tpu.dot_dimension_numbers<[2], [0], [0, 1], [1], [0, 0, 0, 1, 1, 1], [], []>} : vector<16x16x384xf32>, vector<384x128xf32>, vector<16x16x128xf32> -> vector<16x16x128xf32>
    %35 = arith.addf %31, %34 : vector<16x16x128xf32>
    %c0_65 = arith.constant 0 : index
    %c0_66 = arith.constant 0 : index
    %c0_67 = arith.constant 0 : index
    %36 = vector.load %arg11[%c0_65, %c0_66, %c0_67] : memref<16x16x128xf32, #tpu.memory_space<vmem>>, vector<16x16x128xf32>
    tpu.vector_store %arg11[%c0_65, %c0_66, %c0_67], %35 {strides = array<i32>} : memref<16x16x128xf32, #tpu.memory_space<vmem>>, vector<16x16x128xf32>,
    %c0_68 = arith.constant 0 : index
    %c0_69 = arith.constant 0 : index
    %c0_70 = arith.constant 0 : index
    %37 = vector.load %arg11[%c0_68, %c0_69, %c0_70] : memref<16x16x128xf32, #tpu.memory_space<vmem>>, vector<16x16x128xf32>
    %c0_71 = arith.constant 0 : index
    %c0_72 = arith.constant 0 : index
    %38 = vector.load %arg3[%c0_71, %c0_72] : memref<1x128xf32, #tpu.memory_space<vmem>>, vector<1x128xf32>
    %39 = vector.shape_cast %38 : vector<1x128xf32> to vector<128xf32>
    %40 = vector.shape_cast %39 : vector<128xf32> to vector<1x1x128xf32>
    %41 = vector.broadcast %40 : vector<1x1x128xf32> to vector<16x16x128xf32>
    %42 = arith.mulf %37, %41 : vector<16x16x128xf32>
    %c0_73 = arith.constant 0 : index
    %c0_74 = arith.constant 0 : index
    %43 = vector.load %arg4[%c0_73, %c0_74] : memref<1x128xf32, #tpu.memory_space<vmem>>, vector<1x128xf32>
    %44 = vector.shape_cast %43 : vector<1x128xf32> to vector<128xf32>
    %45 = vector.shape_cast %44 : vector<128xf32> to vector<1x1x128xf32>
    %46 = vector.broadcast %45 : vector<1x1x128xf32> to vector<16x16x128xf32>
    %47 = arith.addf %42, %46 : vector<16x16x128xf32>
    %cst_75 = arith.constant 0.000000e+00 : f32
    %48 = vector.broadcast %cst_75 : f32 to vector<16x16x128xf32>
    %49 = arith.maximumf %47, %48 : vector<16x16x128xf32>
    %cst_76 = arith.constant 0.000000e+00 : f32
    %50 = vector.broadcast %cst_76 : f32 to vector<18x18x128xf32>
    %c0_77 = arith.constant 0 : index
    %c0_78 = arith.constant 0 : index
    %c0_79 = arith.constant 0 : index
    %51 = vector.load %arg10[%c0_77, %c0_78, %c0_79] : memref<18x18x128xf32, #tpu.memory_space<vmem>>, vector<18x18x128xf32>
    tpu.vector_store %arg10[%c0_77, %c0_78, %c0_79], %50 {strides = array<i32>} : memref<18x18x128xf32, #tpu.memory_space<vmem>>, vector<18x18x128xf32>,
    %c1_80 = arith.constant 1 : index
    %c1_81 = arith.constant 1 : index
    %c0_82 = arith.constant 0 : index
    %52 = vector.load %arg10[%c1_80, %c1_81, %c0_82] : memref<18x18x128xf32, #tpu.memory_space<vmem>>, vector<16x16x128xf32>
    tpu.vector_store %arg10[%c1_80, %c1_81, %c0_82], %49 {strides = array<i32>} : memref<18x18x128xf32, #tpu.memory_space<vmem>>, vector<16x16x128xf32>,
    %cst_83 = arith.constant 0.000000e+00 : f32
    %53 = vector.broadcast %cst_83 : f32 to vector<16x16x128xf32>
    %c0_84 = arith.constant 0 : index
    %c0_85 = arith.constant 0 : index
    %c0_86 = arith.constant 0 : index
    %54 = vector.load %arg11[%c0_84, %c0_85, %c0_86] : memref<16x16x128xf32, #tpu.memory_space<vmem>>, vector<16x16x128xf32>
    tpu.vector_store %arg11[%c0_84, %c0_85, %c0_86], %53 {strides = array<i32>} : memref<16x16x128xf32, #tpu.memory_space<vmem>>, vector<16x16x128xf32>,
    %c0_87 = arith.constant 0 : index
    %c0_88 = arith.constant 0 : index
    %c0_89 = arith.constant 0 : index
    %55 = vector.load %arg10[%c0_87, %c0_88, %c0_89] : memref<18x18x128xf32, #tpu.memory_space<vmem>>, vector<16x16x128xf32>
    %c0_90 = arith.constant 0 : index
    %c1_91 = arith.constant 1 : index
    %c0_92 = arith.constant 0 : index
    %56 = vector.load %arg10[%c0_90, %c1_91, %c0_92] : memref<18x18x128xf32, #tpu.memory_space<vmem>>, vector<16x16x128xf32>
    %c0_93 = arith.constant 0 : index
    %c2_94 = arith.constant 2 : index
    %c0_95 = arith.constant 0 : index
    %57 = vector.load %arg10[%c0_93, %c2_94, %c0_95] : memref<18x18x128xf32, #tpu.memory_space<vmem>>, vector<16x16x128xf32>
    %58 = tpu.concatenate %55, %56, %57 in 2 : vector<16x16x128xf32>, vector<16x16x128xf32>, vector<16x16x128xf32> -> vector<16x16x384xf32>
    %c0_96 = arith.constant 0 : index
    %c0_97 = arith.constant 0 : index
    %c0_98 = arith.constant 0 : index
    %59 = vector.load %arg11[%c0_96, %c0_97, %c0_98] : memref<16x16x128xf32, #tpu.memory_space<vmem>>, vector<16x16x128xf32>
    %c0_99 = arith.constant 0 : index
    %c0_100 = arith.constant 0 : index
    %c0_101 = arith.constant 0 : index
    %60 = vector.load %arg5[%c0_99, %c0_100, %c0_101] : memref<3x384x128xf32, #tpu.memory_space<vmem>>, vector<1x384x128xf32>
    %61 = vector.shape_cast %60 : vector<1x384x128xf32> to vector<384x128xf32>
    %cst_102 = arith.constant dense<0.000000e+00> : vector<16x16x128xf32>
    %62 = tpu.matmul %58, %61, %cst_102 {dimension_numbers = #tpu.dot_dimension_numbers<[2], [0], [0, 1], [1], [0, 0, 0, 1, 1, 1], [], []>} : vector<16x16x384xf32>, vector<384x128xf32>, vector<16x16x128xf32> -> vector<16x16x128xf32>
    %63 = arith.addf %59, %62 : vector<16x16x128xf32>
    %c0_103 = arith.constant 0 : index
    %c0_104 = arith.constant 0 : index
    %c0_105 = arith.constant 0 : index
    %64 = vector.load %arg11[%c0_103, %c0_104, %c0_105] : memref<16x16x128xf32, #tpu.memory_space<vmem>>, vector<16x16x128xf32>
    tpu.vector_store %arg11[%c0_103, %c0_104, %c0_105], %63 {strides = array<i32>} : memref<16x16x128xf32, #tpu.memory_space<vmem>>, vector<16x16x128xf32>,
    %c1_106 = arith.constant 1 : index
    %c0_107 = arith.constant 0 : index
    %c0_108 = arith.constant 0 : index
    %65 = vector.load %arg10[%c1_106, %c0_107, %c0_108] : memref<18x18x128xf32, #tpu.memory_space<vmem>>, vector<16x16x128xf32>
    %c1_109 = arith.constant 1 : index
    %c1_110 = arith.constant 1 : index
    %c0_111 = arith.constant 0 : index
    %66 = vector.load %arg10[%c1_109, %c1_110, %c0_111] : memref<18x18x128xf32, #tpu.memory_space<vmem>>, vector<16x16x128xf32>
    %c1_112 = arith.constant 1 : index
    %c2_113 = arith.constant 2 : index
    %c0_114 = arith.constant 0 : index
    %67 = vector.load %arg10[%c1_112, %c2_113, %c0_114] : memref<18x18x128xf32, #tpu.memory_space<vmem>>, vector<16x16x128xf32>
    %68 = tpu.concatenate %65, %66, %67 in 2 : vector<16x16x128xf32>, vector<16x16x128xf32>, vector<16x16x128xf32> -> vector<16x16x384xf32>
    %c0_115 = arith.constant 0 : index
    %c0_116 = arith.constant 0 : index
    %c0_117 = arith.constant 0 : index
    %69 = vector.load %arg11[%c0_115, %c0_116, %c0_117] : memref<16x16x128xf32, #tpu.memory_space<vmem>>, vector<16x16x128xf32>
    %c1_118 = arith.constant 1 : index
    %c0_119 = arith.constant 0 : index
    %c0_120 = arith.constant 0 : index
    %70 = vector.load %arg5[%c1_118, %c0_119, %c0_120] : memref<3x384x128xf32, #tpu.memory_space<vmem>>, vector<1x384x128xf32>
    %71 = vector.shape_cast %70 : vector<1x384x128xf32> to vector<384x128xf32>
    %cst_121 = arith.constant dense<0.000000e+00> : vector<16x16x128xf32>
    %72 = tpu.matmul %68, %71, %cst_121 {dimension_numbers = #tpu.dot_dimension_numbers<[2], [0], [0, 1], [1], [0, 0, 0, 1, 1, 1], [], []>} : vector<16x16x384xf32>, vector<384x128xf32>, vector<16x16x128xf32> -> vector<16x16x128xf32>
    %73 = arith.addf %69, %72 : vector<16x16x128xf32>
    %c0_122 = arith.constant 0 : index
    %c0_123 = arith.constant 0 : index
    %c0_124 = arith.constant 0 : index
    %74 = vector.load %arg11[%c0_122, %c0_123, %c0_124] : memref<16x16x128xf32, #tpu.memory_space<vmem>>, vector<16x16x128xf32>
    tpu.vector_store %arg11[%c0_122, %c0_123, %c0_124], %73 {strides = array<i32>} : memref<16x16x128xf32, #tpu.memory_space<vmem>>, vector<16x16x128xf32>,
    %c2_125 = arith.constant 2 : index
    %c0_126 = arith.constant 0 : index
    %c0_127 = arith.constant 0 : index
    %75 = vector.load %arg10[%c2_125, %c0_126, %c0_127] : memref<18x18x128xf32, #tpu.memory_space<vmem>>, vector<16x16x128xf32>
    %c2_128 = arith.constant 2 : index
    %c1_129 = arith.constant 1 : index
    %c0_130 = arith.constant 0 : index
    %76 = vector.load %arg10[%c2_128, %c1_129, %c0_130] : memref<18x18x128xf32, #tpu.memory_space<vmem>>, vector<16x16x128xf32>
    %c2_131 = arith.constant 2 : index
    %c2_132 = arith.constant 2 : index
    %c0_133 = arith.constant 0 : index
    %77 = vector.load %arg10[%c2_131, %c2_132, %c0_133] : memref<18x18x128xf32, #tpu.memory_space<vmem>>, vector<16x16x128xf32>
    %78 = tpu.concatenate %75, %76, %77 in 2 : vector<16x16x128xf32>, vector<16x16x128xf32>, vector<16x16x128xf32> -> vector<16x16x384xf32>
    %c0_134 = arith.constant 0 : index
    %c0_135 = arith.constant 0 : index
    %c0_136 = arith.constant 0 : index
    %79 = vector.load %arg11[%c0_134, %c0_135, %c0_136] : memref<16x16x128xf32, #tpu.memory_space<vmem>>, vector<16x16x128xf32>
    %c2_137 = arith.constant 2 : index
    %c0_138 = arith.constant 0 : index
    %c0_139 = arith.constant 0 : index
    %80 = vector.load %arg5[%c2_137, %c0_138, %c0_139] : memref<3x384x128xf32, #tpu.memory_space<vmem>>, vector<1x384x128xf32>
    %81 = vector.shape_cast %80 : vector<1x384x128xf32> to vector<384x128xf32>
    %cst_140 = arith.constant dense<0.000000e+00> : vector<16x16x128xf32>
    %82 = tpu.matmul %78, %81, %cst_140 {dimension_numbers = #tpu.dot_dimension_numbers<[2], [0], [0, 1], [1], [0, 0, 0, 1, 1, 1], [], []>} : vector<16x16x384xf32>, vector<384x128xf32>, vector<16x16x128xf32> -> vector<16x16x128xf32>
    %83 = arith.addf %79, %82 : vector<16x16x128xf32>
    %c0_141 = arith.constant 0 : index
    %c0_142 = arith.constant 0 : index
    %c0_143 = arith.constant 0 : index
    %84 = vector.load %arg11[%c0_141, %c0_142, %c0_143] : memref<16x16x128xf32, #tpu.memory_space<vmem>>, vector<16x16x128xf32>
    tpu.vector_store %arg11[%c0_141, %c0_142, %c0_143], %83 {strides = array<i32>} : memref<16x16x128xf32, #tpu.memory_space<vmem>>, vector<16x16x128xf32>,
    %c0_144 = arith.constant 0 : index
    %c0_145 = arith.constant 0 : index
    %c0_146 = arith.constant 0 : index
    %85 = vector.load %arg11[%c0_144, %c0_145, %c0_146] : memref<16x16x128xf32, #tpu.memory_space<vmem>>, vector<16x16x128xf32>
    %c0_147 = arith.constant 0 : index
    %c0_148 = arith.constant 0 : index
    %86 = vector.load %arg6[%c0_147, %c0_148] : memref<1x128xf32, #tpu.memory_space<vmem>>, vector<1x128xf32>
    %87 = vector.shape_cast %86 : vector<1x128xf32> to vector<128xf32>
    %88 = vector.shape_cast %87 : vector<128xf32> to vector<1x1x128xf32>
    %89 = vector.broadcast %88 : vector<1x1x128xf32> to vector<16x16x128xf32>
    %90 = arith.mulf %85, %89 : vector<16x16x128xf32>
    %c0_149 = arith.constant 0 : index
    %c0_150 = arith.constant 0 : index
    %91 = vector.load %arg7[%c0_149, %c0_150] : memref<1x128xf32, #tpu.memory_space<vmem>>, vector<1x128xf32>
    %92 = vector.shape_cast %91 : vector<1x128xf32> to vector<128xf32>
    %93 = vector.shape_cast %92 : vector<128xf32> to vector<1x1x128xf32>
    %94 = vector.broadcast %93 : vector<1x1x128xf32> to vector<16x16x128xf32>
    %95 = arith.addf %90, %94 : vector<16x16x128xf32>
    %c0_151 = arith.constant 0 : index
    %c0_152 = arith.constant 0 : index
    %c0_153 = arith.constant 0 : index
    %c0_154 = arith.constant 0 : index
    %96 = vector.load %arg1[%c0_151, %c0_152, %c0_153, %c0_154] : memref<1x16x16x128xf32, #tpu.memory_space<vmem>>, vector<1x16x16x128xf32>
    %97 = vector.shape_cast %96 : vector<1x16x16x128xf32> to vector<16x16x128xf32>
    %98 = arith.addf %95, %97 : vector<16x16x128xf32>
    %cst_155 = arith.constant 0.000000e+00 : f32
    %99 = vector.broadcast %cst_155 : f32 to vector<16x16x128xf32>
    %100 = arith.maximumf %98, %99 : vector<16x16x128xf32>
    %c0_156 = arith.constant 0 : index
    %c0_157 = arith.constant 0 : index
    %c0_158 = arith.constant 0 : index
    %c0_159 = arith.constant 0 : index
    %101 = vector.load %arg8[%c0_156, %c0_157, %c0_158, %c0_159] : memref<1x16x16x128xf32, #tpu.memory_space<vmem>>, vector<1x16x16x128xf32>
    %102 = vector.shape_cast %101 : vector<1x16x16x128xf32> to vector<16x16x128xf32>
    %103 = vector.shape_cast %100 : vector<16x16x128xf32> to vector<1x16x16x128xf32>
    tpu.vector_store %arg8[%c0_156, %c0_157, %c0_158, %c0_159], %103 {strides = array<i32>} : memref<1x16x16x128xf32, #tpu.memory_space<vmem>>, vector<1x16x16x128xf32>,
    return
  }
  func.func @transform_0(%arg0: i32) -> (i32, i32, i32, i32) {
    %c0_i32 = arith.constant 0 : i32
    %c0_i32_0 = arith.constant 0 : i32
    %c0_i32_1 = arith.constant 0 : i32
    %c0_i32_2 = arith.constant 0 : i32
    return %arg0, %c0_i32, %c0_i32_0, %c0_i32_1 : i32, i32, i32, i32
  }
  func.func @transform_1(%arg0: i32) -> (i32, i32, i32) {
    %c0_i32 = arith.constant 0 : i32
    %c0_i32_0 = arith.constant 0 : i32
    %c0_i32_1 = arith.constant 0 : i32
    %c0_i32_2 = arith.constant 0 : i32
    return %c0_i32, %c0_i32_0, %c0_i32_1 : i32, i32, i32
  }
  func.func @transform_2(%arg0: i32) -> (i32, i32) {
    %c0_i32 = arith.constant 0 : i32
    %c0_i32_0 = arith.constant 0 : i32
    %c0_i32_1 = arith.constant 0 : i32
    return %c0_i32, %c0_i32_0 : i32, i32
  }
  func.func @transform_3(%arg0: i32) -> (i32, i32) {
    %c0_i32 = arith.constant 0 : i32
    %c0_i32_0 = arith.constant 0 : i32
    %c0_i32_1 = arith.constant 0 : i32
    return %c0_i32, %c0_i32_0 : i32, i32
  }
  func.func @transform_4(%arg0: i32) -> (i32, i32, i32) {
    %c0_i32 = arith.constant 0 : i32
    %c0_i32_0 = arith.constant 0 : i32
    %c0_i32_1 = arith.constant 0 : i32
    %c0_i32_2 = arith.constant 0 : i32
    return %c0_i32, %c0_i32_0, %c0_i32_1 : i32, i32, i32
  }
  func.func @transform_5(%arg0: i32) -> (i32, i32) {
    %c0_i32 = arith.constant 0 : i32
    %c0_i32_0 = arith.constant 0 : i32
    %c0_i32_1 = arith.constant 0 : i32
    return %c0_i32, %c0_i32_0 : i32, i32
  }
  func.func @transform_6(%arg0: i32) -> (i32, i32) {
    %c0_i32 = arith.constant 0 : i32
    %c0_i32_0 = arith.constant 0 : i32
    %c0_i32_1 = arith.constant 0 : i32
    return %c0_i32, %c0_i32_0 : i32, i32
  }
  func.func @transform_7(%arg0: i32) -> (i32, i32, i32, i32) {
    %c0_i32 = arith.constant 0 : i32
    %c0_i32_0 = arith.constant 0 : i32
    %c0_i32_1 = arith.constant 0 : i32
    %c0_i32_2 = arith.constant 0 : i32
    return %arg0, %c0_i32, %c0_i32_0, %c0_i32_1 : i32, i32, i32, i32
  }
}

</mosaic_0001>

<llo_original>
// kernel: tpu_custom_call.1
$region0: #{tpu_custom_call.1}
  #allocation0 [shape = 'u32[]', space=smem, size = 0x4, offset = 0x4, fixed_abs, tag = 'smem constant byte address 0x4 - core index']
  #allocation1 [shape = 'u32[144,128]{1,0:T(1,128)}', space=vmem, size = 0x12000, scoped, tag = 'internal scratch']
  #allocation2 [shape = 'f32[18,18,128]{2,1,0:T(8,128)}', space=vmem, size = 0x36000, scoped, tag = 'scratch operand']
  #allocation3 [shape = 'f32[18,18,128]{2,1,0:T(8,128)}', space=vmem, size = 0x36000, scoped, tag = 'scratch operand']
  #allocation4 [shape = 'f32[16,16,128]{2,1,0:T(8,128)}', space=vmem, size = 0x20000, scoped, tag = 'scratch operand']
  %s0 = inlined_call_operand.hbm [shape: f32[2,16,16,128], index: 0, kind: input, shape index: {}]
  %s1 = inlined_call_operand.hbm [shape: f32[3,384,128], index: 1, kind: input, shape index: {}]
  %s2 = inlined_call_operand.vmem [shape: f32[1,128], index: 2, kind: input, shape index: {}]
  %s3 = inlined_call_operand.vmem [shape: f32[1,128], index: 3, kind: input, shape index: {}]
  %s4 = inlined_call_operand.hbm [shape: f32[3,384,128], index: 4, kind: input, shape index: {}]
  %s5 = inlined_call_operand.vmem [shape: f32[1,128], index: 5, kind: input, shape index: {}]
  %s6 = inlined_call_operand.vmem [shape: f32[1,128], index: 6, kind: input, shape index: {}]
  %s7 = inlined_call_operand.hbm [shape: f32[2,16,16,128], index: 7, kind: output, shape index: {}]
  %s8 = sld [smem:[#allocation0]]
  $region73: #{tpu_custom_call.1} parent=0
    _
  %s10 = ssub.s32 1, %s8
  %s11 = scalar_select 0, %s10, %s8
  $region1: #{tpu_custom_call.1} parent=0
    #allocation5 [shape = 'u8[262144]{0}', space=vmem, size = 0x40000, scoped, tag = 'input window, operand 0']
    #allocation6 [shape = 's32[2]{0}', space=sflag, size = 0x8, scoped, tag = 'scoped memory for tpu_custom_call.1']
    #allocation7 [shape = 's32[2]{0}', space=sflag, size = 0x8, scoped, tag = 'scoped memory for tpu_custom_call.1']
    #allocation8 [shape = 'u8[589824]{0}', space=vmem, size = 0x90000, scoped, tag = 'input window, operand 1, single buffered']
    #allocation9 [shape = 's32[1]{0}', space=sflag, size = 0x4, scoped, tag = 'scoped memory for tpu_custom_call.1']
    #allocation10 [shape = 'u8[589824]{0}', space=vmem, size = 0x90000, scoped, tag = 'input window, operand 4, single buffered']
    #allocation11 [shape = 'u8[262144]{0}', space=vmem, size = 0x40000, scoped, tag = 'output window, operand 0']
    %12 = vsyncpa [#allocation6], 0
    %s13 = scalar_lea.sflag [#allocation6], 1
    %14 = vsyncpa %s13, 0
    %15 = vsyncpa [#allocation9], 0
    %16 = vsyncpa [#allocation7], 0
    %s17 = scalar_lea.sflag [#allocation7], 1
    %18 = vsyncpa %s17, 0
    loop: start=0, step=1, limit=4
    $region2: #{tpu_custom_call.1} parent=1 // loop_pre_header
      _
    $region3: #{tpu_custom_call.1} parent=1 // loop_header
      %s20 = sphi 0, %s24
      %p21 = scmp.ge.s32.totalorder %s20, 4
      %s30 = sphi 0, %s32
      %s33 = sphi 0, %s30
      %s34 = sphi 0, %s33
      %s50 = sphi 0, %s34
      %s54 = sphi 0, %s54
      %s56 = sphi 0, %s54
      %s57 = sphi 0, %s56
      %s71 = sphi 0, %s57
      %s75 = sphi 0, %s75
      %s77 = sphi 0, %s75
      %s78 = sphi 0, %s77
      %s92 = sphi 0, %s78
      %s96 = sphi 0, %s96
      %s98 = sphi 0, %s96
      %s99 = sphi 0, %s98
      %s113 = sphi 0, %s99
      %s117 = sphi 0, %s117
      %s119 = sphi 0, %s117
      %s120 = sphi 0, %s119
      %s134 = sphi 0, %s120
      %s138 = sphi 0, %s138
      %s140 = sphi 0, %s138
      %s141 = sphi 0, %s140
      %s155 = sphi 0, %s141
      %s159 = sphi 0, %s159
      %s161 = sphi 0, %s159
      %s162 = sphi 0, %s161
      %s176 = sphi 0, %s162
      %s182 = sphi 0, %s184
      %s185 = sphi 0, %s182
      %s186 = sphi 0, %s185
      %s202 = sphi 0, %s186
    $region4: #{tpu_custom_call.1} parent=1 // loop_header_branch
      %23 = sbr.rel (%p21) target = $region8
    $region5: #{tpu_custom_call.1} parent=1 // loop_body
      %s25 = ssub.s32 %s20, 1
      %s26 = ssub.s32 %s20, 2
      %s27 = sadd.s32 %s20, 1
      %s28 = ssub.s32 %s20, %s27
      %p29 = scmp.eq.s32.totalorder %s28, 0
      %s31 = sadd.s32 %s30, 1
      %s32 = scalar_select %p29, %s30, %s31
      %p35 = pneg %p29
      %p36 = scmp.eq.s32.totalorder %s20, 1
      %p37 = por %p35, %p36
      %p38 = scmp.ne.s32.totalorder %s30, %s33
      %p39 = scmp.eq.s32.totalorder %s20, 0
      %p40 = por %p38, %p39
      %p41 = scmp.ne.s32.totalorder %s30, %s33
      %p42 = scmp.eq.s32.totalorder %s25, 1
      %p43 = por %p41, %p42
      %p44 = scmp.ne.s32.totalorder %s33, %s34
      %p45 = scmp.eq.s32.totalorder %s25, 0
      %p46 = por %p44, %p45
      %p47 = scmp.ne.s32.totalorder %s33, %s34
      %p48 = scmp.eq.s32.totalorder %s26, 1
      %p49 = por %p47, %p48
      %p51 = scmp.ne.s32.totalorder %s34, %s50
      %p52 = scmp.eq.s32.totalorder %s26, 0
      %p53 = por %p51, %p52
      %s55 = sadd.s32 %s54, 1
      %p58 = scmp.eq.s32.totalorder %s20, 1
      %p59 = scmp.ne.s32.totalorder %s54, %s56
      %p60 = scmp.eq.s32.totalorder %s20, 0
      %p61 = por %p59, %p60
      %p62 = scmp.ne.s32.totalorder %s54, %s56
      %p63 = scmp.eq.s32.totalorder %s25, 1
      %p64 = por %p62, %p63
      %p65 = scmp.ne.s32.totalorder %s56, %s57
      %p66 = scmp.eq.s32.totalorder %s25, 0
      %p67 = por %p65, %p66
      %p68 = scmp.ne.s32.totalorder %s56, %s57
      %p69 = scmp.eq.s32.totalorder %s26, 1
      %p70 = por %p68, %p69
      %p72 = scmp.ne.s32.totalorder %s57, %s71
      %p73 = scmp.eq.s32.totalorder %s26, 0
      %p74 = por %p72, %p73
      %s76 = sadd.s32 %s75, 1
      %p79 = scmp.eq.s32.totalorder %s20, 1
      %p80 = scmp.ne.s32.totalorder %s75, %s77
      %p81 = scmp.eq.s32.totalorder %s20, 0
      %p82 = por %p80, %p81
      %p83 = scmp.ne.s32.totalorder %s75, %s77
      %p84 = scmp.eq.s32.totalorder %s25, 1
      %p85 = por %p83, %p84
      %p86 = scmp.ne.s32.totalorder %s77, %s78
      %p87 = scmp.eq.s32.totalorder %s25, 0
      %p88 = por %p86, %p87
      %p89 = scmp.ne.s32.totalorder %s77, %s78
      %p90 = scmp.eq.s32.totalorder %s26, 1
      %p91 = por %p89, %p90
      %p93 = scmp.ne.s32.totalorder %s78, %s92
      %p94 = scmp.eq.s32.totalorder %s26, 0
      %p95 = por %p93, %p94
      %s97 = sadd.s32 %s96, 1
      %p100 = scmp.eq.s32.totalorder %s20, 1
      %p101 = scmp.ne.s32.totalorder %s96, %s98
      %p102 = scmp.eq.s32.totalorder %s20, 0
      %p103 = por %p101, %p102
      %p104 = scmp.ne.s32.totalorder %s96, %s98
      %p105 = scmp.eq.s32.totalorder %s25, 1
      %p106 = por %p104, %p105
      %p107 = scmp.ne.s32.totalorder %s98, %s99
      %p108 = scmp.eq.s32.totalorder %s25, 0
      %p109 = por %p107, %p108
      %p110 = scmp.ne.s32.totalorder %s98, %s99
      %p111 = scmp.eq.s32.totalorder %s26, 1
      %p112 = por %p110, %p111
      %p114 = scmp.ne.s32.totalorder %s99, %s113
      %p115 = scmp.eq.s32.totalorder %s26, 0
      %p116 = por %p114, %p115
      %s118 = sadd.s32 %s117, 1
      %p121 = scmp.eq.s32.totalorder %s20, 1
      %p122 = scmp.ne.s32.totalorder %s117, %s119
      %p123 = scmp.eq.s32.totalorder %s20, 0
      %p124 = por %p122, %p123
      %p125 = scmp.ne.s32.totalorder %s117, %s119
      %p126 = scmp.eq.s32.totalorder %s25, 1
      %p127 = por %p125, %p126
      %p128 = scmp.ne.s32.totalorder %s119, %s120
      %p129 = scmp.eq.s32.totalorder %s25, 0
      %p130 = por %p128, %p129
      %p131 = scmp.ne.s32.totalorder %s119, %s120
      %p132 = scmp.eq.s32.totalorder %s26, 1
      %p133 = por %p131, %p132
      %p135 = scmp.ne.s32.totalorder %s120, %s134
      %p136 = scmp.eq.s32.totalorder %s26, 0
      %p137 = por %p135, %p136
      %s139 = sadd.s32 %s138, 1
      %p142 = scmp.eq.s32.totalorder %s20, 1
      %p143 = scmp.ne.s32.totalorder %s138, %s140
      %p144 = scmp.eq.s32.totalorder %s20, 0
      %p145 = por %p143, %p144
      %p146 = scmp.ne.s32.totalorder %s138, %s140
      %p147 = scmp.eq.s32.totalorder %s25, 1
      %p148 = por %p146, %p147
      %p149 = scmp.ne.s32.totalorder %s140, %s141
      %p150 = scmp.eq.s32.totalorder %s25, 0
      %p151 = por %p149, %p150
      %p152 = scmp.ne.s32.totalorder %s140, %s141
      %p153 = scmp.eq.s32.totalorder %s26, 1
      %p154 = por %p152, %p153
      %p156 = scmp.ne.s32.totalorder %s141, %s155
      %p157 = scmp.eq.s32.totalorder %s26, 0
      %p158 = por %p156, %p157
      %s160 = sadd.s32 %s159, 1
      %p163 = scmp.eq.s32.totalorder %s20, 1
      %p164 = scmp.ne.s32.totalorder %s159, %s161
      %p165 = scmp.eq.s32.totalorder %s20, 0
      %p166 = por %p164, %p165
      %p167 = scmp.ne.s32.totalorder %s159, %s161
      %p168 = scmp.eq.s32.totalorder %s25, 1
      %p169 = por %p167, %p168
      %p170 = scmp.ne.s32.totalorder %s161, %s162
      %p171 = scmp.eq.s32.totalorder %s25, 0
      %p172 = por %p170, %p171
      %p173 = scmp.ne.s32.totalorder %s161, %s162
      %p174 = scmp.eq.s32.totalorder %s26, 1
      %p175 = por %p173, %p174
      %p177 = scmp.ne.s32.totalorder %s162, %s176
      %p178 = scmp.eq.s32.totalorder %s26, 0
      %p179 = por %p177, %p178
      %s180 = ssub.s32 %s20, %s27
      %p181 = scmp.eq.s32.totalorder %s180, 0
      %s183 = sadd.s32 %s182, 1
      %s184 = scalar_select %p181, %s182, %s183
      %p187 = pneg %p181
      %p188 = scmp.eq.s32.totalorder %s20, 1
      %p189 = por %p187, %p188
      %p190 = scmp.ne.s32.totalorder %s182, %s185
      %p191 = scmp.eq.s32.totalorder %s20, 0
      %p192 = por %p190, %p191
      %p193 = scmp.ne.s32.totalorder %s182, %s185
      %p194 = scmp.eq.s32.totalorder %s25, 1
      %p195 = por %p193, %p194
      %p196 = scmp.ne.s32.totalorder %s185, %s186
      %p197 = scmp.eq.s32.totalorder %s25, 0
      %p198 = por %p196, %p197
      %p199 = scmp.ne.s32.totalorder %s185, %s186
      %p200 = scmp.eq.s32.totalorder %s26, 1
      %p201 = por %p199, %p200
      %p203 = scmp.ne.s32.totalorder %s186, %s202
      %p204 = scmp.eq.s32.totalorder %s26, 0
      %p205 = por %p203, %p204
      %p206 = scmp.le.s32.totalorder 1, %s20
      %p207 = scmp.lt.s32.totalorder %s20, 3
      %p208 = pnand %p206, %p207
      %p209 = pneg %p208
      // Predicated region
      $region9: #{tpu_custom_call.1} parent=5 // pred_check
        _
      $region10: #{tpu_custom_call.1} parent=5 // pred_check_branch
        %211 = sbr.rel (%p208) target = $region12
      $region11: #{tpu_custom_call.1} parent=5 // pred_region
        %s212 = ssub.s32 %s20, 1
        // Predicated region
        $region13: #{tpu_custom_call.1} parent=11 // pred_check
          %p213 = pneg %p67
        $region14: #{tpu_custom_call.1} parent=11 // pred_check_branch
          %215 = sbr.rel (%p213) target = $region16
        $region15: #{tpu_custom_call.1} parent=11 // pred_region
          %s217 = ssub.s32 18432, 18432
          %218 = vsyncadd [#allocation9], %s217
          %s219 = sshll.u32 [#allocation8], 4
          %s220 = int_to_ptr.vmem [resolvable:$true] %s219
          %225 = dma.hbm_to_vmem [thread:$0]  %s1, 18432, %s220, [#allocation9], 128, 128, 8
        $region16: #{tpu_custom_call.1} parent=11 // pred_fallthru
          _
        // Predicated region
        $region17: #{tpu_custom_call.1} parent=11 // pred_check
          %p226 = pneg %p88
        $region18: #{tpu_custom_call.1} parent=11 // pred_check_branch
          %228 = sbr.rel (%p226) target = $region20
        $region19: #{tpu_custom_call.1} parent=11 // pred_region
          _
        $region20: #{tpu_custom_call.1} parent=11 // pred_fallthru
          _
        // Predicated region
        $region21: #{tpu_custom_call.1} parent=11 // pred_check
          %p229 = pneg %p109
        $region22: #{tpu_custom_call.1} parent=11 // pred_check_branch
          %231 = sbr.rel (%p229) target = $region24
        $region23: #{tpu_custom_call.1} parent=11 // pred_region
          _
        $region24: #{tpu_custom_call.1} parent=11 // pred_fallthru
          _
        // Predicated region
        $region25: #{tpu_custom_call.1} parent=11 // pred_check
          %p232 = pneg %p130
        $region26: #{tpu_custom_call.1} parent=11 // pred_check_branch
          %234 = sbr.rel (%p232) target = $region28
        $region27: #{tpu_custom_call.1} parent=11 // pred_region
          %s236 = ssub.s32 18432, 18432
          %237 = vsyncadd [#allocation9], %s236
          %s238 = sshll.u32 [#allocation10], 4
          %s239 = int_to_ptr.vmem [resolvable:$true] %s238
          %244 = dma.hbm_to_vmem [thread:$0]  %s4, 18432, %s239, [#allocation9], 128, 128, 8
        $region28: #{tpu_custom_call.1} parent=11 // pred_fallthru
          _
        // Predicated region
        $region29: #{tpu_custom_call.1} parent=11 // pred_check
          %p245 = pneg %p151
        $region30: #{tpu_custom_call.1} parent=11 // pred_check_branch
          %247 = sbr.rel (%p245) target = $region32
        $region31: #{tpu_custom_call.1} parent=11 // pred_region
          _
        $region32: #{tpu_custom_call.1} parent=11 // pred_fallthru
          _
        // Predicated region
        $region33: #{tpu_custom_call.1} parent=11 // pred_check
          %p248 = pneg %p172
        $region34: #{tpu_custom_call.1} parent=11 // pred_check_branch
          %250 = sbr.rel (%p248) target = $region36
        $region35: #{tpu_custom_call.1} parent=11 // pred_region
          _
        $region36: #{tpu_custom_call.1} parent=11 // pred_fallthru
          _
      $region12: #{tpu_custom_call.1} parent=5 // pred_fallthru
        _
      %p251 = scmp.lt.s32.totalorder %s20, 2
      // Predicated region
      $region37: #{tpu_custom_call.1} parent=5 // pred_check
        %p252 = pneg %p251
      $region38: #{tpu_custom_call.1} parent=5 // pred_check_branch
        %254 = sbr.rel (%p252) target = $region40
      $region39: #{tpu_custom_call.1} parent=5 // pred_region
        // Predicated region
        $region41: #{tpu_custom_call.1} parent=39 // pred_check
          %p255 = pneg %p40
        $region42: #{tpu_custom_call.1} parent=39 // pred_check_branch
          %257 = sbr.rel (%p255) target = $region44
        $region43: #{tpu_custom_call.1} parent=39 // pred_region
          %s258 = sand.u32 %s30, 1
          %s259 = scalar_lea.sflag [#allocation6], %s258
          %s260 = sand.u32 %s30, 1
          %s261 = smul.addr %s260, 256
          %s262 = scalar_lea.vmem [#allocation5], %s261
          %s264 = ssub.s32 4096, 4096
          %265 = vsyncadd %s259, %s264
          %s266 = smul.addr %s20, 32
          %s267 = smul.addr %s266, 128
          %s268 = scalar_lea.hbm %s0, %s267
          %s269 = sshll.u32 %s262, 4
          %s270 = int_to_ptr.vmem [resolvable:$true] %s269
          %275 = dma.hbm_to_vmem [thread:$0]  %s268, 4096, %s270, %s259, 128, 128, 8
        $region44: #{tpu_custom_call.1} parent=39 // pred_fallthru
          _
      $region40: #{tpu_custom_call.1} parent=5 // pred_fallthru
        _
      %p276 = scmp.le.s32.totalorder 1, %s20
      %p277 = scmp.lt.s32.totalorder %s20, 3
      %p278 = pnand %p276, %p277
      %p279 = pneg %p278
      // Predicated region
      $region45: #{tpu_custom_call.1} parent=5 // pred_check
        _
      $region46: #{tpu_custom_call.1} parent=5 // pred_check_branch
        %281 = sbr.rel (%p278) target = $region48
      $region47: #{tpu_custom_call.1} parent=5 // pred_region
        %s282 = ssub.s32 %s20, 1
        %s283 = sand.u32 %s33, 1
        %s284 = scalar_lea.sflag [#allocation6], %s283
        %s285 = sand.u32 %s33, 1
        %s286 = smul.addr %s285, 256
        %s287 = scalar_lea.vmem [#allocation5], %s286
        // Predicated region
        $region49: #{tpu_custom_call.1} parent=47 // pred_check
          %p288 = pneg %p46
        $region50: #{tpu_custom_call.1} parent=47 // pred_check_branch
          %290 = sbr.rel (%p288) target = $region52
        $region51: #{tpu_custom_call.1} parent=47 // pred_region
          %291 = dma.done %s284, 4096
        $region52: #{tpu_custom_call.1} parent=47 // pred_fallthru
          _
        // Predicated region
        $region53: #{tpu_custom_call.1} parent=47 // pred_check
          %p292 = pneg %p67
        $region54: #{tpu_custom_call.1} parent=47 // pred_check_branch
          %294 = sbr.rel (%p292) target = $region56
        $region55: #{tpu_custom_call.1} parent=47 // pred_region
          %295 = dma.done [#allocation9], 18432
        $region56: #{tpu_custom_call.1} parent=47 // pred_fallthru
          _
        // Predicated region
        $region57: #{tpu_custom_call.1} parent=47 // pred_check
          %p296 = pneg %p130
        $region58: #{tpu_custom_call.1} parent=47 // pred_check_branch
          %298 = sbr.rel (%p296) target = $region60
        $region59: #{tpu_custom_call.1} parent=47 // pred_region
          %299 = dma.done [#allocation9], 18432
        $region60: #{tpu_custom_call.1} parent=47 // pred_fallthru
          _
        %s300 = sand.u32 %s33, 1
        %s301 = scalar_lea.sflag [#allocation6], %s300
        %s302 = sand.u32 %s33, 1
        %s303 = smul.addr %s302, 256
        %s304 = scalar_lea.vmem [#allocation5], %s303
        %p305 = pneg %p46
        %p306 = pneg %p43
        %p307 = pneg %p67
        %p308 = pneg %p64
        %p309 = pneg %p88
        %p310 = pneg %p85
        %p311 = pneg %p109
        %p312 = pneg %p106
        %p313 = pneg %p130
        %p314 = pneg %p127
        %p315 = pneg %p151
        %p316 = pneg %p148
        %p317 = pneg %p172
        %p318 = pneg %p169
        %p319 = pneg %p198
        %p320 = pneg %p195
        %s321 = sand.u32 %s185, 1
        %s322 = scalar_lea.sflag [#allocation7], %s321
        %s323 = sand.u32 %s185, 1
        %s324 = smul.addr %s323, 256
        %s325 = scalar_lea.vmem [#allocation11], %s324
        %326 = vst [vmem:[#allocation2] sm:$0xff] 0.0
        %327 = vst [vmem:[#allocation2 + $0x8] sm:$0xff] 0.0
        %328 = vst [vmem:[#allocation2 + $0x10] sm:$0x3] 0.0
        %329 = vst [vmem:[#allocation2 + $0x18] sm:$0xff] 0.0
        %330 = vst [vmem:[#allocation2 + $0x20] sm:$0xff] 0.0
        %331 = vst [vmem:[#allocation2 + $0x28] sm:$0x3] 0.0
        %332 = vst [vmem:[#allocation2 + $0x30] sm:$0xff] 0.0
        %333 = vst [vmem:[#allocation2 + $0x38] sm:$0xff] 0.0
        %334 = vst [vmem:[#allocation2 + $0x40] sm:$0x3] 0.0
        %335 = vst [vmem:[#allocation2 + $0x48] sm:$0xff] 0.0
        %336 = vst [vmem:[#allocation2 + $0x50] sm:$0xff] 0.0
        %337 = vst [vmem:[#allocation2 + $0x58] sm:$0x3] 0.0
        %338 = vst [vmem:[#allocation2 + $0x60] sm:$0xff] 0.0
        %339 = vst [vmem:[#allocation2 + $0x68] sm:$0xff] 0.0
        %340 = vst [vmem:[#allocation2 + $0x70] sm:$0x3] 0.0
        %341 = vst [vmem:[#allocation2 + $0x78] sm:$0xff] 0.0
        %342 = vst [vmem:[#allocation2 + $0x80] sm:$0xff] 0.0
        %343 = vst [vmem:[#allocation2 + $0x88] sm:$0x3] 0.0
        %344 = vst [vmem:[#allocation2 + $0x90] sm:$0xff] 0.0
        %345 = vst [vmem:[#allocation2 + $0x98] sm:$0xff] 0.0
        %346 = vst [vmem:[#allocation2 + $0xa0] sm:$0x3] 0.0
        %347 = vst [vmem:[#allocation2 + $0xa8] sm:$0xff] 0.0
        %348 = vst [vmem:[#allocation2 + $0xb0] sm:$0xff] 0.0
        %349 = vst [vmem:[#allocation2 + $0xb8] sm:$0x3] 0.0
        %350 = vst [vmem:[#allocation2 + $0xc0] sm:$0xff] 0.0
        %351 = vst [vmem:[#allocation2 + $0xc8] sm:$0xff] 0.0
        %352 = vst [vmem:[#allocation2 + $0xd0] sm:$0x3] 0.0
        %353 = vst [vmem:[#allocation2 + $0xd8] sm:$0xff] 0.0
        %354 = vst [vmem:[#allocation2 + $0xe0] sm:$0xff] 0.0
        %355 = vst [vmem:[#allocation2 + $0xe8] sm:$0x3] 0.0
        %356 = vst [vmem:[#allocation2 + $0xf0] sm:$0xff] 0.0
        %357 = vst [vmem:[#allocation2 + $0xf8] sm:$0xff] 0.0
        %358 = vst [vmem:[#allocation2 + $0x100] sm:$0x3] 0.0
        %359 = vst [vmem:[#allocation2 + $0x108] sm:$0xff] 0.0
        %360 = vst [vmem:[#allocation2 + $0x110] sm:$0xff] 0.0
        %361 = vst [vmem:[#allocation2 + $0x118] sm:$0x3] 0.0
        %362 = vst [vmem:[#allocation2 + $0x120] sm:$0xff] 0.0
        %363 = vst [vmem:[#allocation2 + $0x128] sm:$0xff] 0.0
        %364 = vst [vmem:[#allocation2 + $0x130] sm:$0x3] 0.0
        %365 = vst [vmem:[#allocation2 + $0x138] sm:$0xff] 0.0
        %366 = vst [vmem:[#allocation2 + $0x140] sm:$0xff] 0.0
        %367 = vst [vmem:[#allocation2 + $0x148] sm:$0x3] 0.0
        %368 = vst [vmem:[#allocation2 + $0x150] sm:$0xff] 0.0
        %369 = vst [vmem:[#allocation2 + $0x158] sm:$0xff] 0.0
        %370 = vst [vmem:[#allocation2 + $0x160] sm:$0x3] 0.0
        %371 = vst [vmem:[#allocation2 + $0x168] sm:$0xff] 0.0
        %372 = vst [vmem:[#allocation2 + $0x170] sm:$0xff] 0.0
        %373 = vst [vmem:[#allocation2 + $0x178] sm:$0x3] 0.0
        %374 = vst [vmem:[#allocation2 + $0x180] sm:$0xff] 0.0
        %375 = vst [vmem:[#allocation2 + $0x188] sm:$0xff] 0.0
        %376 = vst [vmem:[#allocation2 + $0x190] sm:$0x3] 0.0
        %377 = vst [vmem:[#allocation2 + $0x198] sm:$0xff] 0.0
        %378 = vst [vmem:[#allocation2 + $0x1a0] sm:$0xff] 0.0
        %379 = vst [vmem:[#allocation2 + $0x1a8] sm:$0x3] 0.0
        %v380 = vld [vmem:[%s287] sm:$0xff]
        %v381 = vld [vmem:[%s287 + $0x8] sm:$0xff]
        %v382 = vld [vmem:[%s287 + $0x10] sm:$0xff]
        %v383 = vld [vmem:[%s287 + $0x18] sm:$0xff]
        %v384 = vld [vmem:[%s287 + $0x20] sm:$0xff]
        %v385 = vld [vmem:[%s287 + $0x28] sm:$0xff]
        %v386 = vld [vmem:[%s287 + $0x30] sm:$0xff]
        %v387 = vld [vmem:[%s287 + $0x38] sm:$0xff]
        %v388 = vld [vmem:[%s287 + $0x40] sm:$0xff]
        %v389 = vld [vmem:[%s287 + $0x48] sm:$0xff]
        %v390 = vld [vmem:[%s287 + $0x50] sm:$0xff]
        %v391 = vld [vmem:[%s287 + $0x58] sm:$0xff]
        %v392 = vld [vmem:[%s287 + $0x60] sm:$0xff]
        %v393 = vld [vmem:[%s287 + $0x68] sm:$0xff]
        %v394 = vld [vmem:[%s287 + $0x70] sm:$0xff]
        %v395 = vld [vmem:[%s287 + $0x78] sm:$0xff]
        %v396 = vld [vmem:[%s287 + $0x80] sm:$0xff]
        %v397 = vld [vmem:[%s287 + $0x88] sm:$0xff]
        %v398 = vld [vmem:[%s287 + $0x90] sm:$0xff]
        %v399 = vld [vmem:[%s287 + $0x98] sm:$0xff]
        %v400 = vld [vmem:[%s287 + $0xa0] sm:$0xff]
        %v401 = vld [vmem:[%s287 + $0xa8] sm:$0xff]
        %v402 = vld [vmem:[%s287 + $0xb0] sm:$0xff]
        %v403 = vld [vmem:[%s287 + $0xb8] sm:$0xff]
        %v404 = vld [vmem:[%s287 + $0xc0] sm:$0xff]
        %v405 = vld [vmem:[%s287 + $0xc8] sm:$0xff]
        %v406 = vld [vmem:[%s287 + $0xd0] sm:$0xff]
        %v407 = vld [vmem:[%s287 + $0xd8] sm:$0xff]
        %v408 = vld [vmem:[%s287 + $0xe0] sm:$0xff]
        %v409 = vld [vmem:[%s287 + $0xe8] sm:$0xff]
        %v410 = vld [vmem:[%s287 + $0xf0] sm:$0xff]
        %v411 = vld [vmem:[%s287 + $0xf8] sm:$0xff]
        %s412 = scalar_lea.vmem [#allocation2], 24
        %413 = vst [vmem:[%s412 + $0x1] sm:$0xff] %v380
        %414 = vst [vmem:[%s412 + $0x9] sm:$0xff] %v381
        %415 = vst [vmem:[%s412 + $0x19] sm:$0xff] %v382
        %416 = vst [vmem:[%s412 + $0x21] sm:$0xff] %v383
        %417 = vst [vmem:[%s412 + $0x31] sm:$0xff] %v384
        %418 = vst [vmem:[%s412 + $0x39] sm:$0xff] %v385
        %419 = vst [vmem:[%s412 + $0x49] sm:$0xff] %v386
        %420 = vst [vmem:[%s412 + $0x51] sm:$0xff] %v387
        %421 = vst [vmem:[%s412 + $0x61] sm:$0xff] %v388
        %422 = vst [vmem:[%s412 + $0x69] sm:$0xff] %v389
        %423 = vst [vmem:[%s412 + $0x79] sm:$0xff] %v390
        %424 = vst [vmem:[%s412 + $0x81] sm:$0xff] %v391
        %425 = vst [vmem:[%s412 + $0x91] sm:$0xff] %v392
        %426 = vst [vmem:[%s412 + $0x99] sm:$0xff] %v393
        %427 = vst [vmem:[%s412 + $0xa9] sm:$0xff] %v394
        %428 = vst [vmem:[%s412 + $0xb1] sm:$0xff] %v395
        %429 = vst [vmem:[%s412 + $0xc1] sm:$0xff] %v396
        %430 = vst [vmem:[%s412 + $0xc9] sm:$0xff] %v397
        %431 = vst [vmem:[%s412 + $0xd9] sm:$0xff] %v398
        %432 = vst [vmem:[%s412 + $0xe1] sm:$0xff] %v399
        %433 = vst [vmem:[%s412 + $0xf1] sm:$0xff] %v400
        %434 = vst [vmem:[%s412 + $0xf9] sm:$0xff] %v401
        %435 = vst [vmem:[%s412 + $0x109] sm:$0xff] %v402
        %436 = vst [vmem:[%s412 + $0x111] sm:$0xff] %v403
        %437 = vst [vmem:[%s412 + $0x121] sm:$0xff] %v404
        %438 = vst [vmem:[%s412 + $0x129] sm:$0xff] %v405
        %439 = vst [vmem:[%s412 + $0x139] sm:$0xff] %v406
        %440 = vst [vmem:[%s412 + $0x141] sm:$0xff] %v407
        %441 = vst [vmem:[%s412 + $0x151] sm:$0xff] %v408
        %442 = vst [vmem:[%s412 + $0x159] sm:$0xff] %v409
        %443 = vst [vmem:[%s412 + $0x169] sm:$0xff] %v410
        %444 = vst [vmem:[%s412 + $0x171] sm:$0xff] %v411
        %445 = vst [vmem:[#allocation4] sm:$0xff] 0.0
        %446 = vst [vmem:[#allocation4 + $0x8] sm:$0xff] 0.0
        %447 = vst [vmem:[#allocation4 + $0x10] sm:$0xff] 0.0
        %448 = vst [vmem:[#allocation4 + $0x18] sm:$0xff] 0.0
        %449 = vst [vmem:[#allocation4 + $0x20] sm:$0xff] 0.0
        %450 = vst [vmem:[#allocation4 + $0x28] sm:$0xff] 0.0
        %451 = vst [vmem:[#allocation4 + $0x30] sm:$0xff] 0.0
        %452 = vst [vmem:[#allocation4 + $0x38] sm:$0xff] 0.0
        %453 = vst [vmem:[#allocation4 + $0x40] sm:$0xff] 0.0
        %454 = vst [vmem:[#allocation4 + $0x48] sm:$0xff] 0.0
        %455 = vst [vmem:[#allocation4 + $0x50] sm:$0xff] 0.0
        %456 = vst [vmem:[#allocation4 + $0x58] sm:$0xff] 0.0
        %457 = vst [vmem:[#allocation4 + $0x60] sm:$0xff] 0.0
        %458 = vst [vmem:[#allocation4 + $0x68] sm:$0xff] 0.0
        %459 = vst [vmem:[#allocation4 + $0x70] sm:$0xff] 0.0
        %460 = vst [vmem:[#allocation4 + $0x78] sm:$0xff] 0.0
        %461 = vst [vmem:[#allocation4 + $0x80] sm:$0xff] 0.0
        %462 = vst [vmem:[#allocation4 + $0x88] sm:$0xff] 0.0
        %463 = vst [vmem:[#allocation4 + $0x90] sm:$0xff] 0.0
        %464 = vst [vmem:[#allocation4 + $0x98] sm:$0xff] 0.0
        %465 = vst [vmem:[#allocation4 + $0xa0] sm:$0xff] 0.0
        %466 = vst [vmem:[#allocation4 + $0xa8] sm:$0xff] 0.0
        %467 = vst [vmem:[#allocation4 + $0xb0] sm:$0xff] 0.0
        %468 = vst [vmem:[#allocation4 + $0xb8] sm:$0xff] 0.0
        %469 = vst [vmem:[#allocation4 + $0xc0] sm:$0xff] 0.0
        %470 = vst [vmem:[#allocation4 + $0xc8] sm:$0xff] 0.0
        %471 = vst [vmem:[#allocation4 + $0xd0] sm:$0xff] 0.0
        %472 = vst [vmem:[#allocation4 + $0xd8] sm:$0xff] 0.0
        %473 = vst [vmem:[#allocation4 + $0xe0] sm:$0xff] 0.0
        %474 = vst [vmem:[#allocation4 + $0xe8] sm:$0xff] 0.0
        %475 = vst [vmem:[#allocation4 + $0xf0] sm:$0xff] 0.0
        %476 = vst [vmem:[#allocation4 + $0xf8] sm:$0xff] 0.0
        %v477 = vld [vmem:[#allocation2] sm:$0xff]
        %v478 = vld [vmem:[#allocation2 + $0x8] sm:$0xff]
        %v479 = vld [vmem:[#allocation2 + $0x18] sm:$0xff]
        %v480 = vld [vmem:[#allocation2 + $0x20] sm:$0xff]
        %v481 = vld [vmem:[#allocation2 + $0x30] sm:$0xff]
        %v482 = vld [vmem:[#allocation2 + $0x38] sm:$0xff]
        %v483 = vld [vmem:[#allocation2 + $0x48] sm:$0xff]
        %v484 = vld [vmem:[#allocation2 + $0x50] sm:$0xff]
        %v485 = vld [vmem:[#allocation2 + $0x60] sm:$0xff]
        %v486 = vld [vmem:[#allocation2 + $0x68] sm:$0xff]
        %v487 = vld [vmem:[#allocation2 + $0x78] sm:$0xff]
        %v488 = vld [vmem:[#allocation2 + $0x80] sm:$0xff]
        %v489 = vld [vmem:[#allocation2 + $0x90] sm:$0xff]
        %v490 = vld [vmem:[#allocation2 + $0x98] sm:$0xff]
        %v491 = vld [vmem:[#allocation2 + $0xa8] sm:$0xff]
        %v492 = vld [vmem:[#allocation2 + $0xb0] sm:$0xff]
        %v493 = vld [vmem:[#allocation2 + $0xc0] sm:$0xff]
        %v494 = vld [vmem:[#allocation2 + $0xc8] sm:$0xff]
        %v495 = vld [vmem:[#allocation2 + $0xd8] sm:$0xff]
        %v496 = vld [vmem:[#allocation2 + $0xe0] sm:$0xff]
        %v497 = vld [vmem:[#allocation2 + $0xf0] sm:$0xff]
        %v498 = vld [vmem:[#allocation2 + $0xf8] sm:$0xff]
        %v499 = vld [vmem:[#allocation2 + $0x108] sm:$0xff]
        %v500 = vld [vmem:[#allocation2 + $0x110] sm:$0xff]
        %v501 = vld [vmem:[#allocation2 + $0x120] sm:$0xff]
        %v502 = vld [vmem:[#allocation2 + $0x128] sm:$0xff]
        %v503 = vld [vmem:[#allocation2 + $0x138] sm:$0xff]
        %v504 = vld [vmem:[#allocation2 + $0x140] sm:$0xff]
        %v505 = vld [vmem:[#allocation2 + $0x150] sm:$0xff]
        %v506 = vld [vmem:[#allocation2 + $0x158] sm:$0xff]
        %v507 = vld [vmem:[#allocation2 + $0x168] sm:$0xff]
        %v508 = vld [vmem:[#allocation2 + $0x170] sm:$0xff]
        %v509 = vld [vmem:[#allocation2 + $0x1] sm:$0xff]
        %v510 = vld [vmem:[#allocation2 + $0x9] sm:$0xff]
        %v511 = vld [vmem:[#allocation2 + $0x19] sm:$0xff]
        %v512 = vld [vmem:[#allocation2 + $0x21] sm:$0xff]
        %v513 = vld [vmem:[#allocation2 + $0x31] sm:$0xff]
        %v514 = vld [vmem:[#allocation2 + $0x39] sm:$0xff]
        %v515 = vld [vmem:[#allocation2 + $0x49] sm:$0xff]
        %v516 = vld [vmem:[#allocation2 + $0x51] sm:$0xff]
        %v517 = vld [vmem:[#allocation2 + $0x61] sm:$0xff]
        %v518 = vld [vmem:[#allocation2 + $0x69] sm:$0xff]
        %v519 = vld [vmem:[#allocation2 + $0x79] sm:$0xff]
        %v520 = vld [vmem:[#allocation2 + $0x81] sm:$0xff]
        %v521 = vld [vmem:[#allocation2 + $0x91] sm:$0xff]
        %v522 = vld [vmem:[#allocation2 + $0x99] sm:$0xff]
        %v523 = vld [vmem:[#allocation2 + $0xa9] sm:$0xff]
        %v524 = vld [vmem:[#allocation2 + $0xb1] sm:$0xff]
        %v525 = vld [vmem:[#allocation2 + $0xc1] sm:$0xff]
        %v526 = vld [vmem:[#allocation2 + $0xc9] sm:$0xff]
        %v527 = vld [vmem:[#allocation2 + $0xd9] sm:$0xff]
        %v528 = vld [vmem:[#allocation2 + $0xe1] sm:$0xff]
        %v529 = vld [vmem:[#allocation2 + $0xf1] sm:$0xff]
        %v530 = vld [vmem:[#allocation2 + $0xf9] sm:$0xff]
        %v531 = vld [vmem:[#allocation2 + $0x109] sm:$0xff]
        %v532 = vld [vmem:[#allocation2 + $0x111] sm:$0xff]
        %v533 = vld [vmem:[#allocation2 + $0x121] sm:$0xff]
        %v534 = vld [vmem:[#allocation2 + $0x129] sm:$0xff]
        %v535 = vld [vmem:[#allocation2 + $0x139] sm:$0xff]
        %v536 = vld [vmem:[#allocation2 + $0x141] sm:$0xff]
        %v537 = vld [vmem:[#allocation2 + $0x151] sm:$0xff]
        %v538 = vld [vmem:[#allocation2 + $0x159] sm:$0xff]
        %v539 = vld [vmem:[#allocation2 + $0x169] sm:$0xff]
        %v540 = vld [vmem:[#allocation2 + $0x171] sm:$0xff]
        %v541 = vld [vmem:[#allocation2 + $0x2] sm:$0xff]
        %v542 = vld [vmem:[#allocation2 + $0xa] sm:$0xff]
        %v543 = vld [vmem:[#allocation2 + $0x1a] sm:$0xff]
        %v544 = vld [vmem:[#allocation2 + $0x22] sm:$0xff]
        %v545 = vld [vmem:[#allocation2 + $0x32] sm:$0xff]
        %v546 = vld [vmem:[#allocation2 + $0x3a] sm:$0xff]
        %v547 = vld [vmem:[#allocation2 + $0x4a] sm:$0xff]
        %v548 = vld [vmem:[#allocation2 + $0x52] sm:$0xff]
        %v549 = vld [vmem:[#allocation2 + $0x62] sm:$0xff]
        %v550 = vld [vmem:[#allocation2 + $0x6a] sm:$0xff]
        %v551 = vld [vmem:[#allocation2 + $0x7a] sm:$0xff]
        %v552 = vld [vmem:[#allocation2 + $0x82] sm:$0xff]
        %v553 = vld [vmem:[#allocation2 + $0x92] sm:$0xff]
        %v554 = vld [vmem:[#allocation2 + $0x9a] sm:$0xff]
        %v555 = vld [vmem:[#allocation2 + $0xaa] sm:$0xff]
        %v556 = vld [vmem:[#allocation2 + $0xb2] sm:$0xff]
        %v557 = vld [vmem:[#allocation2 + $0xc2] sm:$0xff]
        %v558 = vld [vmem:[#allocation2 + $0xca] sm:$0xff]
        %v559 = vld [vmem:[#allocation2 + $0xda] sm:$0xff]
        %v560 = vld [vmem:[#allocation2 + $0xe2] sm:$0xff]
        %v561 = vld [vmem:[#allocation2 + $0xf2] sm:$0xff]
        %v562 = vld [vmem:[#allocation2 + $0xfa] sm:$0xff]
        %v563 = vld [vmem:[#allocation2 + $0x10a] sm:$0xff]
        %v564 = vld [vmem:[#allocation2 + $0x112] sm:$0xff]
        %v565 = vld [vmem:[#allocation2 + $0x122] sm:$0xff]
        %v566 = vld [vmem:[#allocation2 + $0x12a] sm:$0xff]
        %v567 = vld [vmem:[#allocation2 + $0x13a] sm:$0xff]
        %v568 = vld [vmem:[#allocation2 + $0x142] sm:$0xff]
        %v569 = vld [vmem:[#allocation2 + $0x152] sm:$0xff]
        %v570 = vld [vmem:[#allocation2 + $0x15a] sm:$0xff]
        %v571 = vld [vmem:[#allocation2 + $0x16a] sm:$0xff]
        %v572 = vld [vmem:[#allocation2 + $0x172] sm:$0xff]
        %v573 = vld [vmem:[#allocation4] sm:$0xff]
        %v574 = vld [vmem:[#allocation4 + $0x8] sm:$0xff]
        %v575 = vld [vmem:[#allocation4 + $0x10] sm:$0xff]
        %v576 = vld [vmem:[#allocation4 + $0x18] sm:$0xff]
        %v577 = vld [vmem:[#allocation4 + $0x20] sm:$0xff]
        %v578 = vld [vmem:[#allocation4 + $0x28] sm:$0xff]
        %v579 = vld [vmem:[#allocation4 + $0x30] sm:$0xff]
        %v580 = vld [vmem:[#allocation4 + $0x38] sm:$0xff]
        %v581 = vld [vmem:[#allocation4 + $0x40] sm:$0xff]
        %v582 = vld [vmem:[#allocation4 + $0x48] sm:$0xff]
        %v583 = vld [vmem:[#allocation4 + $0x50] sm:$0xff]
        %v584 = vld [vmem:[#allocation4 + $0x58] sm:$0xff]
        %v585 = vld [vmem:[#allocation4 + $0x60] sm:$0xff]
        %v586 = vld [vmem:[#allocation4 + $0x68] sm:$0xff]
        %v587 = vld [vmem:[#allocation4 + $0x70] sm:$0xff]
        %v588 = vld [vmem:[#allocation4 + $0x78] sm:$0xff]
        %v589 = vld [vmem:[#allocation4 + $0x80] sm:$0xff]
        %v590 = vld [vmem:[#allocation4 + $0x88] sm:$0xff]
        %v591 = vld [vmem:[#allocation4 + $0x90] sm:$0xff]
        %v592 = vld [vmem:[#allocation4 + $0x98] sm:$0xff]
        %v593 = vld [vmem:[#allocation4 + $0xa0] sm:$0xff]
        %v594 = vld [vmem:[#allocation4 + $0xa8] sm:$0xff]
        %v595 = vld [vmem:[#allocation4 + $0xb0] sm:$0xff]
        %v596 = vld [vmem:[#allocation4 + $0xb8] sm:$0xff]
        %v597 = vld [vmem:[#allocation4 + $0xc0] sm:$0xff]
        %v598 = vld [vmem:[#allocation4 + $0xc8] sm:$0xff]
        %v599 = vld [vmem:[#allocation4 + $0xd0] sm:$0xff]
        %v600 = vld [vmem:[#allocation4 + $0xd8] sm:$0xff]
        %v601 = vld [vmem:[#allocation4 + $0xe0] sm:$0xff]
        %v602 = vld [vmem:[#allocation4 + $0xe8] sm:$0xff]
        %v603 = vld [vmem:[#allocation4 + $0xf0] sm:$0xff]
        %v604 = vld [vmem:[#allocation4 + $0xf8] sm:$0xff]
        %v605 = vld [vmem:[#allocation8] sm:$0xff]
        %v606 = vld [vmem:[#allocation8 + $0x8] sm:$0xff]
        %v607 = vld [vmem:[#allocation8 + $0x10] sm:$0xff]
        %v608 = vld [vmem:[#allocation8 + $0x18] sm:$0xff]
        %v609 = vld [vmem:[#allocation8 + $0x20] sm:$0xff]
        %v610 = vld [vmem:[#allocation8 + $0x28] sm:$0xff]
        %v611 = vld [vmem:[#allocation8 + $0x30] sm:$0xff]
        %v612 = vld [vmem:[#allocation8 + $0x38] sm:$0xff]
        %v613 = vld [vmem:[#allocation8 + $0x40] sm:$0xff]
        %v614 = vld [vmem:[#allocation8 + $0x48] sm:$0xff]
        %v615 = vld [vmem:[#allocation8 + $0x50] sm:$0xff]
        %v616 = vld [vmem:[#allocation8 + $0x58] sm:$0xff]
        %v617 = vld [vmem:[#allocation8 + $0x60] sm:$0xff]
        %v618 = vld [vmem:[#allocation8 + $0x68] sm:$0xff]
        %v619 = vld [vmem:[#allocation8 + $0x70] sm:$0xff]
        %v620 = vld [vmem:[#allocation8 + $0x78] sm:$0xff]
        %v621 = vld [vmem:[#allocation8 + $0x80] sm:$0xff]
        %v622 = vld [vmem:[#allocation8 + $0x88] sm:$0xff]
        %v623 = vld [vmem:[#allocation8 + $0x90] sm:$0xff]
        %v624 = vld [vmem:[#allocation8 + $0x98] sm:$0xff]
        %v625 = vld [vmem:[#allocation8 + $0xa0] sm:$0xff]
        %v626 = vld [vmem:[#allocation8 + $0xa8] sm:$0xff]
        %v627 = vld [vmem:[#allocation8 + $0xb0] sm:$0xff]
        %v628 = vld [vmem:[#allocation8 + $0xb8] sm:$0xff]
        %v629 = vld [vmem:[#allocation8 + $0xc0] sm:$0xff]
        %v630 = vld [vmem:[#allocation8 + $0xc8] sm:$0xff]
        %v631 = vld [vmem:[#allocation8 + $0xd0] sm:$0xff]
        %v632 = vld [vmem:[#allocation8 + $0xd8] sm:$0xff]
        %v633 = vld [vmem:[#allocation8 + $0xe0] sm:$0xff]
        %v634 = vld [vmem:[#allocation8 + $0xe8] sm:$0xff]
        %v635 = vld [vmem:[#allocation8 + $0xf0] sm:$0xff]
        %v636 = vld [vmem:[#allocation8 + $0xf8] sm:$0xff]
        %v637 = vld [vmem:[#allocation8 + $0x100] sm:$0xff]
        %v638 = vld [vmem:[#allocation8 + $0x108] sm:$0xff]
        %v639 = vld [vmem:[#allocation8 + $0x110] sm:$0xff]
        %v640 = vld [vmem:[#allocation8 + $0x118] sm:$0xff]
        %v641 = vld [vmem:[#allocation8 + $0x120] sm:$0xff]
        %v642 = vld [vmem:[#allocation8 + $0x128] sm:$0xff]
        %v643 = vld [vmem:[#allocation8 + $0x130] sm:$0xff]
        %v644 = vld [vmem:[#allocation8 + $0x138] sm:$0xff]
        %v645 = vld [vmem:[#allocation8 + $0x140] sm:$0xff]
        %v646 = vld [vmem:[#allocation8 + $0x148] sm:$0xff]
        %v647 = vld [vmem:[#allocation8 + $0x150] sm:$0xff]
        %v648 = vld [vmem:[#allocation8 + $0x158] sm:$0xff]
        %v649 = vld [vmem:[#allocation8 + $0x160] sm:$0xff]
        %v650 = vld [vmem:[#allocation8 + $0x168] sm:$0xff]
        %v651 = vld [vmem:[#allocation8 + $0x170] sm:$0xff]
        %v652 = vld [vmem:[#allocation8 + $0x178] sm:$0xff]
        %653 = vmatprep.subr.mxu0 0.0
        %654 = vmatpush1.msra.mxu0 %v605
        %655 = vmatprep.subr.mxu0 0.0
        %656 = vmatpush1.msra.mxu0 %v606
        %657 = vmatprep.subr.mxu0 0.0
        %658 = vmatpush1.msra.mxu0 %v607
        %659 = vmatprep.subr.mxu0 0.0
        %660 = vmatpush1.msra.mxu0 %v608
        %661 = vmatprep.subr.mxu0 0.0
        %662 = vmatpush1.msra.mxu0 %v609
        %663 = vmatprep.subr.mxu0 0.0
        %664 = vmatpush1.msra.mxu0 %v610
        %665 = vmatprep.subr.mxu0 0.0
        %666 = vmatpush1.msra.mxu0 %v611
        %667 = vmatprep.subr.mxu0 0.0
        %668 = vmatpush1.msra.mxu0 %v612
        %669 = vmatprep.subr.mxu0 0.0
        %670 = vmatpush1.msra.mxu0 %v613
        %671 = vmatprep.subr.mxu0 0.0
        %672 = vmatpush1.msra.mxu0 %v614
        %673 = vmatprep.subr.mxu0 0.0
        %674 = vmatpush1.msra.mxu0 %v615
        %675 = vmatprep.subr.mxu0 0.0
        %676 = vmatpush1.msra.mxu0 %v616
        %677 = vmatprep.subr.mxu0 0.0
        %678 = vmatpush1.msra.mxu0 %v617
        %679 = vmatprep.subr.mxu0 0.0
        %680 = vmatpush1.msra.mxu0 %v618
        %681 = vmatprep.subr.mxu0 0.0
        %682 = vmatpush1.msra.mxu0 %v619
        %683 = vmatprep.subr.mxu0 0.0
        %684 = vmatpush1.msra.mxu0 %v620
        %685 = vmatprep.subr.mxu0 0.0
        %686 = vmatpush1.msra.mxu0 %v621
        %687 = vmatprep.subr.mxu0 0.0
        %688 = vmatpush1.msra.mxu0 %v622
        %689 = vmatprep.subr.mxu0 0.0
        %690 = vmatpush1.msra.mxu0 %v623
        %691 = vmatprep.subr.mxu0 0.0
        %692 = vmatpush1.msra.mxu0 %v624
        %693 = vmatprep.subr.mxu0 0.0
        %694 = vmatpush1.msra.mxu0 %v625
        %695 = vmatprep.subr.mxu0 0.0
        %696 = vmatpush1.msra.mxu0 %v626
        %697 = vmatprep.subr.mxu0 0.0
        %698 = vmatpush1.msra.mxu0 %v627
        %699 = vmatprep.subr.mxu0 0.0
        %700 = vmatpush1.msra.mxu0 %v628
        %701 = vmatprep.subr.mxu0 0.0
        %702 = vmatpush1.msra.mxu0 %v629
        %703 = vmatprep.subr.mxu0 0.0
        %704 = vmatpush1.msra.mxu0 %v630
        %705 = vmatprep.subr.mxu0 0.0
        %706 = vmatpush1.msra.mxu0 %v631
        %707 = vmatprep.subr.mxu0 0.0
        %708 = vmatpush1.msra.mxu0 %v632
        %709 = vmatprep.subr.mxu0 0.0
        %710 = vmatpush1.msra.mxu0 %v633
        %711 = vmatprep.subr.mxu0 0.0
        %712 = vmatpush1.msra.mxu0 %v634
        %713 = vmatprep.subr.mxu0 0.0
        %714 = vmatpush1.msra.mxu0 %v635
        %715 = vmatprep.subr.mxu0 0.0
        %716 = vmatpush1.msra.mxu0 %v636
        %717 = vmatprep.mubr.f32.mxu0 %v509
        %718 = vmatmul.mubr.f32.gmra.mrb[0].mxu0 %v477
        %v719 = vpop.f32.mrb[0].mxu0
        %v720 = vadd.f32 0.0, %v719
        %v721 = vpop.f32.mrb[0].mxu0
        %722 = vmatprep.mubr.f32.mxu0 %v510
        %723 = vmatmul.mubr.f32.gmra.mrb[0].mxu0 %v478
        %v724 = vpop.f32.mrb[0].mxu0
        %v725 = vadd.f32 0.0, %v724
        %v726 = vpop.f32.mrb[0].mxu0
        %727 = vmatprep.mubr.f32.mxu0 %v511
        %728 = vmatmul.mubr.f32.gmra.mrb[0].mxu0 %v479
        %v729 = vpop.f32.mrb[0].mxu0
        %v730 = vadd.f32 0.0, %v729
        %v731 = vpop.f32.mrb[0].mxu0
        %732 = vmatprep.mubr.f32.mxu0 %v512
        %733 = vmatmul.mubr.f32.gmra.mrb[0].mxu0 %v480
        %v734 = vpop.f32.mrb[0].mxu0
        %v735 = vadd.f32 0.0, %v734
        %v736 = vpop.f32.mrb[0].mxu0
        %737 = vmatprep.mubr.f32.mxu0 %v513
        %738 = vmatmul.mubr.f32.gmra.mrb[0].mxu0 %v481
        %v739 = vpop.f32.mrb[0].mxu0
        %v740 = vadd.f32 0.0, %v739
        %v741 = vpop.f32.mrb[0].mxu0
        %742 = vmatprep.mubr.f32.mxu0 %v514
        %743 = vmatmul.mubr.f32.gmra.mrb[0].mxu0 %v482
        %v744 = vpop.f32.mrb[0].mxu0
        %v745 = vadd.f32 0.0, %v744
        %v746 = vpop.f32.mrb[0].mxu0
        %747 = vmatprep.mubr.f32.mxu0 %v515
        %748 = vmatmul.mubr.f32.gmra.mrb[0].mxu0 %v483
        %v749 = vpop.f32.mrb[0].mxu0
        %v750 = vadd.f32 0.0, %v749
        %v751 = vpop.f32.mrb[0].mxu0
        %752 = vmatprep.mubr.f32.mxu0 %v516
        %753 = vmatmul.mubr.f32.gmra.mrb[0].mxu0 %v484
        %v754 = vpop.f32.mrb[0].mxu0
        %v755 = vadd.f32 0.0, %v754
        %v756 = vpop.f32.mrb[0].mxu0
        %757 = vmatprep.mubr.f32.mxu0 %v517
        %758 = vmatmul.mubr.f32.gmra.mrb[0].mxu0 %v485
        %v759 = vpop.f32.mrb[0].mxu0
        %v760 = vadd.f32 0.0, %v759
        %v761 = vpop.f32.mrb[0].mxu0
        %762 = vmatprep.mubr.f32.mxu0 %v518
        %763 = vmatmul.mubr.f32.gmra.mrb[0].mxu0 %v486
        %v764 = vpop.f32.mrb[0].mxu0
        %v765 = vadd.f32 0.0, %v764
        %v766 = vpop.f32.mrb[0].mxu0
        %767 = vmatprep.mubr.f32.mxu0 %v519
        %768 = vmatmul.mubr.f32.gmra.mrb[0].mxu0 %v487
        %v769 = vpop.f32.mrb[0].mxu0
        %v770 = vadd.f32 0.0, %v769
        %v771 = vpop.f32.mrb[0].mxu0
        %772 = vmatprep.mubr.f32.mxu0 %v520
        %773 = vmatmul.mubr.f32.gmra.mrb[0].mxu0 %v488
        %v774 = vpop.f32.mrb[0].mxu0
        %v775 = vadd.f32 0.0, %v774
        %v776 = vpop.f32.mrb[0].mxu0
        %777 = vmatprep.mubr.f32.mxu0 %v521
        %778 = vmatmul.mubr.f32.gmra.mrb[0].mxu0 %v489
        %v779 = vpop.f32.mrb[0].mxu0
        %v780 = vadd.f32 0.0, %v779
        %v781 = vpop.f32.mrb[0].mxu0
        %782 = vmatprep.mubr.f32.mxu0 %v522
        %783 = vmatmul.mubr.f32.gmra.mrb[0].mxu0 %v490
        %v784 = vpop.f32.mrb[0].mxu0
        %v785 = vadd.f32 0.0, %v784
        %v786 = vpop.f32.mrb[0].mxu0
        %787 = vmatprep.mubr.f32.mxu0 %v523
        %788 = vmatmul.mubr.f32.gmra.mrb[0].mxu0 %v491
        %v789 = vpop.f32.mrb[0].mxu0
        %v790 = vadd.f32 0.0, %v789
        %v791 = vpop.f32.mrb[0].mxu0
        %792 = vmatprep.mubr.f32.mxu0 %v524
        %793 = vmatmul.mubr.f32.gmra.mrb[0].mxu0 %v492
        %v794 = vpop.f32.mrb[0].mxu0
        %v795 = vadd.f32 0.0, %v794
        %v796 = vpop.f32.mrb[0].mxu0
        %797 = vmatprep.mubr.f32.mxu0 %v525
        %798 = vmatmul.mubr.f32.gmra.mrb[0].mxu0 %v493
        %v799 = vpop.f32.mrb[0].mxu0
        %v800 = vadd.f32 0.0, %v799
        %v801 = vpop.f32.mrb[0].mxu0
        %802 = vmatprep.mubr.f32.mxu0 %v526
        %803 = vmatmul.mubr.f32.gmra.mrb[0].mxu0 %v494
        %v804 = vpop.f32.mrb[0].mxu0
        %v805 = vadd.f32 0.0, %v804
        %v806 = vpop.f32.mrb[0].mxu0
        %807 = vmatprep.mubr.f32.mxu0 %v527
        %808 = vmatmul.mubr.f32.gmra.mrb[0].mxu0 %v495
        %v809 = vpop.f32.mrb[0].mxu0
        %v810 = vadd.f32 0.0, %v809
        %v811 = vpop.f32.mrb[0].mxu0
        %812 = vmatprep.mubr.f32.mxu0 %v528
        %813 = vmatmul.mubr.f32.gmra.mrb[0].mxu0 %v496
        %v814 = vpop.f32.mrb[0].mxu0
        %v815 = vadd.f32 0.0, %v814
        %v816 = vpop.f32.mrb[0].mxu0
        %817 = vmatprep.mubr.f32.mxu0 %v529
        %818 = vmatmul.mubr.f32.gmra.mrb[0].mxu0 %v497
        %v819 = vpop.f32.mrb[0].mxu0
        %v820 = vadd.f32 0.0, %v819
        %v821 = vpop.f32.mrb[0].mxu0
        %822 = vmatprep.mubr.f32.mxu0 %v530
        %823 = vmatmul.mubr.f32.gmra.mrb[0].mxu0 %v498
        %v824 = vpop.f32.mrb[0].mxu0
        %v825 = vadd.f32 0.0, %v824
        %v826 = vpop.f32.mrb[0].mxu0
        %827 = vmatprep.mubr.f32.mxu0 %v531
        %828 = vmatmul.mubr.f32.gmra.mrb[0].mxu0 %v499
        %v829 = vpop.f32.mrb[0].mxu0
        %v830 = vadd.f32 0.0, %v829
        %v831 = vpop.f32.mrb[0].mxu0
        %832 = vmatprep.mubr.f32.mxu0 %v532
        %833 = vmatmul.mubr.f32.gmra.mrb[0].mxu0 %v500
        %v834 = vpop.f32.mrb[0].mxu0
        %v835 = vadd.f32 0.0, %v834
        %v836 = vpop.f32.mrb[0].mxu0
        %837 = vmatprep.mubr.f32.mxu0 %v533
        %838 = vmatmul.mubr.f32.gmra.mrb[0].mxu0 %v501
        %v839 = vpop.f32.mrb[0].mxu0
        %v840 = vadd.f32 0.0, %v839
        %v841 = vpop.f32.mrb[0].mxu0
        %842 = vmatprep.mubr.f32.mxu0 %v534
        %843 = vmatmul.mubr.f32.gmra.mrb[0].mxu0 %v502
        %v844 = vpop.f32.mrb[0].mxu0
        %v845 = vadd.f32 0.0, %v844
        %v846 = vpop.f32.mrb[0].mxu0
        %847 = vmatprep.mubr.f32.mxu0 %v535
        %848 = vmatmul.mubr.f32.gmra.mrb[0].mxu0 %v503
        %v849 = vpop.f32.mrb[0].mxu0
        %v850 = vadd.f32 0.0, %v849
        %v851 = vpop.f32.mrb[0].mxu0
        %852 = vmatprep.mubr.f32.mxu0 %v536
        %853 = vmatmul.mubr.f32.gmra.mrb[0].mxu0 %v504
        %v854 = vpop.f32.mrb[0].mxu0
        %v855 = vadd.f32 0.0, %v854
        %v856 = vpop.f32.mrb[0].mxu0
        %857 = vmatprep.mubr.f32.mxu0 %v537
        %858 = vmatmul.mubr.f32.gmra.mrb[0].mxu0 %v505
        %v859 = vpop.f32.mrb[0].mxu0
        %v860 = vadd.f32 0.0, %v859
        %v861 = vpop.f32.mrb[0].mxu0
        %862 = vmatprep.mubr.f32.mxu0 %v538
        %863 = vmatmul.mubr.f32.gmra.mrb[0].mxu0 %v506
        %v864 = vpop.f32.mrb[0].mxu0
        %v865 = vadd.f32 0.0, %v864
        %v866 = vpop.f32.mrb[0].mxu0
        %867 = vmatprep.mubr.f32.mxu0 %v539
        %868 = vmatmul.mubr.f32.gmra.mrb[0].mxu0 %v507
        %v869 = vpop.f32.mrb[0].mxu0
        %v870 = vadd.f32 0.0, %v869
        %v871 = vpop.f32.mrb[0].mxu0
        %872 = vmatprep.mubr.f32.mxu0 %v540
        %873 = vmatmul.mubr.f32.gmra.mrb[0].mxu0 %v508
        %v874 = vpop.f32.mrb[0].mxu0
        %v875 = vadd.f32 0.0, %v874
        %v876 = vpop.f32.mrb[0].mxu0
        %877 = vdwg.mxu0
        %878 = vmatprep.subr.mxu0 0.0
        %879 = vmatpush1.msra.mxu0 %v637
        %880 = vmatprep.subr.mxu0 0.0
        %881 = vmatpush1.msra.mxu0 %v638
        %882 = vmatprep.subr.mxu0 0.0
        %883 = vmatpush1.msra.mxu0 %v639
        %884 = vmatprep.subr.mxu0 0.0
        %885 = vmatpush1.msra.mxu0 %v640
        %886 = vmatprep.subr.mxu0 0.0
        %887 = vmatpush1.msra.mxu0 %v641
        %888 = vmatprep.subr.mxu0 0.0
        %889 = vmatpush1.msra.mxu0 %v642
        %890 = vmatprep.subr.mxu0 0.0
        %891 = vmatpush1.msra.mxu0 %v643
        %892 = vmatprep.subr.mxu0 0.0
        %893 = vmatpush1.msra.mxu0 %v644
        %894 = vmatprep.subr.mxu0 0.0
        %895 = vmatpush1.msra.mxu0 %v645
        %896 = vmatprep.subr.mxu0 0.0
        %897 = vmatpush1.msra.mxu0 %v646
        %898 = vmatprep.subr.mxu0 0.0
        %899 = vmatpush1.msra.mxu0 %v647
        %900 = vmatprep.subr.mxu0 0.0
        %901 = vmatpush1.msra.mxu0 %v648
        %902 = vmatprep.subr.mxu0 0.0
        %903 = vmatpush1.msra.mxu0 %v649
        %904 = vmatprep.subr.mxu0 0.0
        %905 = vmatpush1.msra.mxu0 %v650
        %906 = vmatprep.subr.mxu0 0.0
        %907 = vmatpush1.msra.mxu0 %v651
        %908 = vmatprep.subr.mxu0 0.0
        %909 = vmatpush1.msra.mxu0 %v652
        %910 = vmatprep.subr.mxu0 0.0
        %911 = vmatpush1.msra.mxu0 0.0
        %912 = vmatprep.subr.mxu0 0.0
        %913 = vmatpush1.msra.mxu0 0.0
        %914 = vmatprep.subr.mxu0 0.0
        %915 = vmatpush1.msra.mxu0 0.0
        %916 = vmatprep.subr.mxu0 0.0
        %917 = vmatpush1.msra.mxu0 0.0
        %918 = vmatprep.subr.mxu0 0.0
        %919 = vmatpush1.msra.mxu0 0.0
        %920 = vmatprep.subr.mxu0 0.0
        %921 = vmatpush1.msra.mxu0 0.0
        %922 = vmatprep.subr.mxu0 0.0
        %923 = vmatpush1.msra.mxu0 0.0
        %924 = vmatprep.subr.mxu0 0.0
        %925 = vmatpush1.msra.mxu0 0.0
        %926 = vmatprep.subr.mxu0 0.0
        %927 = vmatpush1.msra.mxu0 0.0
        %928 = vmatprep.subr.mxu0 0.0
        %929 = vmatpush1.msra.mxu0 0.0
        %930 = vmatprep.subr.mxu0 0.0
        %931 = vmatpush1.msra.mxu0 0.0
        %932 = vmatprep.subr.mxu0 0.0
        %933 = vmatpush1.msra.mxu0 0.0
        %934 = vmatprep.subr.mxu0 0.0
        %935 = vmatpush1.msra.mxu0 0.0
        %936 = vmatprep.subr.mxu0 0.0
        %937 = vmatpush1.msra.mxu0 0.0
        %938 = vmatprep.subr.mxu0 0.0
        %939 = vmatpush1.msra.mxu0 0.0
        %940 = vmatprep.subr.mxu0 0.0
        %941 = vmatpush1.msra.mxu0 0.0
        %942 = vmatprep.mubr.f32.mxu0 0.0
        %943 = vmatmul.mubr.f32.gmra.mrb[0].mxu0 %v541
        %v944 = vpop.f32.mrb[0].mxu0
        %v945 = vadd.f32 %v720, %v944
        %v946 = vpop.f32.mrb[0].mxu0
        %947 = vmatprep.mubr.f32.mxu0 0.0
        %948 = vmatmul.mubr.f32.gmra.mrb[0].mxu0 %v542
        %v949 = vpop.f32.mrb[0].mxu0
        %v950 = vadd.f32 %v725, %v949
        %v951 = vpop.f32.mrb[0].mxu0
        %952 = vmatprep.mubr.f32.mxu0 0.0
        %953 = vmatmul.mubr.f32.gmra.mrb[0].mxu0 %v543
        %v954 = vpop.f32.mrb[0].mxu0
        %v955 = vadd.f32 %v730, %v954
        %v956 = vpop.f32.mrb[0].mxu0
        %957 = vmatprep.mubr.f32.mxu0 0.0
        %958 = vmatmul.mubr.f32.gmra.mrb[0].mxu0 %v544
        %v959 = vpop.f32.mrb[0].mxu0
        %v960 = vadd.f32 %v735, %v959
        %v961 = vpop.f32.mrb[0].mxu0
        %962 = vmatprep.mubr.f32.mxu0 0.0
        %963 = vmatmul.mubr.f32.gmra.mrb[0].mxu0 %v545
        %v964 = vpop.f32.mrb[0].mxu0
        %v965 = vadd.f32 %v740, %v964
        %v966 = vpop.f32.mrb[0].mxu0
        %967 = vmatprep.mubr.f32.mxu0 0.0
        %968 = vmatmul.mubr.f32.gmra.mrb[0].mxu0 %v546
        %v969 = vpop.f32.mrb[0].mxu0
        %v970 = vadd.f32 %v745, %v969
        %v971 = vpop.f32.mrb[0].mxu0
        %972 = vmatprep.mubr.f32.mxu0 0.0
        %973 = vmatmul.mubr.f32.gmra.mrb[0].mxu0 %v547
        %v974 = vpop.f32.mrb[0].mxu0
        %v975 = vadd.f32 %v750, %v974
        %v976 = vpop.f32.mrb[0].mxu0
        %977 = vmatprep.mubr.f32.mxu0 0.0
        %978 = vmatmul.mubr.f32.gmra.mrb[0].mxu0 %v548
        %v979 = vpop.f32.mrb[0].mxu0
        %v980 = vadd.f32 %v755, %v979
        %v981 = vpop.f32.mrb[0].mxu0
        %982 = vmatprep.mubr.f32.mxu0 0.0
        %983 = vmatmul.mubr.f32.gmra.mrb[0].mxu0 %v549
        %v984 = vpop.f32.mrb[0].mxu0
        %v985 = vadd.f32 %v760, %v984
        %v986 = vpop.f32.mrb[0].mxu0
        %987 = vmatprep.mubr.f32.mxu0 0.0
        %988 = vmatmul.mubr.f32.gmra.mrb[0].mxu0 %v550
        %v989 = vpop.f32.mrb[0].mxu0
        %v990 = vadd.f32 %v765, %v989
        %v991 = vpop.f32.mrb[0].mxu0
        %992 = vmatprep.mubr.f32.mxu0 0.0
        %993 = vmatmul.mubr.f32.gmra.mrb[0].mxu0 %v551
        %v994 = vpop.f32.mrb[0].mxu0
        %v995 = vadd.f32 %v770, %v994
        %v996 = vpop.f32.mrb[0].mxu0
        %997 = vmatprep.mubr.f32.mxu0 0.0
        %998 = vmatmul.mubr.f32.gmra.mrb[0].mxu0 %v552
        %v999 = vpop.f32.mrb[0].mxu0
        %v1000 = vadd.f32 %v775, %v999
        %v1001 = vpop.f32.mrb[0].mxu0
        %1002 = vmatprep.mubr.f32.mxu0 0.0
        %1003 = vmatmul.mubr.f32.gmra.mrb[0].mxu0 %v553
        %v1004 = vpop.f32.mrb[0].mxu0
        %v1005 = vadd.f32 %v780, %v1004
        %v1006 = vpop.f32.mrb[0].mxu0
        %1007 = vmatprep.mubr.f32.mxu0 0.0
        %1008 = vmatmul.mubr.f32.gmra.mrb[0].mxu0 %v554
        %v1009 = vpop.f32.mrb[0].mxu0
        %v1010 = vadd.f32 %v785, %v1009
        %v1011 = vpop.f32.mrb[0].mxu0
        %1012 = vmatprep.mubr.f32.mxu0 0.0
        %1013 = vmatmul.mubr.f32.gmra.mrb[0].mxu0 %v555
        %v1014 = vpop.f32.mrb[0].mxu0
        %v1015 = vadd.f32 %v790, %v1014
        %v1016 = vpop.f32.mrb[0].mxu0
        %1017 = vmatprep.mubr.f32.mxu0 0.0
        %1018 = vmatmul.mubr.f32.gmra.mrb[0].mxu0 %v556
        %v1019 = vpop.f32.mrb[0].mxu0
        %v1020 = vadd.f32 %v795, %v1019
        %v1021 = vpop.f32.mrb[0].mxu0
        %1022 = vmatprep.mubr.f32.mxu0 0.0
        %1023 = vmatmul.mubr.f32.gmra.mrb[0].mxu0 %v557
        %v1024 = vpop.f32.mrb[0].mxu0
        %v1025 = vadd.f32 %v800, %v1024
        %v1026 = vpop.f32.mrb[0].mxu0
        %1027 = vmatprep.mubr.f32.mxu0 0.0
        %1028 = vmatmul.mubr.f32.gmra.mrb[0].mxu0 %v558
        %v1029 = vpop.f32.mrb[0].mxu0
        %v1030 = vadd.f32 %v805, %v1029
        %v1031 = vpop.f32.mrb[0].mxu0
        %1032 = vmatprep.mubr.f32.mxu0 0.0
        %1033 = vmatmul.mubr.f32.gmra.mrb[0].mxu0 %v559
        %v1034 = vpop.f32.mrb[0].mxu0
        %v1035 = vadd.f32 %v810, %v1034
        %v1036 = vpop.f32.mrb[0].mxu0
        %1037 = vmatprep.mubr.f32.mxu0 0.0
        %1038 = vmatmul.mubr.f32.gmra.mrb[0].mxu0 %v560
        %v1039 = vpop.f32.mrb[0].mxu0
        %v1040 = vadd.f32 %v815, %v1039
        %v1041 = vpop.f32.mrb[0].mxu0
        %1042 = vmatprep.mubr.f32.mxu0 0.0
        %1043 = vmatmul.mubr.f32.gmra.mrb[0].mxu0 %v561
        %v1044 = vpop.f32.mrb[0].mxu0
        %v1045 = vadd.f32 %v820, %v1044
        %v1046 = vpop.f32.mrb[0].mxu0
        %1047 = vmatprep.mubr.f32.mxu0 0.0
        %1048 = vmatmul.mubr.f32.gmra.mrb[0].mxu0 %v562
        %v1049 = vpop.f32.mrb[0].mxu0
        %v1050 = vadd.f32 %v825, %v1049
        %v1051 = vpop.f32.mrb[0].mxu0
        %1052 = vmatprep.mubr.f32.mxu0 0.0
        %1053 = vmatmul.mubr.f32.gmra.mrb[0].mxu0 %v563
        %v1054 = vpop.f32.mrb[0].mxu0
        %v1055 = vadd.f32 %v830, %v1054
        %v1056 = vpop.f32.mrb[0].mxu0
        %1057 = vmatprep.mubr.f32.mxu0 0.0
        %1058 = vmatmul.mubr.f32.gmra.mrb[0].mxu0 %v564
        %v1059 = vpop.f32.mrb[0].mxu0
        %v1060 = vadd.f32 %v835, %v1059
        %v1061 = vpop.f32.mrb[0].mxu0
        %1062 = vmatprep.mubr.f32.mxu0 0.0
        %1063 = vmatmul.mubr.f32.gmra.mrb[0].mxu0 %v565
        %v1064 = vpop.f32.mrb[0].mxu0
        %v1065 = vadd.f32 %v840, %v1064
        %v1066 = vpop.f32.mrb[0].mxu0
        %1067 = vmatprep.mubr.f32.mxu0 0.0
        %1068 = vmatmul.mubr.f32.gmra.mrb[0].mxu0 %v566
        %v1069 = vpop.f32.mrb[0].mxu0
        %v1070 = vadd.f32 %v845, %v1069
        %v1071 = vpop.f32.mrb[0].mxu0
        %1072 = vmatprep.mubr.f32.mxu0 0.0
        %1073 = vmatmul.mubr.f32.gmra.mrb[0].mxu0 %v567
        %v1074 = vpop.f32.mrb[0].mxu0
        %v1075 = vadd.f32 %v850, %v1074
        %v1076 = vpop.f32.mrb[0].mxu0
        %1077 = vmatprep.mubr.f32.mxu0 0.0
        %1078 = vmatmul.mubr.f32.gmra.mrb[0].mxu0 %v568
        %v1079 = vpop.f32.mrb[0].mxu0
        %v1080 = vadd.f32 %v855, %v1079
        %v1081 = vpop.f32.mrb[0].mxu0
        %1082 = vmatprep.mubr.f32.mxu0 0.0
        %1083 = vmatmul.mubr.f32.gmra.mrb[0].mxu0 %v569
        %v1084 = vpop.f32.mrb[0].mxu0
        %v1085 = vadd.f32 %v860, %v1084
        %v1086 = vpop.f32.mrb[0].mxu0
        %1087 = vmatprep.mubr.f32.mxu0 0.0
        %1088 = vmatmul.mubr.f32.gmra.mrb[0].mxu0 %v570
        %v1089 = vpop.f32.mrb[0].mxu0
        %v1090 = vadd.f32 %v865, %v1089
        %v1091 = vpop.f32.mrb[0].mxu0
        %1092 = vmatprep.mubr.f32.mxu0 0.0
        %1093 = vmatmul.mubr.f32.gmra.mrb[0].mxu0 %v571
        %v1094 = vpop.f32.mrb[0].mxu0
        %v1095 = vadd.f32 %v870, %v1094
        %v1096 = vpop.f32.mrb[0].mxu0
        %1097 = vmatprep.mubr.f32.mxu0 0.0
        %1098 = vmatmul.mubr.f32.gmra.mrb[0].mxu0 %v572
        %v1099 = vpop.f32.mrb[0].mxu0
        %v1100 = vadd.f32 %v875, %v1099
        %v1101 = vpop.f32.mrb[0].mxu0
        %1102 = vdwg.mxu0
        %v1103 = vadd.f32 %v573, %v945
        %v1104 = vadd.f32 %v574, %v950
        %v1105 = vadd.f32 %v575, %v955
        %v1106 = vadd.f32 %v576, %v960
        %v1107 = vadd.f32 %v577, %v965
        %v1108 = vadd.f32 %v578, %v970
        %v1109 = vadd.f32 %v579, %v975
        %v1110 = vadd.f32 %v580, %v980
        %v1111 = vadd.f32 %v581, %v985
        %v1112 = vadd.f32 %v582, %v990
        %v1113 = vadd.f32 %v583, %v995
        %v1114 = vadd.f32 %v584, %v1000
        %v1115 = vadd.f32 %v585, %v1005
        %v1116 = vadd.f32 %v586, %v1010
        %v1117 = vadd.f32 %v587, %v1015
        %v1118 = vadd.f32 %v588, %v1020
        %v1119 = vadd.f32 %v589, %v1025
        %v1120 = vadd.f32 %v590, %v1030
        %v1121 = vadd.f32 %v591, %v1035
        %v1122 = vadd.f32 %v592, %v1040
        %v1123 = vadd.f32 %v593, %v1045
        %v1124 = vadd.f32 %v594, %v1050
        %v1125 = vadd.f32 %v595, %v1055
        %v1126 = vadd.f32 %v596, %v1060
        %v1127 = vadd.f32 %v597, %v1065
        %v1128 = vadd.f32 %v598, %v1070
        %v1129 = vadd.f32 %v599, %v1075
        %v1130 = vadd.f32 %v600, %v1080
        %v1131 = vadd.f32 %v601, %v1085
        %v1132 = vadd.f32 %v602, %v1090
        %v1133 = vadd.f32 %v603, %v1095
        %v1134 = vadd.f32 %v604, %v1100
        %1135 = vst [vmem:[#allocation4] sm:$0xff] %v1103
        %1136 = vst [vmem:[#allocation4 + $0x8] sm:$0xff] %v1104
        %1137 = vst [vmem:[#allocation4 + $0x10] sm:$0xff] %v1105
        %1138 = vst [vmem:[#allocation4 + $0x18] sm:$0xff] %v1106
        %1139 = vst [vmem:[#allocation4 + $0x20] sm:$0xff] %v1107
        %1140 = vst [vmem:[#allocation4 + $0x28] sm:$0xff] %v1108
        %1141 = vst [vmem:[#allocation4 + $0x30] sm:$0xff] %v1109
        %1142 = vst [vmem:[#allocation4 + $0x38] sm:$0xff] %v1110
        %1143 = vst [vmem:[#allocation4 + $0x40] sm:$0xff] %v1111
        %1144 = vst [vmem:[#allocation4 + $0x48] sm:$0xff] %v1112
        %1145 = vst [vmem:[#allocation4 + $0x50] sm:$0xff] %v1113
        %1146 = vst [vmem:[#allocation4 + $0x58] sm:$0xff] %v1114
        %1147 = vst [vmem:[#allocation4 + $0x60] sm:$0xff] %v1115
        %1148 = vst [vmem:[#allocation4 + $0x68] sm:$0xff] %v1116
        %1149 = vst [vmem:[#allocation4 + $0x70] sm:$0xff] %v1117
        %1150 = vst [vmem:[#allocation4 + $0x78] sm:$0xff] %v1118
        %1151 = vst [vmem:[#allocation4 + $0x80] sm:$0xff] %v1119
        %1152 = vst [vmem:[#allocation4 + $0x88] sm:$0xff] %v1120
        %1153 = vst [vmem:[#allocation4 + $0x90] sm:$0xff] %v1121
        %1154 = vst [vmem:[#allocation4 + $0x98] sm:$0xff] %v1122
        %1155 = vst [vmem:[#allocation4 + $0xa0] sm:$0xff] %v1123
        %1156 = vst [vmem:[#allocation4 + $0xa8] sm:$0xff] %v1124
        %1157 = vst [vmem:[#allocation4 + $0xb0] sm:$0xff] %v1125
        %1158 = vst [vmem:[#allocation4 + $0xb8] sm:$0xff] %v1126
        %1159 = vst [vmem:[#allocation4 + $0xc0] sm:$0xff] %v1127
        %1160 = vst [vmem:[#allocation4 + $0xc8] sm:$0xff] %v1128
        %1161 = vst [vmem:[#allocation4 + $0xd0] sm:$0xff] %v1129
        %1162 = vst [vmem:[#allocation4 + $0xd8] sm:$0xff] %v1130
        %1163 = vst [vmem:[#allocation4 + $0xe0] sm:$0xff] %v1131
        %1164 = vst [vmem:[#allocation4 + $0xe8] sm:$0xff] %v1132
        %1165 = vst [vmem:[#allocation4 + $0xf0] sm:$0xff] %v1133
        %1166 = vst [vmem:[#allocation4 + $0xf8] sm:$0xff] %v1134
        %v1167 = vld [vmem:[%s412] sm:$0xff]
        %v1168 = vld [vmem:[%s412 + $0x8] sm:$0xff]
        %v1169 = vld [vmem:[%s412 + $0x18] sm:$0xff]
        %v1170 = vld [vmem:[%s412 + $0x20] sm:$0xff]
        %v1171 = vld [vmem:[%s412 + $0x30] sm:$0xff]
        %v1172 = vld [vmem:[%s412 + $0x38] sm:$0xff]
        %v1173 = vld [vmem:[%s412 + $0x48] sm:$0xff]
        %v1174 = vld [vmem:[%s412 + $0x50] sm:$0xff]
        %v1175 = vld [vmem:[%s412 + $0x60] sm:$0xff]
        %v1176 = vld [vmem:[%s412 + $0x68] sm:$0xff]
        %v1177 = vld [vmem:[%s412 + $0x78] sm:$0xff]
        %v1178 = vld [vmem:[%s412 + $0x80] sm:$0xff]
        %v1179 = vld [vmem:[%s412 + $0x90] sm:$0xff]
        %v1180 = vld [vmem:[%s412 + $0x98] sm:$0xff]
        %v1181 = vld [vmem:[%s412 + $0xa8] sm:$0xff]
        %v1182 = vld [vmem:[%s412 + $0xb0] sm:$0xff]
        %v1183 = vld [vmem:[%s412 + $0xc0] sm:$0xff]
        %v1184 = vld [vmem:[%s412 + $0xc8] sm:$0xff]
        %v1185 = vld [vmem:[%s412 + $0xd8] sm:$0xff]
        %v1186 = vld [vmem:[%s412 + $0xe0] sm:$0xff]
        %v1187 = vld [vmem:[%s412 + $0xf0] sm:$0xff]
        %v1188 = vld [vmem:[%s412 + $0xf8] sm:$0xff]
        %v1189 = vld [vmem:[%s412 + $0x108] sm:$0xff]
        %v1190 = vld [vmem:[%s412 + $0x110] sm:$0xff]
        %v1191 = vld [vmem:[%s412 + $0x120] sm:$0xff]
        %v1192 = vld [vmem:[%s412 + $0x128] sm:$0xff]
        %v1193 = vld [vmem:[%s412 + $0x138] sm:$0xff]
        %v1194 = vld [vmem:[%s412 + $0x140] sm:$0xff]
        %v1195 = vld [vmem:[%s412 + $0x150] sm:$0xff]
        %v1196 = vld [vmem:[%s412 + $0x158] sm:$0xff]
        %v1197 = vld [vmem:[%s412 + $0x168] sm:$0xff]
        %v1198 = vld [vmem:[%s412 + $0x170] sm:$0xff]
        %v1199 = vld [vmem:[%s412 + $0x1] sm:$0xff]
        %v1200 = vld [vmem:[%s412 + $0x9] sm:$0xff]
        %v1201 = vld [vmem:[%s412 + $0x19] sm:$0xff]
        %v1202 = vld [vmem:[%s412 + $0x21] sm:$0xff]
        %v1203 = vld [vmem:[%s412 + $0x31] sm:$0xff]
        %v1204 = vld [vmem:[%s412 + $0x39] sm:$0xff]
        %v1205 = vld [vmem:[%s412 + $0x49] sm:$0xff]
        %v1206 = vld [vmem:[%s412 + $0x51] sm:$0xff]
        %v1207 = vld [vmem:[%s412 + $0x61] sm:$0xff]
        %v1208 = vld [vmem:[%s412 + $0x69] sm:$0xff]
        %v1209 = vld [vmem:[%s412 + $0x79] sm:$0xff]
        %v1210 = vld [vmem:[%s412 + $0x81] sm:$0xff]
        %v1211 = vld [vmem:[%s412 + $0x91] sm:$0xff]
        %v1212 = vld [vmem:[%s412 + $0x99] sm:$0xff]
        %v1213 = vld [vmem:[%s412 + $0xa9] sm:$0xff]
        %v1214 = vld [vmem:[%s412 + $0xb1] sm:$0xff]
        %v1215 = vld [vmem:[%s412 + $0xc1] sm:$0xff]
        %v1216 = vld [vmem:[%s412 + $0xc9] sm:$0xff]
        %v1217 = vld [vmem:[%s412 + $0xd9] sm:$0xff]
        %v1218 = vld [vmem:[%s412 + $0xe1] sm:$0xff]
        %v1219 = vld [vmem:[%s412 + $0xf1] sm:$0xff]
        %v1220 = vld [vmem:[%s412 + $0xf9] sm:$0xff]
        %v1221 = vld [vmem:[%s412 + $0x109] sm:$0xff]
        %v1222 = vld [vmem:[%s412 + $0x111] sm:$0xff]
        %v1223 = vld [vmem:[%s412 + $0x121] sm:$0xff]
        %v1224 = vld [vmem:[%s412 + $0x129] sm:$0xff]
        %v1225 = vld [vmem:[%s412 + $0x139] sm:$0xff]
        %v1226 = vld [vmem:[%s412 + $0x141] sm:$0xff]
        %v1227 = vld [vmem:[%s412 + $0x151] sm:$0xff]
        %v1228 = vld [vmem:[%s412 + $0x159] sm:$0xff]
        %v1229 = vld [vmem:[%s412 + $0x169] sm:$0xff]
        %v1230 = vld [vmem:[%s412 + $0x171] sm:$0xff]
        %v1231 = vld [vmem:[%s412 + $0x2] sm:$0xff]
        %v1232 = vld [vmem:[%s412 + $0xa] sm:$0xff]
        %v1233 = vld [vmem:[%s412 + $0x1a] sm:$0xff]
        %v1234 = vld [vmem:[%s412 + $0x22] sm:$0xff]
        %v1235 = vld [vmem:[%s412 + $0x32] sm:$0xff]
        %v1236 = vld [vmem:[%s412 + $0x3a] sm:$0xff]
        %v1237 = vld [vmem:[%s412 + $0x4a] sm:$0xff]
        %v1238 = vld [vmem:[%s412 + $0x52] sm:$0xff]
        %v1239 = vld [vmem:[%s412 + $0x62] sm:$0xff]
        %v1240 = vld [vmem:[%s412 + $0x6a] sm:$0xff]
        %v1241 = vld [vmem:[%s412 + $0x7a] sm:$0xff]
        %v1242 = vld [vmem:[%s412 + $0x82] sm:$0xff]
        %v1243 = vld [vmem:[%s412 + $0x92] sm:$0xff]
        %v1244 = vld [vmem:[%s412 + $0x9a] sm:$0xff]
        %v1245 = vld [vmem:[%s412 + $0xaa] sm:$0xff]
        %v1246 = vld [vmem:[%s412 + $0xb2] sm:$0xff]
        %v1247 = vld [vmem:[%s412 + $0xc2] sm:$0xff]
        %v1248 = vld [vmem:[%s412 + $0xca] sm:$0xff]
        %v1249 = vld [vmem:[%s412 + $0xda] sm:$0xff]
        %v1250 = vld [vmem:[%s412 + $0xe2] sm:$0xff]
        %v1251 = vld [vmem:[%s412 + $0xf2] sm:$0xff]
        %v1252 = vld [vmem:[%s412 + $0xfa] sm:$0xff]
        %v1253 = vld [vmem:[%s412 + $0x10a] sm:$0xff]
        %v1254 = vld [vmem:[%s412 + $0x112] sm:$0xff]
        %v1255 = vld [vmem:[%s412 + $0x122] sm:$0xff]
        %v1256 = vld [vmem:[%s412 + $0x12a] sm:$0xff]
        %v1257 = vld [vmem:[%s412 + $0x13a] sm:$0xff]
        %v1258 = vld [vmem:[%s412 + $0x142] sm:$0xff]
        %v1259 = vld [vmem:[%s412 + $0x152] sm:$0xff]
        %v1260 = vld [vmem:[%s412 + $0x15a] sm:$0xff]
        %v1261 = vld [vmem:[%s412 + $0x16a] sm:$0xff]
        %v1262 = vld [vmem:[%s412 + $0x172] sm:$0xff]
        %v1263 = vld [vmem:[#allocation4] sm:$0xff]
        %v1264 = vld [vmem:[#allocation4 + $0x8] sm:$0xff]
        %v1265 = vld [vmem:[#allocation4 + $0x10] sm:$0xff]
        %v1266 = vld [vmem:[#allocation4 + $0x18] sm:$0xff]
        %v1267 = vld [vmem:[#allocation4 + $0x20] sm:$0xff]
        %v1268 = vld [vmem:[#allocation4 + $0x28] sm:$0xff]
        %v1269 = vld [vmem:[#allocation4 + $0x30] sm:$0xff]
        %v1270 = vld [vmem:[#allocation4 + $0x38] sm:$0xff]
        %v1271 = vld [vmem:[#allocation4 + $0x40] sm:$0xff]
        %v1272 = vld [vmem:[#allocation4 + $0x48] sm:$0xff]
        %v1273 = vld [vmem:[#allocation4 + $0x50] sm:$0xff]
        %v1274 = vld [vmem:[#allocation4 + $0x58] sm:$0xff]
        %v1275 = vld [vmem:[#allocation4 + $0x60] sm:$0xff]
        %v1276 = vld [vmem:[#allocation4 + $0x68] sm:$0xff]
        %v1277 = vld [vmem:[#allocation4 + $0x70] sm:$0xff]
        %v1278 = vld [vmem:[#allocation4 + $0x78] sm:$0xff]
        %v1279 = vld [vmem:[#allocation4 + $0x80] sm:$0xff]
        %v1280 = vld [vmem:[#allocation4 + $0x88] sm:$0xff]
        %v1281 = vld [vmem:[#allocation4 + $0x90] sm:$0xff]
        %v1282 = vld [vmem:[#allocation4 + $0x98] sm:$0xff]
        %v1283 = vld [vmem:[#allocation4 + $0xa0] sm:$0xff]
        %v1284 = vld [vmem:[#allocation4 + $0xa8] sm:$0xff]
        %v1285 = vld [vmem:[#allocation4 + $0xb0] sm:$0xff]
        %v1286 = vld [vmem:[#allocation4 + $0xb8] sm:$0xff]
        %v1287 = vld [vmem:[#allocation4 + $0xc0] sm:$0xff]
        %v1288 = vld [vmem:[#allocation4 + $0xc8] sm:$0xff]
        %v1289 = vld [vmem:[#allocation4 + $0xd0] sm:$0xff]
        %v1290 = vld [vmem:[#allocation4 + $0xd8] sm:$0xff]
        %v1291 = vld [vmem:[#allocation4 + $0xe0] sm:$0xff]
        %v1292 = vld [vmem:[#allocation4 + $0xe8] sm:$0xff]
        %v1293 = vld [vmem:[#allocation4 + $0xf0] sm:$0xff]
        %v1294 = vld [vmem:[#allocation4 + $0xf8] sm:$0xff]
        %s1295 = scalar_lea.vmem [#allocation8], 384
        %v1296 = vld [vmem:[%s1295] sm:$0xff]
        %v1297 = vld [vmem:[%s1295 + $0x8] sm:$0xff]
        %v1298 = vld [vmem:[%s1295 + $0x10] sm:$0xff]
        %v1299 = vld [vmem:[%s1295 + $0x18] sm:$0xff]
        %v1300 = vld [vmem:[%s1295 + $0x20] sm:$0xff]
        %v1301 = vld [vmem:[%s1295 + $0x28] sm:$0xff]
        %v1302 = vld [vmem:[%s1295 + $0x30] sm:$0xff]
        %v1303 = vld [vmem:[%s1295 + $0x38] sm:$0xff]
        %v1304 = vld [vmem:[%s1295 + $0x40] sm:$0xff]
        %v1305 = vld [vmem:[%s1295 + $0x48] sm:$0xff]
        %v1306 = vld [vmem:[%s1295 + $0x50] sm:$0xff]
        %v1307 = vld [vmem:[%s1295 + $0x58] sm:$0xff]
        %v1308 = vld [vmem:[%s1295 + $0x60] sm:$0xff]
        %v1309 = vld [vmem:[%s1295 + $0x68] sm:$0xff]
        %v1310 = vld [vmem:[%s1295 + $0x70] sm:$0xff]
        %v1311 = vld [vmem:[%s1295 + $0x78] sm:$0xff]
        %v1312 = vld [vmem:[%s1295 + $0x80] sm:$0xff]
        %v1313 = vld [vmem:[%s1295 + $0x88] sm:$0xff]
        %v1314 = vld [vmem:[%s1295 + $0x90] sm:$0xff]
        %v1315 = vld [vmem:[%s1295 + $0x98] sm:$0xff]
        %v1316 = vld [vmem:[%s1295 + $0xa0] sm:$0xff]
        %v1317 = vld [vmem:[%s1295 + $0xa8] sm:$0xff]
        %v1318 = vld [vmem:[%s1295 + $0xb0] sm:$0xff]
        %v1319 = vld [vmem:[%s1295 + $0xb8] sm:$0xff]
        %v1320 = vld [vmem:[%s1295 + $0xc0] sm:$0xff]
        %v1321 = vld [vmem:[%s1295 + $0xc8] sm:$0xff]
        %v1322 = vld [vmem:[%s1295 + $0xd0] sm:$0xff]
        %v1323 = vld [vmem:[%s1295 + $0xd8] sm:$0xff]
        %v1324 = vld [vmem:[%s1295 + $0xe0] sm:$0xff]
        %v1325 = vld [vmem:[%s1295 + $0xe8] sm:$0xff]
        %v1326 = vld [vmem:[%s1295 + $0xf0] sm:$0xff]
        %v1327 = vld [vmem:[%s1295 + $0xf8] sm:$0xff]
        %v1328 = vld [vmem:[%s1295 + $0x100] sm:$0xff]
        %v1329 = vld [vmem:[%s1295 + $0x108] sm:$0xff]
        %v1330 = vld [vmem:[%s1295 + $0x110] sm:$0xff]
        %v1331 = vld [vmem:[%s1295 + $0x118] sm:$0xff]
        %v1332 = vld [vmem:[%s1295 + $0x120] sm:$0xff]
        %v1333 = vld [vmem:[%s1295 + $0x128] sm:$0xff]
        %v1334 = vld [vmem:[%s1295 + $0x130] sm:$0xff]
        %v1335 = vld [vmem:[%s1295 + $0x138] sm:$0xff]
        %v1336 = vld [vmem:[%s1295 + $0x140] sm:$0xff]
        %v1337 = vld [vmem:[%s1295 + $0x148] sm:$0xff]
        %v1338 = vld [vmem:[%s1295 + $0x150] sm:$0xff]
        %v1339 = vld [vmem:[%s1295 + $0x158] sm:$0xff]
        %v1340 = vld [vmem:[%s1295 + $0x160] sm:$0xff]
        %v1341 = vld [vmem:[%s1295 + $0x168] sm:$0xff]
        %v1342 = vld [vmem:[%s1295 + $0x170] sm:$0xff]
        %v1343 = vld [vmem:[%s1295 + $0x178] sm:$0xff]
        %1344 = vmatprep.subr.mxu0 0.0
        %1345 = vmatpush1.msra.mxu0 %v1296
        %1346 = vmatprep.subr.mxu0 0.0
        %1347 = vmatpush1.msra.mxu0 %v1297
        %1348 = vmatprep.subr.mxu0 0.0
        %1349 = vmatpush1.msra.mxu0 %v1298
        %1350 = vmatprep.subr.mxu0 0.0
        %1351 = vmatpush1.msra.mxu0 %v1299
        %1352 = vmatprep.subr.mxu0 0.0
        %1353 = vmatpush1.msra.mxu0 %v1300
        %1354 = vmatprep.subr.mxu0 0.0
        %1355 = vmatpush1.msra.mxu0 %v1301
        %1356 = vmatprep.subr.mxu0 0.0
        %1357 = vmatpush1.msra.mxu0 %v1302
        %1358 = vmatprep.subr.mxu0 0.0
        %1359 = vmatpush1.msra.mxu0 %v1303
        %1360 = vmatprep.subr.mxu0 0.0
        %1361 = vmatpush1.msra.mxu0 %v1304
        %1362 = vmatprep.subr.mxu0 0.0
        %1363 = vmatpush1.msra.mxu0 %v1305
        %1364 = vmatprep.subr.mxu0 0.0
        %1365 = vmatpush1.msra.mxu0 %v1306
        %1366 = vmatprep.subr.mxu0 0.0
        %1367 = vmatpush1.msra.mxu0 %v1307
        %1368 = vmatprep.subr.mxu0 0.0
        %1369 = vmatpush1.msra.mxu0 %v1308
        %1370 = vmatprep.subr.mxu0 0.0
        %1371 = vmatpush1.msra.mxu0 %v1309
        %1372 = vmatprep.subr.mxu0 0.0
        %1373 = vmatpush1.msra.mxu0 %v1310
        %1374 = vmatprep.subr.mxu0 0.0
        %1375 = vmatpush1.msra.mxu0 %v1311
        %1376 = vmatprep.subr.mxu0 0.0
        %1377 = vmatpush1.msra.mxu0 %v1312
        %1378 = vmatprep.subr.mxu0 0.0
        %1379 = vmatpush1.msra.mxu0 %v1313
        %1380 = vmatprep.subr.mxu0 0.0
        %1381 = vmatpush1.msra.mxu0 %v1314
        %1382 = vmatprep.subr.mxu0 0.0
        %1383 = vmatpush1.msra.mxu0 %v1315
        %1384 = vmatprep.subr.mxu0 0.0
        %1385 = vmatpush1.msra.mxu0 %v1316
        %1386 = vmatprep.subr.mxu0 0.0
        %1387 = vmatpush1.msra.mxu0 %v1317
        %1388 = vmatprep.subr.mxu0 0.0
        %1389 = vmatpush1.msra.mxu0 %v1318
        %1390 = vmatprep.subr.mxu0 0.0
        %1391 = vmatpush1.msra.mxu0 %v1319
        %1392 = vmatprep.subr.mxu0 0.0
        %1393 = vmatpush1.msra.mxu0 %v1320
        %1394 = vmatprep.subr.mxu0 0.0
        %1395 = vmatpush1.msra.mxu0 %v1321
        %1396 = vmatprep.subr.mxu0 0.0
        %1397 = vmatpush1.msra.mxu0 %v1322
        %1398 = vmatprep.subr.mxu0 0.0
        %1399 = vmatpush1.msra.mxu0 %v1323
        %1400 = vmatprep.subr.mxu0 0.0
        %1401 = vmatpush1.msra.mxu0 %v1324
        %1402 = vmatprep.subr.mxu0 0.0
        %1403 = vmatpush1.msra.mxu0 %v1325
        %1404 = vmatprep.subr.mxu0 0.0
        %1405 = vmatpush1.msra.mxu0 %v1326
        %1406 = vmatprep.subr.mxu0 0.0
        %1407 = vmatpush1.msra.mxu0 %v1327
        %1408 = vmatprep.mubr.f32.mxu0 %v1199
        %1409 = vmatmul.mubr.f32.gmra.mrb[0].mxu0 %v1167
        %v1410 = vpop.f32.mrb[0].mxu0
        %v1411 = vadd.f32 0.0, %v1410
        %v1412 = vpop.f32.mrb[0].mxu0
        %1413 = vmatprep.mubr.f32.mxu0 %v1200
        %1414 = vmatmul.mubr.f32.gmra.mrb[0].mxu0 %v1168
        %v1415 = vpop.f32.mrb[0].mxu0
        %v1416 = vadd.f32 0.0, %v1415
        %v1417 = vpop.f32.mrb[0].mxu0
        %1418 = vmatprep.mubr.f32.mxu0 %v1201
        %1419 = vmatmul.mubr.f32.gmra.mrb[0].mxu0 %v1169
        %v1420 = vpop.f32.mrb[0].mxu0
        %v1421 = vadd.f32 0.0, %v1420
        %v1422 = vpop.f32.mrb[0].mxu0
        %1423 = vmatprep.mubr.f32.mxu0 %v1202
        %1424 = vmatmul.mubr.f32.gmra.mrb[0].mxu0 %v1170
        %v1425 = vpop.f32.mrb[0].mxu0
        %v1426 = vadd.f32 0.0, %v1425
        %v1427 = vpop.f32.mrb[0].mxu0
        %1428 = vmatprep.mubr.f32.mxu0 %v1203
        %1429 = vmatmul.mubr.f32.gmra.mrb[0].mxu0 %v1171
        %v1430 = vpop.f32.mrb[0].mxu0
        %v1431 = vadd.f32 0.0, %v1430
        %v1432 = vpop.f32.mrb[0].mxu0
        %1433 = vmatprep.mubr.f32.mxu0 %v1204
        %1434 = vmatmul.mubr.f32.gmra.mrb[0].mxu0 %v1172
        %v1435 = vpop.f32.mrb[0].mxu0
        %v1436 = vadd.f32 0.0, %v1435
        %v1437 = vpop.f32.mrb[0].mxu0
        %1438 = vmatprep.mubr.f32.mxu0 %v1205
        %1439 = vmatmul.mubr.f32.gmra.mrb[0].mxu0 %v1173
        %v1440 = vpop.f32.mrb[0].mxu0
        %v1441 = vadd.f32 0.0, %v1440
        %v1442 = vpop.f32.mrb[0].mxu0
        %1443 = vmatprep.mubr.f32.mxu0 %v1206
        %1444 = vmatmul.mubr.f32.gmra.mrb[0].mxu0 %v1174
        %v1445 = vpop.f32.mrb[0].mxu0
        %v1446 = vadd.f32 0.0, %v1445
        %v1447 = vpop.f32.mrb[0].mxu0
        %1448 = vmatprep.mubr.f32.mxu0 %v1207
        %1449 = vmatmul.mubr.f32.gmra.mrb[0].mxu0 %v1175
        %v1450 = vpop.f32.mrb[0].mxu0
        %v1451 = vadd.f32 0.0, %v1450
        %v1452 = vpop.f32.mrb[0].mxu0
        %1453 = vmatprep.mubr.f32.mxu0 %v1208
        %1454 = vmatmul.mubr.f32.gmra.mrb[0].mxu0 %v1176
        %v1455 = vpop.f32.mrb[0].mxu0
        %v1456 = vadd.f32 0.0, %v1455
        %v1457 = vpop.f32.mrb[0].mxu0
        %1458 = vmatprep.mubr.f32.mxu0 %v1209
        %1459 = vmatmul.mubr.f32.gmra.mrb[0].mxu0 %v1177
        %v1460 = vpop.f32.mrb[0].mxu0
        %v1461 = vadd.f32 0.0, %v1460
        %v1462 = vpop.f32.mrb[0].mxu0
        %1463 = vmatprep.mubr.f32.mxu0 %v1210
        %1464 = vmatmul.mubr.f32.gmra.mrb[0].mxu0 %v1178
        %v1465 = vpop.f32.mrb[0].mxu0
        %v1466 = vadd.f32 0.0, %v1465
        %v1467 = vpop.f32.mrb[0].mxu0
        %1468 = vmatprep.mubr.f32.mxu0 %v1211
        %1469 = vmatmul.mubr.f32.gmra.mrb[0].mxu0 %v1179
        %v1470 = vpop.f32.mrb[0].mxu0
        %v1471 = vadd.f32 0.0, %v1470
        %v1472 = vpop.f32.mrb[0].mxu0
        %1473 = vmatprep.mubr.f32.mxu0 %v1212
        %1474 = vmatmul.mubr.f32.gmra.mrb[0].mxu0 %v1180
        %v1475 = vpop.f32.mrb[0].mxu0
        %v1476 = vadd.f32 0.0, %v1475
        %v1477 = vpop.f32.mrb[0].mxu0
        %1478 = vmatprep.mubr.f32.mxu0 %v1213
        %1479 = vmatmul.mubr.f32.gmra.mrb[0].mxu0 %v1181
        %v1480 = vpop.f32.mrb[0].mxu0
        %v1481 = vadd.f32 0.0, %v1480
        %v1482 = vpop.f32.mrb[0].mxu0
        %1483 = vmatprep.mubr.f32.mxu0 %v1214
        %1484 = vmatmul.mubr.f32.gmra.mrb[0].mxu0 %v1182
        %v1485 = vpop.f32.mrb[0].mxu0
        %v1486 = vadd.f32 0.0, %v1485
        %v1487 = vpop.f32.mrb[0].mxu0
        %1488 = vmatprep.mubr.f32.mxu0 %v1215
        %1489 = vmatmul.mubr.f32.gmra.mrb[0].mxu0 %v1183
        %v1490 = vpop.f32.mrb[0].mxu0
        %v1491 = vadd.f32 0.0, %v1490
        %v1492 = vpop.f32.mrb[0].mxu0
        %1493 = vmatprep.mubr.f32.mxu0 %v1216
        %1494 = vmatmul.mubr.f32.gmra.mrb[0].mxu0 %v1184
        %v1495 = vpop.f32.mrb[0].mxu0
        %v1496 = vadd.f32 0.0, %v1495
        %v1497 = vpop.f32.mrb[0].mxu0
        %1498 = vmatprep.mubr.f32.mxu0 %v1217
        %1499 = vmatmul.mubr.f32.gmra.mrb[0].mxu0 %v1185
        %v1500 = vpop.f32.mrb[0].mxu0
        %v1501 = vadd.f32 0.0, %v1500
        %v1502 = vpop.f32.mrb[0].mxu0
        %1503 = vmatprep.mubr.f32.mxu0 %v1218
        %1504 = vmatmul.mubr.f32.gmra.mrb[0].mxu0 %v1186
        %v1505 = vpop.f32.mrb[0].mxu0
        %v1506 = vadd.f32 0.0, %v1505
        %v1507 = vpop.f32.mrb[0].mxu0
        %1508 = vmatprep.mubr.f32.mxu0 %v1219
        %1509 = vmatmul.mubr.f32.gmra.mrb[0].mxu0 %v1187
        %v1510 = vpop.f32.mrb[0].mxu0
        %v1511 = vadd.f32 0.0, %v1510
        %v1512 = vpop.f32.mrb[0].mxu0
        %1513 = vmatprep.mubr.f32.mxu0 %v1220
        %1514 = vmatmul.mubr.f32.gmra.mrb[0].mxu0 %v1188
        %v1515 = vpop.f32.mrb[0].mxu0
        %v1516 = vadd.f32 0.0, %v1515
        %v1517 = vpop.f32.mrb[0].mxu0
        %1518 = vmatprep.mubr.f32.mxu0 %v1221
        %1519 = vmatmul.mubr.f32.gmra.mrb[0].mxu0 %v1189
        %v1520 = vpop.f32.mrb[0].mxu0
        %v1521 = vadd.f32 0.0, %v1520
        %v1522 = vpop.f32.mrb[0].mxu0
        %1523 = vmatprep.mubr.f32.mxu0 %v1222
        %1524 = vmatmul.mubr.f32.gmra.mrb[0].mxu0 %v1190
        %v1525 = vpop.f32.mrb[0].mxu0
        %v1526 = vadd.f32 0.0, %v1525
        %v1527 = vpop.f32.mrb[0].mxu0
        %1528 = vmatprep.mubr.f32.mxu0 %v1223
        %1529 = vmatmul.mubr.f32.gmra.mrb[0].mxu0 %v1191
        %v1530 = vpop.f32.mrb[0].mxu0
        %v1531 = vadd.f32 0.0, %v1530
        %v1532 = vpop.f32.mrb[0].mxu0
        %1533 = vmatprep.mubr.f32.mxu0 %v1224
        %1534 = vmatmul.mubr.f32.gmra.mrb[0].mxu0 %v1192
        %v1535 = vpop.f32.mrb[0].mxu0
        %v1536 = vadd.f32 0.0, %v1535
        %v1537 = vpop.f32.mrb[0].mxu0
        %1538 = vmatprep.mubr.f32.mxu0 %v1225
        %1539 = vmatmul.mubr.f32.gmra.mrb[0].mxu0 %v1193
        %v1540 = vpop.f32.mrb[0].mxu0
        %v1541 = vadd.f32 0.0, %v1540
        %v1542 = vpop.f32.mrb[0].mxu0
        %1543 = vmatprep.mubr.f32.mxu0 %v1226
        %1544 = vmatmul.mubr.f32.gmra.mrb[0].mxu0 %v1194
        %v1545 = vpop.f32.mrb[0].mxu0
        %v1546 = vadd.f32 0.0, %v1545
        %v1547 = vpop.f32.mrb[0].mxu0
        %1548 = vmatprep.mubr.f32.mxu0 %v1227
        %1549 = vmatmul.mubr.f32.gmra.mrb[0].mxu0 %v1195
        %v1550 = vpop.f32.mrb[0].mxu0
        %v1551 = vadd.f32 0.0, %v1550
        %v1552 = vpop.f32.mrb[0].mxu0
        %1553 = vmatprep.mubr.f32.mxu0 %v1228
        %1554 = vmatmul.mubr.f32.gmra.mrb[0].mxu0 %v1196
        %v1555 = vpop.f32.mrb[0].mxu0
        %v1556 = vadd.f32 0.0, %v1555
        %v1557 = vpop.f32.mrb[0].mxu0
        %1558 = vmatprep.mubr.f32.mxu0 %v1229
        %1559 = vmatmul.mubr.f32.gmra.mrb[0].mxu0 %v1197
        %v1560 = vpop.f32.mrb[0].mxu0
        %v1561 = vadd.f32 0.0, %v1560
        %v1562 = vpop.f32.mrb[0].mxu0
        %1563 = vmatprep.mubr.f32.mxu0 %v1230
        %1564 = vmatmul.mubr.f32.gmra.mrb[0].mxu0 %v1198
        %v1565 = vpop.f32.mrb[0].mxu0
        %v1566 = vadd.f32 0.0, %v1565
        %v1567 = vpop.f32.mrb[0].mxu0
        %1568 = vdwg.mxu0
        %1569 = vmatprep.subr.mxu0 0.0
        %1570 = vmatpush1.msra.mxu0 %v1328
        %1571 = vmatprep.subr.mxu0 0.0
        %1572 = vmatpush1.msra.mxu0 %v1329
        %1573 = vmatprep.subr.mxu0 0.0
        %1574 = vmatpush1.msra.mxu0 %v1330
        %1575 = vmatprep.subr.mxu0 0.0
        %1576 = vmatpush1.msra.mxu0 %v1331
        %1577 = vmatprep.subr.mxu0 0.0
        %1578 = vmatpush1.msra.mxu0 %v1332
        %1579 = vmatprep.subr.mxu0 0.0
        %1580 = vmatpush1.msra.mxu0 %v1333
        %1581 = vmatprep.subr.mxu0 0.0
        %1582 = vmatpush1.msra.mxu0 %v1334
        %1583 = vmatprep.subr.mxu0 0.0
        %1584 = vmatpush1.msra.mxu0 %v1335
        %1585 = vmatprep.subr.mxu0 0.0
        %1586 = vmatpush1.msra.mxu0 %v1336
        %1587 = vmatprep.subr.mxu0 0.0
        %1588 = vmatpush1.msra.mxu0 %v1337
        %1589 = vmatprep.subr.mxu0 0.0
        %1590 = vmatpush1.msra.mxu0 %v1338
        %1591 = vmatprep.subr.mxu0 0.0
        %1592 = vmatpush1.msra.mxu0 %v1339
        %1593 = vmatprep.subr.mxu0 0.0
        %1594 = vmatpush1.msra.mxu0 %v1340
        %1595 = vmatprep.subr.mxu0 0.0
        %1596 = vmatpush1.msra.mxu0 %v1341
        %1597 = vmatprep.subr.mxu0 0.0
        %1598 = vmatpush1.msra.mxu0 %v1342
        %1599 = vmatprep.subr.mxu0 0.0
        %1600 = vmatpush1.msra.mxu0 %v1343
        %1601 = vmatprep.subr.mxu0 0.0
        %1602 = vmatpush1.msra.mxu0 0.0
        %1603 = vmatprep.subr.mxu0 0.0
        %1604 = vmatpush1.msra.mxu0 0.0
        %1605 = vmatprep.subr.mxu0 0.0
        %1606 = vmatpush1.msra.mxu0 0.0
        %1607 = vmatprep.subr.mxu0 0.0
        %1608 = vmatpush1.msra.mxu0 0.0
        %1609 = vmatprep.subr.mxu0 0.0
        %1610 = vmatpush1.msra.mxu0 0.0
        %1611 = vmatprep.subr.mxu0 0.0
        %1612 = vmatpush1.msra.mxu0 0.0
        %1613 = vmatprep.subr.mxu0 0.0
        %1614 = vmatpush1.msra.mxu0 0.0
        %1615 = vmatprep.subr.mxu0 0.0
        %1616 = vmatpush1.msra.mxu0 0.0
        %1617 = vmatprep.subr.mxu0 0.0
        %1618 = vmatpush1.msra.mxu0 0.0
        %1619 = vmatprep.subr.mxu0 0.0
        %1620 = vmatpush1.msra.mxu0 0.0
        %1621 = vmatprep.subr.mxu0 0.0
        %1622 = vmatpush1.msra.mxu0 0.0
        %1623 = vmatprep.subr.mxu0 0.0
        %1624 = vmatpush1.msra.mxu0 0.0
        %1625 = vmatprep.subr.mxu0 0.0
        %1626 = vmatpush1.msra.mxu0 0.0
        %1627 = vmatprep.subr.mxu0 0.0
        %1628 = vmatpush1.msra.mxu0 0.0
        %1629 = vmatprep.subr.mxu0 0.0
        %1630 = vmatpush1.msra.mxu0 0.0
        %1631 = vmatprep.subr.mxu0 0.0
        %1632 = vmatpush1.msra.mxu0 0.0
        %1633 = vmatprep.mubr.f32.mxu0 0.0
        %1634 = vmatmul.mubr.f32.gmra.mrb[0].mxu0 %v1231
        %v1635 = vpop.f32.mrb[0].mxu0
        %v1636 = vadd.f32 %v1411, %v1635
        %v1637 = vpop.f32.mrb[0].mxu0
        %1638 = vmatprep.mubr.f32.mxu0 0.0
        %1639 = vmatmul.mubr.f32.gmra.mrb[0].mxu0 %v1232
        %v1640 = vpop.f32.mrb[0].mxu0
        %v1641 = vadd.f32 %v1416, %v1640
        %v1642 = vpop.f32.mrb[0].mxu0
        %1643 = vmatprep.mubr.f32.mxu0 0.0
        %1644 = vmatmul.mubr.f32.gmra.mrb[0].mxu0 %v1233
        %v1645 = vpop.f32.mrb[0].mxu0
        %v1646 = vadd.f32 %v1421, %v1645
        %v1647 = vpop.f32.mrb[0].mxu0
        %1648 = vmatprep.mubr.f32.mxu0 0.0
        %1649 = vmatmul.mubr.f32.gmra.mrb[0].mxu0 %v1234
        %v1650 = vpop.f32.mrb[0].mxu0
        %v1651 = vadd.f32 %v1426, %v1650
        %v1652 = vpop.f32.mrb[0].mxu0
        %1653 = vmatprep.mubr.f32.mxu0 0.0
        %1654 = vmatmul.mubr.f32.gmra.mrb[0].mxu0 %v1235
        %v1655 = vpop.f32.mrb[0].mxu0
        %v1656 = vadd.f32 %v1431, %v1655
        %v1657 = vpop.f32.mrb[0].mxu0
        %1658 = vmatprep.mubr.f32.mxu0 0.0
        %1659 = vmatmul.mubr.f32.gmra.mrb[0].mxu0 %v1236
        %v1660 = vpop.f32.mrb[0].mxu0
        %v1661 = vadd.f32 %v1436, %v1660
        %v1662 = vpop.f32.mrb[0].mxu0
        %1663 = vmatprep.mubr.f32.mxu0 0.0
        %1664 = vmatmul.mubr.f32.gmra.mrb[0].mxu0 %v1237
        %v1665 = vpop.f32.mrb[0].mxu0
        %v1666 = vadd.f32 %v1441, %v1665
        %v1667 = vpop.f32.mrb[0].mxu0
        %1668 = vmatprep.mubr.f32.mxu0 0.0
        %1669 = vmatmul.mubr.f32.gmra.mrb[0].mxu0 %v1238
        %v1670 = vpop.f32.mrb[0].mxu0
        %v1671 = vadd.f32 %v1446, %v1670
        %v1672 = vpop.f32.mrb[0].mxu0
        %1673 = vmatprep.mubr.f32.mxu0 0.0
        %1674 = vmatmul.mubr.f32.gmra.mrb[0].mxu0 %v1239
        %v1675 = vpop.f32.mrb[0].mxu0
        %v1676 = vadd.f32 %v1451, %v1675
        %v1677 = vpop.f32.mrb[0].mxu0
        %1678 = vmatprep.mubr.f32.mxu0 0.0
        %1679 = vmatmul.mubr.f32.gmra.mrb[0].mxu0 %v1240
        %v1680 = vpop.f32.mrb[0].mxu0
        %v1681 = vadd.f32 %v1456, %v1680
        %v1682 = vpop.f32.mrb[0].mxu0
        %1683 = vmatprep.mubr.f32.mxu0 0.0
        %1684 = vmatmul.mubr.f32.gmra.mrb[0].mxu0 %v1241
        %v1685 = vpop.f32.mrb[0].mxu0
        %v1686 = vadd.f32 %v1461, %v1685
        %v1687 = vpop.f32.mrb[0].mxu0
        %1688 = vmatprep.mubr.f32.mxu0 0.0
        %1689 = vmatmul.mubr.f32.gmra.mrb[0].mxu0 %v1242
        %v1690 = vpop.f32.mrb[0].mxu0
        %v1691 = vadd.f32 %v1466, %v1690
        %v1692 = vpop.f32.mrb[0].mxu0
        %1693 = vmatprep.mubr.f32.mxu0 0.0
        %1694 = vmatmul.mubr.f32.gmra.mrb[0].mxu0 %v1243
        %v1695 = vpop.f32.mrb[0].mxu0
        %v1696 = vadd.f32 %v1471, %v1695
        %v1697 = vpop.f32.mrb[0].mxu0
        %1698 = vmatprep.mubr.f32.mxu0 0.0
        %1699 = vmatmul.mubr.f32.gmra.mrb[0].mxu0 %v1244
        %v1700 = vpop.f32.mrb[0].mxu0
        %v1701 = vadd.f32 %v1476, %v1700
        %v1702 = vpop.f32.mrb[0].mxu0
        %1703 = vmatprep.mubr.f32.mxu0 0.0
        %1704 = vmatmul.mubr.f32.gmra.mrb[0].mxu0 %v1245
        %v1705 = vpop.f32.mrb[0].mxu0
        %v1706 = vadd.f32 %v1481, %v1705
        %v1707 = vpop.f32.mrb[0].mxu0
        %1708 = vmatprep.mubr.f32.mxu0 0.0
        %1709 = vmatmul.mubr.f32.gmra.mrb[0].mxu0 %v1246
        %v1710 = vpop.f32.mrb[0].mxu0
        %v1711 = vadd.f32 %v1486, %v1710
        %v1712 = vpop.f32.mrb[0].mxu0
        %1713 = vmatprep.mubr.f32.mxu0 0.0
        %1714 = vmatmul.mubr.f32.gmra.mrb[0].mxu0 %v1247
        %v1715 = vpop.f32.mrb[0].mxu0
        %v1716 = vadd.f32 %v1491, %v1715
        %v1717 = vpop.f32.mrb[0].mxu0
        %1718 = vmatprep.mubr.f32.mxu0 0.0
        %1719 = vmatmul.mubr.f32.gmra.mrb[0].mxu0 %v1248
        %v1720 = vpop.f32.mrb[0].mxu0
        %v1721 = vadd.f32 %v1496, %v1720
        %v1722 = vpop.f32.mrb[0].mxu0
        %1723 = vmatprep.mubr.f32.mxu0 0.0
        %1724 = vmatmul.mubr.f32.gmra.mrb[0].mxu0 %v1249
        %v1725 = vpop.f32.mrb[0].mxu0
        %v1726 = vadd.f32 %v1501, %v1725
        %v1727 = vpop.f32.mrb[0].mxu0
        %1728 = vmatprep.mubr.f32.mxu0 0.0
        %1729 = vmatmul.mubr.f32.gmra.mrb[0].mxu0 %v1250
        %v1730 = vpop.f32.mrb[0].mxu0
        %v1731 = vadd.f32 %v1506, %v1730
        %v1732 = vpop.f32.mrb[0].mxu0
        %1733 = vmatprep.mubr.f32.mxu0 0.0
        %1734 = vmatmul.mubr.f32.gmra.mrb[0].mxu0 %v1251
        %v1735 = vpop.f32.mrb[0].mxu0
        %v1736 = vadd.f32 %v1511, %v1735
        %v1737 = vpop.f32.mrb[0].mxu0
        %1738 = vmatprep.mubr.f32.mxu0 0.0
        %1739 = vmatmul.mubr.f32.gmra.mrb[0].mxu0 %v1252
        %v1740 = vpop.f32.mrb[0].mxu0
        %v1741 = vadd.f32 %v1516, %v1740
        %v1742 = vpop.f32.mrb[0].mxu0
        %1743 = vmatprep.mubr.f32.mxu0 0.0
        %1744 = vmatmul.mubr.f32.gmra.mrb[0].mxu0 %v1253
        %v1745 = vpop.f32.mrb[0].mxu0
        %v1746 = vadd.f32 %v1521, %v1745
        %v1747 = vpop.f32.mrb[0].mxu0
        %1748 = vmatprep.mubr.f32.mxu0 0.0
        %1749 = vmatmul.mubr.f32.gmra.mrb[0].mxu0 %v1254
        %v1750 = vpop.f32.mrb[0].mxu0
        %v1751 = vadd.f32 %v1526, %v1750
        %v1752 = vpop.f32.mrb[0].mxu0
        %1753 = vmatprep.mubr.f32.mxu0 0.0
        %1754 = vmatmul.mubr.f32.gmra.mrb[0].mxu0 %v1255
        %v1755 = vpop.f32.mrb[0].mxu0
        %v1756 = vadd.f32 %v1531, %v1755
        %v1757 = vpop.f32.mrb[0].mxu0
        %1758 = vmatprep.mubr.f32.mxu0 0.0
        %1759 = vmatmul.mubr.f32.gmra.mrb[0].mxu0 %v1256
        %v1760 = vpop.f32.mrb[0].mxu0
        %v1761 = vadd.f32 %v1536, %v1760
        %v1762 = vpop.f32.mrb[0].mxu0
        %1763 = vmatprep.mubr.f32.mxu0 0.0
        %1764 = vmatmul.mubr.f32.gmra.mrb[0].mxu0 %v1257
        %v1765 = vpop.f32.mrb[0].mxu0
        %v1766 = vadd.f32 %v1541, %v1765
        %v1767 = vpop.f32.mrb[0].mxu0
        %1768 = vmatprep.mubr.f32.mxu0 0.0
        %1769 = vmatmul.mubr.f32.gmra.mrb[0].mxu0 %v1258
        %v1770 = vpop.f32.mrb[0].mxu0
        %v1771 = vadd.f32 %v1546, %v1770
        %v1772 = vpop.f32.mrb[0].mxu0
        %1773 = vmatprep.mubr.f32.mxu0 0.0
        %1774 = vmatmul.mubr.f32.gmra.mrb[0].mxu0 %v1259
        %v1775 = vpop.f32.mrb[0].mxu0
        %v1776 = vadd.f32 %v1551, %v1775
        %v1777 = vpop.f32.mrb[0].mxu0
        %1778 = vmatprep.mubr.f32.mxu0 0.0
        %1779 = vmatmul.mubr.f32.gmra.mrb[0].mxu0 %v1260
        %v1780 = vpop.f32.mrb[0].mxu0
        %v1781 = vadd.f32 %v1556, %v1780
        %v1782 = vpop.f32.mrb[0].mxu0
        %1783 = vmatprep.mubr.f32.mxu0 0.0
        %1784 = vmatmul.mubr.f32.gmra.mrb[0].mxu0 %v1261
        %v1785 = vpop.f32.mrb[0].mxu0
        %v1786 = vadd.f32 %v1561, %v1785
        %v1787 = vpop.f32.mrb[0].mxu0
        %1788 = vmatprep.mubr.f32.mxu0 0.0
        %1789 = vmatmul.mubr.f32.gmra.mrb[0].mxu0 %v1262
        %v1790 = vpop.f32.mrb[0].mxu0
        %v1791 = vadd.f32 %v1566, %v1790
        %v1792 = vpop.f32.mrb[0].mxu0
        %1793 = vdwg.mxu0
        %v1794 = vadd.f32 %v1263, %v1636
        %v1795 = vadd.f32 %v1264, %v1641
        %v1796 = vadd.f32 %v1265, %v1646
        %v1797 = vadd.f32 %v1266, %v1651
        %v1798 = vadd.f32 %v1267, %v1656
        %v1799 = vadd.f32 %v1268, %v1661
        %v1800 = vadd.f32 %v1269, %v1666
        %v1801 = vadd.f32 %v1270, %v1671
        %v1802 = vadd.f32 %v1271, %v1676
        %v1803 = vadd.f32 %v1272, %v1681
        %v1804 = vadd.f32 %v1273, %v1686
        %v1805 = vadd.f32 %v1274, %v1691
        %v1806 = vadd.f32 %v1275, %v1696
        %v1807 = vadd.f32 %v1276, %v1701
        %v1808 = vadd.f32 %v1277, %v1706
        %v1809 = vadd.f32 %v1278, %v1711
        %v1810 = vadd.f32 %v1279, %v1716
        %v1811 = vadd.f32 %v1280, %v1721
        %v1812 = vadd.f32 %v1281, %v1726
        %v1813 = vadd.f32 %v1282, %v1731
        %v1814 = vadd.f32 %v1283, %v1736
        %v1815 = vadd.f32 %v1284, %v1741
        %v1816 = vadd.f32 %v1285, %v1746
        %v1817 = vadd.f32 %v1286, %v1751
        %v1818 = vadd.f32 %v1287, %v1756
        %v1819 = vadd.f32 %v1288, %v1761
        %v1820 = vadd.f32 %v1289, %v1766
        %v1821 = vadd.f32 %v1290, %v1771
        %v1822 = vadd.f32 %v1291, %v1776
        %v1823 = vadd.f32 %v1292, %v1781
        %v1824 = vadd.f32 %v1293, %v1786
        %v1825 = vadd.f32 %v1294, %v1791
        %1826 = vst [vmem:[#allocation4] sm:$0xff] %v1794
        %1827 = vst [vmem:[#allocation4 + $0x8] sm:$0xff] %v1795
        %1828 = vst [vmem:[#allocation4 + $0x10] sm:$0xff] %v1796
        %1829 = vst [vmem:[#allocation4 + $0x18] sm:$0xff] %v1797
        %1830 = vst [vmem:[#allocation4 + $0x20] sm:$0xff] %v1798
        %1831 = vst [vmem:[#allocation4 + $0x28] sm:$0xff] %v1799
        %1832 = vst [vmem:[#allocation4 + $0x30] sm:$0xff] %v1800
        %1833 = vst [vmem:[#allocation4 + $0x38] sm:$0xff] %v1801
        %1834 = vst [vmem:[#allocation4 + $0x40] sm:$0xff] %v1802
        %1835 = vst [vmem:[#allocation4 + $0x48] sm:$0xff] %v1803
        %1836 = vst [vmem:[#allocation4 + $0x50] sm:$0xff] %v1804
        %1837 = vst [vmem:[#allocation4 + $0x58] sm:$0xff] %v1805
        %1838 = vst [vmem:[#allocation4 + $0x60] sm:$0xff] %v1806
        %1839 = vst [vmem:[#allocation4 + $0x68] sm:$0xff] %v1807
        %1840 = vst [vmem:[#allocation4 + $0x70] sm:$0xff] %v1808
        %1841 = vst [vmem:[#allocation4 + $0x78] sm:$0xff] %v1809
        %1842 = vst [vmem:[#allocation4 + $0x80] sm:$0xff] %v1810
        %1843 = vst [vmem:[#allocation4 + $0x88] sm:$0xff] %v1811
        %1844 = vst [vmem:[#allocation4 + $0x90] sm:$0xff] %v1812
        %1845 = vst [vmem:[#allocation4 + $0x98] sm:$0xff] %v1813
        %1846 = vst [vmem:[#allocation4 + $0xa0] sm:$0xff] %v1814
        %1847 = vst [vmem:[#allocation4 + $0xa8] sm:$0xff] %v1815
        %1848 = vst [vmem:[#allocation4 + $0xb0] sm:$0xff] %v1816
        %1849 = vst [vmem:[#allocation4 + $0xb8] sm:$0xff] %v1817
        %1850 = vst [vmem:[#allocation4 + $0xc0] sm:$0xff] %v1818
        %1851 = vst [vmem:[#allocation4 + $0xc8] sm:$0xff] %v1819
        %1852 = vst [vmem:[#allocation4 + $0xd0] sm:$0xff] %v1820
        %1853 = vst [vmem:[#allocation4 + $0xd8] sm:$0xff] %v1821
        %1854 = vst [vmem:[#allocation4 + $0xe0] sm:$0xff] %v1822
        %1855 = vst [vmem:[#allocation4 + $0xe8] sm:$0xff] %v1823
        %1856 = vst [vmem:[#allocation4 + $0xf0] sm:$0xff] %v1824
        %1857 = vst [vmem:[#allocation4 + $0xf8] sm:$0xff] %v1825
        %s1858 = scalar_lea.vmem [#allocation2], 48
        %v1859 = vld [vmem:[%s1858] sm:$0xff]
        %v1860 = vld [vmem:[%s1858 + $0x8] sm:$0xff]
        %v1861 = vld [vmem:[%s1858 + $0x18] sm:$0xff]
        %v1862 = vld [vmem:[%s1858 + $0x20] sm:$0xff]
        %v1863 = vld [vmem:[%s1858 + $0x30] sm:$0xff]
        %v1864 = vld [vmem:[%s1858 + $0x38] sm:$0xff]
        %v1865 = vld [vmem:[%s1858 + $0x48] sm:$0xff]
        %v1866 = vld [vmem:[%s1858 + $0x50] sm:$0xff]
        %v1867 = vld [vmem:[%s1858 + $0x60] sm:$0xff]
        %v1868 = vld [vmem:[%s1858 + $0x68] sm:$0xff]
        %v1869 = vld [vmem:[%s1858 + $0x78] sm:$0xff]
        %v1870 = vld [vmem:[%s1858 + $0x80] sm:$0xff]
        %v1871 = vld [vmem:[%s1858 + $0x90] sm:$0xff]
        %v1872 = vld [vmem:[%s1858 + $0x98] sm:$0xff]
        %v1873 = vld [vmem:[%s1858 + $0xa8] sm:$0xff]
        %v1874 = vld [vmem:[%s1858 + $0xb0] sm:$0xff]
        %v1875 = vld [vmem:[%s1858 + $0xc0] sm:$0xff]
        %v1876 = vld [vmem:[%s1858 + $0xc8] sm:$0xff]
        %v1877 = vld [vmem:[%s1858 + $0xd8] sm:$0xff]
        %v1878 = vld [vmem:[%s1858 + $0xe0] sm:$0xff]
        %v1879 = vld [vmem:[%s1858 + $0xf0] sm:$0xff]
        %v1880 = vld [vmem:[%s1858 + $0xf8] sm:$0xff]
        %v1881 = vld [vmem:[%s1858 + $0x108] sm:$0xff]
        %v1882 = vld [vmem:[%s1858 + $0x110] sm:$0xff]
        %v1883 = vld [vmem:[%s1858 + $0x120] sm:$0xff]
        %v1884 = vld [vmem:[%s1858 + $0x128] sm:$0xff]
        %v1885 = vld [vmem:[%s1858 + $0x138] sm:$0xff]
        %v1886 = vld [vmem:[%s1858 + $0x140] sm:$0xff]
        %v1887 = vld [vmem:[%s1858 + $0x150] sm:$0xff]
        %v1888 = vld [vmem:[%s1858 + $0x158] sm:$0xff]
        %v1889 = vld [vmem:[%s1858 + $0x168] sm:$0xff]
        %v1890 = vld [vmem:[%s1858 + $0x170] sm:$0xff]
        %v1891 = vld [vmem:[%s1858 + $0x1] sm:$0xff]
        %v1892 = vld [vmem:[%s1858 + $0x9] sm:$0xff]
        %v1893 = vld [vmem:[%s1858 + $0x19] sm:$0xff]
        %v1894 = vld [vmem:[%s1858 + $0x21] sm:$0xff]
        %v1895 = vld [vmem:[%s1858 + $0x31] sm:$0xff]
        %v1896 = vld [vmem:[%s1858 + $0x39] sm:$0xff]
        %v1897 = vld [vmem:[%s1858 + $0x49] sm:$0xff]
        %v1898 = vld [vmem:[%s1858 + $0x51] sm:$0xff]
        %v1899 = vld [vmem:[%s1858 + $0x61] sm:$0xff]
        %v1900 = vld [vmem:[%s1858 + $0x69] sm:$0xff]
        %v1901 = vld [vmem:[%s1858 + $0x79] sm:$0xff]
        %v1902 = vld [vmem:[%s1858 + $0x81] sm:$0xff]
        %v1903 = vld [vmem:[%s1858 + $0x91] sm:$0xff]
        %v1904 = vld [vmem:[%s1858 + $0x99] sm:$0xff]
        %v1905 = vld [vmem:[%s1858 + $0xa9] sm:$0xff]
        %v1906 = vld [vmem:[%s1858 + $0xb1] sm:$0xff]
        %v1907 = vld [vmem:[%s1858 + $0xc1] sm:$0xff]
        %v1908 = vld [vmem:[%s1858 + $0xc9] sm:$0xff]
        %v1909 = vld [vmem:[%s1858 + $0xd9] sm:$0xff]
        %v1910 = vld [vmem:[%s1858 + $0xe1] sm:$0xff]
        %v1911 = vld [vmem:[%s1858 + $0xf1] sm:$0xff]
        %v1912 = vld [vmem:[%s1858 + $0xf9] sm:$0xff]
        %v1913 = vld [vmem:[%s1858 + $0x109] sm:$0xff]
        %v1914 = vld [vmem:[%s1858 + $0x111] sm:$0xff]
        %v1915 = vld [vmem:[%s1858 + $0x121] sm:$0xff]
        %v1916 = vld [vmem:[%s1858 + $0x129] sm:$0xff]
        %v1917 = vld [vmem:[%s1858 + $0x139] sm:$0xff]
        %v1918 = vld [vmem:[%s1858 + $0x141] sm:$0xff]
        %v1919 = vld [vmem:[%s1858 + $0x151] sm:$0xff]
        %v1920 = vld [vmem:[%s1858 + $0x159] sm:$0xff]
        %v1921 = vld [vmem:[%s1858 + $0x169] sm:$0xff]
        %v1922 = vld [vmem:[%s1858 + $0x171] sm:$0xff]
        %v1923 = vld [vmem:[%s1858 + $0x2] sm:$0xff]
        %v1924 = vld [vmem:[%s1858 + $0xa] sm:$0xff]
        %v1925 = vld [vmem:[%s1858 + $0x1a] sm:$0xff]
        %v1926 = vld [vmem:[%s1858 + $0x22] sm:$0xff]
        %v1927 = vld [vmem:[%s1858 + $0x32] sm:$0xff]
        %v1928 = vld [vmem:[%s1858 + $0x3a] sm:$0xff]
        %v1929 = vld [vmem:[%s1858 + $0x4a] sm:$0xff]
        %v1930 = vld [vmem:[%s1858 + $0x52] sm:$0xff]
        %v1931 = vld [vmem:[%s1858 + $0x62] sm:$0xff]
        %v1932 = vld [vmem:[%s1858 + $0x6a] sm:$0xff]
        %v1933 = vld [vmem:[%s1858 + $0x7a] sm:$0xff]
        %v1934 = vld [vmem:[%s1858 + $0x82] sm:$0xff]
        %v1935 = vld [vmem:[%s1858 + $0x92] sm:$0xff]
        %v1936 = vld [vmem:[%s1858 + $0x9a] sm:$0xff]
        %v1937 = vld [vmem:[%s1858 + $0xaa] sm:$0xff]
        %v1938 = vld [vmem:[%s1858 + $0xb2] sm:$0xff]
        %v1939 = vld [vmem:[%s1858 + $0xc2] sm:$0xff]
        %v1940 = vld [vmem:[%s1858 + $0xca] sm:$0xff]
        %v1941 = vld [vmem:[%s1858 + $0xda] sm:$0xff]
        %v1942 = vld [vmem:[%s1858 + $0xe2] sm:$0xff]
        %v1943 = vld [vmem:[%s1858 + $0xf2] sm:$0xff]
        %v1944 = vld [vmem:[%s1858 + $0xfa] sm:$0xff]
        %v1945 = vld [vmem:[%s1858 + $0x10a] sm:$0xff]
        %v1946 = vld [vmem:[%s1858 + $0x112] sm:$0xff]
        %v1947 = vld [vmem:[%s1858 + $0x122] sm:$0xff]
        %v1948 = vld [vmem:[%s1858 + $0x12a] sm:$0xff]
        %v1949 = vld [vmem:[%s1858 + $0x13a] sm:$0xff]
        %v1950 = vld [vmem:[%s1858 + $0x142] sm:$0xff]
        %v1951 = vld [vmem:[%s1858 + $0x152] sm:$0xff]
        %v1952 = vld [vmem:[%s1858 + $0x15a] sm:$0xff]
        %v1953 = vld [vmem:[%s1858 + $0x16a] sm:$0xff]
        %v1954 = vld [vmem:[%s1858 + $0x172] sm:$0xff]
        %v1955 = vld [vmem:[#allocation4] sm:$0xff]
        %v1956 = vld [vmem:[#allocation4 + $0x8] sm:$0xff]
        %v1957 = vld [vmem:[#allocation4 + $0x10] sm:$0xff]
        %v1958 = vld [vmem:[#allocation4 + $0x18] sm:$0xff]
        %v1959 = vld [vmem:[#allocation4 + $0x20] sm:$0xff]
        %v1960 = vld [vmem:[#allocation4 + $0x28] sm:$0xff]
        %v1961 = vld [vmem:[#allocation4 + $0x30] sm:$0xff]
        %v1962 = vld [vmem:[#allocation4 + $0x38] sm:$0xff]
        %v1963 = vld [vmem:[#allocation4 + $0x40] sm:$0xff]
        %v1964 = vld [vmem:[#allocation4 + $0x48] sm:$0xff]
        %v1965 = vld [vmem:[#allocation4 + $0x50] sm:$0xff]
        %v1966 = vld [vmem:[#allocation4 + $0x58] sm:$0xff]
        %v1967 = vld [vmem:[#allocation4 + $0x60] sm:$0xff]
        %v1968 = vld [vmem:[#allocation4 + $0x68] sm:$0xff]
        %v1969 = vld [vmem:[#allocation4 + $0x70] sm:$0xff]
        %v1970 = vld [vmem:[#allocation4 + $0x78] sm:$0xff]
        %v1971 = vld [vmem:[#allocation4 + $0x80] sm:$0xff]
        %v1972 = vld [vmem:[#allocation4 + $0x88] sm:$0xff]
        %v1973 = vld [vmem:[#allocation4 + $0x90] sm:$0xff]
        %v1974 = vld [vmem:[#allocation4 + $0x98] sm:$0xff]
        %v1975 = vld [vmem:[#allocation4 + $0xa0] sm:$0xff]
        %v1976 = vld [vmem:[#allocation4 + $0xa8] sm:$0xff]
        %v1977 = vld [vmem:[#allocation4 + $0xb0] sm:$0xff]
        %v1978 = vld [vmem:[#allocation4 + $0xb8] sm:$0xff]
        %v1979 = vld [vmem:[#allocation4 + $0xc0] sm:$0xff]
        %v1980 = vld [vmem:[#allocation4 + $0xc8] sm:$0xff]
        %v1981 = vld [vmem:[#allocation4 + $0xd0] sm:$0xff]
        %v1982 = vld [vmem:[#allocation4 + $0xd8] sm:$0xff]
        %v1983 = vld [vmem:[#allocation4 + $0xe0] sm:$0xff]
        %v1984 = vld [vmem:[#allocation4 + $0xe8] sm:$0xff]
        %v1985 = vld [vmem:[#allocation4 + $0xf0] sm:$0xff]
        %v1986 = vld [vmem:[#allocation4 + $0xf8] sm:$0xff]
        %s1987 = scalar_lea.vmem [#allocation8], 768
        %v1988 = vld [vmem:[%s1987] sm:$0xff]
        %v1989 = vld [vmem:[%s1987 + $0x8] sm:$0xff]
        %v1990 = vld [vmem:[%s1987 + $0x10] sm:$0xff]
        %v1991 = vld [vmem:[%s1987 + $0x18] sm:$0xff]
        %v1992 = vld [vmem:[%s1987 + $0x20] sm:$0xff]
        %v1993 = vld [vmem:[%s1987 + $0x28] sm:$0xff]
        %v1994 = vld [vmem:[%s1987 + $0x30] sm:$0xff]
        %v1995 = vld [vmem:[%s1987 + $0x38] sm:$0xff]
        %v1996 = vld [vmem:[%s1987 + $0x40] sm:$0xff]
        %v1997 = vld [vmem:[%s1987 + $0x48] sm:$0xff]
        %v1998 = vld [vmem:[%s1987 + $0x50] sm:$0xff]
        %v1999 = vld [vmem:[%s1987 + $0x58] sm:$0xff]
        %v2000 = vld [vmem:[%s1987 + $0x60] sm:$0xff]
        %v2001 = vld [vmem:[%s1987 + $0x68] sm:$0xff]
        %v2002 = vld [vmem:[%s1987 + $0x70] sm:$0xff]
        %v2003 = vld [vmem:[%s1987 + $0x78] sm:$0xff]
        %v2004 = vld [vmem:[%s1987 + $0x80] sm:$0xff]
        %v2005 = vld [vmem:[%s1987 + $0x88] sm:$0xff]
        %v2006 = vld [vmem:[%s1987 + $0x90] sm:$0xff]
        %v2007 = vld [vmem:[%s1987 + $0x98] sm:$0xff]
        %v2008 = vld [vmem:[%s1987 + $0xa0] sm:$0xff]
        %v2009 = vld [vmem:[%s1987 + $0xa8] sm:$0xff]
        %v2010 = vld [vmem:[%s1987 + $0xb0] sm:$0xff]
        %v2011 = vld [vmem:[%s1987 + $0xb8] sm:$0xff]
        %v2012 = vld [vmem:[%s1987 + $0xc0] sm:$0xff]
        %v2013 = vld [vmem:[%s1987 + $0xc8] sm:$0xff]
        %v2014 = vld [vmem:[%s1987 + $0xd0] sm:$0xff]
        %v2015 = vld [vmem:[%s1987 + $0xd8] sm:$0xff]
        %v2016 = vld [vmem:[%s1987 + $0xe0] sm:$0xff]
        %v2017 = vld [vmem:[%s1987 + $0xe8] sm:$0xff]
        %v2018 = vld [vmem:[%s1987 + $0xf0] sm:$0xff]
        %v2019 = vld [vmem:[%s1987 + $0xf8] sm:$0xff]
        %v2020 = vld [vmem:[%s1987 + $0x100] sm:$0xff]
        %v2021 = vld [vmem:[%s1987 + $0x108] sm:$0xff]
        %v2022 = vld [vmem:[%s1987 + $0x110] sm:$0xff]
        %v2023 = vld [vmem:[%s1987 + $0x118] sm:$0xff]
        %v2024 = vld [vmem:[%s1987 + $0x120] sm:$0xff]
        %v2025 = vld [vmem:[%s1987 + $0x128] sm:$0xff]
        %v2026 = vld [vmem:[%s1987 + $0x130] sm:$0xff]
        %v2027 = vld [vmem:[%s1987 + $0x138] sm:$0xff]
        %v2028 = vld [vmem:[%s1987 + $0x140] sm:$0xff]
        %v2029 = vld [vmem:[%s1987 + $0x148] sm:$0xff]
        %v2030 = vld [vmem:[%s1987 + $0x150] sm:$0xff]
        %v2031 = vld [vmem:[%s1987 + $0x158] sm:$0xff]
        %v2032 = vld [vmem:[%s1987 + $0x160] sm:$0xff]
        %v2033 = vld [vmem:[%s1987 + $0x168] sm:$0xff]
        %v2034 = vld [vmem:[%s1987 + $0x170] sm:$0xff]
        %v2035 = vld [vmem:[%s1987 + $0x178] sm:$0xff]
        %2036 = vmatprep.subr.mxu0 0.0
        %2037 = vmatpush1.msra.mxu0 %v1988
        %2038 = vmatprep.subr.mxu0 0.0
        %2039 = vmatpush1.msra.mxu0 %v1989
        %2040 = vmatprep.subr.mxu0 0.0
        %2041 = vmatpush1.msra.mxu0 %v1990
        %2042 = vmatprep.subr.mxu0 0.0
        %2043 = vmatpush1.msra.mxu0 %v1991
        %2044 = vmatprep.subr.mxu0 0.0
        %2045 = vmatpush1.msra.mxu0 %v1992
        %2046 = vmatprep.subr.mxu0 0.0
        %2047 = vmatpush1.msra.mxu0 %v1993
        %2048 = vmatprep.subr.mxu0 0.0
        %2049 = vmatpush1.msra.mxu0 %v1994
        %2050 = vmatprep.subr.mxu0 0.0
        %2051 = vmatpush1.msra.mxu0 %v1995
        %2052 = vmatprep.subr.mxu0 0.0
        %2053 = vmatpush1.msra.mxu0 %v1996
        %2054 = vmatprep.subr.mxu0 0.0
        %2055 = vmatpush1.msra.mxu0 %v1997
        %2056 = vmatprep.subr.mxu0 0.0
        %2057 = vmatpush1.msra.mxu0 %v1998
        %2058 = vmatprep.subr.mxu0 0.0
        %2059 = vmatpush1.msra.mxu0 %v1999
        %2060 = vmatprep.subr.mxu0 0.0
        %2061 = vmatpush1.msra.mxu0 %v2000
        %2062 = vmatprep.subr.mxu0 0.0
        %2063 = vmatpush1.msra.mxu0 %v2001
        %2064 = vmatprep.subr.mxu0 0.0
        %2065 = vmatpush1.msra.mxu0 %v2002
        %2066 = vmatprep.subr.mxu0 0.0
        %2067 = vmatpush1.msra.mxu0 %v2003
        %2068 = vmatprep.subr.mxu0 0.0
        %2069 = vmatpush1.msra.mxu0 %v2004
        %2070 = vmatprep.subr.mxu0 0.0
        %2071 = vmatpush1.msra.mxu0 %v2005
        %2072 = vmatprep.subr.mxu0 0.0
        %2073 = vmatpush1.msra.mxu0 %v2006
        %2074 = vmatprep.subr.mxu0 0.0
        %2075 = vmatpush1.msra.mxu0 %v2007
        %2076 = vmatprep.subr.mxu0 0.0
        %2077 = vmatpush1.msra.mxu0 %v2008
        %2078 = vmatprep.subr.mxu0 0.0
        %2079 = vmatpush1.msra.mxu0 %v2009
        %2080 = vmatprep.subr.mxu0 0.0
        %2081 = vmatpush1.msra.mxu0 %v2010
        %2082 = vmatprep.subr.mxu0 0.0
        %2083 = vmatpush1.msra.mxu0 %v2011
        %2084 = vmatprep.subr.mxu0 0.0
        %2085 = vmatpush1.msra.mxu0 %v2012
        %2086 = vmatprep.subr.mxu0 0.0
        %2087 = vmatpush1.msra.mxu0 %v2013
        %2088 = vmatprep.subr.mxu0 0.0
        %2089 = vmatpush1.msra.mxu0 %v2014
        %2090 = vmatprep.subr.mxu0 0.0
        %2091 = vmatpush1.msra.mxu0 %v2015
        %2092 = vmatprep.subr.mxu0 0.0
        %2093 = vmatpush1.msra.mxu0 %v2016
        %2094 = vmatprep.subr.mxu0 0.0
        %2095 = vmatpush1.msra.mxu0 %v2017
        %2096 = vmatprep.subr.mxu0 0.0
        %2097 = vmatpush1.msra.mxu0 %v2018
        %2098 = vmatprep.subr.mxu0 0.0
        %2099 = vmatpush1.msra.mxu0 %v2019
        %2100 = vmatprep.mubr.f32.mxu0 %v1891
        %2101 = vmatmul.mubr.f32.gmra.mrb[0].mxu0 %v1859
        %v2102 = vpop.f32.mrb[0].mxu0
        %v2103 = vadd.f32 0.0, %v2102
        %v2104 = vpop.f32.mrb[0].mxu0
        %2105 = vmatprep.mubr.f32.mxu0 %v1892
        %2106 = vmatmul.mubr.f32.gmra.mrb[0].mxu0 %v1860
        %v2107 = vpop.f32.mrb[0].mxu0
        %v2108 = vadd.f32 0.0, %v2107
        %v2109 = vpop.f32.mrb[0].mxu0
        %2110 = vmatprep.mubr.f32.mxu0 %v1893
        %2111 = vmatmul.mubr.f32.gmra.mrb[0].mxu0 %v1861
        %v2112 = vpop.f32.mrb[0].mxu0
        %v2113 = vadd.f32 0.0, %v2112
        %v2114 = vpop.f32.mrb[0].mxu0
        %2115 = vmatprep.mubr.f32.mxu0 %v1894
        %2116 = vmatmul.mubr.f32.gmra.mrb[0].mxu0 %v1862
        %v2117 = vpop.f32.mrb[0].mxu0
        %v2118 = vadd.f32 0.0, %v2117
        %v2119 = vpop.f32.mrb[0].mxu0
        %2120 = vmatprep.mubr.f32.mxu0 %v1895
        %2121 = vmatmul.mubr.f32.gmra.mrb[0].mxu0 %v1863
        %v2122 = vpop.f32.mrb[0].mxu0
        %v2123 = vadd.f32 0.0, %v2122
        %v2124 = vpop.f32.mrb[0].mxu0
        %2125 = vmatprep.mubr.f32.mxu0 %v1896
        %2126 = vmatmul.mubr.f32.gmra.mrb[0].mxu0 %v1864
        %v2127 = vpop.f32.mrb[0].mxu0
        %v2128 = vadd.f32 0.0, %v2127
        %v2129 = vpop.f32.mrb[0].mxu0
        %2130 = vmatprep.mubr.f32.mxu0 %v1897
        %2131 = vmatmul.mubr.f32.gmra.mrb[0].mxu0 %v1865
        %v2132 = vpop.f32.mrb[0].mxu0
        %v2133 = vadd.f32 0.0, %v2132
        %v2134 = vpop.f32.mrb[0].mxu0
        %2135 = vmatprep.mubr.f32.mxu0 %v1898
        %2136 = vmatmul.mubr.f32.gmra.mrb[0].mxu0 %v1866
        %v2137 = vpop.f32.mrb[0].mxu0
        %v2138 = vadd.f32 0.0, %v2137
        %v2139 = vpop.f32.mrb[0].mxu0
        %2140 = vmatprep.mubr.f32.mxu0 %v1899
        %2141 = vmatmul.mubr.f32.gmra.mrb[0].mxu0 %v1867
        %v2142 = vpop.f32.mrb[0].mxu0
        %v2143 = vadd.f32 0.0, %v2142
        %v2144 = vpop.f32.mrb[0].mxu0
        %2145 = vmatprep.mubr.f32.mxu0 %v1900
        %2146 = vmatmul.mubr.f32.gmra.mrb[0].mxu0 %v1868
        %v2147 = vpop.f32.mrb[0].mxu0
        %v2148 = vadd.f32 0.0, %v2147
        %v2149 = vpop.f32.mrb[0].mxu0
        %2150 = vmatprep.mubr.f32.mxu0 %v1901
        %2151 = vmatmul.mubr.f32.gmra.mrb[0].mxu0 %v1869
        %v2152 = vpop.f32.mrb[0].mxu0
        %v2153 = vadd.f32 0.0, %v2152
        %v2154 = vpop.f32.mrb[0].mxu0
        %2155 = vmatprep.mubr.f32.mxu0 %v1902
        %2156 = vmatmul.mubr.f32.gmra.mrb[0].mxu0 %v1870
        %v2157 = vpop.f32.mrb[0].mxu0
        %v2158 = vadd.f32 0.0, %v2157
        %v2159 = vpop.f32.mrb[0].mxu0
        %2160 = vmatprep.mubr.f32.mxu0 %v1903
        %2161 = vmatmul.mubr.f32.gmra.mrb[0].mxu0 %v1871
        %v2162 = vpop.f32.mrb[0].mxu0
        %v2163 = vadd.f32 0.0, %v2162
        %v2164 = vpop.f32.mrb[0].mxu0
        %2165 = vmatprep.mubr.f32.mxu0 %v1904
        %2166 = vmatmul.mubr.f32.gmra.mrb[0].mxu0 %v1872
        %v2167 = vpop.f32.mrb[0].mxu0
        %v2168 = vadd.f32 0.0, %v2167
        %v2169 = vpop.f32.mrb[0].mxu0
        %2170 = vmatprep.mubr.f32.mxu0 %v1905
        %2171 = vmatmul.mubr.f32.gmra.mrb[0].mxu0 %v1873
        %v2172 = vpop.f32.mrb[0].mxu0
        %v2173 = vadd.f32 0.0, %v2172
        %v2174 = vpop.f32.mrb[0].mxu0
        %2175 = vmatprep.mubr.f32.mxu0 %v1906
        %2176 = vmatmul.mubr.f32.gmra.mrb[0].mxu0 %v1874
        %v2177 = vpop.f32.mrb[0].mxu0
        %v2178 = vadd.f32 0.0, %v2177
        %v2179 = vpop.f32.mrb[0].mxu0
        %2180 = vmatprep.mubr.f32.mxu0 %v1907
        %2181 = vmatmul.mubr.f32.gmra.mrb[0].mxu0 %v1875
        %v2182 = vpop.f32.mrb[0].mxu0
        %v2183 = vadd.f32 0.0, %v2182
        %v2184 = vpop.f32.mrb[0].mxu0
        %2185 = vmatprep.mubr.f32.mxu0 %v1908
        %2186 = vmatmul.mubr.f32.gmra.mrb[0].mxu0 %v1876
        %v2187 = vpop.f32.mrb[0].mxu0
        %v2188 = vadd.f32 0.0, %v2187
        %v2189 = vpop.f32.mrb[0].mxu0
        %2190 = vmatprep.mubr.f32.mxu0 %v1909
        %2191 = vmatmul.mubr.f32.gmra.mrb[0].mxu0 %v1877
        %v2192 = vpop.f32.mrb[0].mxu0
        %v2193 = vadd.f32 0.0, %v2192
        %v2194 = vpop.f32.mrb[0].mxu0
        %2195 = vmatprep.mubr.f32.mxu0 %v1910
        %2196 = vmatmul.mubr.f32.gmra.mrb[0].mxu0 %v1878
        %v2197 = vpop.f32.mrb[0].mxu0
        %v2198 = vadd.f32 0.0, %v2197
        %v2199 = vpop.f32.mrb[0].mxu0
        %2200 = vmatprep.mubr.f32.mxu0 %v1911
        %2201 = vmatmul.mubr.f32.gmra.mrb[0].mxu0 %v1879
        %v2202 = vpop.f32.mrb[0].mxu0
        %v2203 = vadd.f32 0.0, %v2202
        %v2204 = vpop.f32.mrb[0].mxu0
        %2205 = vmatprep.mubr.f32.mxu0 %v1912
        %2206 = vmatmul.mubr.f32.gmra.mrb[0].mxu0 %v1880
        %v2207 = vpop.f32.mrb[0].mxu0
        %v2208 = vadd.f32 0.0, %v2207
        %v2209 = vpop.f32.mrb[0].mxu0
        %2210 = vmatprep.mubr.f32.mxu0 %v1913
        %2211 = vmatmul.mubr.f32.gmra.mrb[0].mxu0 %v1881
        %v2212 = vpop.f32.mrb[0].mxu0
        %v2213 = vadd.f32 0.0, %v2212
        %v2214 = vpop.f32.mrb[0].mxu0
        %2215 = vmatprep.mubr.f32.mxu0 %v1914
        %2216 = vmatmul.mubr.f32.gmra.mrb[0].mxu0 %v1882
        %v2217 = vpop.f32.mrb[0].mxu0
        %v2218 = vadd.f32 0.0, %v2217
        %v2219 = vpop.f32.mrb[0].mxu0
        %2220 = vmatprep.mubr.f32.mxu0 %v1915
        %2221 = vmatmul.mubr.f32.gmra.mrb[0].mxu0 %v1883
        %v2222 = vpop.f32.mrb[0].mxu0
        %v2223 = vadd.f32 0.0, %v2222
        %v2224 = vpop.f32.mrb[0].mxu0
        %2225 = vmatprep.mubr.f32.mxu0 %v1916
        %2226 = vmatmul.mubr.f32.gmra.mrb[0].mxu0 %v1884
        %v2227 = vpop.f32.mrb[0].mxu0
        %v2228 = vadd.f32 0.0, %v2227
        %v2229 = vpop.f32.mrb[0].mxu0
        %2230 = vmatprep.mubr.f32.mxu0 %v1917
        %2231 = vmatmul.mubr.f32.gmra.mrb[0].mxu0 %v1885
        %v2232 = vpop.f32.mrb[0].mxu0
        %v2233 = vadd.f32 0.0, %v2232
        %v2234 = vpop.f32.mrb[0].mxu0
        %2235 = vmatprep.mubr.f32.mxu0 %v1918
        %2236 = vmatmul.mubr.f32.gmra.mrb[0].mxu0 %v1886
        %v2237 = vpop.f32.mrb[0].mxu0
        %v2238 = vadd.f32 0.0, %v2237
        %v2239 = vpop.f32.mrb[0].mxu0
        %2240 = vmatprep.mubr.f32.mxu0 %v1919
        %2241 = vmatmul.mubr.f32.gmra.mrb[0].mxu0 %v1887
        %v2242 = vpop.f32.mrb[0].mxu0
        %v2243 = vadd.f32 0.0, %v2242
        %v2244 = vpop.f32.mrb[0].mxu0
        %2245 = vmatprep.mubr.f32.mxu0 %v1920
        %2246 = vmatmul.mubr.f32.gmra.mrb[0].mxu0 %v1888
        %v2247 = vpop.f32.mrb[0].mxu0
        %v2248 = vadd.f32 0.0, %v2247
        %v2249 = vpop.f32.mrb[0].mxu0
        %2250 = vmatprep.mubr.f32.mxu0 %v1921
        %2251 = vmatmul.mubr.f32.gmra.mrb[0].mxu0 %v1889
        %v2252 = vpop.f32.mrb[0].mxu0
        %v2253 = vadd.f32 0.0, %v2252
        %v2254 = vpop.f32.mrb[0].mxu0
        %2255 = vmatprep.mubr.f32.mxu0 %v1922
        %2256 = vmatmul.mubr.f32.gmra.mrb[0].mxu0 %v1890
        %v2257 = vpop.f32.mrb[0].mxu0
        %v2258 = vadd.f32 0.0, %v2257
        %v2259 = vpop.f32.mrb[0].mxu0
        %2260 = vdwg.mxu0
        %2261 = vmatprep.subr.mxu0 0.0
        %2262 = vmatpush1.msra.mxu0 %v2020
        %2263 = vmatprep.subr.mxu0 0.0
        %2264 = vmatpush1.msra.mxu0 %v2021
        %2265 = vmatprep.subr.mxu0 0.0
        %2266 = vmatpush1.msra.mxu0 %v2022
        %2267 = vmatprep.subr.mxu0 0.0
        %2268 = vmatpush1.msra.mxu0 %v2023
        %2269 = vmatprep.subr.mxu0 0.0
        %2270 = vmatpush1.msra.mxu0 %v2024
        %2271 = vmatprep.subr.mxu0 0.0
        %2272 = vmatpush1.msra.mxu0 %v2025
        %2273 = vmatprep.subr.mxu0 0.0
        %2274 = vmatpush1.msra.mxu0 %v2026
        %2275 = vmatprep.subr.mxu0 0.0
        %2276 = vmatpush1.msra.mxu0 %v2027
        %2277 = vmatprep.subr.mxu0 0.0
        %2278 = vmatpush1.msra.mxu0 %v2028
        %2279 = vmatprep.subr.mxu0 0.0
        %2280 = vmatpush1.msra.mxu0 %v2029
        %2281 = vmatprep.subr.mxu0 0.0
        %2282 = vmatpush1.msra.mxu0 %v2030
        %2283 = vmatprep.subr.mxu0 0.0
        %2284 = vmatpush1.msra.mxu0 %v2031
        %2285 = vmatprep.subr.mxu0 0.0
        %2286 = vmatpush1.msra.mxu0 %v2032
        %2287 = vmatprep.subr.mxu0 0.0
        %2288 = vmatpush1.msra.mxu0 %v2033
        %2289 = vmatprep.subr.mxu0 0.0
        %2290 = vmatpush1.msra.mxu0 %v2034
        %2291 = vmatprep.subr.mxu0 0.0
        %2292 = vmatpush1.msra.mxu0 %v2035
        %2293 = vmatprep.subr.mxu0 0.0
        %2294 = vmatpush1.msra.mxu0 0.0
        %2295 = vmatprep.subr.mxu0 0.0
        %2296 = vmatpush1.msra.mxu0 0.0
        %2297 = vmatprep.subr.mxu0 0.0
        %2298 = vmatpush1.msra.mxu0 0.0
        %2299 = vmatprep.subr.mxu0 0.0
        %2300 = vmatpush1.msra.mxu0 0.0
        %2301 = vmatprep.subr.mxu0 0.0
        %2302 = vmatpush1.msra.mxu0 0.0
        %2303 = vmatprep.subr.mxu0 0.0
        %2304 = vmatpush1.msra.mxu0 0.0
        %2305 = vmatprep.subr.mxu0 0.0
        %2306 = vmatpush1.msra.mxu0 0.0
        %2307 = vmatprep.subr.mxu0 0.0
        %2308 = vmatpush1.msra.mxu0 0.0
        %2309 = vmatprep.subr.mxu0 0.0
        %2310 = vmatpush1.msra.mxu0 0.0
        %2311 = vmatprep.subr.mxu0 0.0
        %2312 = vmatpush1.msra.mxu0 0.0
        %2313 = vmatprep.subr.mxu0 0.0
        %2314 = vmatpush1.msra.mxu0 0.0
        %2315 = vmatprep.subr.mxu0 0.0
        %2316 = vmatpush1.msra.mxu0 0.0
        %2317 = vmatprep.subr.mxu0 0.0
        %2318 = vmatpush1.msra.mxu0 0.0
        %2319 = vmatprep.subr.mxu0 0.0
        %2320 = vmatpush1.msra.mxu0 0.0
        %2321 = vmatprep.subr.mxu0 0.0
        %2322 = vmatpush1.msra.mxu0 0.0
        %2323 = vmatprep.subr.mxu0 0.0
        %2324 = vmatpush1.msra.mxu0 0.0
        %2325 = vmatprep.mubr.f32.mxu0 0.0
        %2326 = vmatmul.mubr.f32.gmra.mrb[0].mxu0 %v1923
        %v2327 = vpop.f32.mrb[0].mxu0
        %v2328 = vadd.f32 %v2103, %v2327
        %v2329 = vpop.f32.mrb[0].mxu0
        %2330 = vmatprep.mubr.f32.mxu0 0.0
        %2331 = vmatmul.mubr.f32.gmra.mrb[0].mxu0 %v1924
        %v2332 = vpop.f32.mrb[0].mxu0
        %v2333 = vadd.f32 %v2108, %v2332
        %v2334 = vpop.f32.mrb[0].mxu0
        %2335 = vmatprep.mubr.f32.mxu0 0.0
        %2336 = vmatmul.mubr.f32.gmra.mrb[0].mxu0 %v1925
        %v2337 = vpop.f32.mrb[0].mxu0
        %v2338 = vadd.f32 %v2113, %v2337
        %v2339 = vpop.f32.mrb[0].mxu0
        %2340 = vmatprep.mubr.f32.mxu0 0.0
        %2341 = vmatmul.mubr.f32.gmra.mrb[0].mxu0 %v1926
        %v2342 = vpop.f32.mrb[0].mxu0
        %v2343 = vadd.f32 %v2118, %v2342
        %v2344 = vpop.f32.mrb[0].mxu0
        %2345 = vmatprep.mubr.f32.mxu0 0.0
        %2346 = vmatmul.mubr.f32.gmra.mrb[0].mxu0 %v1927
        %v2347 = vpop.f32.mrb[0].mxu0
        %v2348 = vadd.f32 %v2123, %v2347
        %v2349 = vpop.f32.mrb[0].mxu0
        %2350 = vmatprep.mubr.f32.mxu0 0.0
        %2351 = vmatmul.mubr.f32.gmra.mrb[0].mxu0 %v1928
        %v2352 = vpop.f32.mrb[0].mxu0
        %v2353 = vadd.f32 %v2128, %v2352
        %v2354 = vpop.f32.mrb[0].mxu0
        %2355 = vmatprep.mubr.f32.mxu0 0.0
        %2356 = vmatmul.mubr.f32.gmra.mrb[0].mxu0 %v1929
        %v2357 = vpop.f32.mrb[0].mxu0
        %v2358 = vadd.f32 %v2133, %v2357
        %v2359 = vpop.f32.mrb[0].mxu0
        %2360 = vmatprep.mubr.f32.mxu0 0.0
        %2361 = vmatmul.mubr.f32.gmra.mrb[0].mxu0 %v1930
        %v2362 = vpop.f32.mrb[0].mxu0
        %v2363 = vadd.f32 %v2138, %v2362
        %v2364 = vpop.f32.mrb[0].mxu0
        %2365 = vmatprep.mubr.f32.mxu0 0.0
        %2366 = vmatmul.mubr.f32.gmra.mrb[0].mxu0 %v1931
        %v2367 = vpop.f32.mrb[0].mxu0
        %v2368 = vadd.f32 %v2143, %v2367
        %v2369 = vpop.f32.mrb[0].mxu0
        %2370 = vmatprep.mubr.f32.mxu0 0.0
        %2371 = vmatmul.mubr.f32.gmra.mrb[0].mxu0 %v1932
        %v2372 = vpop.f32.mrb[0].mxu0
        %v2373 = vadd.f32 %v2148, %v2372
        %v2374 = vpop.f32.mrb[0].mxu0
        %2375 = vmatprep.mubr.f32.mxu0 0.0
        %2376 = vmatmul.mubr.f32.gmra.mrb[0].mxu0 %v1933
        %v2377 = vpop.f32.mrb[0].mxu0
        %v2378 = vadd.f32 %v2153, %v2377
        %v2379 = vpop.f32.mrb[0].mxu0
        %2380 = vmatprep.mubr.f32.mxu0 0.0
        %2381 = vmatmul.mubr.f32.gmra.mrb[0].mxu0 %v1934
        %v2382 = vpop.f32.mrb[0].mxu0
        %v2383 = vadd.f32 %v2158, %v2382
        %v2384 = vpop.f32.mrb[0].mxu0
        %2385 = vmatprep.mubr.f32.mxu0 0.0
        %2386 = vmatmul.mubr.f32.gmra.mrb[0].mxu0 %v1935
        %v2387 = vpop.f32.mrb[0].mxu0
        %v2388 = vadd.f32 %v2163, %v2387
        %v2389 = vpop.f32.mrb[0].mxu0
        %2390 = vmatprep.mubr.f32.mxu0 0.0
        %2391 = vmatmul.mubr.f32.gmra.mrb[0].mxu0 %v1936
        %v2392 = vpop.f32.mrb[0].mxu0
        %v2393 = vadd.f32 %v2168, %v2392
        %v2394 = vpop.f32.mrb[0].mxu0
        %2395 = vmatprep.mubr.f32.mxu0 0.0
        %2396 = vmatmul.mubr.f32.gmra.mrb[0].mxu0 %v1937
        %v2397 = vpop.f32.mrb[0].mxu0
        %v2398 = vadd.f32 %v2173, %v2397
        %v2399 = vpop.f32.mrb[0].mxu0
        %2400 = vmatprep.mubr.f32.mxu0 0.0
        %2401 = vmatmul.mubr.f32.gmra.mrb[0].mxu0 %v1938
        %v2402 = vpop.f32.mrb[0].mxu0
        %v2403 = vadd.f32 %v2178, %v2402
        %v2404 = vpop.f32.mrb[0].mxu0
        %2405 = vmatprep.mubr.f32.mxu0 0.0
        %2406 = vmatmul.mubr.f32.gmra.mrb[0].mxu0 %v1939
        %v2407 = vpop.f32.mrb[0].mxu0
        %v2408 = vadd.f32 %v2183, %v2407
        %v2409 = vpop.f32.mrb[0].mxu0
        %2410 = vmatprep.mubr.f32.mxu0 0.0
        %2411 = vmatmul.mubr.f32.gmra.mrb[0].mxu0 %v1940
        %v2412 = vpop.f32.mrb[0].mxu0
        %v2413 = vadd.f32 %v2188, %v2412
        %v2414 = vpop.f32.mrb[0].mxu0
        %2415 = vmatprep.mubr.f32.mxu0 0.0
        %2416 = vmatmul.mubr.f32.gmra.mrb[0].mxu0 %v1941
        %v2417 = vpop.f32.mrb[0].mxu0
        %v2418 = vadd.f32 %v2193, %v2417
        %v2419 = vpop.f32.mrb[0].mxu0
        %2420 = vmatprep.mubr.f32.mxu0 0.0
        %2421 = vmatmul.mubr.f32.gmra.mrb[0].mxu0 %v1942
        %v2422 = vpop.f32.mrb[0].mxu0
        %v2423 = vadd.f32 %v2198, %v2422
        %v2424 = vpop.f32.mrb[0].mxu0
        %2425 = vmatprep.mubr.f32.mxu0 0.0
        %2426 = vmatmul.mubr.f32.gmra.mrb[0].mxu0 %v1943
        %v2427 = vpop.f32.mrb[0].mxu0
        %v2428 = vadd.f32 %v2203, %v2427
        %v2429 = vpop.f32.mrb[0].mxu0
        %2430 = vmatprep.mubr.f32.mxu0 0.0
        %2431 = vmatmul.mubr.f32.gmra.mrb[0].mxu0 %v1944
        %v2432 = vpop.f32.mrb[0].mxu0
        %v2433 = vadd.f32 %v2208, %v2432
        %v2434 = vpop.f32.mrb[0].mxu0
        %2435 = vmatprep.mubr.f32.mxu0 0.0
        %2436 = vmatmul.mubr.f32.gmra.mrb[0].mxu0 %v1945
        %v2437 = vpop.f32.mrb[0].mxu0
        %v2438 = vadd.f32 %v2213, %v2437
        %v2439 = vpop.f32.mrb[0].mxu0
        %2440 = vmatprep.mubr.f32.mxu0 0.0
        %2441 = vmatmul.mubr.f32.gmra.mrb[0].mxu0 %v1946
        %v2442 = vpop.f32.mrb[0].mxu0
        %v2443 = vadd.f32 %v2218, %v2442
        %v2444 = vpop.f32.mrb[0].mxu0
        %2445 = vmatprep.mubr.f32.mxu0 0.0
        %2446 = vmatmul.mubr.f32.gmra.mrb[0].mxu0 %v1947
        %v2447 = vpop.f32.mrb[0].mxu0
        %v2448 = vadd.f32 %v2223, %v2447
        %v2449 = vpop.f32.mrb[0].mxu0
        %2450 = vmatprep.mubr.f32.mxu0 0.0
        %2451 = vmatmul.mubr.f32.gmra.mrb[0].mxu0 %v1948
        %v2452 = vpop.f32.mrb[0].mxu0
        %v2453 = vadd.f32 %v2228, %v2452
        %v2454 = vpop.f32.mrb[0].mxu0
        %2455 = vmatprep.mubr.f32.mxu0 0.0
        %2456 = vmatmul.mubr.f32.gmra.mrb[0].mxu0 %v1949
        %v2457 = vpop.f32.mrb[0].mxu0
        %v2458 = vadd.f32 %v2233, %v2457
        %v2459 = vpop.f32.mrb[0].mxu0
        %2460 = vmatprep.mubr.f32.mxu0 0.0
        %2461 = vmatmul.mubr.f32.gmra.mrb[0].mxu0 %v1950
        %v2462 = vpop.f32.mrb[0].mxu0
        %v2463 = vadd.f32 %v2238, %v2462
        %v2464 = vpop.f32.mrb[0].mxu0
        %2465 = vmatprep.mubr.f32.mxu0 0.0
        %2466 = vmatmul.mubr.f32.gmra.mrb[0].mxu0 %v1951
        %v2467 = vpop.f32.mrb[0].mxu0
        %v2468 = vadd.f32 %v2243, %v2467
        %v2469 = vpop.f32.mrb[0].mxu0
        %2470 = vmatprep.mubr.f32.mxu0 0.0
        %2471 = vmatmul.mubr.f32.gmra.mrb[0].mxu0 %v1952
        %v2472 = vpop.f32.mrb[0].mxu0
        %v2473 = vadd.f32 %v2248, %v2472
        %v2474 = vpop.f32.mrb[0].mxu0
        %2475 = vmatprep.mubr.f32.mxu0 0.0
        %2476 = vmatmul.mubr.f32.gmra.mrb[0].mxu0 %v1953
        %v2477 = vpop.f32.mrb[0].mxu0
        %v2478 = vadd.f32 %v2253, %v2477
        %v2479 = vpop.f32.mrb[0].mxu0
        %2480 = vmatprep.mubr.f32.mxu0 0.0
        %2481 = vmatmul.mubr.f32.gmra.mrb[0].mxu0 %v1954
        %v2482 = vpop.f32.mrb[0].mxu0
        %v2483 = vadd.f32 %v2258, %v2482
        %v2484 = vpop.f32.mrb[0].mxu0
        %2485 = vdwg.mxu0
        %v2486 = vadd.f32 %v1955, %v2328
        %v2487 = vadd.f32 %v1956, %v2333
        %v2488 = vadd.f32 %v1957, %v2338
        %v2489 = vadd.f32 %v1958, %v2343
        %v2490 = vadd.f32 %v1959, %v2348
        %v2491 = vadd.f32 %v1960, %v2353
        %v2492 = vadd.f32 %v1961, %v2358
        %v2493 = vadd.f32 %v1962, %v2363
        %v2494 = vadd.f32 %v1963, %v2368
        %v2495 = vadd.f32 %v1964, %v2373
        %v2496 = vadd.f32 %v1965, %v2378
        %v2497 = vadd.f32 %v1966, %v2383
        %v2498 = vadd.f32 %v1967, %v2388
        %v2499 = vadd.f32 %v1968, %v2393
        %v2500 = vadd.f32 %v1969, %v2398
        %v2501 = vadd.f32 %v1970, %v2403
        %v2502 = vadd.f32 %v1971, %v2408
        %v2503 = vadd.f32 %v1972, %v2413
        %v2504 = vadd.f32 %v1973, %v2418
        %v2505 = vadd.f32 %v1974, %v2423
        %v2506 = vadd.f32 %v1975, %v2428
        %v2507 = vadd.f32 %v1976, %v2433
        %v2508 = vadd.f32 %v1977, %v2438
        %v2509 = vadd.f32 %v1978, %v2443
        %v2510 = vadd.f32 %v1979, %v2448
        %v2511 = vadd.f32 %v1980, %v2453
        %v2512 = vadd.f32 %v1981, %v2458
        %v2513 = vadd.f32 %v1982, %v2463
        %v2514 = vadd.f32 %v1983, %v2468
        %v2515 = vadd.f32 %v1984, %v2473
        %v2516 = vadd.f32 %v1985, %v2478
        %v2517 = vadd.f32 %v1986, %v2483
        %2518 = vst [vmem:[#allocation4] sm:$0xff] %v2486
        %2519 = vst [vmem:[#allocation4 + $0x8] sm:$0xff] %v2487
        %2520 = vst [vmem:[#allocation4 + $0x10] sm:$0xff] %v2488
        %2521 = vst [vmem:[#allocation4 + $0x18] sm:$0xff] %v2489
        %2522 = vst [vmem:[#allocation4 + $0x20] sm:$0xff] %v2490
        %2523 = vst [vmem:[#allocation4 + $0x28] sm:$0xff] %v2491
        %2524 = vst [vmem:[#allocation4 + $0x30] sm:$0xff] %v2492
        %2525 = vst [vmem:[#allocation4 + $0x38] sm:$0xff] %v2493
        %2526 = vst [vmem:[#allocation4 + $0x40] sm:$0xff] %v2494
        %2527 = vst [vmem:[#allocation4 + $0x48] sm:$0xff] %v2495
        %2528 = vst [vmem:[#allocation4 + $0x50] sm:$0xff] %v2496
        %2529 = vst [vmem:[#allocation4 + $0x58] sm:$0xff] %v2497
        %2530 = vst [vmem:[#allocation4 + $0x60] sm:$0xff] %v2498
        %2531 = vst [vmem:[#allocation4 + $0x68] sm:$0xff] %v2499
        %2532 = vst [vmem:[#allocation4 + $0x70] sm:$0xff] %v2500
        %2533 = vst [vmem:[#allocation4 + $0x78] sm:$0xff] %v2501
        %2534 = vst [vmem:[#allocation4 + $0x80] sm:$0xff] %v2502
        %2535 = vst [vmem:[#allocation4 + $0x88] sm:$0xff] %v2503
        %2536 = vst [vmem:[#allocation4 + $0x90] sm:$0xff] %v2504
        %2537 = vst [vmem:[#allocation4 + $0x98] sm:$0xff] %v2505
        %2538 = vst [vmem:[#allocation4 + $0xa0] sm:$0xff] %v2506
        %2539 = vst [vmem:[#allocation4 + $0xa8] sm:$0xff] %v2507
        %2540 = vst [vmem:[#allocation4 + $0xb0] sm:$0xff] %v2508
        %2541 = vst [vmem:[#allocation4 + $0xb8] sm:$0xff] %v2509
        %2542 = vst [vmem:[#allocation4 + $0xc0] sm:$0xff] %v2510
        %2543 = vst [vmem:[#allocation4 + $0xc8] sm:$0xff] %v2511
        %2544 = vst [vmem:[#allocation4 + $0xd0] sm:$0xff] %v2512
        %2545 = vst [vmem:[#allocation4 + $0xd8] sm:$0xff] %v2513
        %2546 = vst [vmem:[#allocation4 + $0xe0] sm:$0xff] %v2514
        %2547 = vst [vmem:[#allocation4 + $0xe8] sm:$0xff] %v2515
        %2548 = vst [vmem:[#allocation4 + $0xf0] sm:$0xff] %v2516
        %2549 = vst [vmem:[#allocation4 + $0xf8] sm:$0xff] %v2517
        %v2550 = vld [vmem:[#allocation4] sm:$0xff]
        %v2551 = vld [vmem:[#allocation4 + $0x8] sm:$0xff]
        %v2552 = vld [vmem:[#allocation4 + $0x10] sm:$0xff]
        %v2553 = vld [vmem:[#allocation4 + $0x18] sm:$0xff]
        %v2554 = vld [vmem:[#allocation4 + $0x20] sm:$0xff]
        %v2555 = vld [vmem:[#allocation4 + $0x28] sm:$0xff]
        %v2556 = vld [vmem:[#allocation4 + $0x30] sm:$0xff]
        %v2557 = vld [vmem:[#allocation4 + $0x38] sm:$0xff]
        %v2558 = vld [vmem:[#allocation4 + $0x40] sm:$0xff]
        %v2559 = vld [vmem:[#allocation4 + $0x48] sm:$0xff]
        %v2560 = vld [vmem:[#allocation4 + $0x50] sm:$0xff]
        %v2561 = vld [vmem:[#allocation4 + $0x58] sm:$0xff]
        %v2562 = vld [vmem:[#allocation4 + $0x60] sm:$0xff]
        %v2563 = vld [vmem:[#allocation4 + $0x68] sm:$0xff]
        %v2564 = vld [vmem:[#allocation4 + $0x70] sm:$0xff]
        %v2565 = vld [vmem:[#allocation4 + $0x78] sm:$0xff]
        %v2566 = vld [vmem:[#allocation4 + $0x80] sm:$0xff]
        %v2567 = vld [vmem:[#allocation4 + $0x88] sm:$0xff]
        %v2568 = vld [vmem:[#allocation4 + $0x90] sm:$0xff]
        %v2569 = vld [vmem:[#allocation4 + $0x98] sm:$0xff]
        %v2570 = vld [vmem:[#allocation4 + $0xa0] sm:$0xff]
        %v2571 = vld [vmem:[#allocation4 + $0xa8] sm:$0xff]
        %v2572 = vld [vmem:[#allocation4 + $0xb0] sm:$0xff]
        %v2573 = vld [vmem:[#allocation4 + $0xb8] sm:$0xff]
        %v2574 = vld [vmem:[#allocation4 + $0xc0] sm:$0xff]
        %v2575 = vld [vmem:[#allocation4 + $0xc8] sm:$0xff]
        %v2576 = vld [vmem:[#allocation4 + $0xd0] sm:$0xff]
        %v2577 = vld [vmem:[#allocation4 + $0xd8] sm:$0xff]
        %v2578 = vld [vmem:[#allocation4 + $0xe0] sm:$0xff]
        %v2579 = vld [vmem:[#allocation4 + $0xe8] sm:$0xff]
        %v2580 = vld [vmem:[#allocation4 + $0xf0] sm:$0xff]
        %v2581 = vld [vmem:[#allocation4 + $0xf8] sm:$0xff]
        %v2582 = vld [vmem:[%s2] sm:$0x1]
        %v2584 = vlaneseq
        %v2585 = vshrl.u32 %v2584, 7
        %v2586 = vsub.s32 0, %v2585
        %v2587 = vrot.slane %v2582, %v2586
        %v2589 = vmul.f32 %v2550, %v2587
        %v2590 = vmul.f32 %v2551, %v2587
        %v2591 = vmul.f32 %v2552, %v2587
        %v2592 = vmul.f32 %v2553, %v2587
        %v2593 = vmul.f32 %v2554, %v2587
        %v2594 = vmul.f32 %v2555, %v2587
        %v2595 = vmul.f32 %v2556, %v2587
        %v2596 = vmul.f32 %v2557, %v2587
        %v2597 = vmul.f32 %v2558, %v2587
        %v2598 = vmul.f32 %v2559, %v2587
        %v2599 = vmul.f32 %v2560, %v2587
        %v2600 = vmul.f32 %v2561, %v2587
        %v2601 = vmul.f32 %v2562, %v2587
        %v2602 = vmul.f32 %v2563, %v2587
        %v2603 = vmul.f32 %v2564, %v2587
        %v2604 = vmul.f32 %v2565, %v2587
        %v2605 = vmul.f32 %v2566, %v2587
        %v2606 = vmul.f32 %v2567, %v2587
        %v2607 = vmul.f32 %v2568, %v2587
        %v2608 = vmul.f32 %v2569, %v2587
        %v2609 = vmul.f32 %v2570, %v2587
        %v2610 = vmul.f32 %v2571, %v2587
        %v2611 = vmul.f32 %v2572, %v2587
        %v2612 = vmul.f32 %v2573, %v2587
        %v2613 = vmul.f32 %v2574, %v2587
        %v2614 = vmul.f32 %v2575, %v2587
        %v2615 = vmul.f32 %v2576, %v2587
        %v2616 = vmul.f32 %v2577, %v2587
        %v2617 = vmul.f32 %v2578, %v2587
        %v2618 = vmul.f32 %v2579, %v2587
        %v2619 = vmul.f32 %v2580, %v2587
        %v2620 = vmul.f32 %v2581, %v2587
        %v2621 = vld [vmem:[%s3] sm:$0x1]
        %v2623 = vlaneseq
        %v2624 = vshrl.u32 %v2623, 7
        %v2625 = vsub.s32 0, %v2624
        %v2626 = vrot.slane %v2621, %v2625
        %v2628 = vadd.f32 %v2589, %v2626
        %v2629 = vadd.f32 %v2590, %v2626
        %v2630 = vadd.f32 %v2591, %v2626
        %v2631 = vadd.f32 %v2592, %v2626
        %v2632 = vadd.f32 %v2593, %v2626
        %v2633 = vadd.f32 %v2594, %v2626
        %v2634 = vadd.f32 %v2595, %v2626
        %v2635 = vadd.f32 %v2596, %v2626
        %v2636 = vadd.f32 %v2597, %v2626
        %v2637 = vadd.f32 %v2598, %v2626
        %v2638 = vadd.f32 %v2599, %v2626
        %v2639 = vadd.f32 %v2600, %v2626
        %v2640 = vadd.f32 %v2601, %v2626
        %v2641 = vadd.f32 %v2602, %v2626
        %v2642 = vadd.f32 %v2603, %v2626
        %v2643 = vadd.f32 %v2604, %v2626
        %v2644 = vadd.f32 %v2605, %v2626
        %v2645 = vadd.f32 %v2606, %v2626
        %v2646 = vadd.f32 %v2607, %v2626
        %v2647 = vadd.f32 %v2608, %v2626
        %v2648 = vadd.f32 %v2609, %v2626
        %v2649 = vadd.f32 %v2610, %v2626
        %v2650 = vadd.f32 %v2611, %v2626
        %v2651 = vadd.f32 %v2612, %v2626
        %v2652 = vadd.f32 %v2613, %v2626
        %v2653 = vadd.f32 %v2614, %v2626
        %v2654 = vadd.f32 %v2615, %v2626
        %v2655 = vadd.f32 %v2616, %v2626
        %v2656 = vadd.f32 %v2617, %v2626
        %v2657 = vadd.f32 %v2618, %v2626
        %v2658 = vadd.f32 %v2619, %v2626
        %v2659 = vadd.f32 %v2620, %v2626
        %v2660 = vmax.f32 %v2628, 0.0
        %v2661 = vmax.f32 %v2629, 0.0
        %v2662 = vmax.f32 %v2630, 0.0
        %v2663 = vmax.f32 %v2631, 0.0
        %v2664 = vmax.f32 %v2632, 0.0
        %v2665 = vmax.f32 %v2633, 0.0
        %v2666 = vmax.f32 %v2634, 0.0
        %v2667 = vmax.f32 %v2635, 0.0
        %v2668 = vmax.f32 %v2636, 0.0
        %v2669 = vmax.f32 %v2637, 0.0
        %v2670 = vmax.f32 %v2638, 0.0
        %v2671 = vmax.f32 %v2639, 0.0
        %v2672 = vmax.f32 %v2640, 0.0
        %v2673 = vmax.f32 %v2641, 0.0
        %v2674 = vmax.f32 %v2642, 0.0
        %v2675 = vmax.f32 %v2643, 0.0
        %v2676 = vmax.f32 %v2644, 0.0
        %v2677 = vmax.f32 %v2645, 0.0
        %v2678 = vmax.f32 %v2646, 0.0
        %v2679 = vmax.f32 %v2647, 0.0
        %v2680 = vmax.f32 %v2648, 0.0
        %v2681 = vmax.f32 %v2649, 0.0
        %v2682 = vmax.f32 %v2650, 0.0
        %v2683 = vmax.f32 %v2651, 0.0
        %v2684 = vmax.f32 %v2652, 0.0
        %v2685 = vmax.f32 %v2653, 0.0
        %v2686 = vmax.f32 %v2654, 0.0
        %v2687 = vmax.f32 %v2655, 0.0
        %v2688 = vmax.f32 %v2656, 0.0
        %v2689 = vmax.f32 %v2657, 0.0
        %v2690 = vmax.f32 %v2658, 0.0
        %v2691 = vmax.f32 %v2659, 0.0
        %2692 = vst [vmem:[#allocation3] sm:$0xff] 0.0
        %2693 = vst [vmem:[#allocation3 + $0x8] sm:$0xff] 0.0
        %2694 = vst [vmem:[#allocation3 + $0x10] sm:$0x3] 0.0
        %2695 = vst [vmem:[#allocation3 + $0x18] sm:$0xff] 0.0
        %2696 = vst [vmem:[#allocation3 + $0x20] sm:$0xff] 0.0
        %2697 = vst [vmem:[#allocation3 + $0x28] sm:$0x3] 0.0
        %2698 = vst [vmem:[#allocation3 + $0x30] sm:$0xff] 0.0
        %2699 = vst [vmem:[#allocation3 + $0x38] sm:$0xff] 0.0
        %2700 = vst [vmem:[#allocation3 + $0x40] sm:$0x3] 0.0
        %2701 = vst [vmem:[#allocation3 + $0x48] sm:$0xff] 0.0
        %2702 = vst [vmem:[#allocation3 + $0x50] sm:$0xff] 0.0
        %2703 = vst [vmem:[#allocation3 + $0x58] sm:$0x3] 0.0
        %2704 = vst [vmem:[#allocation3 + $0x60] sm:$0xff] 0.0
        %2705 = vst [vmem:[#allocation3 + $0x68] sm:$0xff] 0.0
        %2706 = vst [vmem:[#allocation3 + $0x70] sm:$0x3] 0.0
        %2707 = vst [vmem:[#allocation3 + $0x78] sm:$0xff] 0.0
        %2708 = vst [vmem:[#allocation3 + $0x80] sm:$0xff] 0.0
        %2709 = vst [vmem:[#allocation3 + $0x88] sm:$0x3] 0.0
        %2710 = vst [vmem:[#allocation3 + $0x90] sm:$0xff] 0.0
        %2711 = vst [vmem:[#allocation3 + $0x98] sm:$0xff] 0.0
        %2712 = vst [vmem:[#allocation3 + $0xa0] sm:$0x3] 0.0
        %2713 = vst [vmem:[#allocation3 + $0xa8] sm:$0xff] 0.0
        %2714 = vst [vmem:[#allocation3 + $0xb0] sm:$0xff] 0.0
        %2715 = vst [vmem:[#allocation3 + $0xb8] sm:$0x3] 0.0
        %2716 = vst [vmem:[#allocation3 + $0xc0] sm:$0xff] 0.0
        %2717 = vst [vmem:[#allocation3 + $0xc8] sm:$0xff] 0.0
        %2718 = vst [vmem:[#allocation3 + $0xd0] sm:$0x3] 0.0
        %2719 = vst [vmem:[#allocation3 + $0xd8] sm:$0xff] 0.0
        %2720 = vst [vmem:[#allocation3 + $0xe0] sm:$0xff] 0.0
        %2721 = vst [vmem:[#allocation3 + $0xe8] sm:$0x3] 0.0
        %2722 = vst [vmem:[#allocation3 + $0xf0] sm:$0xff] 0.0
        %2723 = vst [vmem:[#allocation3 + $0xf8] sm:$0xff] 0.0
        %2724 = vst [vmem:[#allocation3 + $0x100] sm:$0x3] 0.0
        %2725 = vst [vmem:[#allocation3 + $0x108] sm:$0xff] 0.0
        %2726 = vst [vmem:[#allocation3 + $0x110] sm:$0xff] 0.0
        %2727 = vst [vmem:[#allocation3 + $0x118] sm:$0x3] 0.0
        %2728 = vst [vmem:[#allocation3 + $0x120] sm:$0xff] 0.0
        %2729 = vst [vmem:[#allocation3 + $0x128] sm:$0xff] 0.0
        %2730 = vst [vmem:[#allocation3 + $0x130] sm:$0x3] 0.0
        %2731 = vst [vmem:[#allocation3 + $0x138] sm:$0xff] 0.0
        %2732 = vst [vmem:[#allocation3 + $0x140] sm:$0xff] 0.0
        %2733 = vst [vmem:[#allocation3 + $0x148] sm:$0x3] 0.0
        %2734 = vst [vmem:[#allocation3 + $0x150] sm:$0xff] 0.0
        %2735 = vst [vmem:[#allocation3 + $0x158] sm:$0xff] 0.0
        %2736 = vst [vmem:[#allocation3 + $0x160] sm:$0x3] 0.0
        %2737 = vst [vmem:[#allocation3 + $0x168] sm:$0xff] 0.0
        %2738 = vst [vmem:[#allocation3 + $0x170] sm:$0xff] 0.0
        %2739 = vst [vmem:[#allocation3 + $0x178] sm:$0x3] 0.0
        %2740 = vst [vmem:[#allocation3 + $0x180] sm:$0xff] 0.0
        %2741 = vst [vmem:[#allocation3 + $0x188] sm:$0xff] 0.0
        %2742 = vst [vmem:[#allocation3 + $0x190] sm:$0x3] 0.0
        %2743 = vst [vmem:[#allocation3 + $0x198] sm:$0xff] 0.0
        %2744 = vst [vmem:[#allocation3 + $0x1a0] sm:$0xff] 0.0
        %2745 = vst [vmem:[#allocation3 + $0x1a8] sm:$0x3] 0.0
        %s2746 = scalar_lea.vmem [#allocation3], 24
        %2747 = vst [vmem:[%s2746 + $0x1] sm:$0xff] %v2660
        %2748 = vst [vmem:[%s2746 + $0x9] sm:$0xff] %v2661
        %2749 = vst [vmem:[%s2746 + $0x19] sm:$0xff] %v2662
        %2750 = vst [vmem:[%s2746 + $0x21] sm:$0xff] %v2663
        %2751 = vst [vmem:[%s2746 + $0x31] sm:$0xff] %v2664
        %2752 = vst [vmem:[%s2746 + $0x39] sm:$0xff] %v2665
        %2753 = vst [vmem:[%s2746 + $0x49] sm:$0xff] %v2666
        %2754 = vst [vmem:[%s2746 + $0x51] sm:$0xff] %v2667
        %2755 = vst [vmem:[%s2746 + $0x61] sm:$0xff] %v2668
        %2756 = vst [vmem:[%s2746 + $0x69] sm:$0xff] %v2669
        %2757 = vst [vmem:[%s2746 + $0x79] sm:$0xff] %v2670
        %2758 = vst [vmem:[%s2746 + $0x81] sm:$0xff] %v2671
        %2759 = vst [vmem:[%s2746 + $0x91] sm:$0xff] %v2672
        %2760 = vst [vmem:[%s2746 + $0x99] sm:$0xff] %v2673
        %2761 = vst [vmem:[%s2746 + $0xa9] sm:$0xff] %v2674
        %2762 = vst [vmem:[%s2746 + $0xb1] sm:$0xff] %v2675
        %2763 = vst [vmem:[%s2746 + $0xc1] sm:$0xff] %v2676
        %2764 = vst [vmem:[%s2746 + $0xc9] sm:$0xff] %v2677
        %2765 = vst [vmem:[%s2746 + $0xd9] sm:$0xff] %v2678
        %2766 = vst [vmem:[%s2746 + $0xe1] sm:$0xff] %v2679
        %2767 = vst [vmem:[%s2746 + $0xf1] sm:$0xff] %v2680
        %2768 = vst [vmem:[%s2746 + $0xf9] sm:$0xff] %v2681
        %2769 = vst [vmem:[%s2746 + $0x109] sm:$0xff] %v2682
        %2770 = vst [vmem:[%s2746 + $0x111] sm:$0xff] %v2683
        %2771 = vst [vmem:[%s2746 + $0x121] sm:$0xff] %v2684
        %2772 = vst [vmem:[%s2746 + $0x129] sm:$0xff] %v2685
        %2773 = vst [vmem:[%s2746 + $0x139] sm:$0xff] %v2686
        %2774 = vst [vmem:[%s2746 + $0x141] sm:$0xff] %v2687
        %2775 = vst [vmem:[%s2746 + $0x151] sm:$0xff] %v2688
        %2776 = vst [vmem:[%s2746 + $0x159] sm:$0xff] %v2689
        %2777 = vst [vmem:[%s2746 + $0x169] sm:$0xff] %v2690
        %2778 = vst [vmem:[%s2746 + $0x171] sm:$0xff] %v2691
        %2779 = vst [vmem:[#allocation4] sm:$0xff] 0.0
        %2780 = vst [vmem:[#allocation4 + $0x8] sm:$0xff] 0.0
        %2781 = vst [vmem:[#allocation4 + $0x10] sm:$0xff] 0.0
        %2782 = vst [vmem:[#allocation4 + $0x18] sm:$0xff] 0.0
        %2783 = vst [vmem:[#allocation4 + $0x20] sm:$0xff] 0.0
        %2784 = vst [vmem:[#allocation4 + $0x28] sm:$0xff] 0.0
        %2785 = vst [vmem:[#allocation4 + $0x30] sm:$0xff] 0.0
        %2786 = vst [vmem:[#allocation4 + $0x38] sm:$0xff] 0.0
        %2787 = vst [vmem:[#allocation4 + $0x40] sm:$0xff] 0.0
        %2788 = vst [vmem:[#allocation4 + $0x48] sm:$0xff] 0.0
        %2789 = vst [vmem:[#allocation4 + $0x50] sm:$0xff] 0.0
        %2790 = vst [vmem:[#allocation4 + $0x58] sm:$0xff] 0.0
        %2791 = vst [vmem:[#allocation4 + $0x60] sm:$0xff] 0.0
        %2792 = vst [vmem:[#allocation4 + $0x68] sm:$0xff] 0.0
        %2793 = vst [vmem:[#allocation4 + $0x70] sm:$0xff] 0.0
        %2794 = vst [vmem:[#allocation4 + $0x78] sm:$0xff] 0.0
        %2795 = vst [vmem:[#allocation4 + $0x80] sm:$0xff] 0.0
        %2796 = vst [vmem:[#allocation4 + $0x88] sm:$0xff] 0.0
        %2797 = vst [vmem:[#allocation4 + $0x90] sm:$0xff] 0.0
        %2798 = vst [vmem:[#allocation4 + $0x98] sm:$0xff] 0.0
        %2799 = vst [vmem:[#allocation4 + $0xa0] sm:$0xff] 0.0
        %2800 = vst [vmem:[#allocation4 + $0xa8] sm:$0xff] 0.0
        %2801 = vst [vmem:[#allocation4 + $0xb0] sm:$0xff] 0.0
        %2802 = vst [vmem:[#allocation4 + $0xb8] sm:$0xff] 0.0
        %2803 = vst [vmem:[#allocation4 + $0xc0] sm:$0xff] 0.0
        %2804 = vst [vmem:[#allocation4 + $0xc8] sm:$0xff] 0.0
        %2805 = vst [vmem:[#allocation4 + $0xd0] sm:$0xff] 0.0
        %2806 = vst [vmem:[#allocation4 + $0xd8] sm:$0xff] 0.0
        %2807 = vst [vmem:[#allocation4 + $0xe0] sm:$0xff] 0.0
        %2808 = vst [vmem:[#allocation4 + $0xe8] sm:$0xff] 0.0
        %2809 = vst [vmem:[#allocation4 + $0xf0] sm:$0xff] 0.0
        %2810 = vst [vmem:[#allocation4 + $0xf8] sm:$0xff] 0.0
        %v2811 = vld [vmem:[#allocation3] sm:$0xff]
        %v2812 = vld [vmem:[#allocation3 + $0x8] sm:$0xff]
        %v2813 = vld [vmem:[#allocation3 + $0x18] sm:$0xff]
        %v2814 = vld [vmem:[#allocation3 + $0x20] sm:$0xff]
        %v2815 = vld [vmem:[#allocation3 + $0x30] sm:$0xff]
        %v2816 = vld [vmem:[#allocation3 + $0x38] sm:$0xff]
        %v2817 = vld [vmem:[#allocation3 + $0x48] sm:$0xff]
        %v2818 = vld [vmem:[#allocation3 + $0x50] sm:$0xff]
        %v2819 = vld [vmem:[#allocation3 + $0x60] sm:$0xff]
        %v2820 = vld [vmem:[#allocation3 + $0x68] sm:$0xff]
        %v2821 = vld [vmem:[#allocation3 + $0x78] sm:$0xff]
        %v2822 = vld [vmem:[#allocation3 + $0x80] sm:$0xff]
        %v2823 = vld [vmem:[#allocation3 + $0x90] sm:$0xff]
        %v2824 = vld [vmem:[#allocation3 + $0x98] sm:$0xff]
        %v2825 = vld [vmem:[#allocation3 + $0xa8] sm:$0xff]
        %v2826 = vld [vmem:[#allocation3 + $0xb0] sm:$0xff]
        %v2827 = vld [vmem:[#allocation3 + $0xc0] sm:$0xff]
        %v2828 = vld [vmem:[#allocation3 + $0xc8] sm:$0xff]
        %v2829 = vld [vmem:[#allocation3 + $0xd8] sm:$0xff]
        %v2830 = vld [vmem:[#allocation3 + $0xe0] sm:$0xff]
        %v2831 = vld [vmem:[#allocation3 + $0xf0] sm:$0xff]
        %v2832 = vld [vmem:[#allocation3 + $0xf8] sm:$0xff]
        %v2833 = vld [vmem:[#allocation3 + $0x108] sm:$0xff]
        %v2834 = vld [vmem:[#allocation3 + $0x110] sm:$0xff]
        %v2835 = vld [vmem:[#allocation3 + $0x120] sm:$0xff]
        %v2836 = vld [vmem:[#allocation3 + $0x128] sm:$0xff]
        %v2837 = vld [vmem:[#allocation3 + $0x138] sm:$0xff]
        %v2838 = vld [vmem:[#allocation3 + $0x140] sm:$0xff]
        %v2839 = vld [vmem:[#allocation3 + $0x150] sm:$0xff]
        %v2840 = vld [vmem:[#allocation3 + $0x158] sm:$0xff]
        %v2841 = vld [vmem:[#allocation3 + $0x168] sm:$0xff]
        %v2842 = vld [vmem:[#allocation3 + $0x170] sm:$0xff]
        %v2843 = vld [vmem:[#allocation3 + $0x1] sm:$0xff]
        %v2844 = vld [vmem:[#allocation3 + $0x9] sm:$0xff]
        %v2845 = vld [vmem:[#allocation3 + $0x19] sm:$0xff]
        %v2846 = vld [vmem:[#allocation3 + $0x21] sm:$0xff]
        %v2847 = vld [vmem:[#allocation3 + $0x31] sm:$0xff]
        %v2848 = vld [vmem:[#allocation3 + $0x39] sm:$0xff]
        %v2849 = vld [vmem:[#allocation3 + $0x49] sm:$0xff]
        %v2850 = vld [vmem:[#allocation3 + $0x51] sm:$0xff]
        %v2851 = vld [vmem:[#allocation3 + $0x61] sm:$0xff]
        %v2852 = vld [vmem:[#allocation3 + $0x69] sm:$0xff]
        %v2853 = vld [vmem:[#allocation3 + $0x79] sm:$0xff]
        %v2854 = vld [vmem:[#allocation3 + $0x81] sm:$0xff]
        %v2855 = vld [vmem:[#allocation3 + $0x91] sm:$0xff]
        %v2856 = vld [vmem:[#allocation3 + $0x99] sm:$0xff]
        %v2857 = vld [vmem:[#allocation3 + $0xa9] sm:$0xff]
        %v2858 = vld [vmem:[#allocation3 + $0xb1] sm:$0xff]
        %v2859 = vld [vmem:[#allocation3 + $0xc1] sm:$0xff]
        %v2860 = vld [vmem:[#allocation3 + $0xc9] sm:$0xff]
        %v2861 = vld [vmem:[#allocation3 + $0xd9] sm:$0xff]
        %v2862 = vld [vmem:[#allocation3 + $0xe1] sm:$0xff]
        %v2863 = vld [vmem:[#allocation3 + $0xf1] sm:$0xff]
        %v2864 = vld [vmem:[#allocation3 + $0xf9] sm:$0xff]
        %v2865 = vld [vmem:[#allocation3 + $0x109] sm:$0xff]
        %v2866 = vld [vmem:[#allocation3 + $0x111] sm:$0xff]
        %v2867 = vld [vmem:[#allocation3 + $0x121] sm:$0xff]
        %v2868 = vld [vmem:[#allocation3 + $0x129] sm:$0xff]
        %v2869 = vld [vmem:[#allocation3 + $0x139] sm:$0xff]
        %v2870 = vld [vmem:[#allocation3 + $0x141] sm:$0xff]
        %v2871 = vld [vmem:[#allocation3 + $0x151] sm:$0xff]
        %v2872 = vld [vmem:[#allocation3 + $0x159] sm:$0xff]
        %v2873 = vld [vmem:[#allocation3 + $0x169] sm:$0xff]
        %v2874 = vld [vmem:[#allocation3 + $0x171] sm:$0xff]
        %v2875 = vld [vmem:[#allocation3 + $0x2] sm:$0xff]
        %v2876 = vld [vmem:[#allocation3 + $0xa] sm:$0xff]
        %v2877 = vld [vmem:[#allocation3 + $0x1a] sm:$0xff]
        %v2878 = vld [vmem:[#allocation3 + $0x22] sm:$0xff]
        %v2879 = vld [vmem:[#allocation3 + $0x32] sm:$0xff]
        %v2880 = vld [vmem:[#allocation3 + $0x3a] sm:$0xff]
        %v2881 = vld [vmem:[#allocation3 + $0x4a] sm:$0xff]
        %v2882 = vld [vmem:[#allocation3 + $0x52] sm:$0xff]
        %v2883 = vld [vmem:[#allocation3 + $0x62] sm:$0xff]
        %v2884 = vld [vmem:[#allocation3 + $0x6a] sm:$0xff]
        %v2885 = vld [vmem:[#allocation3 + $0x7a] sm:$0xff]
        %v2886 = vld [vmem:[#allocation3 + $0x82] sm:$0xff]
        %v2887 = vld [vmem:[#allocation3 + $0x92] sm:$0xff]
        %v2888 = vld [vmem:[#allocation3 + $0x9a] sm:$0xff]
        %v2889 = vld [vmem:[#allocation3 + $0xaa] sm:$0xff]
        %v2890 = vld [vmem:[#allocation3 + $0xb2] sm:$0xff]
        %v2891 = vld [vmem:[#allocation3 + $0xc2] sm:$0xff]
        %v2892 = vld [vmem:[#allocation3 + $0xca] sm:$0xff]
        %v2893 = vld [vmem:[#allocation3 + $0xda] sm:$0xff]
        %v2894 = vld [vmem:[#allocation3 + $0xe2] sm:$0xff]
        %v2895 = vld [vmem:[#allocation3 + $0xf2] sm:$0xff]
        %v2896 = vld [vmem:[#allocation3 + $0xfa] sm:$0xff]
        %v2897 = vld [vmem:[#allocation3 + $0x10a] sm:$0xff]
        %v2898 = vld [vmem:[#allocation3 + $0x112] sm:$0xff]
        %v2899 = vld [vmem:[#allocation3 + $0x122] sm:$0xff]
        %v2900 = vld [vmem:[#allocation3 + $0x12a] sm:$0xff]
        %v2901 = vld [vmem:[#allocation3 + $0x13a] sm:$0xff]
        %v2902 = vld [vmem:[#allocation3 + $0x142] sm:$0xff]
        %v2903 = vld [vmem:[#allocation3 + $0x152] sm:$0xff]
        %v2904 = vld [vmem:[#allocation3 + $0x15a] sm:$0xff]
        %v2905 = vld [vmem:[#allocation3 + $0x16a] sm:$0xff]
        %v2906 = vld [vmem:[#allocation3 + $0x172] sm:$0xff]
        %v2907 = vld [vmem:[#allocation4] sm:$0xff]
        %v2908 = vld [vmem:[#allocation4 + $0x8] sm:$0xff]
        %v2909 = vld [vmem:[#allocation4 + $0x10] sm:$0xff]
        %v2910 = vld [vmem:[#allocation4 + $0x18] sm:$0xff]
        %v2911 = vld [vmem:[#allocation4 + $0x20] sm:$0xff]
        %v2912 = vld [vmem:[#allocation4 + $0x28] sm:$0xff]
        %v2913 = vld [vmem:[#allocation4 + $0x30] sm:$0xff]
        %v2914 = vld [vmem:[#allocation4 + $0x38] sm:$0xff]
        %v2915 = vld [vmem:[#allocation4 + $0x40] sm:$0xff]
        %v2916 = vld [vmem:[#allocation4 + $0x48] sm:$0xff]
        %v2917 = vld [vmem:[#allocation4 + $0x50] sm:$0xff]
        %v2918 = vld [vmem:[#allocation4 + $0x58] sm:$0xff]
        %v2919 = vld [vmem:[#allocation4 + $0x60] sm:$0xff]
        %v2920 = vld [vmem:[#allocation4 + $0x68] sm:$0xff]
        %v2921 = vld [vmem:[#allocation4 + $0x70] sm:$0xff]
        %v2922 = vld [vmem:[#allocation4 + $0x78] sm:$0xff]
        %v2923 = vld [vmem:[#allocation4 + $0x80] sm:$0xff]
        %v2924 = vld [vmem:[#allocation4 + $0x88] sm:$0xff]
        %v2925 = vld [vmem:[#allocation4 + $0x90] sm:$0xff]
        %v2926 = vld [vmem:[#allocation4 + $0x98] sm:$0xff]
        %v2927 = vld [vmem:[#allocation4 + $0xa0] sm:$0xff]
        %v2928 = vld [vmem:[#allocation4 + $0xa8] sm:$0xff]
        %v2929 = vld [vmem:[#allocation4 + $0xb0] sm:$0xff]
        %v2930 = vld [vmem:[#allocation4 + $0xb8] sm:$0xff]
        %v2931 = vld [vmem:[#allocation4 + $0xc0] sm:$0xff]
        %v2932 = vld [vmem:[#allocation4 + $0xc8] sm:$0xff]
        %v2933 = vld [vmem:[#allocation4 + $0xd0] sm:$0xff]
        %v2934 = vld [vmem:[#allocation4 + $0xd8] sm:$0xff]
        %v2935 = vld [vmem:[#allocation4 + $0xe0] sm:$0xff]
        %v2936 = vld [vmem:[#allocation4 + $0xe8] sm:$0xff]
        %v2937 = vld [vmem:[#allocation4 + $0xf0] sm:$0xff]
        %v2938 = vld [vmem:[#allocation4 + $0xf8] sm:$0xff]
        %v2939 = vld [vmem:[#allocation10] sm:$0xff]
        %v2940 = vld [vmem:[#allocation10 + $0x8] sm:$0xff]
        %v2941 = vld [vmem:[#allocation10 + $0x10] sm:$0xff]
        %v2942 = vld [vmem:[#allocation10 + $0x18] sm:$0xff]
        %v2943 = vld [vmem:[#allocation10 + $0x20] sm:$0xff]
        %v2944 = vld [vmem:[#allocation10 + $0x28] sm:$0xff]
        %v2945 = vld [vmem:[#allocation10 + $0x30] sm:$0xff]
        %v2946 = vld [vmem:[#allocation10 + $0x38] sm:$0xff]
        %v2947 = vld [vmem:[#allocation10 + $0x40] sm:$0xff]
        %v2948 = vld [vmem:[#allocation10 + $0x48] sm:$0xff]
        %v2949 = vld [vmem:[#allocation10 + $0x50] sm:$0xff]
        %v2950 = vld [vmem:[#allocation10 + $0x58] sm:$0xff]
        %v2951 = vld [vmem:[#allocation10 + $0x60] sm:$0xff]
        %v2952 = vld [vmem:[#allocation10 + $0x68] sm:$0xff]
        %v2953 = vld [vmem:[#allocation10 + $0x70] sm:$0xff]
        %v2954 = vld [vmem:[#allocation10 + $0x78] sm:$0xff]
        %v2955 = vld [vmem:[#allocation10 + $0x80] sm:$0xff]
        %v2956 = vld [vmem:[#allocation10 + $0x88] sm:$0xff]
        %v2957 = vld [vmem:[#allocation10 + $0x90] sm:$0xff]
        %v2958 = vld [vmem:[#allocation10 + $0x98] sm:$0xff]
        %v2959 = vld [vmem:[#allocation10 + $0xa0] sm:$0xff]
        %v2960 = vld [vmem:[#allocation10 + $0xa8] sm:$0xff]
        %v2961 = vld [vmem:[#allocation10 + $0xb0] sm:$0xff]
        %v2962 = vld [vmem:[#allocation10 + $0xb8] sm:$0xff]
        %v2963 = vld [vmem:[#allocation10 + $0xc0] sm:$0xff]
        %v2964 = vld [vmem:[#allocation10 + $0xc8] sm:$0xff]
        %v2965 = vld [vmem:[#allocation10 + $0xd0] sm:$0xff]
        %v2966 = vld [vmem:[#allocation10 + $0xd8] sm:$0xff]
        %v2967 = vld [vmem:[#allocation10 + $0xe0] sm:$0xff]
        %v2968 = vld [vmem:[#allocation10 + $0xe8] sm:$0xff]
        %v2969 = vld [vmem:[#allocation10 + $0xf0] sm:$0xff]
        %v2970 = vld [vmem:[#allocation10 + $0xf8] sm:$0xff]
        %v2971 = vld [vmem:[#allocation10 + $0x100] sm:$0xff]
        %v2972 = vld [vmem:[#allocation10 + $0x108] sm:$0xff]
        %v2973 = vld [vmem:[#allocation10 + $0x110] sm:$0xff]
        %v2974 = vld [vmem:[#allocation10 + $0x118] sm:$0xff]
        %v2975 = vld [vmem:[#allocation10 + $0x120] sm:$0xff]
        %v2976 = vld [vmem:[#allocation10 + $0x128] sm:$0xff]
        %v2977 = vld [vmem:[#allocation10 + $0x130] sm:$0xff]
        %v2978 = vld [vmem:[#allocation10 + $0x138] sm:$0xff]
        %v2979 = vld [vmem:[#allocation10 + $0x140] sm:$0xff]
        %v2980 = vld [vmem:[#allocation10 + $0x148] sm:$0xff]
        %v2981 = vld [vmem:[#allocation10 + $0x150] sm:$0xff]
        %v2982 = vld [vmem:[#allocation10 + $0x158] sm:$0xff]
        %v2983 = vld [vmem:[#allocation10 + $0x160] sm:$0xff]
        %v2984 = vld [vmem:[#allocation10 + $0x168] sm:$0xff]
        %v2985 = vld [vmem:[#allocation10 + $0x170] sm:$0xff]
        %v2986 = vld [vmem:[#allocation10 + $0x178] sm:$0xff]
        %2987 = vmatprep.subr.mxu0 0.0
        %2988 = vmatpush1.msra.mxu0 %v2939
        %2989 = vmatprep.subr.mxu0 0.0
        %2990 = vmatpush1.msra.mxu0 %v2940
        %2991 = vmatprep.subr.mxu0 0.0
        %2992 = vmatpush1.msra.mxu0 %v2941
        %2993 = vmatprep.subr.mxu0 0.0
        %2994 = vmatpush1.msra.mxu0 %v2942
        %2995 = vmatprep.subr.mxu0 0.0
        %2996 = vmatpush1.msra.mxu0 %v2943
        %2997 = vmatprep.subr.mxu0 0.0
        %2998 = vmatpush1.msra.mxu0 %v2944
        %2999 = vmatprep.subr.mxu0 0.0
        %3000 = vmatpush1.msra.mxu0 %v2945
        %3001 = vmatprep.subr.mxu0 0.0
        %3002 = vmatpush1.msra.mxu0 %v2946
        %3003 = vmatprep.subr.mxu0 0.0
        %3004 = vmatpush1.msra.mxu0 %v2947
        %3005 = vmatprep.subr.mxu0 0.0
        %3006 = vmatpush1.msra.mxu0 %v2948
        %3007 = vmatprep.subr.mxu0 0.0
        %3008 = vmatpush1.msra.mxu0 %v2949
        %3009 = vmatprep.subr.mxu0 0.0
        %3010 = vmatpush1.msra.mxu0 %v2950
        %3011 = vmatprep.subr.mxu0 0.0
        %3012 = vmatpush1.msra.mxu0 %v2951
        %3013 = vmatprep.subr.mxu0 0.0
        %3014 = vmatpush1.msra.mxu0 %v2952
        %3015 = vmatprep.subr.mxu0 0.0
        %3016 = vmatpush1.msra.mxu0 %v2953
        %3017 = vmatprep.subr.mxu0 0.0
        %3018 = vmatpush1.msra.mxu0 %v2954
        %3019 = vmatprep.subr.mxu0 0.0
        %3020 = vmatpush1.msra.mxu0 %v2955
        %3021 = vmatprep.subr.mxu0 0.0
        %3022 = vmatpush1.msra.mxu0 %v2956
        %3023 = vmatprep.subr.mxu0 0.0
        %3024 = vmatpush1.msra.mxu0 %v2957
        %3025 = vmatprep.subr.mxu0 0.0
        %3026 = vmatpush1.msra.mxu0 %v2958
        %3027 = vmatprep.subr.mxu0 0.0
        %3028 = vmatpush1.msra.mxu0 %v2959
        %3029 = vmatprep.subr.mxu0 0.0
        %3030 = vmatpush1.msra.mxu0 %v2960
        %3031 = vmatprep.subr.mxu0 0.0
        %3032 = vmatpush1.msra.mxu0 %v2961
        %3033 = vmatprep.subr.mxu0 0.0
        %3034 = vmatpush1.msra.mxu0 %v2962
        %3035 = vmatprep.subr.mxu0 0.0
        %3036 = vmatpush1.msra.mxu0 %v2963
        %3037 = vmatprep.subr.mxu0 0.0
        %3038 = vmatpush1.msra.mxu0 %v2964
        %3039 = vmatprep.subr.mxu0 0.0
        %3040 = vmatpush1.msra.mxu0 %v2965
        %3041 = vmatprep.subr.mxu0 0.0
        %3042 = vmatpush1.msra.mxu0 %v2966
        %3043 = vmatprep.subr.mxu0 0.0
        %3044 = vmatpush1.msra.mxu0 %v2967
        %3045 = vmatprep.subr.mxu0 0.0
        %3046 = vmatpush1.msra.mxu0 %v2968
        %3047 = vmatprep.subr.mxu0 0.0
        %3048 = vmatpush1.msra.mxu0 %v2969
        %3049 = vmatprep.subr.mxu0 0.0
        %3050 = vmatpush1.msra.mxu0 %v2970
        %3051 = vmatprep.mubr.f32.mxu0 %v2843
        %3052 = vmatmul.mubr.f32.gmra.mrb[0].mxu0 %v2811
        %v3053 = vpop.f32.mrb[0].mxu0
        %v3054 = vadd.f32 0.0, %v3053
        %v3055 = vpop.f32.mrb[0].mxu0
        %3056 = vmatprep.mubr.f32.mxu0 %v2844
        %3057 = vmatmul.mubr.f32.gmra.mrb[0].mxu0 %v2812
        %v3058 = vpop.f32.mrb[0].mxu0
        %v3059 = vadd.f32 0.0, %v3058
        %v3060 = vpop.f32.mrb[0].mxu0
        %3061 = vmatprep.mubr.f32.mxu0 %v2845
        %3062 = vmatmul.mubr.f32.gmra.mrb[0].mxu0 %v2813
        %v3063 = vpop.f32.mrb[0].mxu0
        %v3064 = vadd.f32 0.0, %v3063
        %v3065 = vpop.f32.mrb[0].mxu0
        %3066 = vmatprep.mubr.f32.mxu0 %v2846
        %3067 = vmatmul.mubr.f32.gmra.mrb[0].mxu0 %v2814
        %v3068 = vpop.f32.mrb[0].mxu0
        %v3069 = vadd.f32 0.0, %v3068
        %v3070 = vpop.f32.mrb[0].mxu0
        %3071 = vmatprep.mubr.f32.mxu0 %v2847
        %3072 = vmatmul.mubr.f32.gmra.mrb[0].mxu0 %v2815
        %v3073 = vpop.f32.mrb[0].mxu0
        %v3074 = vadd.f32 0.0, %v3073
        %v3075 = vpop.f32.mrb[0].mxu0
        %3076 = vmatprep.mubr.f32.mxu0 %v2848
        %3077 = vmatmul.mubr.f32.gmra.mrb[0].mxu0 %v2816
        %v3078 = vpop.f32.mrb[0].mxu0
        %v3079 = vadd.f32 0.0, %v3078
        %v3080 = vpop.f32.mrb[0].mxu0
        %3081 = vmatprep.mubr.f32.mxu0 %v2849
        %3082 = vmatmul.mubr.f32.gmra.mrb[0].mxu0 %v2817
        %v3083 = vpop.f32.mrb[0].mxu0
        %v3084 = vadd.f32 0.0, %v3083
        %v3085 = vpop.f32.mrb[0].mxu0
        %3086 = vmatprep.mubr.f32.mxu0 %v2850
        %3087 = vmatmul.mubr.f32.gmra.mrb[0].mxu0 %v2818
        %v3088 = vpop.f32.mrb[0].mxu0
        %v3089 = vadd.f32 0.0, %v3088
        %v3090 = vpop.f32.mrb[0].mxu0
        %3091 = vmatprep.mubr.f32.mxu0 %v2851
        %3092 = vmatmul.mubr.f32.gmra.mrb[0].mxu0 %v2819
        %v3093 = vpop.f32.mrb[0].mxu0
        %v3094 = vadd.f32 0.0, %v3093
        %v3095 = vpop.f32.mrb[0].mxu0
        %3096 = vmatprep.mubr.f32.mxu0 %v2852
        %3097 = vmatmul.mubr.f32.gmra.mrb[0].mxu0 %v2820
        %v3098 = vpop.f32.mrb[0].mxu0
        %v3099 = vadd.f32 0.0, %v3098
        %v3100 = vpop.f32.mrb[0].mxu0
        %3101 = vmatprep.mubr.f32.mxu0 %v2853
        %3102 = vmatmul.mubr.f32.gmra.mrb[0].mxu0 %v2821
        %v3103 = vpop.f32.mrb[0].mxu0
        %v3104 = vadd.f32 0.0, %v3103
        %v3105 = vpop.f32.mrb[0].mxu0
        %3106 = vmatprep.mubr.f32.mxu0 %v2854
        %3107 = vmatmul.mubr.f32.gmra.mrb[0].mxu0 %v2822
        %v3108 = vpop.f32.mrb[0].mxu0
        %v3109 = vadd.f32 0.0, %v3108
        %v3110 = vpop.f32.mrb[0].mxu0
        %3111 = vmatprep.mubr.f32.mxu0 %v2855
        %3112 = vmatmul.mubr.f32.gmra.mrb[0].mxu0 %v2823
        %v3113 = vpop.f32.mrb[0].mxu0
        %v3114 = vadd.f32 0.0, %v3113
        %v3115 = vpop.f32.mrb[0].mxu0
        %3116 = vmatprep.mubr.f32.mxu0 %v2856
        %3117 = vmatmul.mubr.f32.gmra.mrb[0].mxu0 %v2824
        %v3118 = vpop.f32.mrb[0].mxu0
        %v3119 = vadd.f32 0.0, %v3118
        %v3120 = vpop.f32.mrb[0].mxu0
        %3121 = vmatprep.mubr.f32.mxu0 %v2857
        %3122 = vmatmul.mubr.f32.gmra.mrb[0].mxu0 %v2825
        %v3123 = vpop.f32.mrb[0].mxu0
        %v3124 = vadd.f32 0.0, %v3123
        %v3125 = vpop.f32.mrb[0].mxu0
        %3126 = vmatprep.mubr.f32.mxu0 %v2858
        %3127 = vmatmul.mubr.f32.gmra.mrb[0].mxu0 %v2826
        %v3128 = vpop.f32.mrb[0].mxu0
        %v3129 = vadd.f32 0.0, %v3128
        %v3130 = vpop.f32.mrb[0].mxu0
        %3131 = vmatprep.mubr.f32.mxu0 %v2859
        %3132 = vmatmul.mubr.f32.gmra.mrb[0].mxu0 %v2827
        %v3133 = vpop.f32.mrb[0].mxu0
        %v3134 = vadd.f32 0.0, %v3133
        %v3135 = vpop.f32.mrb[0].mxu0
        %3136 = vmatprep.mubr.f32.mxu0 %v2860
        %3137 = vmatmul.mubr.f32.gmra.mrb[0].mxu0 %v2828
        %v3138 = vpop.f32.mrb[0].mxu0
        %v3139 = vadd.f32 0.0, %v3138
        %v3140 = vpop.f32.mrb[0].mxu0
        %3141 = vmatprep.mubr.f32.mxu0 %v2861
        %3142 = vmatmul.mubr.f32.gmra.mrb[0].mxu0 %v2829
        %v3143 = vpop.f32.mrb[0].mxu0
        %v3144 = vadd.f32 0.0, %v3143
        %v3145 = vpop.f32.mrb[0].mxu0
        %3146 = vmatprep.mubr.f32.mxu0 %v2862
        %3147 = vmatmul.mubr.f32.gmra.mrb[0].mxu0 %v2830
        %v3148 = vpop.f32.mrb[0].mxu0
        %v3149 = vadd.f32 0.0, %v3148
        %v3150 = vpop.f32.mrb[0].mxu0
        %3151 = vmatprep.mubr.f32.mxu0 %v2863
        %3152 = vmatmul.mubr.f32.gmra.mrb[0].mxu0 %v2831
        %v3153 = vpop.f32.mrb[0].mxu0
        %v3154 = vadd.f32 0.0, %v3153
        %v3155 = vpop.f32.mrb[0].mxu0
        %3156 = vmatprep.mubr.f32.mxu0 %v2864
        %3157 = vmatmul.mubr.f32.gmra.mrb[0].mxu0 %v2832
        %v3158 = vpop.f32.mrb[0].mxu0
        %v3159 = vadd.f32 0.0, %v3158
        %v3160 = vpop.f32.mrb[0].mxu0
        %3161 = vmatprep.mubr.f32.mxu0 %v2865
        %3162 = vmatmul.mubr.f32.gmra.mrb[0].mxu0 %v2833
        %v3163 = vpop.f32.mrb[0].mxu0
        %v3164 = vadd.f32 0.0, %v3163
        %v3165 = vpop.f32.mrb[0].mxu0
        %3166 = vmatprep.mubr.f32.mxu0 %v2866
        %3167 = vmatmul.mubr.f32.gmra.mrb[0].mxu0 %v2834
        %v3168 = vpop.f32.mrb[0].mxu0
        %v3169 = vadd.f32 0.0, %v3168
        %v3170 = vpop.f32.mrb[0].mxu0
        %3171 = vmatprep.mubr.f32.mxu0 %v2867
        %3172 = vmatmul.mubr.f32.gmra.mrb[0].mxu0 %v2835
        %v3173 = vpop.f32.mrb[0].mxu0
        %v3174 = vadd.f32 0.0, %v3173
        %v3175 = vpop.f32.mrb[0].mxu0
        %3176 = vmatprep.mubr.f32.mxu0 %v2868
        %3177 = vmatmul.mubr.f32.gmra.mrb[0].mxu0 %v2836
        %v3178 = vpop.f32.mrb[0].mxu0
        %v3179 = vadd.f32 0.0, %v3178
        %v3180 = vpop.f32.mrb[0].mxu0
        %3181 = vmatprep.mubr.f32.mxu0 %v2869
        %3182 = vmatmul.mubr.f32.gmra.mrb[0].mxu0 %v2837
        %v3183 = vpop.f32.mrb[0].mxu0
        %v3184 = vadd.f32 0.0, %v3183
        %v3185 = vpop.f32.mrb[0].mxu0
        %3186 = vmatprep.mubr.f32.mxu0 %v2870
        %3187 = vmatmul.mubr.f32.gmra.mrb[0].mxu0 %v2838
        %v3188 = vpop.f32.mrb[0].mxu0
        %v3189 = vadd.f32 0.0, %v3188
        %v3190 = vpop.f32.mrb[0].mxu0
        %3191 = vmatprep.mubr.f32.mxu0 %v2871
        %3192 = vmatmul.mubr.f32.gmra.mrb[0].mxu0 %v2839
        %v3193 = vpop.f32.mrb[0].mxu0
        %v3194 = vadd.f32 0.0, %v3193
        %v3195 = vpop.f32.mrb[0].mxu0
        %3196 = vmatprep.mubr.f32.mxu0 %v2872
        %3197 = vmatmul.mubr.f32.gmra.mrb[0].mxu0 %v2840
        %v3198 = vpop.f32.mrb[0].mxu0
        %v3199 = vadd.f32 0.0, %v3198
        %v3200 = vpop.f32.mrb[0].mxu0
        %3201 = vmatprep.mubr.f32.mxu0 %v2873
        %3202 = vmatmul.mubr.f32.gmra.mrb[0].mxu0 %v2841
        %v3203 = vpop.f32.mrb[0].mxu0
        %v3204 = vadd.f32 0.0, %v3203
        %v3205 = vpop.f32.mrb[0].mxu0
        %3206 = vmatprep.mubr.f32.mxu0 %v2874
        %3207 = vmatmul.mubr.f32.gmra.mrb[0].mxu0 %v2842
        %v3208 = vpop.f32.mrb[0].mxu0
        %v3209 = vadd.f32 0.0, %v3208
        %v3210 = vpop.f32.mrb[0].mxu0
        %3211 = vdwg.mxu0
        %3212 = vmatprep.subr.mxu0 0.0
        %3213 = vmatpush1.msra.mxu0 %v2971
        %3214 = vmatprep.subr.mxu0 0.0
        %3215 = vmatpush1.msra.mxu0 %v2972
        %3216 = vmatprep.subr.mxu0 0.0
        %3217 = vmatpush1.msra.mxu0 %v2973
        %3218 = vmatprep.subr.mxu0 0.0
        %3219 = vmatpush1.msra.mxu0 %v2974
        %3220 = vmatprep.subr.mxu0 0.0
        %3221 = vmatpush1.msra.mxu0 %v2975
        %3222 = vmatprep.subr.mxu0 0.0
        %3223 = vmatpush1.msra.mxu0 %v2976
        %3224 = vmatprep.subr.mxu0 0.0
        %3225 = vmatpush1.msra.mxu0 %v2977
        %3226 = vmatprep.subr.mxu0 0.0
        %3227 = vmatpush1.msra.mxu0 %v2978
        %3228 = vmatprep.subr.mxu0 0.0
        %3229 = vmatpush1.msra.mxu0 %v2979
        %3230 = vmatprep.subr.mxu0 0.0
        %3231 = vmatpush1.msra.mxu0 %v2980
        %3232 = vmatprep.subr.mxu0 0.0
        %3233 = vmatpush1.msra.mxu0 %v2981
        %3234 = vmatprep.subr.mxu0 0.0
        %3235 = vmatpush1.msra.mxu0 %v2982
        %3236 = vmatprep.subr.mxu0 0.0
        %3237 = vmatpush1.msra.mxu0 %v2983
        %3238 = vmatprep.subr.mxu0 0.0
        %3239 = vmatpush1.msra.mxu0 %v2984
        %3240 = vmatprep.subr.mxu0 0.0
        %3241 = vmatpush1.msra.mxu0 %v2985
        %3242 = vmatprep.subr.mxu0 0.0
        %3243 = vmatpush1.msra.mxu0 %v2986
        %3244 = vmatprep.subr.mxu0 0.0
        %3245 = vmatpush1.msra.mxu0 0.0
        %3246 = vmatprep.subr.mxu0 0.0
        %3247 = vmatpush1.msra.mxu0 0.0
        %3248 = vmatprep.subr.mxu0 0.0
        %3249 = vmatpush1.msra.mxu0 0.0
        %3250 = vmatprep.subr.mxu0 0.0
        %3251 = vmatpush1.msra.mxu0 0.0
        %3252 = vmatprep.subr.mxu0 0.0
        %3253 = vmatpush1.msra.mxu0 0.0
        %3254 = vmatprep.subr.mxu0 0.0
        %3255 = vmatpush1.msra.mxu0 0.0
        %3256 = vmatprep.subr.mxu0 0.0
        %3257 = vmatpush1.msra.mxu0 0.0
        %3258 = vmatprep.subr.mxu0 0.0
        %3259 = vmatpush1.msra.mxu0 0.0
        %3260 = vmatprep.subr.mxu0 0.0
        %3261 = vmatpush1.msra.mxu0 0.0
        %3262 = vmatprep.subr.mxu0 0.0
        %3263 = vmatpush1.msra.mxu0 0.0
        %3264 = vmatprep.subr.mxu0 0.0
        %3265 = vmatpush1.msra.mxu0 0.0
        %3266 = vmatprep.subr.mxu0 0.0
        %3267 = vmatpush1.msra.mxu0 0.0
        %3268 = vmatprep.subr.mxu0 0.0
        %3269 = vmatpush1.msra.mxu0 0.0
        %3270 = vmatprep.subr.mxu0 0.0
        %3271 = vmatpush1.msra.mxu0 0.0
        %3272 = vmatprep.subr.mxu0 0.0
        %3273 = vmatpush1.msra.mxu0 0.0
        %3274 = vmatprep.subr.mxu0 0.0
        %3275 = vmatpush1.msra.mxu0 0.0
        %3276 = vmatprep.mubr.f32.mxu0 0.0
        %3277 = vmatmul.mubr.f32.gmra.mrb[0].mxu0 %v2875
        %v3278 = vpop.f32.mrb[0].mxu0
        %v3279 = vadd.f32 %v3054, %v3278
        %v3280 = vpop.f32.mrb[0].mxu0
        %3281 = vmatprep.mubr.f32.mxu0 0.0
        %3282 = vmatmul.mubr.f32.gmra.mrb[0].mxu0 %v2876
        %v3283 = vpop.f32.mrb[0].mxu0
        %v3284 = vadd.f32 %v3059, %v3283
        %v3285 = vpop.f32.mrb[0].mxu0
        %3286 = vmatprep.mubr.f32.mxu0 0.0
        %3287 = vmatmul.mubr.f32.gmra.mrb[0].mxu0 %v2877
        %v3288 = vpop.f32.mrb[0].mxu0
        %v3289 = vadd.f32 %v3064, %v3288
        %v3290 = vpop.f32.mrb[0].mxu0
        %3291 = vmatprep.mubr.f32.mxu0 0.0
        %3292 = vmatmul.mubr.f32.gmra.mrb[0].mxu0 %v2878
        %v3293 = vpop.f32.mrb[0].mxu0
        %v3294 = vadd.f32 %v3069, %v3293
        %v3295 = vpop.f32.mrb[0].mxu0
        %3296 = vmatprep.mubr.f32.mxu0 0.0
        %3297 = vmatmul.mubr.f32.gmra.mrb[0].mxu0 %v2879
        %v3298 = vpop.f32.mrb[0].mxu0
        %v3299 = vadd.f32 %v3074, %v3298
        %v3300 = vpop.f32.mrb[0].mxu0
        %3301 = vmatprep.mubr.f32.mxu0 0.0
        %3302 = vmatmul.mubr.f32.gmra.mrb[0].mxu0 %v2880
        %v3303 = vpop.f32.mrb[0].mxu0
        %v3304 = vadd.f32 %v3079, %v3303
        %v3305 = vpop.f32.mrb[0].mxu0
        %3306 = vmatprep.mubr.f32.mxu0 0.0
        %3307 = vmatmul.mubr.f32.gmra.mrb[0].mxu0 %v2881
        %v3308 = vpop.f32.mrb[0].mxu0
        %v3309 = vadd.f32 %v3084, %v3308
        %v3310 = vpop.f32.mrb[0].mxu0
        %3311 = vmatprep.mubr.f32.mxu0 0.0
        %3312 = vmatmul.mubr.f32.gmra.mrb[0].mxu0 %v2882
        %v3313 = vpop.f32.mrb[0].mxu0
        %v3314 = vadd.f32 %v3089, %v3313
        %v3315 = vpop.f32.mrb[0].mxu0
        %3316 = vmatprep.mubr.f32.mxu0 0.0
        %3317 = vmatmul.mubr.f32.gmra.mrb[0].mxu0 %v2883
        %v3318 = vpop.f32.mrb[0].mxu0
        %v3319 = vadd.f32 %v3094, %v3318
        %v3320 = vpop.f32.mrb[0].mxu0
        %3321 = vmatprep.mubr.f32.mxu0 0.0
        %3322 = vmatmul.mubr.f32.gmra.mrb[0].mxu0 %v2884
        %v3323 = vpop.f32.mrb[0].mxu0
        %v3324 = vadd.f32 %v3099, %v3323
        %v3325 = vpop.f32.mrb[0].mxu0
        %3326 = vmatprep.mubr.f32.mxu0 0.0
        %3327 = vmatmul.mubr.f32.gmra.mrb[0].mxu0 %v2885
        %v3328 = vpop.f32.mrb[0].mxu0
        %v3329 = vadd.f32 %v3104, %v3328
        %v3330 = vpop.f32.mrb[0].mxu0
        %3331 = vmatprep.mubr.f32.mxu0 0.0
        %3332 = vmatmul.mubr.f32.gmra.mrb[0].mxu0 %v2886
        %v3333 = vpop.f32.mrb[0].mxu0
        %v3334 = vadd.f32 %v3109, %v3333
        %v3335 = vpop.f32.mrb[0].mxu0
        %3336 = vmatprep.mubr.f32.mxu0 0.0
        %3337 = vmatmul.mubr.f32.gmra.mrb[0].mxu0 %v2887
        %v3338 = vpop.f32.mrb[0].mxu0
        %v3339 = vadd.f32 %v3114, %v3338
        %v3340 = vpop.f32.mrb[0].mxu0
        %3341 = vmatprep.mubr.f32.mxu0 0.0
        %3342 = vmatmul.mubr.f32.gmra.mrb[0].mxu0 %v2888
        %v3343 = vpop.f32.mrb[0].mxu0
        %v3344 = vadd.f32 %v3119, %v3343
        %v3345 = vpop.f32.mrb[0].mxu0
        %3346 = vmatprep.mubr.f32.mxu0 0.0
        %3347 = vmatmul.mubr.f32.gmra.mrb[0].mxu0 %v2889
        %v3348 = vpop.f32.mrb[0].mxu0
        %v3349 = vadd.f32 %v3124, %v3348
        %v3350 = vpop.f32.mrb[0].mxu0
        %3351 = vmatprep.mubr.f32.mxu0 0.0
        %3352 = vmatmul.mubr.f32.gmra.mrb[0].mxu0 %v2890
        %v3353 = vpop.f32.mrb[0].mxu0
        %v3354 = vadd.f32 %v3129, %v3353
        %v3355 = vpop.f32.mrb[0].mxu0
        %3356 = vmatprep.mubr.f32.mxu0 0.0
        %3357 = vmatmul.mubr.f32.gmra.mrb[0].mxu0 %v2891
        %v3358 = vpop.f32.mrb[0].mxu0
        %v3359 = vadd.f32 %v3134, %v3358
        %v3360 = vpop.f32.mrb[0].mxu0
        %3361 = vmatprep.mubr.f32.mxu0 0.0
        %3362 = vmatmul.mubr.f32.gmra.mrb[0].mxu0 %v2892
        %v3363 = vpop.f32.mrb[0].mxu0
        %v3364 = vadd.f32 %v3139, %v3363
        %v3365 = vpop.f32.mrb[0].mxu0
        %3366 = vmatprep.mubr.f32.mxu0 0.0
        %3367 = vmatmul.mubr.f32.gmra.mrb[0].mxu0 %v2893
        %v3368 = vpop.f32.mrb[0].mxu0
        %v3369 = vadd.f32 %v3144, %v3368
        %v3370 = vpop.f32.mrb[0].mxu0
        %3371 = vmatprep.mubr.f32.mxu0 0.0
        %3372 = vmatmul.mubr.f32.gmra.mrb[0].mxu0 %v2894
        %v3373 = vpop.f32.mrb[0].mxu0
        %v3374 = vadd.f32 %v3149, %v3373
        %v3375 = vpop.f32.mrb[0].mxu0
        %3376 = vmatprep.mubr.f32.mxu0 0.0
        %3377 = vmatmul.mubr.f32.gmra.mrb[0].mxu0 %v2895
        %v3378 = vpop.f32.mrb[0].mxu0
        %v3379 = vadd.f32 %v3154, %v3378
        %v3380 = vpop.f32.mrb[0].mxu0
        %3381 = vmatprep.mubr.f32.mxu0 0.0
        %3382 = vmatmul.mubr.f32.gmra.mrb[0].mxu0 %v2896
        %v3383 = vpop.f32.mrb[0].mxu0
        %v3384 = vadd.f32 %v3159, %v3383
        %v3385 = vpop.f32.mrb[0].mxu0
        %3386 = vmatprep.mubr.f32.mxu0 0.0
        %3387 = vmatmul.mubr.f32.gmra.mrb[0].mxu0 %v2897
        %v3388 = vpop.f32.mrb[0].mxu0
        %v3389 = vadd.f32 %v3164, %v3388
        %v3390 = vpop.f32.mrb[0].mxu0
        %3391 = vmatprep.mubr.f32.mxu0 0.0
        %3392 = vmatmul.mubr.f32.gmra.mrb[0].mxu0 %v2898
        %v3393 = vpop.f32.mrb[0].mxu0
        %v3394 = vadd.f32 %v3169, %v3393
        %v3395 = vpop.f32.mrb[0].mxu0
        %3396 = vmatprep.mubr.f32.mxu0 0.0
        %3397 = vmatmul.mubr.f32.gmra.mrb[0].mxu0 %v2899
        %v3398 = vpop.f32.mrb[0].mxu0
        %v3399 = vadd.f32 %v3174, %v3398
        %v3400 = vpop.f32.mrb[0].mxu0
        %3401 = vmatprep.mubr.f32.mxu0 0.0
        %3402 = vmatmul.mubr.f32.gmra.mrb[0].mxu0 %v2900
        %v3403 = vpop.f32.mrb[0].mxu0
        %v3404 = vadd.f32 %v3179, %v3403
        %v3405 = vpop.f32.mrb[0].mxu0
        %3406 = vmatprep.mubr.f32.mxu0 0.0
        %3407 = vmatmul.mubr.f32.gmra.mrb[0].mxu0 %v2901
        %v3408 = vpop.f32.mrb[0].mxu0
        %v3409 = vadd.f32 %v3184, %v3408
        %v3410 = vpop.f32.mrb[0].mxu0
        %3411 = vmatprep.mubr.f32.mxu0 0.0
        %3412 = vmatmul.mubr.f32.gmra.mrb[0].mxu0 %v2902
        %v3413 = vpop.f32.mrb[0].mxu0
        %v3414 = vadd.f32 %v3189, %v3413
        %v3415 = vpop.f32.mrb[0].mxu0
        %3416 = vmatprep.mubr.f32.mxu0 0.0
        %3417 = vmatmul.mubr.f32.gmra.mrb[0].mxu0 %v2903
        %v3418 = vpop.f32.mrb[0].mxu0
        %v3419 = vadd.f32 %v3194, %v3418
        %v3420 = vpop.f32.mrb[0].mxu0
        %3421 = vmatprep.mubr.f32.mxu0 0.0
        %3422 = vmatmul.mubr.f32.gmra.mrb[0].mxu0 %v2904
        %v3423 = vpop.f32.mrb[0].mxu0
        %v3424 = vadd.f32 %v3199, %v3423
        %v3425 = vpop.f32.mrb[0].mxu0
        %3426 = vmatprep.mubr.f32.mxu0 0.0
        %3427 = vmatmul.mubr.f32.gmra.mrb[0].mxu0 %v2905
        %v3428 = vpop.f32.mrb[0].mxu0
        %v3429 = vadd.f32 %v3204, %v3428
        %v3430 = vpop.f32.mrb[0].mxu0
        %3431 = vmatprep.mubr.f32.mxu0 0.0
        %3432 = vmatmul.mubr.f32.gmra.mrb[0].mxu0 %v2906
        %v3433 = vpop.f32.mrb[0].mxu0
        %v3434 = vadd.f32 %v3209, %v3433
        %v3435 = vpop.f32.mrb[0].mxu0
        %3436 = vdwg.mxu0
        %v3437 = vadd.f32 %v2907, %v3279
        %v3438 = vadd.f32 %v2908, %v3284
        %v3439 = vadd.f32 %v2909, %v3289
        %v3440 = vadd.f32 %v2910, %v3294
        %v3441 = vadd.f32 %v2911, %v3299
        %v3442 = vadd.f32 %v2912, %v3304
        %v3443 = vadd.f32 %v2913, %v3309
        %v3444 = vadd.f32 %v2914, %v3314
        %v3445 = vadd.f32 %v2915, %v3319
        %v3446 = vadd.f32 %v2916, %v3324
        %v3447 = vadd.f32 %v2917, %v3329
        %v3448 = vadd.f32 %v2918, %v3334
        %v3449 = vadd.f32 %v2919, %v3339
        %v3450 = vadd.f32 %v2920, %v3344
        %v3451 = vadd.f32 %v2921, %v3349
        %v3452 = vadd.f32 %v2922, %v3354
        %v3453 = vadd.f32 %v2923, %v3359
        %v3454 = vadd.f32 %v2924, %v3364
        %v3455 = vadd.f32 %v2925, %v3369
        %v3456 = vadd.f32 %v2926, %v3374
        %v3457 = vadd.f32 %v2927, %v3379
        %v3458 = vadd.f32 %v2928, %v3384
        %v3459 = vadd.f32 %v2929, %v3389
        %v3460 = vadd.f32 %v2930, %v3394
        %v3461 = vadd.f32 %v2931, %v3399
        %v3462 = vadd.f32 %v2932, %v3404
        %v3463 = vadd.f32 %v2933, %v3409
        %v3464 = vadd.f32 %v2934, %v3414
        %v3465 = vadd.f32 %v2935, %v3419
        %v3466 = vadd.f32 %v2936, %v3424
        %v3467 = vadd.f32 %v2937, %v3429
        %v3468 = vadd.f32 %v2938, %v3434
        %3469 = vst [vmem:[#allocation4] sm:$0xff] %v3437
        %3470 = vst [vmem:[#allocation4 + $0x8] sm:$0xff] %v3438
        %3471 = vst [vmem:[#allocation4 + $0x10] sm:$0xff] %v3439
        %3472 = vst [vmem:[#allocation4 + $0x18] sm:$0xff] %v3440
        %3473 = vst [vmem:[#allocation4 + $0x20] sm:$0xff] %v3441
        %3474 = vst [vmem:[#allocation4 + $0x28] sm:$0xff] %v3442
        %3475 = vst [vmem:[#allocation4 + $0x30] sm:$0xff] %v3443
        %3476 = vst [vmem:[#allocation4 + $0x38] sm:$0xff] %v3444
        %3477 = vst [vmem:[#allocation4 + $0x40] sm:$0xff] %v3445
        %3478 = vst [vmem:[#allocation4 + $0x48] sm:$0xff] %v3446
        %3479 = vst [vmem:[#allocation4 + $0x50] sm:$0xff] %v3447
        %3480 = vst [vmem:[#allocation4 + $0x58] sm:$0xff] %v3448
        %3481 = vst [vmem:[#allocation4 + $0x60] sm:$0xff] %v3449
        %3482 = vst [vmem:[#allocation4 + $0x68] sm:$0xff] %v3450
        %3483 = vst [vmem:[#allocation4 + $0x70] sm:$0xff] %v3451
        %3484 = vst [vmem:[#allocation4 + $0x78] sm:$0xff] %v3452
        %3485 = vst [vmem:[#allocation4 + $0x80] sm:$0xff] %v3453
        %3486 = vst [vmem:[#allocation4 + $0x88] sm:$0xff] %v3454
        %3487 = vst [vmem:[#allocation4 + $0x90] sm:$0xff] %v3455
        %3488 = vst [vmem:[#allocation4 + $0x98] sm:$0xff] %v3456
        %3489 = vst [vmem:[#allocation4 + $0xa0] sm:$0xff] %v3457
        %3490 = vst [vmem:[#allocation4 + $0xa8] sm:$0xff] %v3458
        %3491 = vst [vmem:[#allocation4 + $0xb0] sm:$0xff] %v3459
        %3492 = vst [vmem:[#allocation4 + $0xb8] sm:$0xff] %v3460
        %3493 = vst [vmem:[#allocation4 + $0xc0] sm:$0xff] %v3461
        %3494 = vst [vmem:[#allocation4 + $0xc8] sm:$0xff] %v3462
        %3495 = vst [vmem:[#allocation4 + $0xd0] sm:$0xff] %v3463
        %3496 = vst [vmem:[#allocation4 + $0xd8] sm:$0xff] %v3464
        %3497 = vst [vmem:[#allocation4 + $0xe0] sm:$0xff] %v3465
        %3498 = vst [vmem:[#allocation4 + $0xe8] sm:$0xff] %v3466
        %3499 = vst [vmem:[#allocation4 + $0xf0] sm:$0xff] %v3467
        %3500 = vst [vmem:[#allocation4 + $0xf8] sm:$0xff] %v3468
        %v3501 = vld [vmem:[%s2746] sm:$0xff]
        %v3502 = vld [vmem:[%s2746 + $0x8] sm:$0xff]
        %v3503 = vld [vmem:[%s2746 + $0x18] sm:$0xff]
        %v3504 = vld [vmem:[%s2746 + $0x20] sm:$0xff]
        %v3505 = vld [vmem:[%s2746 + $0x30] sm:$0xff]
        %v3506 = vld [vmem:[%s2746 + $0x38] sm:$0xff]
        %v3507 = vld [vmem:[%s2746 + $0x48] sm:$0xff]
        %v3508 = vld [vmem:[%s2746 + $0x50] sm:$0xff]
        %v3509 = vld [vmem:[%s2746 + $0x60] sm:$0xff]
        %v3510 = vld [vmem:[%s2746 + $0x68] sm:$0xff]
        %v3511 = vld [vmem:[%s2746 + $0x78] sm:$0xff]
        %v3512 = vld [vmem:[%s2746 + $0x80] sm:$0xff]
        %v3513 = vld [vmem:[%s2746 + $0x90] sm:$0xff]
        %v3514 = vld [vmem:[%s2746 + $0x98] sm:$0xff]
        %v3515 = vld [vmem:[%s2746 + $0xa8] sm:$0xff]
        %v3516 = vld [vmem:[%s2746 + $0xb0] sm:$0xff]
        %v3517 = vld [vmem:[%s2746 + $0xc0] sm:$0xff]
        %v3518 = vld [vmem:[%s2746 + $0xc8] sm:$0xff]
        %v3519 = vld [vmem:[%s2746 + $0xd8] sm:$0xff]
        %v3520 = vld [vmem:[%s2746 + $0xe0] sm:$0xff]
        %v3521 = vld [vmem:[%s2746 + $0xf0] sm:$0xff]
        %v3522 = vld [vmem:[%s2746 + $0xf8] sm:$0xff]
        %v3523 = vld [vmem:[%s2746 + $0x108] sm:$0xff]
        %v3524 = vld [vmem:[%s2746 + $0x110] sm:$0xff]
        %v3525 = vld [vmem:[%s2746 + $0x120] sm:$0xff]
        %v3526 = vld [vmem:[%s2746 + $0x128] sm:$0xff]
        %v3527 = vld [vmem:[%s2746 + $0x138] sm:$0xff]
        %v3528 = vld [vmem:[%s2746 + $0x140] sm:$0xff]
        %v3529 = vld [vmem:[%s2746 + $0x150] sm:$0xff]
        %v3530 = vld [vmem:[%s2746 + $0x158] sm:$0xff]
        %v3531 = vld [vmem:[%s2746 + $0x168] sm:$0xff]
        %v3532 = vld [vmem:[%s2746 + $0x170] sm:$0xff]
        %v3533 = vld [vmem:[%s2746 + $0x1] sm:$0xff]
        %v3534 = vld [vmem:[%s2746 + $0x9] sm:$0xff]
        %v3535 = vld [vmem:[%s2746 + $0x19] sm:$0xff]
        %v3536 = vld [vmem:[%s2746 + $0x21] sm:$0xff]
        %v3537 = vld [vmem:[%s2746 + $0x31] sm:$0xff]
        %v3538 = vld [vmem:[%s2746 + $0x39] sm:$0xff]
        %v3539 = vld [vmem:[%s2746 + $0x49] sm:$0xff]
        %v3540 = vld [vmem:[%s2746 + $0x51] sm:$0xff]
        %v3541 = vld [vmem:[%s2746 + $0x61] sm:$0xff]
        %v3542 = vld [vmem:[%s2746 + $0x69] sm:$0xff]
        %v3543 = vld [vmem:[%s2746 + $0x79] sm:$0xff]
        %v3544 = vld [vmem:[%s2746 + $0x81] sm:$0xff]
        %v3545 = vld [vmem:[%s2746 + $0x91] sm:$0xff]
        %v3546 = vld [vmem:[%s2746 + $0x99] sm:$0xff]
        %v3547 = vld [vmem:[%s2746 + $0xa9] sm:$0xff]
        %v3548 = vld [vmem:[%s2746 + $0xb1] sm:$0xff]
        %v3549 = vld [vmem:[%s2746 + $0xc1] sm:$0xff]
        %v3550 = vld [vmem:[%s2746 + $0xc9] sm:$0xff]
        %v3551 = vld [vmem:[%s2746 + $0xd9] sm:$0xff]
        %v3552 = vld [vmem:[%s2746 + $0xe1] sm:$0xff]
        %v3553 = vld [vmem:[%s2746 + $0xf1] sm:$0xff]
        %v3554 = vld [vmem:[%s2746 + $0xf9] sm:$0xff]
        %v3555 = vld [vmem:[%s2746 + $0x109] sm:$0xff]
        %v3556 = vld [vmem:[%s2746 + $0x111] sm:$0xff]
        %v3557 = vld [vmem:[%s2746 + $0x121] sm:$0xff]
        %v3558 = vld [vmem:[%s2746 + $0x129] sm:$0xff]
        %v3559 = vld [vmem:[%s2746 + $0x139] sm:$0xff]
        %v3560 = vld [vmem:[%s2746 + $0x141] sm:$0xff]
        %v3561 = vld [vmem:[%s2746 + $0x151] sm:$0xff]
        %v3562 = vld [vmem:[%s2746 + $0x159] sm:$0xff]
        %v3563 = vld [vmem:[%s2746 + $0x169] sm:$0xff]
        %v3564 = vld [vmem:[%s2746 + $0x171] sm:$0xff]
        %v3565 = vld [vmem:[%s2746 + $0x2] sm:$0xff]
        %v3566 = vld [vmem:[%s2746 + $0xa] sm:$0xff]
        %v3567 = vld [vmem:[%s2746 + $0x1a] sm:$0xff]
        %v3568 = vld [vmem:[%s2746 + $0x22] sm:$0xff]
        %v3569 = vld [vmem:[%s2746 + $0x32] sm:$0xff]
        %v3570 = vld [vmem:[%s2746 + $0x3a] sm:$0xff]
        %v3571 = vld [vmem:[%s2746 + $0x4a] sm:$0xff]
        %v3572 = vld [vmem:[%s2746 + $0x52] sm:$0xff]
        %v3573 = vld [vmem:[%s2746 + $0x62] sm:$0xff]
        %v3574 = vld [vmem:[%s2746 + $0x6a] sm:$0xff]
        %v3575 = vld [vmem:[%s2746 + $0x7a] sm:$0xff]
        %v3576 = vld [vmem:[%s2746 + $0x82] sm:$0xff]
        %v3577 = vld [vmem:[%s2746 + $0x92] sm:$0xff]
        %v3578 = vld [vmem:[%s2746 + $0x9a] sm:$0xff]
        %v3579 = vld [vmem:[%s2746 + $0xaa] sm:$0xff]
        %v3580 = vld [vmem:[%s2746 + $0xb2] sm:$0xff]
        %v3581 = vld [vmem:[%s2746 + $0xc2] sm:$0xff]
        %v3582 = vld [vmem:[%s2746 + $0xca] sm:$0xff]
        %v3583 = vld [vmem:[%s2746 + $0xda] sm:$0xff]
        %v3584 = vld [vmem:[%s2746 + $0xe2] sm:$0xff]
        %v3585 = vld [vmem:[%s2746 + $0xf2] sm:$0xff]
        %v3586 = vld [vmem:[%s2746 + $0xfa] sm:$0xff]
        %v3587 = vld [vmem:[%s2746 + $0x10a] sm:$0xff]
        %v3588 = vld [vmem:[%s2746 + $0x112] sm:$0xff]
        %v3589 = vld [vmem:[%s2746 + $0x122] sm:$0xff]
        %v3590 = vld [vmem:[%s2746 + $0x12a] sm:$0xff]
        %v3591 = vld [vmem:[%s2746 + $0x13a] sm:$0xff]
        %v3592 = vld [vmem:[%s2746 + $0x142] sm:$0xff]
        %v3593 = vld [vmem:[%s2746 + $0x152] sm:$0xff]
        %v3594 = vld [vmem:[%s2746 + $0x15a] sm:$0xff]
        %v3595 = vld [vmem:[%s2746 + $0x16a] sm:$0xff]
        %v3596 = vld [vmem:[%s2746 + $0x172] sm:$0xff]
        %v3597 = vld [vmem:[#allocation4] sm:$0xff]
        %v3598 = vld [vmem:[#allocation4 + $0x8] sm:$0xff]
        %v3599 = vld [vmem:[#allocation4 + $0x10] sm:$0xff]
        %v3600 = vld [vmem:[#allocation4 + $0x18] sm:$0xff]
        %v3601 = vld [vmem:[#allocation4 + $0x20] sm:$0xff]
        %v3602 = vld [vmem:[#allocation4 + $0x28] sm:$0xff]
        %v3603 = vld [vmem:[#allocation4 + $0x30] sm:$0xff]
        %v3604 = vld [vmem:[#allocation4 + $0x38] sm:$0xff]
        %v3605 = vld [vmem:[#allocation4 + $0x40] sm:$0xff]
        %v3606 = vld [vmem:[#allocation4 + $0x48] sm:$0xff]
        %v3607 = vld [vmem:[#allocation4 + $0x50] sm:$0xff]
        %v3608 = vld [vmem:[#allocation4 + $0x58] sm:$0xff]
        %v3609 = vld [vmem:[#allocation4 + $0x60] sm:$0xff]
        %v3610 = vld [vmem:[#allocation4 + $0x68] sm:$0xff]
        %v3611 = vld [vmem:[#allocation4 + $0x70] sm:$0xff]
        %v3612 = vld [vmem:[#allocation4 + $0x78] sm:$0xff]
        %v3613 = vld [vmem:[#allocation4 + $0x80] sm:$0xff]
        %v3614 = vld [vmem:[#allocation4 + $0x88] sm:$0xff]
        %v3615 = vld [vmem:[#allocation4 + $0x90] sm:$0xff]
        %v3616 = vld [vmem:[#allocation4 + $0x98] sm:$0xff]
        %v3617 = vld [vmem:[#allocation4 + $0xa0] sm:$0xff]
        %v3618 = vld [vmem:[#allocation4 + $0xa8] sm:$0xff]
        %v3619 = vld [vmem:[#allocation4 + $0xb0] sm:$0xff]
        %v3620 = vld [vmem:[#allocation4 + $0xb8] sm:$0xff]
        %v3621 = vld [vmem:[#allocation4 + $0xc0] sm:$0xff]
        %v3622 = vld [vmem:[#allocation4 + $0xc8] sm:$0xff]
        %v3623 = vld [vmem:[#allocation4 + $0xd0] sm:$0xff]
        %v3624 = vld [vmem:[#allocation4 + $0xd8] sm:$0xff]
        %v3625 = vld [vmem:[#allocation4 + $0xe0] sm:$0xff]
        %v3626 = vld [vmem:[#allocation4 + $0xe8] sm:$0xff]
        %v3627 = vld [vmem:[#allocation4 + $0xf0] sm:$0xff]
        %v3628 = vld [vmem:[#allocation4 + $0xf8] sm:$0xff]
        %s3629 = scalar_lea.vmem [#allocation10], 384
        %v3630 = vld [vmem:[%s3629] sm:$0xff]
        %v3631 = vld [vmem:[%s3629 + $0x8] sm:$0xff]
        %v3632 = vld [vmem:[%s3629 + $0x10] sm:$0xff]
        %v3633 = vld [vmem:[%s3629 + $0x18] sm:$0xff]
        %v3634 = vld [vmem:[%s3629 + $0x20] sm:$0xff]
        %v3635 = vld [vmem:[%s3629 + $0x28] sm:$0xff]
        %v3636 = vld [vmem:[%s3629 + $0x30] sm:$0xff]
        %v3637 = vld [vmem:[%s3629 + $0x38] sm:$0xff]
        %v3638 = vld [vmem:[%s3629 + $0x40] sm:$0xff]
        %v3639 = vld [vmem:[%s3629 + $0x48] sm:$0xff]
        %v3640 = vld [vmem:[%s3629 + $0x50] sm:$0xff]
        %v3641 = vld [vmem:[%s3629 + $0x58] sm:$0xff]
        %v3642 = vld [vmem:[%s3629 + $0x60] sm:$0xff]
        %v3643 = vld [vmem:[%s3629 + $0x68] sm:$0xff]
        %v3644 = vld [vmem:[%s3629 + $0x70] sm:$0xff]
        %v3645 = vld [vmem:[%s3629 + $0x78] sm:$0xff]
        %v3646 = vld [vmem:[%s3629 + $0x80] sm:$0xff]
        %v3647 = vld [vmem:[%s3629 + $0x88] sm:$0xff]
        %v3648 = vld [vmem:[%s3629 + $0x90] sm:$0xff]
        %v3649 = vld [vmem:[%s3629 + $0x98] sm:$0xff]
        %v3650 = vld [vmem:[%s3629 + $0xa0] sm:$0xff]
        %v3651 = vld [vmem:[%s3629 + $0xa8] sm:$0xff]
        %v3652 = vld [vmem:[%s3629 + $0xb0] sm:$0xff]
        %v3653 = vld [vmem:[%s3629 + $0xb8] sm:$0xff]
        %v3654 = vld [vmem:[%s3629 + $0xc0] sm:$0xff]
        %v3655 = vld [vmem:[%s3629 + $0xc8] sm:$0xff]
        %v3656 = vld [vmem:[%s3629 + $0xd0] sm:$0xff]
        %v3657 = vld [vmem:[%s3629 + $0xd8] sm:$0xff]
        %v3658 = vld [vmem:[%s3629 + $0xe0] sm:$0xff]
        %v3659 = vld [vmem:[%s3629 + $0xe8] sm:$0xff]
        %v3660 = vld [vmem:[%s3629 + $0xf0] sm:$0xff]
        %v3661 = vld [vmem:[%s3629 + $0xf8] sm:$0xff]
        %v3662 = vld [vmem:[%s3629 + $0x100] sm:$0xff]
        %v3663 = vld [vmem:[%s3629 + $0x108] sm:$0xff]
        %v3664 = vld [vmem:[%s3629 + $0x110] sm:$0xff]
        %v3665 = vld [vmem:[%s3629 + $0x118] sm:$0xff]
        %v3666 = vld [vmem:[%s3629 + $0x120] sm:$0xff]
        %v3667 = vld [vmem:[%s3629 + $0x128] sm:$0xff]
        %v3668 = vld [vmem:[%s3629 + $0x130] sm:$0xff]
        %v3669 = vld [vmem:[%s3629 + $0x138] sm:$0xff]
        %v3670 = vld [vmem:[%s3629 + $0x140] sm:$0xff]
        %v3671 = vld [vmem:[%s3629 + $0x148] sm:$0xff]
        %v3672 = vld [vmem:[%s3629 + $0x150] sm:$0xff]
        %v3673 = vld [vmem:[%s3629 + $0x158] sm:$0xff]
        %v3674 = vld [vmem:[%s3629 + $0x160] sm:$0xff]
        %v3675 = vld [vmem:[%s3629 + $0x168] sm:$0xff]
        %v3676 = vld [vmem:[%s3629 + $0x170] sm:$0xff]
        %v3677 = vld [vmem:[%s3629 + $0x178] sm:$0xff]
        %3678 = vmatprep.subr.mxu0 0.0
        %3679 = vmatpush1.msra.mxu0 %v3630
        %3680 = vmatprep.subr.mxu0 0.0
        %3681 = vmatpush1.msra.mxu0 %v3631
        %3682 = vmatprep.subr.mxu0 0.0
        %3683 = vmatpush1.msra.mxu0 %v3632
        %3684 = vmatprep.subr.mxu0 0.0
        %3685 = vmatpush1.msra.mxu0 %v3633
        %3686 = vmatprep.subr.mxu0 0.0
        %3687 = vmatpush1.msra.mxu0 %v3634
        %3688 = vmatprep.subr.mxu0 0.0
        %3689 = vmatpush1.msra.mxu0 %v3635
        %3690 = vmatprep.subr.mxu0 0.0
        %3691 = vmatpush1.msra.mxu0 %v3636
        %3692 = vmatprep.subr.mxu0 0.0
        %3693 = vmatpush1.msra.mxu0 %v3637
        %3694 = vmatprep.subr.mxu0 0.0
        %3695 = vmatpush1.msra.mxu0 %v3638
        %3696 = vmatprep.subr.mxu0 0.0
        %3697 = vmatpush1.msra.mxu0 %v3639
        %3698 = vmatprep.subr.mxu0 0.0
        %3699 = vmatpush1.msra.mxu0 %v3640
        %3700 = vmatprep.subr.mxu0 0.0
        %3701 = vmatpush1.msra.mxu0 %v3641
        %3702 = vmatprep.subr.mxu0 0.0
        %3703 = vmatpush1.msra.mxu0 %v3642
        %3704 = vmatprep.subr.mxu0 0.0
        %3705 = vmatpush1.msra.mxu0 %v3643
        %3706 = vmatprep.subr.mxu0 0.0
        %3707 = vmatpush1.msra.mxu0 %v3644
        %3708 = vmatprep.subr.mxu0 0.0
        %3709 = vmatpush1.msra.mxu0 %v3645
        %3710 = vmatprep.subr.mxu0 0.0
        %3711 = vmatpush1.msra.mxu0 %v3646
        %3712 = vmatprep.subr.mxu0 0.0
        %3713 = vmatpush1.msra.mxu0 %v3647
        %3714 = vmatprep.subr.mxu0 0.0
        %3715 = vmatpush1.msra.mxu0 %v3648
        %3716 = vmatprep.subr.mxu0 0.0
        %3717 = vmatpush1.msra.mxu0 %v3649
        %3718 = vmatprep.subr.mxu0 0.0
        %3719 = vmatpush1.msra.mxu0 %v3650
        %3720 = vmatprep.subr.mxu0 0.0
        %3721 = vmatpush1.msra.mxu0 %v3651
        %3722 = vmatprep.subr.mxu0 0.0
        %3723 = vmatpush1.msra.mxu0 %v3652
        %3724 = vmatprep.subr.mxu0 0.0
        %3725 = vmatpush1.msra.mxu0 %v3653
        %3726 = vmatprep.subr.mxu0 0.0
        %3727 = vmatpush1.msra.mxu0 %v3654
        %3728 = vmatprep.subr.mxu0 0.0
        %3729 = vmatpush1.msra.mxu0 %v3655
        %3730 = vmatprep.subr.mxu0 0.0
        %3731 = vmatpush1.msra.mxu0 %v3656
        %3732 = vmatprep.subr.mxu0 0.0
        %3733 = vmatpush1.msra.mxu0 %v3657
        %3734 = vmatprep.subr.mxu0 0.0
        %3735 = vmatpush1.msra.mxu0 %v3658
        %3736 = vmatprep.subr.mxu0 0.0
        %3737 = vmatpush1.msra.mxu0 %v3659
        %3738 = vmatprep.subr.mxu0 0.0
        %3739 = vmatpush1.msra.mxu0 %v3660
        %3740 = vmatprep.subr.mxu0 0.0
        %3741 = vmatpush1.msra.mxu0 %v3661
        %3742 = vmatprep.mubr.f32.mxu0 %v3533
        %3743 = vmatmul.mubr.f32.gmra.mrb[0].mxu0 %v3501
        %v3744 = vpop.f32.mrb[0].mxu0
        %v3745 = vadd.f32 0.0, %v3744
        %v3746 = vpop.f32.mrb[0].mxu0
        %3747 = vmatprep.mubr.f32.mxu0 %v3534
        %3748 = vmatmul.mubr.f32.gmra.mrb[0].mxu0 %v3502
        %v3749 = vpop.f32.mrb[0].mxu0
        %v3750 = vadd.f32 0.0, %v3749
        %v3751 = vpop.f32.mrb[0].mxu0
        %3752 = vmatprep.mubr.f32.mxu0 %v3535
        %3753 = vmatmul.mubr.f32.gmra.mrb[0].mxu0 %v3503
        %v3754 = vpop.f32.mrb[0].mxu0
        %v3755 = vadd.f32 0.0, %v3754
        %v3756 = vpop.f32.mrb[0].mxu0
        %3757 = vmatprep.mubr.f32.mxu0 %v3536
        %3758 = vmatmul.mubr.f32.gmra.mrb[0].mxu0 %v3504
        %v3759 = vpop.f32.mrb[0].mxu0
        %v3760 = vadd.f32 0.0, %v3759
        %v3761 = vpop.f32.mrb[0].mxu0
        %3762 = vmatprep.mubr.f32.mxu0 %v3537
        %3763 = vmatmul.mubr.f32.gmra.mrb[0].mxu0 %v3505
        %v3764 = vpop.f32.mrb[0].mxu0
        %v3765 = vadd.f32 0.0, %v3764
        %v3766 = vpop.f32.mrb[0].mxu0
        %3767 = vmatprep.mubr.f32.mxu0 %v3538
        %3768 = vmatmul.mubr.f32.gmra.mrb[0].mxu0 %v3506
        %v3769 = vpop.f32.mrb[0].mxu0
        %v3770 = vadd.f32 0.0, %v3769
        %v3771 = vpop.f32.mrb[0].mxu0
        %3772 = vmatprep.mubr.f32.mxu0 %v3539
        %3773 = vmatmul.mubr.f32.gmra.mrb[0].mxu0 %v3507
        %v3774 = vpop.f32.mrb[0].mxu0
        %v3775 = vadd.f32 0.0, %v3774
        %v3776 = vpop.f32.mrb[0].mxu0
        %3777 = vmatprep.mubr.f32.mxu0 %v3540
        %3778 = vmatmul.mubr.f32.gmra.mrb[0].mxu0 %v3508
        %v3779 = vpop.f32.mrb[0].mxu0
        %v3780 = vadd.f32 0.0, %v3779
        %v3781 = vpop.f32.mrb[0].mxu0
        %3782 = vmatprep.mubr.f32.mxu0 %v3541
        %3783 = vmatmul.mubr.f32.gmra.mrb[0].mxu0 %v3509
        %v3784 = vpop.f32.mrb[0].mxu0
        %v3785 = vadd.f32 0.0, %v3784
        %v3786 = vpop.f32.mrb[0].mxu0
        %3787 = vmatprep.mubr.f32.mxu0 %v3542
        %3788 = vmatmul.mubr.f32.gmra.mrb[0].mxu0 %v3510
        %v3789 = vpop.f32.mrb[0].mxu0
        %v3790 = vadd.f32 0.0, %v3789
        %v3791 = vpop.f32.mrb[0].mxu0
        %3792 = vmatprep.mubr.f32.mxu0 %v3543
        %3793 = vmatmul.mubr.f32.gmra.mrb[0].mxu0 %v3511
        %v3794 = vpop.f32.mrb[0].mxu0
        %v3795 = vadd.f32 0.0, %v3794
        %v3796 = vpop.f32.mrb[0].mxu0
        %3797 = vmatprep.mubr.f32.mxu0 %v3544
        %3798 = vmatmul.mubr.f32.gmra.mrb[0].mxu0 %v3512
        %v3799 = vpop.f32.mrb[0].mxu0
        %v3800 = vadd.f32 0.0, %v3799
        %v3801 = vpop.f32.mrb[0].mxu0
        %3802 = vmatprep.mubr.f32.mxu0 %v3545
        %3803 = vmatmul.mubr.f32.gmra.mrb[0].mxu0 %v3513
        %v3804 = vpop.f32.mrb[0].mxu0
        %v3805 = vadd.f32 0.0, %v3804
        %v3806 = vpop.f32.mrb[0].mxu0
        %3807 = vmatprep.mubr.f32.mxu0 %v3546
        %3808 = vmatmul.mubr.f32.gmra.mrb[0].mxu0 %v3514
        %v3809 = vpop.f32.mrb[0].mxu0
        %v3810 = vadd.f32 0.0, %v3809
        %v3811 = vpop.f32.mrb[0].mxu0
        %3812 = vmatprep.mubr.f32.mxu0 %v3547
        %3813 = vmatmul.mubr.f32.gmra.mrb[0].mxu0 %v3515
        %v3814 = vpop.f32.mrb[0].mxu0
        %v3815 = vadd.f32 0.0, %v3814
        %v3816 = vpop.f32.mrb[0].mxu0
        %3817 = vmatprep.mubr.f32.mxu0 %v3548
        %3818 = vmatmul.mubr.f32.gmra.mrb[0].mxu0 %v3516
        %v3819 = vpop.f32.mrb[0].mxu0
        %v3820 = vadd.f32 0.0, %v3819
        %v3821 = vpop.f32.mrb[0].mxu0
        %3822 = vmatprep.mubr.f32.mxu0 %v3549
        %3823 = vmatmul.mubr.f32.gmra.mrb[0].mxu0 %v3517
        %v3824 = vpop.f32.mrb[0].mxu0
        %v3825 = vadd.f32 0.0, %v3824
        %v3826 = vpop.f32.mrb[0].mxu0
        %3827 = vmatprep.mubr.f32.mxu0 %v3550
        %3828 = vmatmul.mubr.f32.gmra.mrb[0].mxu0 %v3518
        %v3829 = vpop.f32.mrb[0].mxu0
        %v3830 = vadd.f32 0.0, %v3829
        %v3831 = vpop.f32.mrb[0].mxu0
        %3832 = vmatprep.mubr.f32.mxu0 %v3551
        %3833 = vmatmul.mubr.f32.gmra.mrb[0].mxu0 %v3519
        %v3834 = vpop.f32.mrb[0].mxu0
        %v3835 = vadd.f32 0.0, %v3834
        %v3836 = vpop.f32.mrb[0].mxu0
        %3837 = vmatprep.mubr.f32.mxu0 %v3552
        %3838 = vmatmul.mubr.f32.gmra.mrb[0].mxu0 %v3520
        %v3839 = vpop.f32.mrb[0].mxu0
        %v3840 = vadd.f32 0.0, %v3839
        %v3841 = vpop.f32.mrb[0].mxu0
        %3842 = vmatprep.mubr.f32.mxu0 %v3553
        %3843 = vmatmul.mubr.f32.gmra.mrb[0].mxu0 %v3521
        %v3844 = vpop.f32.mrb[0].mxu0
        %v3845 = vadd.f32 0.0, %v3844
        %v3846 = vpop.f32.mrb[0].mxu0
        %3847 = vmatprep.mubr.f32.mxu0 %v3554
        %3848 = vmatmul.mubr.f32.gmra.mrb[0].mxu0 %v3522
        %v3849 = vpop.f32.mrb[0].mxu0
        %v3850 = vadd.f32 0.0, %v3849
        %v3851 = vpop.f32.mrb[0].mxu0
        %3852 = vmatprep.mubr.f32.mxu0 %v3555
        %3853 = vmatmul.mubr.f32.gmra.mrb[0].mxu0 %v3523
        %v3854 = vpop.f32.mrb[0].mxu0
        %v3855 = vadd.f32 0.0, %v3854
        %v3856 = vpop.f32.mrb[0].mxu0
        %3857 = vmatprep.mubr.f32.mxu0 %v3556
        %3858 = vmatmul.mubr.f32.gmra.mrb[0].mxu0 %v3524
        %v3859 = vpop.f32.mrb[0].mxu0
        %v3860 = vadd.f32 0.0, %v3859
        %v3861 = vpop.f32.mrb[0].mxu0
        %3862 = vmatprep.mubr.f32.mxu0 %v3557
        %3863 = vmatmul.mubr.f32.gmra.mrb[0].mxu0 %v3525
        %v3864 = vpop.f32.mrb[0].mxu0
        %v3865 = vadd.f32 0.0, %v3864
        %v3866 = vpop.f32.mrb[0].mxu0
        %3867 = vmatprep.mubr.f32.mxu0 %v3558
        %3868 = vmatmul.mubr.f32.gmra.mrb[0].mxu0 %v3526
        %v3869 = vpop.f32.mrb[0].mxu0
        %v3870 = vadd.f32 0.0, %v3869
        %v3871 = vpop.f32.mrb[0].mxu0
        %3872 = vmatprep.mubr.f32.mxu0 %v3559
        %3873 = vmatmul.mubr.f32.gmra.mrb[0].mxu0 %v3527
        %v3874 = vpop.f32.mrb[0].mxu0
        %v3875 = vadd.f32 0.0, %v3874
        %v3876 = vpop.f32.mrb[0].mxu0
        %3877 = vmatprep.mubr.f32.mxu0 %v3560
        %3878 = vmatmul.mubr.f32.gmra.mrb[0].mxu0 %v3528
        %v3879 = vpop.f32.mrb[0].mxu0
        %v3880 = vadd.f32 0.0, %v3879
        %v3881 = vpop.f32.mrb[0].mxu0
        %3882 = vmatprep.mubr.f32.mxu0 %v3561
        %3883 = vmatmul.mubr.f32.gmra.mrb[0].mxu0 %v3529
        %v3884 = vpop.f32.mrb[0].mxu0
        %v3885 = vadd.f32 0.0, %v3884
        %v3886 = vpop.f32.mrb[0].mxu0
        %3887 = vmatprep.mubr.f32.mxu0 %v3562
        %3888 = vmatmul.mubr.f32.gmra.mrb[0].mxu0 %v3530
        %v3889 = vpop.f32.mrb[0].mxu0
        %v3890 = vadd.f32 0.0, %v3889
        %v3891 = vpop.f32.mrb[0].mxu0
        %3892 = vmatprep.mubr.f32.mxu0 %v3563
        %3893 = vmatmul.mubr.f32.gmra.mrb[0].mxu0 %v3531
        %v3894 = vpop.f32.mrb[0].mxu0
        %v3895 = vadd.f32 0.0, %v3894
        %v3896 = vpop.f32.mrb[0].mxu0
        %3897 = vmatprep.mubr.f32.mxu0 %v3564
        %3898 = vmatmul.mubr.f32.gmra.mrb[0].mxu0 %v3532
        %v3899 = vpop.f32.mrb[0].mxu0
        %v3900 = vadd.f32 0.0, %v3899
        %v3901 = vpop.f32.mrb[0].mxu0
        %3902 = vdwg.mxu0
        %3903 = vmatprep.subr.mxu0 0.0
        %3904 = vmatpush1.msra.mxu0 %v3662
        %3905 = vmatprep.subr.mxu0 0.0
        %3906 = vmatpush1.msra.mxu0 %v3663
        %3907 = vmatprep.subr.mxu0 0.0
        %3908 = vmatpush1.msra.mxu0 %v3664
        %3909 = vmatprep.subr.mxu0 0.0
        %3910 = vmatpush1.msra.mxu0 %v3665
        %3911 = vmatprep.subr.mxu0 0.0
        %3912 = vmatpush1.msra.mxu0 %v3666
        %3913 = vmatprep.subr.mxu0 0.0
        %3914 = vmatpush1.msra.mxu0 %v3667
        %3915 = vmatprep.subr.mxu0 0.0
        %3916 = vmatpush1.msra.mxu0 %v3668
        %3917 = vmatprep.subr.mxu0 0.0
        %3918 = vmatpush1.msra.mxu0 %v3669
        %3919 = vmatprep.subr.mxu0 0.0
        %3920 = vmatpush1.msra.mxu0 %v3670
        %3921 = vmatprep.subr.mxu0 0.0
        %3922 = vmatpush1.msra.mxu0 %v3671
        %3923 = vmatprep.subr.mxu0 0.0
        %3924 = vmatpush1.msra.mxu0 %v3672
        %3925 = vmatprep.subr.mxu0 0.0
        %3926 = vmatpush1.msra.mxu0 %v3673
        %3927 = vmatprep.subr.mxu0 0.0
        %3928 = vmatpush1.msra.mxu0 %v3674
        %3929 = vmatprep.subr.mxu0 0.0
        %3930 = vmatpush1.msra.mxu0 %v3675
        %3931 = vmatprep.subr.mxu0 0.0
        %3932 = vmatpush1.msra.mxu0 %v3676
        %3933 = vmatprep.subr.mxu0 0.0
        %3934 = vmatpush1.msra.mxu0 %v3677
        %3935 = vmatprep.subr.mxu0 0.0
        %3936 = vmatpush1.msra.mxu0 0.0
        %3937 = vmatprep.subr.mxu0 0.0
        %3938 = vmatpush1.msra.mxu0 0.0
        %3939 = vmatprep.subr.mxu0 0.0
        %3940 = vmatpush1.msra.mxu0 0.0
        %3941 = vmatprep.subr.mxu0 0.0
        %3942 = vmatpush1.msra.mxu0 0.0
        %3943 = vmatprep.subr.mxu0 0.0
        %3944 = vmatpush1.msra.mxu0 0.0
        %3945 = vmatprep.subr.mxu0 0.0
        %3946 = vmatpush1.msra.mxu0 0.0
        %3947 = vmatprep.subr.mxu0 0.0
        %3948 = vmatpush1.msra.mxu0 0.0
        %3949 = vmatprep.subr.mxu0 0.0
        %3950 = vmatpush1.msra.mxu0 0.0
        %3951 = vmatprep.subr.mxu0 0.0
        %3952 = vmatpush1.msra.mxu0 0.0
        %3953 = vmatprep.subr.mxu0 0.0
        %3954 = vmatpush1.msra.mxu0 0.0
        %3955 = vmatprep.subr.mxu0 0.0
        %3956 = vmatpush1.msra.mxu0 0.0
        %3957 = vmatprep.subr.mxu0 0.0
        %3958 = vmatpush1.msra.mxu0 0.0
        %3959 = vmatprep.subr.mxu0 0.0
        %3960 = vmatpush1.msra.mxu0 0.0
        %3961 = vmatprep.subr.mxu0 0.0
        %3962 = vmatpush1.msra.mxu0 0.0
        %3963 = vmatprep.subr.mxu0 0.0
        %3964 = vmatpush1.msra.mxu0 0.0
        %3965 = vmatprep.subr.mxu0 0.0
        %3966 = vmatpush1.msra.mxu0 0.0
        %3967 = vmatprep.mubr.f32.mxu0 0.0
        %3968 = vmatmul.mubr.f32.gmra.mrb[0].mxu0 %v3565
        %v3969 = vpop.f32.mrb[0].mxu0
        %v3970 = vadd.f32 %v3745, %v3969
        %v3971 = vpop.f32.mrb[0].mxu0
        %3972 = vmatprep.mubr.f32.mxu0 0.0
        %3973 = vmatmul.mubr.f32.gmra.mrb[0].mxu0 %v3566
        %v3974 = vpop.f32.mrb[0].mxu0
        %v3975 = vadd.f32 %v3750, %v3974
        %v3976 = vpop.f32.mrb[0].mxu0
        %3977 = vmatprep.mubr.f32.mxu0 0.0
        %3978 = vmatmul.mubr.f32.gmra.mrb[0].mxu0 %v3567
        %v3979 = vpop.f32.mrb[0].mxu0
        %v3980 = vadd.f32 %v3755, %v3979
        %v3981 = vpop.f32.mrb[0].mxu0
        %3982 = vmatprep.mubr.f32.mxu0 0.0
        %3983 = vmatmul.mubr.f32.gmra.mrb[0].mxu0 %v3568
        %v3984 = vpop.f32.mrb[0].mxu0
        %v3985 = vadd.f32 %v3760, %v3984
        %v3986 = vpop.f32.mrb[0].mxu0
        %3987 = vmatprep.mubr.f32.mxu0 0.0
        %3988 = vmatmul.mubr.f32.gmra.mrb[0].mxu0 %v3569
        %v3989 = vpop.f32.mrb[0].mxu0
        %v3990 = vadd.f32 %v3765, %v3989
        %v3991 = vpop.f32.mrb[0].mxu0
        %3992 = vmatprep.mubr.f32.mxu0 0.0
        %3993 = vmatmul.mubr.f32.gmra.mrb[0].mxu0 %v3570
        %v3994 = vpop.f32.mrb[0].mxu0
        %v3995 = vadd.f32 %v3770, %v3994
        %v3996 = vpop.f32.mrb[0].mxu0
        %3997 = vmatprep.mubr.f32.mxu0 0.0
        %3998 = vmatmul.mubr.f32.gmra.mrb[0].mxu0 %v3571
        %v3999 = vpop.f32.mrb[0].mxu0
        %v4000 = vadd.f32 %v3775, %v3999
        %v4001 = vpop.f32.mrb[0].mxu0
        %4002 = vmatprep.mubr.f32.mxu0 0.0
        %4003 = vmatmul.mubr.f32.gmra.mrb[0].mxu0 %v3572
        %v4004 = vpop.f32.mrb[0].mxu0
        %v4005 = vadd.f32 %v3780, %v4004
        %v4006 = vpop.f32.mrb[0].mxu0
        %4007 = vmatprep.mubr.f32.mxu0 0.0
        %4008 = vmatmul.mubr.f32.gmra.mrb[0].mxu0 %v3573
        %v4009 = vpop.f32.mrb[0].mxu0
        %v4010 = vadd.f32 %v3785, %v4009
        %v4011 = vpop.f32.mrb[0].mxu0
        %4012 = vmatprep.mubr.f32.mxu0 0.0
        %4013 = vmatmul.mubr.f32.gmra.mrb[0].mxu0 %v3574
        %v4014 = vpop.f32.mrb[0].mxu0
        %v4015 = vadd.f32 %v3790, %v4014
        %v4016 = vpop.f32.mrb[0].mxu0
        %4017 = vmatprep.mubr.f32.mxu0 0.0
        %4018 = vmatmul.mubr.f32.gmra.mrb[0].mxu0 %v3575
        %v4019 = vpop.f32.mrb[0].mxu0
        %v4020 = vadd.f32 %v3795, %v4019
        %v4021 = vpop.f32.mrb[0].mxu0
        %4022 = vmatprep.mubr.f32.mxu0 0.0
        %4023 = vmatmul.mubr.f32.gmra.mrb[0].mxu0 %v3576
        %v4024 = vpop.f32.mrb[0].mxu0
        %v4025 = vadd.f32 %v3800, %v4024
        %v4026 = vpop.f32.mrb[0].mxu0
        %4027 = vmatprep.mubr.f32.mxu0 0.0
        %4028 = vmatmul.mubr.f32.gmra.mrb[0].mxu0 %v3577
        %v4029 = vpop.f32.mrb[0].mxu0
        %v4030 = vadd.f32 %v3805, %v4029
        %v4031 = vpop.f32.mrb[0].mxu0
        %4032 = vmatprep.mubr.f32.mxu0 0.0
        %4033 = vmatmul.mubr.f32.gmra.mrb[0].mxu0 %v3578
        %v4034 = vpop.f32.mrb[0].mxu0
        %v4035 = vadd.f32 %v3810, %v4034
        %v4036 = vpop.f32.mrb[0].mxu0
        %4037 = vmatprep.mubr.f32.mxu0 0.0
        %4038 = vmatmul.mubr.f32.gmra.mrb[0].mxu0 %v3579
        %v4039 = vpop.f32.mrb[0].mxu0
        %v4040 = vadd.f32 %v3815, %v4039
        %v4041 = vpop.f32.mrb[0].mxu0
        %4042 = vmatprep.mubr.f32.mxu0 0.0
        %4043 = vmatmul.mubr.f32.gmra.mrb[0].mxu0 %v3580
        %v4044 = vpop.f32.mrb[0].mxu0
        %v4045 = vadd.f32 %v3820, %v4044
        %v4046 = vpop.f32.mrb[0].mxu0
        %4047 = vmatprep.mubr.f32.mxu0 0.0
        %4048 = vmatmul.mubr.f32.gmra.mrb[0].mxu0 %v3581
        %v4049 = vpop.f32.mrb[0].mxu0
        %v4050 = vadd.f32 %v3825, %v4049
        %v4051 = vpop.f32.mrb[0].mxu0
        %4052 = vmatprep.mubr.f32.mxu0 0.0
        %4053 = vmatmul.mubr.f32.gmra.mrb[0].mxu0 %v3582
        %v4054 = vpop.f32.mrb[0].mxu0
        %v4055 = vadd.f32 %v3830, %v4054
        %v4056 = vpop.f32.mrb[0].mxu0
        %4057 = vmatprep.mubr.f32.mxu0 0.0
        %4058 = vmatmul.mubr.f32.gmra.mrb[0].mxu0 %v3583
        %v4059 = vpop.f32.mrb[0].mxu0
        %v4060 = vadd.f32 %v3835, %v4059
        %v4061 = vpop.f32.mrb[0].mxu0
        %4062 = vmatprep.mubr.f32.mxu0 0.0
        %4063 = vmatmul.mubr.f32.gmra.mrb[0].mxu0 %v3584
        %v4064 = vpop.f32.mrb[0].mxu0
        %v4065 = vadd.f32 %v3840, %v4064
        %v4066 = vpop.f32.mrb[0].mxu0
        %4067 = vmatprep.mubr.f32.mxu0 0.0
        %4068 = vmatmul.mubr.f32.gmra.mrb[0].mxu0 %v3585
        %v4069 = vpop.f32.mrb[0].mxu0
        %v4070 = vadd.f32 %v3845, %v4069
        %v4071 = vpop.f32.mrb[0].mxu0
        %4072 = vmatprep.mubr.f32.mxu0 0.0
        %4073 = vmatmul.mubr.f32.gmra.mrb[0].mxu0 %v3586
        %v4074 = vpop.f32.mrb[0].mxu0
        %v4075 = vadd.f32 %v3850, %v4074
        %v4076 = vpop.f32.mrb[0].mxu0
        %4077 = vmatprep.mubr.f32.mxu0 0.0
        %4078 = vmatmul.mubr.f32.gmra.mrb[0].mxu0 %v3587
        %v4079 = vpop.f32.mrb[0].mxu0
        %v4080 = vadd.f32 %v3855, %v4079
        %v4081 = vpop.f32.mrb[0].mxu0
        %4082 = vmatprep.mubr.f32.mxu0 0.0
        %4083 = vmatmul.mubr.f32.gmra.mrb[0].mxu0 %v3588
        %v4084 = vpop.f32.mrb[0].mxu0
        %v4085 = vadd.f32 %v3860, %v4084
        %v4086 = vpop.f32.mrb[0].mxu0
        %4087 = vmatprep.mubr.f32.mxu0 0.0
        %4088 = vmatmul.mubr.f32.gmra.mrb[0].mxu0 %v3589
        %v4089 = vpop.f32.mrb[0].mxu0
        %v4090 = vadd.f32 %v3865, %v4089
        %v4091 = vpop.f32.mrb[0].mxu0
        %4092 = vmatprep.mubr.f32.mxu0 0.0
        %4093 = vmatmul.mubr.f32.gmra.mrb[0].mxu0 %v3590
        %v4094 = vpop.f32.mrb[0].mxu0
        %v4095 = vadd.f32 %v3870, %v4094
        %v4096 = vpop.f32.mrb[0].mxu0
        %4097 = vmatprep.mubr.f32.mxu0 0.0
        %4098 = vmatmul.mubr.f32.gmra.mrb[0].mxu0 %v3591
        %v4099 = vpop.f32.mrb[0].mxu0
        %v4100 = vadd.f32 %v3875, %v4099
        %v4101 = vpop.f32.mrb[0].mxu0
        %4102 = vmatprep.mubr.f32.mxu0 0.0
        %4103 = vmatmul.mubr.f32.gmra.mrb[0].mxu0 %v3592
        %v4104 = vpop.f32.mrb[0].mxu0
        %v4105 = vadd.f32 %v3880, %v4104
        %v4106 = vpop.f32.mrb[0].mxu0
        %4107 = vmatprep.mubr.f32.mxu0 0.0
        %4108 = vmatmul.mubr.f32.gmra.mrb[0].mxu0 %v3593
        %v4109 = vpop.f32.mrb[0].mxu0
        %v4110 = vadd.f32 %v3885, %v4109
        %v4111 = vpop.f32.mrb[0].mxu0
        %4112 = vmatprep.mubr.f32.mxu0 0.0
        %4113 = vmatmul.mubr.f32.gmra.mrb[0].mxu0 %v3594
        %v4114 = vpop.f32.mrb[0].mxu0
        %v4115 = vadd.f32 %v3890, %v4114
        %v4116 = vpop.f32.mrb[0].mxu0
        %4117 = vmatprep.mubr.f32.mxu0 0.0
        %4118 = vmatmul.mubr.f32.gmra.mrb[0].mxu0 %v3595
        %v4119 = vpop.f32.mrb[0].mxu0
        %v4120 = vadd.f32 %v3895, %v4119
        %v4121 = vpop.f32.mrb[0].mxu0
        %4122 = vmatprep.mubr.f32.mxu0 0.0
        %4123 = vmatmul.mubr.f32.gmra.mrb[0].mxu0 %v3596
        %v4124 = vpop.f32.mrb[0].mxu0
        %v4125 = vadd.f32 %v3900, %v4124
        %v4126 = vpop.f32.mrb[0].mxu0
        %4127 = vdwg.mxu0
        %v4128 = vadd.f32 %v3597, %v3970
        %v4129 = vadd.f32 %v3598, %v3975
        %v4130 = vadd.f32 %v3599, %v3980
        %v4131 = vadd.f32 %v3600, %v3985
        %v4132 = vadd.f32 %v3601, %v3990
        %v4133 = vadd.f32 %v3602, %v3995
        %v4134 = vadd.f32 %v3603, %v4000
        %v4135 = vadd.f32 %v3604, %v4005
        %v4136 = vadd.f32 %v3605, %v4010
        %v4137 = vadd.f32 %v3606, %v4015
        %v4138 = vadd.f32 %v3607, %v4020
        %v4139 = vadd.f32 %v3608, %v4025
        %v4140 = vadd.f32 %v3609, %v4030
        %v4141 = vadd.f32 %v3610, %v4035
        %v4142 = vadd.f32 %v3611, %v4040
        %v4143 = vadd.f32 %v3612, %v4045
        %v4144 = vadd.f32 %v3613, %v4050
        %v4145 = vadd.f32 %v3614, %v4055
        %v4146 = vadd.f32 %v3615, %v4060
        %v4147 = vadd.f32 %v3616, %v4065
        %v4148 = vadd.f32 %v3617, %v4070
        %v4149 = vadd.f32 %v3618, %v4075
        %v4150 = vadd.f32 %v3619, %v4080
        %v4151 = vadd.f32 %v3620, %v4085
        %v4152 = vadd.f32 %v3621, %v4090
        %v4153 = vadd.f32 %v3622, %v4095
        %v4154 = vadd.f32 %v3623, %v4100
        %v4155 = vadd.f32 %v3624, %v4105
        %v4156 = vadd.f32 %v3625, %v4110
        %v4157 = vadd.f32 %v3626, %v4115
        %v4158 = vadd.f32 %v3627, %v4120
        %v4159 = vadd.f32 %v3628, %v4125
        %4160 = vst [vmem:[#allocation4] sm:$0xff] %v4128
        %4161 = vst [vmem:[#allocation4 + $0x8] sm:$0xff] %v4129
        %4162 = vst [vmem:[#allocation4 + $0x10] sm:$0xff] %v4130
        %4163 = vst [vmem:[#allocation4 + $0x18] sm:$0xff] %v4131
        %4164 = vst [vmem:[#allocation4 + $0x20] sm:$0xff] %v4132
        %4165 = vst [vmem:[#allocation4 + $0x28] sm:$0xff] %v4133
        %4166 = vst [vmem:[#allocation4 + $0x30] sm:$0xff] %v4134
        %4167 = vst [vmem:[#allocation4 + $0x38] sm:$0xff] %v4135
        %4168 = vst [vmem:[#allocation4 + $0x40] sm:$0xff] %v4136
        %4169 = vst [vmem:[#allocation4 + $0x48] sm:$0xff] %v4137
        %4170 = vst [vmem:[#allocation4 + $0x50] sm:$0xff] %v4138
        %4171 = vst [vmem:[#allocation4 + $0x58] sm:$0xff] %v4139
        %4172 = vst [vmem:[#allocation4 + $0x60] sm:$0xff] %v4140
        %4173 = vst [vmem:[#allocation4 + $0x68] sm:$0xff] %v4141
        %4174 = vst [vmem:[#allocation4 + $0x70] sm:$0xff] %v4142
        %4175 = vst [vmem:[#allocation4 + $0x78] sm:$0xff] %v4143
        %4176 = vst [vmem:[#allocation4 + $0x80] sm:$0xff] %v4144
        %4177 = vst [vmem:[#allocation4 + $0x88] sm:$0xff] %v4145
        %4178 = vst [vmem:[#allocation4 + $0x90] sm:$0xff] %v4146
        %4179 = vst [vmem:[#allocation4 + $0x98] sm:$0xff] %v4147
        %4180 = vst [vmem:[#allocation4 + $0xa0] sm:$0xff] %v4148
        %4181 = vst [vmem:[#allocation4 + $0xa8] sm:$0xff] %v4149
        %4182 = vst [vmem:[#allocation4 + $0xb0] sm:$0xff] %v4150
        %4183 = vst [vmem:[#allocation4 + $0xb8] sm:$0xff] %v4151
        %4184 = vst [vmem:[#allocation4 + $0xc0] sm:$0xff] %v4152
        %4185 = vst [vmem:[#allocation4 + $0xc8] sm:$0xff] %v4153
        %4186 = vst [vmem:[#allocation4 + $0xd0] sm:$0xff] %v4154
        %4187 = vst [vmem:[#allocation4 + $0xd8] sm:$0xff] %v4155
        %4188 = vst [vmem:[#allocation4 + $0xe0] sm:$0xff] %v4156
        %4189 = vst [vmem:[#allocation4 + $0xe8] sm:$0xff] %v4157
        %4190 = vst [vmem:[#allocation4 + $0xf0] sm:$0xff] %v4158
        %4191 = vst [vmem:[#allocation4 + $0xf8] sm:$0xff] %v4159
        %s4192 = scalar_lea.vmem [#allocation3], 48
        %v4193 = vld [vmem:[%s4192] sm:$0xff]
        %v4194 = vld [vmem:[%s4192 + $0x8] sm:$0xff]
        %v4195 = vld [vmem:[%s4192 + $0x18] sm:$0xff]
        %v4196 = vld [vmem:[%s4192 + $0x20] sm:$0xff]
        %v4197 = vld [vmem:[%s4192 + $0x30] sm:$0xff]
        %v4198 = vld [vmem:[%s4192 + $0x38] sm:$0xff]
        %v4199 = vld [vmem:[%s4192 + $0x48] sm:$0xff]
        %v4200 = vld [vmem:[%s4192 + $0x50] sm:$0xff]
        %v4201 = vld [vmem:[%s4192 + $0x60] sm:$0xff]
        %v4202 = vld [vmem:[%s4192 + $0x68] sm:$0xff]
        %v4203 = vld [vmem:[%s4192 + $0x78] sm:$0xff]
        %v4204 = vld [vmem:[%s4192 + $0x80] sm:$0xff]
        %v4205 = vld [vmem:[%s4192 + $0x90] sm:$0xff]
        %v4206 = vld [vmem:[%s4192 + $0x98] sm:$0xff]
        %v4207 = vld [vmem:[%s4192 + $0xa8] sm:$0xff]
        %v4208 = vld [vmem:[%s4192 + $0xb0] sm:$0xff]
        %v4209 = vld [vmem:[%s4192 + $0xc0] sm:$0xff]
        %v4210 = vld [vmem:[%s4192 + $0xc8] sm:$0xff]
        %v4211 = vld [vmem:[%s4192 + $0xd8] sm:$0xff]
        %v4212 = vld [vmem:[%s4192 + $0xe0] sm:$0xff]
        %v4213 = vld [vmem:[%s4192 + $0xf0] sm:$0xff]
        %v4214 = vld [vmem:[%s4192 + $0xf8] sm:$0xff]
        %v4215 = vld [vmem:[%s4192 + $0x108] sm:$0xff]
        %v4216 = vld [vmem:[%s4192 + $0x110] sm:$0xff]
        %v4217 = vld [vmem:[%s4192 + $0x120] sm:$0xff]
        %v4218 = vld [vmem:[%s4192 + $0x128] sm:$0xff]
        %v4219 = vld [vmem:[%s4192 + $0x138] sm:$0xff]
        %v4220 = vld [vmem:[%s4192 + $0x140] sm:$0xff]
        %v4221 = vld [vmem:[%s4192 + $0x150] sm:$0xff]
        %v4222 = vld [vmem:[%s4192 + $0x158] sm:$0xff]
        %v4223 = vld [vmem:[%s4192 + $0x168] sm:$0xff]
        %v4224 = vld [vmem:[%s4192 + $0x170] sm:$0xff]
        %v4225 = vld [vmem:[%s4192 + $0x1] sm:$0xff]
        %v4226 = vld [vmem:[%s4192 + $0x9] sm:$0xff]
        %v4227 = vld [vmem:[%s4192 + $0x19] sm:$0xff]
        %v4228 = vld [vmem:[%s4192 + $0x21] sm:$0xff]
        %v4229 = vld [vmem:[%s4192 + $0x31] sm:$0xff]
        %v4230 = vld [vmem:[%s4192 + $0x39] sm:$0xff]
        %v4231 = vld [vmem:[%s4192 + $0x49] sm:$0xff]
        %v4232 = vld [vmem:[%s4192 + $0x51] sm:$0xff]
        %v4233 = vld [vmem:[%s4192 + $0x61] sm:$0xff]
        %v4234 = vld [vmem:[%s4192 + $0x69] sm:$0xff]
        %v4235 = vld [vmem:[%s4192 + $0x79] sm:$0xff]
        %v4236 = vld [vmem:[%s4192 + $0x81] sm:$0xff]
        %v4237 = vld [vmem:[%s4192 + $0x91] sm:$0xff]
        %v4238 = vld [vmem:[%s4192 + $0x99] sm:$0xff]
        %v4239 = vld [vmem:[%s4192 + $0xa9] sm:$0xff]
        %v4240 = vld [vmem:[%s4192 + $0xb1] sm:$0xff]
        %v4241 = vld [vmem:[%s4192 + $0xc1] sm:$0xff]
        %v4242 = vld [vmem:[%s4192 + $0xc9] sm:$0xff]
        %v4243 = vld [vmem:[%s4192 + $0xd9] sm:$0xff]
        %v4244 = vld [vmem:[%s4192 + $0xe1] sm:$0xff]
        %v4245 = vld [vmem:[%s4192 + $0xf1] sm:$0xff]
        %v4246 = vld [vmem:[%s4192 + $0xf9] sm:$0xff]
        %v4247 = vld [vmem:[%s4192 + $0x109] sm:$0xff]
        %v4248 = vld [vmem:[%s4192 + $0x111] sm:$0xff]
        %v4249 = vld [vmem:[%s4192 + $0x121] sm:$0xff]
        %v4250 = vld [vmem:[%s4192 + $0x129] sm:$0xff]
        %v4251 = vld [vmem:[%s4192 + $0x139] sm:$0xff]
        %v4252 = vld [vmem:[%s4192 + $0x141] sm:$0xff]
        %v4253 = vld [vmem:[%s4192 + $0x151] sm:$0xff]
        %v4254 = vld [vmem:[%s4192 + $0x159] sm:$0xff]
        %v4255 = vld [vmem:[%s4192 + $0x169] sm:$0xff]
        %v4256 = vld [vmem:[%s4192 + $0x171] sm:$0xff]
        %v4257 = vld [vmem:[%s4192 + $0x2] sm:$0xff]
        %v4258 = vld [vmem:[%s4192 + $0xa] sm:$0xff]
        %v4259 = vld [vmem:[%s4192 + $0x1a] sm:$0xff]
        %v4260 = vld [vmem:[%s4192 + $0x22] sm:$0xff]
        %v4261 = vld [vmem:[%s4192 + $0x32] sm:$0xff]
        %v4262 = vld [vmem:[%s4192 + $0x3a] sm:$0xff]
        %v4263 = vld [vmem:[%s4192 + $0x4a] sm:$0xff]
        %v4264 = vld [vmem:[%s4192 + $0x52] sm:$0xff]
        %v4265 = vld [vmem:[%s4192 + $0x62] sm:$0xff]
        %v4266 = vld [vmem:[%s4192 + $0x6a] sm:$0xff]
        %v4267 = vld [vmem:[%s4192 + $0x7a] sm:$0xff]
        %v4268 = vld [vmem:[%s4192 + $0x82] sm:$0xff]
        %v4269 = vld [vmem:[%s4192 + $0x92] sm:$0xff]
        %v4270 = vld [vmem:[%s4192 + $0x9a] sm:$0xff]
        %v4271 = vld [vmem:[%s4192 + $0xaa] sm:$0xff]
        %v4272 = vld [vmem:[%s4192 + $0xb2] sm:$0xff]
        %v4273 = vld [vmem:[%s4192 + $0xc2] sm:$0xff]
        %v4274 = vld [vmem:[%s4192 + $0xca] sm:$0xff]
        %v4275 = vld [vmem:[%s4192 + $0xda] sm:$0xff]
        %v4276 = vld [vmem:[%s4192 + $0xe2] sm:$0xff]
        %v4277 = vld [vmem:[%s4192 + $0xf2] sm:$0xff]
        %v4278 = vld [vmem:[%s4192 + $0xfa] sm:$0xff]
        %v4279 = vld [vmem:[%s4192 + $0x10a] sm:$0xff]
        %v4280 = vld [vmem:[%s4192 + $0x112] sm:$0xff]
        %v4281 = vld [vmem:[%s4192 + $0x122] sm:$0xff]
        %v4282 = vld [vmem:[%s4192 + $0x12a] sm:$0xff]
        %v4283 = vld [vmem:[%s4192 + $0x13a] sm:$0xff]
        %v4284 = vld [vmem:[%s4192 + $0x142] sm:$0xff]
        %v4285 = vld [vmem:[%s4192 + $0x152] sm:$0xff]
        %v4286 = vld [vmem:[%s4192 + $0x15a] sm:$0xff]
        %v4287 = vld [vmem:[%s4192 + $0x16a] sm:$0xff]
        %v4288 = vld [vmem:[%s4192 + $0x172] sm:$0xff]
        %v4289 = vld [vmem:[#allocation4] sm:$0xff]
        %v4290 = vld [vmem:[#allocation4 + $0x8] sm:$0xff]
        %v4291 = vld [vmem:[#allocation4 + $0x10] sm:$0xff]
        %v4292 = vld [vmem:[#allocation4 + $0x18] sm:$0xff]
        %v4293 = vld [vmem:[#allocation4 + $0x20] sm:$0xff]
        %v4294 = vld [vmem:[#allocation4 + $0x28] sm:$0xff]
        %v4295 = vld [vmem:[#allocation4 + $0x30] sm:$0xff]
        %v4296 = vld [vmem:[#allocation4 + $0x38] sm:$0xff]
        %v4297 = vld [vmem:[#allocation4 + $0x40] sm:$0xff]
        %v4298 = vld [vmem:[#allocation4 + $0x48] sm:$0xff]
        %v4299 = vld [vmem:[#allocation4 + $0x50] sm:$0xff]
        %v4300 = vld [vmem:[#allocation4 + $0x58] sm:$0xff]
        %v4301 = vld [vmem:[#allocation4 + $0x60] sm:$0xff]
        %v4302 = vld [vmem:[#allocation4 + $0x68] sm:$0xff]
        %v4303 = vld [vmem:[#allocation4 + $0x70] sm:$0xff]
        %v4304 = vld [vmem:[#allocation4 + $0x78] sm:$0xff]
        %v4305 = vld [vmem:[#allocation4 + $0x80] sm:$0xff]
        %v4306 = vld [vmem:[#allocation4 + $0x88] sm:$0xff]
        %v4307 = vld [vmem:[#allocation4 + $0x90] sm:$0xff]
        %v4308 = vld [vmem:[#allocation4 + $0x98] sm:$0xff]
        %v4309 = vld [vmem:[#allocation4 + $0xa0] sm:$0xff]
        %v4310 = vld [vmem:[#allocation4 + $0xa8] sm:$0xff]
        %v4311 = vld [vmem:[#allocation4 + $0xb0] sm:$0xff]
        %v4312 = vld [vmem:[#allocation4 + $0xb8] sm:$0xff]
        %v4313 = vld [vmem:[#allocation4 + $0xc0] sm:$0xff]
        %v4314 = vld [vmem:[#allocation4 + $0xc8] sm:$0xff]
        %v4315 = vld [vmem:[#allocation4 + $0xd0] sm:$0xff]
        %v4316 = vld [vmem:[#allocation4 + $0xd8] sm:$0xff]
        %v4317 = vld [vmem:[#allocation4 + $0xe0] sm:$0xff]
        %v4318 = vld [vmem:[#allocation4 + $0xe8] sm:$0xff]
        %v4319 = vld [vmem:[#allocation4 + $0xf0] sm:$0xff]
        %v4320 = vld [vmem:[#allocation4 + $0xf8] sm:$0xff]
        %s4321 = scalar_lea.vmem [#allocation10], 768
        %v4322 = vld [vmem:[%s4321] sm:$0xff]
        %v4323 = vld [vmem:[%s4321 + $0x8] sm:$0xff]
        %v4324 = vld [vmem:[%s4321 + $0x10] sm:$0xff]
        %v4325 = vld [vmem:[%s4321 + $0x18] sm:$0xff]
        %v4326 = vld [vmem:[%s4321 + $0x20] sm:$0xff]
        %v4327 = vld [vmem:[%s4321 + $0x28] sm:$0xff]
        %v4328 = vld [vmem:[%s4321 + $0x30] sm:$0xff]
        %v4329 = vld [vmem:[%s4321 + $0x38] sm:$0xff]
        %v4330 = vld [vmem:[%s4321 + $0x40] sm:$0xff]
        %v4331 = vld [vmem:[%s4321 + $0x48] sm:$0xff]
        %v4332 = vld [vmem:[%s4321 + $0x50] sm:$0xff]
        %v4333 = vld [vmem:[%s4321 + $0x58] sm:$0xff]
        %v4334 = vld [vmem:[%s4321 + $0x60] sm:$0xff]
        %v4335 = vld [vmem:[%s4321 + $0x68] sm:$0xff]
        %v4336 = vld [vmem:[%s4321 + $0x70] sm:$0xff]
        %v4337 = vld [vmem:[%s4321 + $0x78] sm:$0xff]
        %v4338 = vld [vmem:[%s4321 + $0x80] sm:$0xff]
        %v4339 = vld [vmem:[%s4321 + $0x88] sm:$0xff]
        %v4340 = vld [vmem:[%s4321 + $0x90] sm:$0xff]
        %v4341 = vld [vmem:[%s4321 + $0x98] sm:$0xff]
        %v4342 = vld [vmem:[%s4321 + $0xa0] sm:$0xff]
        %v4343 = vld [vmem:[%s4321 + $0xa8] sm:$0xff]
        %v4344 = vld [vmem:[%s4321 + $0xb0] sm:$0xff]
        %v4345 = vld [vmem:[%s4321 + $0xb8] sm:$0xff]
        %v4346 = vld [vmem:[%s4321 + $0xc0] sm:$0xff]
        %v4347 = vld [vmem:[%s4321 + $0xc8] sm:$0xff]
        %v4348 = vld [vmem:[%s4321 + $0xd0] sm:$0xff]
        %v4349 = vld [vmem:[%s4321 + $0xd8] sm:$0xff]
        %v4350 = vld [vmem:[%s4321 + $0xe0] sm:$0xff]
        %v4351 = vld [vmem:[%s4321 + $0xe8] sm:$0xff]
        %v4352 = vld [vmem:[%s4321 + $0xf0] sm:$0xff]
        %v4353 = vld [vmem:[%s4321 + $0xf8] sm:$0xff]
        %v4354 = vld [vmem:[%s4321 + $0x100] sm:$0xff]
        %v4355 = vld [vmem:[%s4321 + $0x108] sm:$0xff]
        %v4356 = vld [vmem:[%s4321 + $0x110] sm:$0xff]
        %v4357 = vld [vmem:[%s4321 + $0x118] sm:$0xff]
        %v4358 = vld [vmem:[%s4321 + $0x120] sm:$0xff]
        %v4359 = vld [vmem:[%s4321 + $0x128] sm:$0xff]
        %v4360 = vld [vmem:[%s4321 + $0x130] sm:$0xff]
        %v4361 = vld [vmem:[%s4321 + $0x138] sm:$0xff]
        %v4362 = vld [vmem:[%s4321 + $0x140] sm:$0xff]
        %v4363 = vld [vmem:[%s4321 + $0x148] sm:$0xff]
        %v4364 = vld [vmem:[%s4321 + $0x150] sm:$0xff]
        %v4365 = vld [vmem:[%s4321 + $0x158] sm:$0xff]
        %v4366 = vld [vmem:[%s4321 + $0x160] sm:$0xff]
        %v4367 = vld [vmem:[%s4321 + $0x168] sm:$0xff]
        %v4368 = vld [vmem:[%s4321 + $0x170] sm:$0xff]
        %v4369 = vld [vmem:[%s4321 + $0x178] sm:$0xff]
        %4370 = vmatprep.subr.mxu0 0.0
        %4371 = vmatpush1.msra.mxu0 %v4322
        %4372 = vmatprep.subr.mxu0 0.0
        %4373 = vmatpush1.msra.mxu0 %v4323
        %4374 = vmatprep.subr.mxu0 0.0
        %4375 = vmatpush1.msra.mxu0 %v4324
        %4376 = vmatprep.subr.mxu0 0.0
        %4377 = vmatpush1.msra.mxu0 %v4325
        %4378 = vmatprep.subr.mxu0 0.0
        %4379 = vmatpush1.msra.mxu0 %v4326
        %4380 = vmatprep.subr.mxu0 0.0
        %4381 = vmatpush1.msra.mxu0 %v4327
        %4382 = vmatprep.subr.mxu0 0.0
        %4383 = vmatpush1.msra.mxu0 %v4328
        %4384 = vmatprep.subr.mxu0 0.0
        %4385 = vmatpush1.msra.mxu0 %v4329
        %4386 = vmatprep.subr.mxu0 0.0
        %4387 = vmatpush1.msra.mxu0 %v4330
        %4388 = vmatprep.subr.mxu0 0.0
        %4389 = vmatpush1.msra.mxu0 %v4331
        %4390 = vmatprep.subr.mxu0 0.0
        %4391 = vmatpush1.msra.mxu0 %v4332
        %4392 = vmatprep.subr.mxu0 0.0
        %4393 = vmatpush1.msra.mxu0 %v4333
        %4394 = vmatprep.subr.mxu0 0.0
        %4395 = vmatpush1.msra.mxu0 %v4334
        %4396 = vmatprep.subr.mxu0 0.0
        %4397 = vmatpush1.msra.mxu0 %v4335
        %4398 = vmatprep.subr.mxu0 0.0
        %4399 = vmatpush1.msra.mxu0 %v4336
        %4400 = vmatprep.subr.mxu0 0.0
        %4401 = vmatpush1.msra.mxu0 %v4337
        %4402 = vmatprep.subr.mxu0 0.0
        %4403 = vmatpush1.msra.mxu0 %v4338
        %4404 = vmatprep.subr.mxu0 0.0
        %4405 = vmatpush1.msra.mxu0 %v4339
        %4406 = vmatprep.subr.mxu0 0.0
        %4407 = vmatpush1.msra.mxu0 %v4340
        %4408 = vmatprep.subr.mxu0 0.0
        %4409 = vmatpush1.msra.mxu0 %v4341
        %4410 = vmatprep.subr.mxu0 0.0
        %4411 = vmatpush1.msra.mxu0 %v4342
        %4412 = vmatprep.subr.mxu0 0.0
        %4413 = vmatpush1.msra.mxu0 %v4343
        %4414 = vmatprep.subr.mxu0 0.0
        %4415 = vmatpush1.msra.mxu0 %v4344
        %4416 = vmatprep.subr.mxu0 0.0
        %4417 = vmatpush1.msra.mxu0 %v4345
        %4418 = vmatprep.subr.mxu0 0.0
        %4419 = vmatpush1.msra.mxu0 %v4346
        %4420 = vmatprep.subr.mxu0 0.0
        %4421 = vmatpush1.msra.mxu0 %v4347
        %4422 = vmatprep.subr.mxu0 0.0
        %4423 = vmatpush1.msra.mxu0 %v4348
        %4424 = vmatprep.subr.mxu0 0.0
        %4425 = vmatpush1.msra.mxu0 %v4349
        %4426 = vmatprep.subr.mxu0 0.0
        %4427 = vmatpush1.msra.mxu0 %v4350
        %4428 = vmatprep.subr.mxu0 0.0
        %4429 = vmatpush1.msra.mxu0 %v4351
        %4430 = vmatprep.subr.mxu0 0.0
        %4431 = vmatpush1.msra.mxu0 %v4352
        %4432 = vmatprep.subr.mxu0 0.0
        %4433 = vmatpush1.msra.mxu0 %v4353
        %4434 = vmatprep.mubr.f32.mxu0 %v4225
        %4435 = vmatmul.mubr.f32.gmra.mrb[0].mxu0 %v4193
        %v4436 = vpop.f32.mrb[0].mxu0
        %v4437 = vadd.f32 0.0, %v4436
        %v4438 = vpop.f32.mrb[0].mxu0
        %4439 = vmatprep.mubr.f32.mxu0 %v4226
        %4440 = vmatmul.mubr.f32.gmra.mrb[0].mxu0 %v4194
        %v4441 = vpop.f32.mrb[0].mxu0
        %v4442 = vadd.f32 0.0, %v4441
        %v4443 = vpop.f32.mrb[0].mxu0
        %4444 = vmatprep.mubr.f32.mxu0 %v4227
        %4445 = vmatmul.mubr.f32.gmra.mrb[0].mxu0 %v4195
        %v4446 = vpop.f32.mrb[0].mxu0
        %v4447 = vadd.f32 0.0, %v4446
        %v4448 = vpop.f32.mrb[0].mxu0
        %4449 = vmatprep.mubr.f32.mxu0 %v4228
        %4450 = vmatmul.mubr.f32.gmra.mrb[0].mxu0 %v4196
        %v4451 = vpop.f32.mrb[0].mxu0
        %v4452 = vadd.f32 0.0, %v4451
        %v4453 = vpop.f32.mrb[0].mxu0
        %4454 = vmatprep.mubr.f32.mxu0 %v4229
        %4455 = vmatmul.mubr.f32.gmra.mrb[0].mxu0 %v4197
        %v4456 = vpop.f32.mrb[0].mxu0
        %v4457 = vadd.f32 0.0, %v4456
        %v4458 = vpop.f32.mrb[0].mxu0
        %4459 = vmatprep.mubr.f32.mxu0 %v4230
        %4460 = vmatmul.mubr.f32.gmra.mrb[0].mxu0 %v4198
        %v4461 = vpop.f32.mrb[0].mxu0
        %v4462 = vadd.f32 0.0, %v4461
        %v4463 = vpop.f32.mrb[0].mxu0
        %4464 = vmatprep.mubr.f32.mxu0 %v4231
        %4465 = vmatmul.mubr.f32.gmra.mrb[0].mxu0 %v4199
        %v4466 = vpop.f32.mrb[0].mxu0
        %v4467 = vadd.f32 0.0, %v4466
        %v4468 = vpop.f32.mrb[0].mxu0
        %4469 = vmatprep.mubr.f32.mxu0 %v4232
        %4470 = vmatmul.mubr.f32.gmra.mrb[0].mxu0 %v4200
        %v4471 = vpop.f32.mrb[0].mxu0
        %v4472 = vadd.f32 0.0, %v4471
        %v4473 = vpop.f32.mrb[0].mxu0
        %4474 = vmatprep.mubr.f32.mxu0 %v4233
        %4475 = vmatmul.mubr.f32.gmra.mrb[0].mxu0 %v4201
        %v4476 = vpop.f32.mrb[0].mxu0
        %v4477 = vadd.f32 0.0, %v4476
        %v4478 = vpop.f32.mrb[0].mxu0
        %4479 = vmatprep.mubr.f32.mxu0 %v4234
        %4480 = vmatmul.mubr.f32.gmra.mrb[0].mxu0 %v4202
        %v4481 = vpop.f32.mrb[0].mxu0
        %v4482 = vadd.f32 0.0, %v4481
        %v4483 = vpop.f32.mrb[0].mxu0
        %4484 = vmatprep.mubr.f32.mxu0 %v4235
        %4485 = vmatmul.mubr.f32.gmra.mrb[0].mxu0 %v4203
        %v4486 = vpop.f32.mrb[0].mxu0
        %v4487 = vadd.f32 0.0, %v4486
        %v4488 = vpop.f32.mrb[0].mxu0
        %4489 = vmatprep.mubr.f32.mxu0 %v4236
        %4490 = vmatmul.mubr.f32.gmra.mrb[0].mxu0 %v4204
        %v4491 = vpop.f32.mrb[0].mxu0
        %v4492 = vadd.f32 0.0, %v4491
        %v4493 = vpop.f32.mrb[0].mxu0
        %4494 = vmatprep.mubr.f32.mxu0 %v4237
        %4495 = vmatmul.mubr.f32.gmra.mrb[0].mxu0 %v4205
        %v4496 = vpop.f32.mrb[0].mxu0
        %v4497 = vadd.f32 0.0, %v4496
        %v4498 = vpop.f32.mrb[0].mxu0
        %4499 = vmatprep.mubr.f32.mxu0 %v4238
        %4500 = vmatmul.mubr.f32.gmra.mrb[0].mxu0 %v4206
        %v4501 = vpop.f32.mrb[0].mxu0
        %v4502 = vadd.f32 0.0, %v4501
        %v4503 = vpop.f32.mrb[0].mxu0
        %4504 = vmatprep.mubr.f32.mxu0 %v4239
        %4505 = vmatmul.mubr.f32.gmra.mrb[0].mxu0 %v4207
        %v4506 = vpop.f32.mrb[0].mxu0
        %v4507 = vadd.f32 0.0, %v4506
        %v4508 = vpop.f32.mrb[0].mxu0
        %4509 = vmatprep.mubr.f32.mxu0 %v4240
        %4510 = vmatmul.mubr.f32.gmra.mrb[0].mxu0 %v4208
        %v4511 = vpop.f32.mrb[0].mxu0
        %v4512 = vadd.f32 0.0, %v4511
        %v4513 = vpop.f32.mrb[0].mxu0
        %4514 = vmatprep.mubr.f32.mxu0 %v4241
        %4515 = vmatmul.mubr.f32.gmra.mrb[0].mxu0 %v4209
        %v4516 = vpop.f32.mrb[0].mxu0
        %v4517 = vadd.f32 0.0, %v4516
        %v4518 = vpop.f32.mrb[0].mxu0
        %4519 = vmatprep.mubr.f32.mxu0 %v4242
        %4520 = vmatmul.mubr.f32.gmra.mrb[0].mxu0 %v4210
        %v4521 = vpop.f32.mrb[0].mxu0
        %v4522 = vadd.f32 0.0, %v4521
        %v4523 = vpop.f32.mrb[0].mxu0
        %4524 = vmatprep.mubr.f32.mxu0 %v4243
        %4525 = vmatmul.mubr.f32.gmra.mrb[0].mxu0 %v4211
        %v4526 = vpop.f32.mrb[0].mxu0
        %v4527 = vadd.f32 0.0, %v4526
        %v4528 = vpop.f32.mrb[0].mxu0
        %4529 = vmatprep.mubr.f32.mxu0 %v4244
        %4530 = vmatmul.mubr.f32.gmra.mrb[0].mxu0 %v4212
        %v4531 = vpop.f32.mrb[0].mxu0
        %v4532 = vadd.f32 0.0, %v4531
        %v4533 = vpop.f32.mrb[0].mxu0
        %4534 = vmatprep.mubr.f32.mxu0 %v4245
        %4535 = vmatmul.mubr.f32.gmra.mrb[0].mxu0 %v4213
        %v4536 = vpop.f32.mrb[0].mxu0
        %v4537 = vadd.f32 0.0, %v4536
        %v4538 = vpop.f32.mrb[0].mxu0
        %4539 = vmatprep.mubr.f32.mxu0 %v4246
        %4540 = vmatmul.mubr.f32.gmra.mrb[0].mxu0 %v4214
        %v4541 = vpop.f32.mrb[0].mxu0
        %v4542 = vadd.f32 0.0, %v4541
        %v4543 = vpop.f32.mrb[0].mxu0
        %4544 = vmatprep.mubr.f32.mxu0 %v4247
        %4545 = vmatmul.mubr.f32.gmra.mrb[0].mxu0 %v4215
        %v4546 = vpop.f32.mrb[0].mxu0
        %v4547 = vadd.f32 0.0, %v4546
        %v4548 = vpop.f32.mrb[0].mxu0
        %4549 = vmatprep.mubr.f32.mxu0 %v4248
        %4550 = vmatmul.mubr.f32.gmra.mrb[0].mxu0 %v4216
        %v4551 = vpop.f32.mrb[0].mxu0
        %v4552 = vadd.f32 0.0, %v4551
        %v4553 = vpop.f32.mrb[0].mxu0
        %4554 = vmatprep.mubr.f32.mxu0 %v4249
        %4555 = vmatmul.mubr.f32.gmra.mrb[0].mxu0 %v4217
        %v4556 = vpop.f32.mrb[0].mxu0
        %v4557 = vadd.f32 0.0, %v4556
        %v4558 = vpop.f32.mrb[0].mxu0
        %4559 = vmatprep.mubr.f32.mxu0 %v4250
        %4560 = vmatmul.mubr.f32.gmra.mrb[0].mxu0 %v4218
        %v4561 = vpop.f32.mrb[0].mxu0
        %v4562 = vadd.f32 0.0, %v4561
        %v4563 = vpop.f32.mrb[0].mxu0
        %4564 = vmatprep.mubr.f32.mxu0 %v4251
        %4565 = vmatmul.mubr.f32.gmra.mrb[0].mxu0 %v4219
        %v4566 = vpop.f32.mrb[0].mxu0
        %v4567 = vadd.f32 0.0, %v4566
        %v4568 = vpop.f32.mrb[0].mxu0
        %4569 = vmatprep.mubr.f32.mxu0 %v4252
        %4570 = vmatmul.mubr.f32.gmra.mrb[0].mxu0 %v4220
        %v4571 = vpop.f32.mrb[0].mxu0
        %v4572 = vadd.f32 0.0, %v4571
        %v4573 = vpop.f32.mrb[0].mxu0
        %4574 = vmatprep.mubr.f32.mxu0 %v4253
        %4575 = vmatmul.mubr.f32.gmra.mrb[0].mxu0 %v4221
        %v4576 = vpop.f32.mrb[0].mxu0
        %v4577 = vadd.f32 0.0, %v4576
        %v4578 = vpop.f32.mrb[0].mxu0
        %4579 = vmatprep.mubr.f32.mxu0 %v4254
        %4580 = vmatmul.mubr.f32.gmra.mrb[0].mxu0 %v4222
        %v4581 = vpop.f32.mrb[0].mxu0
        %v4582 = vadd.f32 0.0, %v4581
        %v4583 = vpop.f32.mrb[0].mxu0
        %4584 = vmatprep.mubr.f32.mxu0 %v4255
        %4585 = vmatmul.mubr.f32.gmra.mrb[0].mxu0 %v4223
        %v4586 = vpop.f32.mrb[0].mxu0
        %v4587 = vadd.f32 0.0, %v4586
        %v4588 = vpop.f32.mrb[0].mxu0
        %4589 = vmatprep.mubr.f32.mxu0 %v4256
        %4590 = vmatmul.mubr.f32.gmra.mrb[0].mxu0 %v4224
        %v4591 = vpop.f32.mrb[0].mxu0
        %v4592 = vadd.f32 0.0, %v4591
        %v4593 = vpop.f32.mrb[0].mxu0
        %4594 = vdwg.mxu0
        %4595 = vmatprep.subr.mxu0 0.0
        %4596 = vmatpush1.msra.mxu0 %v4354
        %4597 = vmatprep.subr.mxu0 0.0
        %4598 = vmatpush1.msra.mxu0 %v4355
        %4599 = vmatprep.subr.mxu0 0.0
        %4600 = vmatpush1.msra.mxu0 %v4356
        %4601 = vmatprep.subr.mxu0 0.0
        %4602 = vmatpush1.msra.mxu0 %v4357
        %4603 = vmatprep.subr.mxu0 0.0
        %4604 = vmatpush1.msra.mxu0 %v4358
        %4605 = vmatprep.subr.mxu0 0.0
        %4606 = vmatpush1.msra.mxu0 %v4359
        %4607 = vmatprep.subr.mxu0 0.0
        %4608 = vmatpush1.msra.mxu0 %v4360
        %4609 = vmatprep.subr.mxu0 0.0
        %4610 = vmatpush1.msra.mxu0 %v4361
        %4611 = vmatprep.subr.mxu0 0.0
        %4612 = vmatpush1.msra.mxu0 %v4362
        %4613 = vmatprep.subr.mxu0 0.0
        %4614 = vmatpush1.msra.mxu0 %v4363
        %4615 = vmatprep.subr.mxu0 0.0
        %4616 = vmatpush1.msra.mxu0 %v4364
        %4617 = vmatprep.subr.mxu0 0.0
        %4618 = vmatpush1.msra.mxu0 %v4365
        %4619 = vmatprep.subr.mxu0 0.0
        %4620 = vmatpush1.msra.mxu0 %v4366
        %4621 = vmatprep.subr.mxu0 0.0
        %4622 = vmatpush1.msra.mxu0 %v4367
        %4623 = vmatprep.subr.mxu0 0.0
        %4624 = vmatpush1.msra.mxu0 %v4368
        %4625 = vmatprep.subr.mxu0 0.0
        %4626 = vmatpush1.msra.mxu0 %v4369
        %4627 = vmatprep.subr.mxu0 0.0
        %4628 = vmatpush1.msra.mxu0 0.0
        %4629 = vmatprep.subr.mxu0 0.0
        %4630 = vmatpush1.msra.mxu0 0.0
        %4631 = vmatprep.subr.mxu0 0.0
        %4632 = vmatpush1.msra.mxu0 0.0
        %4633 = vmatprep.subr.mxu0 0.0
        %4634 = vmatpush1.msra.mxu0 0.0
        %4635 = vmatprep.subr.mxu0 0.0
        %4636 = vmatpush1.msra.mxu0 0.0
        %4637 = vmatprep.subr.mxu0 0.0
        %4638 = vmatpush1.msra.mxu0 0.0
        %4639 = vmatprep.subr.mxu0 0.0
        %4640 = vmatpush1.msra.mxu0 0.0
        %4641 = vmatprep.subr.mxu0 0.0
        %4642 = vmatpush1.msra.mxu0 0.0
        %4643 = vmatprep.subr.mxu0 0.0
        %4644 = vmatpush1.msra.mxu0 0.0
        %4645 = vmatprep.subr.mxu0 0.0
        %4646 = vmatpush1.msra.mxu0 0.0
        %4647 = vmatprep.subr.mxu0 0.0
        %4648 = vmatpush1.msra.mxu0 0.0
        %4649 = vmatprep.subr.mxu0 0.0
        %4650 = vmatpush1.msra.mxu0 0.0
        %4651 = vmatprep.subr.mxu0 0.0
        %4652 = vmatpush1.msra.mxu0 0.0
        %4653 = vmatprep.subr.mxu0 0.0
        %4654 = vmatpush1.msra.mxu0 0.0
        %4655 = vmatprep.subr.mxu0 0.0
        %4656 = vmatpush1.msra.mxu0 0.0
        %4657 = vmatprep.subr.mxu0 0.0
        %4658 = vmatpush1.msra.mxu0 0.0
        %4659 = vmatprep.mubr.f32.mxu0 0.0
        %4660 = vmatmul.mubr.f32.gmra.mrb[0].mxu0 %v4257
        %v4661 = vpop.f32.mrb[0].mxu0
        %v4662 = vadd.f32 %v4437, %v4661
        %v4663 = vpop.f32.mrb[0].mxu0
        %4664 = vmatprep.mubr.f32.mxu0 0.0
        %4665 = vmatmul.mubr.f32.gmra.mrb[0].mxu0 %v4258
        %v4666 = vpop.f32.mrb[0].mxu0
        %v4667 = vadd.f32 %v4442, %v4666
        %v4668 = vpop.f32.mrb[0].mxu0
        %4669 = vmatprep.mubr.f32.mxu0 0.0
        %4670 = vmatmul.mubr.f32.gmra.mrb[0].mxu0 %v4259
        %v4671 = vpop.f32.mrb[0].mxu0
        %v4672 = vadd.f32 %v4447, %v4671
        %v4673 = vpop.f32.mrb[0].mxu0
        %4674 = vmatprep.mubr.f32.mxu0 0.0
        %4675 = vmatmul.mubr.f32.gmra.mrb[0].mxu0 %v4260
        %v4676 = vpop.f32.mrb[0].mxu0
        %v4677 = vadd.f32 %v4452, %v4676
        %v4678 = vpop.f32.mrb[0].mxu0
        %4679 = vmatprep.mubr.f32.mxu0 0.0
        %4680 = vmatmul.mubr.f32.gmra.mrb[0].mxu0 %v4261
        %v4681 = vpop.f32.mrb[0].mxu0
        %v4682 = vadd.f32 %v4457, %v4681
        %v4683 = vpop.f32.mrb[0].mxu0
        %4684 = vmatprep.mubr.f32.mxu0 0.0
        %4685 = vmatmul.mubr.f32.gmra.mrb[0].mxu0 %v4262
        %v4686 = vpop.f32.mrb[0].mxu0
        %v4687 = vadd.f32 %v4462, %v4686
        %v4688 = vpop.f32.mrb[0].mxu0
        %4689 = vmatprep.mubr.f32.mxu0 0.0
        %4690 = vmatmul.mubr.f32.gmra.mrb[0].mxu0 %v4263
        %v4691 = vpop.f32.mrb[0].mxu0
        %v4692 = vadd.f32 %v4467, %v4691
        %v4693 = vpop.f32.mrb[0].mxu0
        %4694 = vmatprep.mubr.f32.mxu0 0.0
        %4695 = vmatmul.mubr.f32.gmra.mrb[0].mxu0 %v4264
        %v4696 = vpop.f32.mrb[0].mxu0
        %v4697 = vadd.f32 %v4472, %v4696
        %v4698 = vpop.f32.mrb[0].mxu0
        %4699 = vmatprep.mubr.f32.mxu0 0.0
        %4700 = vmatmul.mubr.f32.gmra.mrb[0].mxu0 %v4265
        %v4701 = vpop.f32.mrb[0].mxu0
        %v4702 = vadd.f32 %v4477, %v4701
        %v4703 = vpop.f32.mrb[0].mxu0
        %4704 = vmatprep.mubr.f32.mxu0 0.0
        %4705 = vmatmul.mubr.f32.gmra.mrb[0].mxu0 %v4266
        %v4706 = vpop.f32.mrb[0].mxu0
        %v4707 = vadd.f32 %v4482, %v4706
        %v4708 = vpop.f32.mrb[0].mxu0
        %4709 = vmatprep.mubr.f32.mxu0 0.0
        %4710 = vmatmul.mubr.f32.gmra.mrb[0].mxu0 %v4267
        %v4711 = vpop.f32.mrb[0].mxu0
        %v4712 = vadd.f32 %v4487, %v4711
        %v4713 = vpop.f32.mrb[0].mxu0
        %4714 = vmatprep.mubr.f32.mxu0 0.0
        %4715 = vmatmul.mubr.f32.gmra.mrb[0].mxu0 %v4268
        %v4716 = vpop.f32.mrb[0].mxu0
        %v4717 = vadd.f32 %v4492, %v4716
        %v4718 = vpop.f32.mrb[0].mxu0
        %4719 = vmatprep.mubr.f32.mxu0 0.0
        %4720 = vmatmul.mubr.f32.gmra.mrb[0].mxu0 %v4269
        %v4721 = vpop.f32.mrb[0].mxu0
        %v4722 = vadd.f32 %v4497, %v4721
        %v4723 = vpop.f32.mrb[0].mxu0
        %4724 = vmatprep.mubr.f32.mxu0 0.0
        %4725 = vmatmul.mubr.f32.gmra.mrb[0].mxu0 %v4270
        %v4726 = vpop.f32.mrb[0].mxu0
        %v4727 = vadd.f32 %v4502, %v4726
        %v4728 = vpop.f32.mrb[0].mxu0
        %4729 = vmatprep.mubr.f32.mxu0 0.0
        %4730 = vmatmul.mubr.f32.gmra.mrb[0].mxu0 %v4271
        %v4731 = vpop.f32.mrb[0].mxu0
        %v4732 = vadd.f32 %v4507, %v4731
        %v4733 = vpop.f32.mrb[0].mxu0
        %4734 = vmatprep.mubr.f32.mxu0 0.0
        %4735 = vmatmul.mubr.f32.gmra.mrb[0].mxu0 %v4272
        %v4736 = vpop.f32.mrb[0].mxu0
        %v4737 = vadd.f32 %v4512, %v4736
        %v4738 = vpop.f32.mrb[0].mxu0
        %4739 = vmatprep.mubr.f32.mxu0 0.0
        %4740 = vmatmul.mubr.f32.gmra.mrb[0].mxu0 %v4273
        %v4741 = vpop.f32.mrb[0].mxu0
        %v4742 = vadd.f32 %v4517, %v4741
        %v4743 = vpop.f32.mrb[0].mxu0
        %4744 = vmatprep.mubr.f32.mxu0 0.0
        %4745 = vmatmul.mubr.f32.gmra.mrb[0].mxu0 %v4274
        %v4746 = vpop.f32.mrb[0].mxu0
        %v4747 = vadd.f32 %v4522, %v4746
        %v4748 = vpop.f32.mrb[0].mxu0
        %4749 = vmatprep.mubr.f32.mxu0 0.0
        %4750 = vmatmul.mubr.f32.gmra.mrb[0].mxu0 %v4275
        %v4751 = vpop.f32.mrb[0].mxu0
        %v4752 = vadd.f32 %v4527, %v4751
        %v4753 = vpop.f32.mrb[0].mxu0
        %4754 = vmatprep.mubr.f32.mxu0 0.0
        %4755 = vmatmul.mubr.f32.gmra.mrb[0].mxu0 %v4276
        %v4756 = vpop.f32.mrb[0].mxu0
        %v4757 = vadd.f32 %v4532, %v4756
        %v4758 = vpop.f32.mrb[0].mxu0
        %4759 = vmatprep.mubr.f32.mxu0 0.0
        %4760 = vmatmul.mubr.f32.gmra.mrb[0].mxu0 %v4277
        %v4761 = vpop.f32.mrb[0].mxu0
        %v4762 = vadd.f32 %v4537, %v4761
        %v4763 = vpop.f32.mrb[0].mxu0
        %4764 = vmatprep.mubr.f32.mxu0 0.0
        %4765 = vmatmul.mubr.f32.gmra.mrb[0].mxu0 %v4278
        %v4766 = vpop.f32.mrb[0].mxu0
        %v4767 = vadd.f32 %v4542, %v4766
        %v4768 = vpop.f32.mrb[0].mxu0
        %4769 = vmatprep.mubr.f32.mxu0 0.0
        %4770 = vmatmul.mubr.f32.gmra.mrb[0].mxu0 %v4279
        %v4771 = vpop.f32.mrb[0].mxu0
        %v4772 = vadd.f32 %v4547, %v4771
        %v4773 = vpop.f32.mrb[0].mxu0
        %4774 = vmatprep.mubr.f32.mxu0 0.0
        %4775 = vmatmul.mubr.f32.gmra.mrb[0].mxu0 %v4280
        %v4776 = vpop.f32.mrb[0].mxu0
        %v4777 = vadd.f32 %v4552, %v4776
        %v4778 = vpop.f32.mrb[0].mxu0
        %4779 = vmatprep.mubr.f32.mxu0 0.0
        %4780 = vmatmul.mubr.f32.gmra.mrb[0].mxu0 %v4281
        %v4781 = vpop.f32.mrb[0].mxu0
        %v4782 = vadd.f32 %v4557, %v4781
        %v4783 = vpop.f32.mrb[0].mxu0
        %4784 = vmatprep.mubr.f32.mxu0 0.0
        %4785 = vmatmul.mubr.f32.gmra.mrb[0].mxu0 %v4282
        %v4786 = vpop.f32.mrb[0].mxu0
        %v4787 = vadd.f32 %v4562, %v4786
        %v4788 = vpop.f32.mrb[0].mxu0
        %4789 = vmatprep.mubr.f32.mxu0 0.0
        %4790 = vmatmul.mubr.f32.gmra.mrb[0].mxu0 %v4283
        %v4791 = vpop.f32.mrb[0].mxu0
        %v4792 = vadd.f32 %v4567, %v4791
        %v4793 = vpop.f32.mrb[0].mxu0
        %4794 = vmatprep.mubr.f32.mxu0 0.0
        %4795 = vmatmul.mubr.f32.gmra.mrb[0].mxu0 %v4284
        %v4796 = vpop.f32.mrb[0].mxu0
        %v4797 = vadd.f32 %v4572, %v4796
        %v4798 = vpop.f32.mrb[0].mxu0
        %4799 = vmatprep.mubr.f32.mxu0 0.0
        %4800 = vmatmul.mubr.f32.gmra.mrb[0].mxu0 %v4285
        %v4801 = vpop.f32.mrb[0].mxu0
        %v4802 = vadd.f32 %v4577, %v4801
        %v4803 = vpop.f32.mrb[0].mxu0
        %4804 = vmatprep.mubr.f32.mxu0 0.0
        %4805 = vmatmul.mubr.f32.gmra.mrb[0].mxu0 %v4286
        %v4806 = vpop.f32.mrb[0].mxu0
        %v4807 = vadd.f32 %v4582, %v4806
        %v4808 = vpop.f32.mrb[0].mxu0
        %4809 = vmatprep.mubr.f32.mxu0 0.0
        %4810 = vmatmul.mubr.f32.gmra.mrb[0].mxu0 %v4287
        %v4811 = vpop.f32.mrb[0].mxu0
        %v4812 = vadd.f32 %v4587, %v4811
        %v4813 = vpop.f32.mrb[0].mxu0
        %4814 = vmatprep.mubr.f32.mxu0 0.0
        %4815 = vmatmul.mubr.f32.gmra.mrb[0].mxu0 %v4288
        %v4816 = vpop.f32.mrb[0].mxu0
        %v4817 = vadd.f32 %v4592, %v4816
        %v4818 = vpop.f32.mrb[0].mxu0
        %4819 = vdwg.mxu0
        %v4820 = vadd.f32 %v4289, %v4662
        %v4821 = vadd.f32 %v4290, %v4667
        %v4822 = vadd.f32 %v4291, %v4672
        %v4823 = vadd.f32 %v4292, %v4677
        %v4824 = vadd.f32 %v4293, %v4682
        %v4825 = vadd.f32 %v4294, %v4687
        %v4826 = vadd.f32 %v4295, %v4692
        %v4827 = vadd.f32 %v4296, %v4697
        %v4828 = vadd.f32 %v4297, %v4702
        %v4829 = vadd.f32 %v4298, %v4707
        %v4830 = vadd.f32 %v4299, %v4712
        %v4831 = vadd.f32 %v4300, %v4717
        %v4832 = vadd.f32 %v4301, %v4722
        %v4833 = vadd.f32 %v4302, %v4727
        %v4834 = vadd.f32 %v4303, %v4732
        %v4835 = vadd.f32 %v4304, %v4737
        %v4836 = vadd.f32 %v4305, %v4742
        %v4837 = vadd.f32 %v4306, %v4747
        %v4838 = vadd.f32 %v4307, %v4752
        %v4839 = vadd.f32 %v4308, %v4757
        %v4840 = vadd.f32 %v4309, %v4762
        %v4841 = vadd.f32 %v4310, %v4767
        %v4842 = vadd.f32 %v4311, %v4772
        %v4843 = vadd.f32 %v4312, %v4777
        %v4844 = vadd.f32 %v4313, %v4782
        %v4845 = vadd.f32 %v4314, %v4787
        %v4846 = vadd.f32 %v4315, %v4792
        %v4847 = vadd.f32 %v4316, %v4797
        %v4848 = vadd.f32 %v4317, %v4802
        %v4849 = vadd.f32 %v4318, %v4807
        %v4850 = vadd.f32 %v4319, %v4812
        %v4851 = vadd.f32 %v4320, %v4817
        %4852 = vst [vmem:[#allocation4] sm:$0xff] %v4820
        %4853 = vst [vmem:[#allocation4 + $0x8] sm:$0xff] %v4821
        %4854 = vst [vmem:[#allocation4 + $0x10] sm:$0xff] %v4822
        %4855 = vst [vmem:[#allocation4 + $0x18] sm:$0xff] %v4823
        %4856 = vst [vmem:[#allocation4 + $0x20] sm:$0xff] %v4824
        %4857 = vst [vmem:[#allocation4 + $0x28] sm:$0xff] %v4825
        %4858 = vst [vmem:[#allocation4 + $0x30] sm:$0xff] %v4826
        %4859 = vst [vmem:[#allocation4 + $0x38] sm:$0xff] %v4827
        %4860 = vst [vmem:[#allocation4 + $0x40] sm:$0xff] %v4828
        %4861 = vst [vmem:[#allocation4 + $0x48] sm:$0xff] %v4829
        %4862 = vst [vmem:[#allocation4 + $0x50] sm:$0xff] %v4830
        %4863 = vst [vmem:[#allocation4 + $0x58] sm:$0xff] %v4831
        %4864 = vst [vmem:[#allocation4 + $0x60] sm:$0xff] %v4832
        %4865 = vst [vmem:[#allocation4 + $0x68] sm:$0xff] %v4833
        %4866 = vst [vmem:[#allocation4 + $0x70] sm:$0xff] %v4834
        %4867 = vst [vmem:[#allocation4 + $0x78] sm:$0xff] %v4835
        %4868 = vst [vmem:[#allocation4 + $0x80] sm:$0xff] %v4836
        %4869 = vst [vmem:[#allocation4 + $0x88] sm:$0xff] %v4837
        %4870 = vst [vmem:[#allocation4 + $0x90] sm:$0xff] %v4838
        %4871 = vst [vmem:[#allocation4 + $0x98] sm:$0xff] %v4839
        %4872 = vst [vmem:[#allocation4 + $0xa0] sm:$0xff] %v4840
        %4873 = vst [vmem:[#allocation4 + $0xa8] sm:$0xff] %v4841
        %4874 = vst [vmem:[#allocation4 + $0xb0] sm:$0xff] %v4842
        %4875 = vst [vmem:[#allocation4 + $0xb8] sm:$0xff] %v4843
        %4876 = vst [vmem:[#allocation4 + $0xc0] sm:$0xff] %v4844
        %4877 = vst [vmem:[#allocation4 + $0xc8] sm:$0xff] %v4845
        %4878 = vst [vmem:[#allocation4 + $0xd0] sm:$0xff] %v4846
        %4879 = vst [vmem:[#allocation4 + $0xd8] sm:$0xff] %v4847
        %4880 = vst [vmem:[#allocation4 + $0xe0] sm:$0xff] %v4848
        %4881 = vst [vmem:[#allocation4 + $0xe8] sm:$0xff] %v4849
        %4882 = vst [vmem:[#allocation4 + $0xf0] sm:$0xff] %v4850
        %4883 = vst [vmem:[#allocation4 + $0xf8] sm:$0xff] %v4851
        %v4884 = vld [vmem:[#allocation4] sm:$0xff]
        %v4885 = vld [vmem:[#allocation4 + $0x8] sm:$0xff]
        %v4886 = vld [vmem:[#allocation4 + $0x10] sm:$0xff]
        %v4887 = vld [vmem:[#allocation4 + $0x18] sm:$0xff]
        %v4888 = vld [vmem:[#allocation4 + $0x20] sm:$0xff]
        %v4889 = vld [vmem:[#allocation4 + $0x28] sm:$0xff]
        %v4890 = vld [vmem:[#allocation4 + $0x30] sm:$0xff]
        %v4891 = vld [vmem:[#allocation4 + $0x38] sm:$0xff]
        %v4892 = vld [vmem:[#allocation4 + $0x40] sm:$0xff]
        %v4893 = vld [vmem:[#allocation4 + $0x48] sm:$0xff]
        %v4894 = vld [vmem:[#allocation4 + $0x50] sm:$0xff]
        %v4895 = vld [vmem:[#allocation4 + $0x58] sm:$0xff]
        %v4896 = vld [vmem:[#allocation4 + $0x60] sm:$0xff]
        %v4897 = vld [vmem:[#allocation4 + $0x68] sm:$0xff]
        %v4898 = vld [vmem:[#allocation4 + $0x70] sm:$0xff]
        %v4899 = vld [vmem:[#allocation4 + $0x78] sm:$0xff]
        %v4900 = vld [vmem:[#allocation4 + $0x80] sm:$0xff]
        %v4901 = vld [vmem:[#allocation4 + $0x88] sm:$0xff]
        %v4902 = vld [vmem:[#allocation4 + $0x90] sm:$0xff]
        %v4903 = vld [vmem:[#allocation4 + $0x98] sm:$0xff]
        %v4904 = vld [vmem:[#allocation4 + $0xa0] sm:$0xff]
        %v4905 = vld [vmem:[#allocation4 + $0xa8] sm:$0xff]
        %v4906 = vld [vmem:[#allocation4 + $0xb0] sm:$0xff]
        %v4907 = vld [vmem:[#allocation4 + $0xb8] sm:$0xff]
        %v4908 = vld [vmem:[#allocation4 + $0xc0] sm:$0xff]
        %v4909 = vld [vmem:[#allocation4 + $0xc8] sm:$0xff]
        %v4910 = vld [vmem:[#allocation4 + $0xd0] sm:$0xff]
        %v4911 = vld [vmem:[#allocation4 + $0xd8] sm:$0xff]
        %v4912 = vld [vmem:[#allocation4 + $0xe0] sm:$0xff]
        %v4913 = vld [vmem:[#allocation4 + $0xe8] sm:$0xff]
        %v4914 = vld [vmem:[#allocation4 + $0xf0] sm:$0xff]
        %v4915 = vld [vmem:[#allocation4 + $0xf8] sm:$0xff]
        %v4916 = vld [vmem:[%s5] sm:$0x1]
        %v4918 = vlaneseq
        %v4919 = vshrl.u32 %v4918, 7
        %v4920 = vsub.s32 0, %v4919
        %v4921 = vrot.slane %v4916, %v4920
        %v4923 = vmul.f32 %v4884, %v4921
        %v4924 = vmul.f32 %v4885, %v4921
        %v4925 = vmul.f32 %v4886, %v4921
        %v4926 = vmul.f32 %v4887, %v4921
        %v4927 = vmul.f32 %v4888, %v4921
        %v4928 = vmul.f32 %v4889, %v4921
        %v4929 = vmul.f32 %v4890, %v4921
        %v4930 = vmul.f32 %v4891, %v4921
        %v4931 = vmul.f32 %v4892, %v4921
        %v4932 = vmul.f32 %v4893, %v4921
        %v4933 = vmul.f32 %v4894, %v4921
        %v4934 = vmul.f32 %v4895, %v4921
        %v4935 = vmul.f32 %v4896, %v4921
        %v4936 = vmul.f32 %v4897, %v4921
        %v4937 = vmul.f32 %v4898, %v4921
        %v4938 = vmul.f32 %v4899, %v4921
        %v4939 = vmul.f32 %v4900, %v4921
        %v4940 = vmul.f32 %v4901, %v4921
        %v4941 = vmul.f32 %v4902, %v4921
        %v4942 = vmul.f32 %v4903, %v4921
        %v4943 = vmul.f32 %v4904, %v4921
        %v4944 = vmul.f32 %v4905, %v4921
        %v4945 = vmul.f32 %v4906, %v4921
        %v4946 = vmul.f32 %v4907, %v4921
        %v4947 = vmul.f32 %v4908, %v4921
        %v4948 = vmul.f32 %v4909, %v4921
        %v4949 = vmul.f32 %v4910, %v4921
        %v4950 = vmul.f32 %v4911, %v4921
        %v4951 = vmul.f32 %v4912, %v4921
        %v4952 = vmul.f32 %v4913, %v4921
        %v4953 = vmul.f32 %v4914, %v4921
        %v4954 = vmul.f32 %v4915, %v4921
        %v4955 = vld [vmem:[%s6] sm:$0x1]
        %v4957 = vlaneseq
        %v4958 = vshrl.u32 %v4957, 7
        %v4959 = vsub.s32 0, %v4958
        %v4960 = vrot.slane %v4955, %v4959
        %v4962 = vadd.f32 %v4923, %v4960
        %v4963 = vadd.f32 %v4924, %v4960
        %v4964 = vadd.f32 %v4925, %v4960
        %v4965 = vadd.f32 %v4926, %v4960
        %v4966 = vadd.f32 %v4927, %v4960
        %v4967 = vadd.f32 %v4928, %v4960
        %v4968 = vadd.f32 %v4929, %v4960
        %v4969 = vadd.f32 %v4930, %v4960
        %v4970 = vadd.f32 %v4931, %v4960
        %v4971 = vadd.f32 %v4932, %v4960
        %v4972 = vadd.f32 %v4933, %v4960
        %v4973 = vadd.f32 %v4934, %v4960
        %v4974 = vadd.f32 %v4935, %v4960
        %v4975 = vadd.f32 %v4936, %v4960
        %v4976 = vadd.f32 %v4937, %v4960
        %v4977 = vadd.f32 %v4938, %v4960
        %v4978 = vadd.f32 %v4939, %v4960
        %v4979 = vadd.f32 %v4940, %v4960
        %v4980 = vadd.f32 %v4941, %v4960
        %v4981 = vadd.f32 %v4942, %v4960
        %v4982 = vadd.f32 %v4943, %v4960
        %v4983 = vadd.f32 %v4944, %v4960
        %v4984 = vadd.f32 %v4945, %v4960
        %v4985 = vadd.f32 %v4946, %v4960
        %v4986 = vadd.f32 %v4947, %v4960
        %v4987 = vadd.f32 %v4948, %v4960
        %v4988 = vadd.f32 %v4949, %v4960
        %v4989 = vadd.f32 %v4950, %v4960
        %v4990 = vadd.f32 %v4951, %v4960
        %v4991 = vadd.f32 %v4952, %v4960
        %v4992 = vadd.f32 %v4953, %v4960
        %v4993 = vadd.f32 %v4954, %v4960
        %v4994 = vld [vmem:[%s287] sm:$0xff]
        %v4995 = vld [vmem:[%s287 + $0x8] sm:$0xff]
        %v4996 = vld [vmem:[%s287 + $0x10] sm:$0xff]
        %v4997 = vld [vmem:[%s287 + $0x18] sm:$0xff]
        %v4998 = vld [vmem:[%s287 + $0x20] sm:$0xff]
        %v4999 = vld [vmem:[%s287 + $0x28] sm:$0xff]
        %v5000 = vld [vmem:[%s287 + $0x30] sm:$0xff]
        %v5001 = vld [vmem:[%s287 + $0x38] sm:$0xff]
        %v5002 = vld [vmem:[%s287 + $0x40] sm:$0xff]
        %v5003 = vld [vmem:[%s287 + $0x48] sm:$0xff]
        %v5004 = vld [vmem:[%s287 + $0x50] sm:$0xff]
        %v5005 = vld [vmem:[%s287 + $0x58] sm:$0xff]
        %v5006 = vld [vmem:[%s287 + $0x60] sm:$0xff]
        %v5007 = vld [vmem:[%s287 + $0x68] sm:$0xff]
        %v5008 = vld [vmem:[%s287 + $0x70] sm:$0xff]
        %v5009 = vld [vmem:[%s287 + $0x78] sm:$0xff]
        %v5010 = vld [vmem:[%s287 + $0x80] sm:$0xff]
        %v5011 = vld [vmem:[%s287 + $0x88] sm:$0xff]
        %v5012 = vld [vmem:[%s287 + $0x90] sm:$0xff]
        %v5013 = vld [vmem:[%s287 + $0x98] sm:$0xff]
        %v5014 = vld [vmem:[%s287 + $0xa0] sm:$0xff]
        %v5015 = vld [vmem:[%s287 + $0xa8] sm:$0xff]
        %v5016 = vld [vmem:[%s287 + $0xb0] sm:$0xff]
        %v5017 = vld [vmem:[%s287 + $0xb8] sm:$0xff]
        %v5018 = vld [vmem:[%s287 + $0xc0] sm:$0xff]
        %v5019 = vld [vmem:[%s287 + $0xc8] sm:$0xff]
        %v5020 = vld [vmem:[%s287 + $0xd0] sm:$0xff]
        %v5021 = vld [vmem:[%s287 + $0xd8] sm:$0xff]
        %v5022 = vld [vmem:[%s287 + $0xe0] sm:$0xff]
        %v5023 = vld [vmem:[%s287 + $0xe8] sm:$0xff]
        %v5024 = vld [vmem:[%s287 + $0xf0] sm:$0xff]
        %v5025 = vld [vmem:[%s287 + $0xf8] sm:$0xff]
        %v5026 = vadd.f32 %v4962, %v4994
        %v5027 = vadd.f32 %v4963, %v4995
        %v5028 = vadd.f32 %v4964, %v4996
        %v5029 = vadd.f32 %v4965, %v4997
        %v5030 = vadd.f32 %v4966, %v4998
        %v5031 = vadd.f32 %v4967, %v4999
        %v5032 = vadd.f32 %v4968, %v5000
        %v5033 = vadd.f32 %v4969, %v5001
        %v5034 = vadd.f32 %v4970, %v5002
        %v5035 = vadd.f32 %v4971, %v5003
        %v5036 = vadd.f32 %v4972, %v5004
        %v5037 = vadd.f32 %v4973, %v5005
        %v5038 = vadd.f32 %v4974, %v5006
        %v5039 = vadd.f32 %v4975, %v5007
        %v5040 = vadd.f32 %v4976, %v5008
        %v5041 = vadd.f32 %v4977, %v5009
        %v5042 = vadd.f32 %v4978, %v5010
        %v5043 = vadd.f32 %v4979, %v5011
        %v5044 = vadd.f32 %v4980, %v5012
        %v5045 = vadd.f32 %v4981, %v5013
        %v5046 = vadd.f32 %v4982, %v5014
        %v5047 = vadd.f32 %v4983, %v5015
        %v5048 = vadd.f32 %v4984, %v5016
        %v5049 = vadd.f32 %v4985, %v5017
        %v5050 = vadd.f32 %v4986, %v5018
        %v5051 = vadd.f32 %v4987, %v5019
        %v5052 = vadd.f32 %v4988, %v5020
        %v5053 = vadd.f32 %v4989, %v5021
        %v5054 = vadd.f32 %v4990, %v5022
        %v5055 = vadd.f32 %v4991, %v5023
        %v5056 = vadd.f32 %v4992, %v5024
        %v5057 = vadd.f32 %v4993, %v5025
        %v5058 = vmax.f32 %v5026, 0.0
        %v5059 = vmax.f32 %v5027, 0.0
        %v5060 = vmax.f32 %v5028, 0.0
        %v5061 = vmax.f32 %v5029, 0.0
        %v5062 = vmax.f32 %v5030, 0.0
        %v5063 = vmax.f32 %v5031, 0.0
        %v5064 = vmax.f32 %v5032, 0.0
        %v5065 = vmax.f32 %v5033, 0.0
        %v5066 = vmax.f32 %v5034, 0.0
        %v5067 = vmax.f32 %v5035, 0.0
        %v5068 = vmax.f32 %v5036, 0.0
        %v5069 = vmax.f32 %v5037, 0.0
        %v5070 = vmax.f32 %v5038, 0.0
        %v5071 = vmax.f32 %v5039, 0.0
        %v5072 = vmax.f32 %v5040, 0.0
        %v5073 = vmax.f32 %v5041, 0.0
        %v5074 = vmax.f32 %v5042, 0.0
        %v5075 = vmax.f32 %v5043, 0.0
        %v5076 = vmax.f32 %v5044, 0.0
        %v5077 = vmax.f32 %v5045, 0.0
        %v5078 = vmax.f32 %v5046, 0.0
        %v5079 = vmax.f32 %v5047, 0.0
        %v5080 = vmax.f32 %v5048, 0.0
        %v5081 = vmax.f32 %v5049, 0.0
        %v5082 = vmax.f32 %v5050, 0.0
        %v5083 = vmax.f32 %v5051, 0.0
        %v5084 = vmax.f32 %v5052, 0.0
        %v5085 = vmax.f32 %v5053, 0.0
        %v5086 = vmax.f32 %v5054, 0.0
        %v5087 = vmax.f32 %v5055, 0.0
        %v5088 = vmax.f32 %v5056, 0.0
        %v5089 = vmax.f32 %v5057, 0.0
        %5090 = vst [vmem:[%s325] sm:$0xff] %v5058
        %5091 = vst [vmem:[%s325 + $0x8] sm:$0xff] %v5059
        %5092 = vst [vmem:[%s325 + $0x10] sm:$0xff] %v5060
        %5093 = vst [vmem:[%s325 + $0x18] sm:$0xff] %v5061
        %5094 = vst [vmem:[%s325 + $0x20] sm:$0xff] %v5062
        %5095 = vst [vmem:[%s325 + $0x28] sm:$0xff] %v5063
        %5096 = vst [vmem:[%s325 + $0x30] sm:$0xff] %v5064
        %5097 = vst [vmem:[%s325 + $0x38] sm:$0xff] %v5065
        %5098 = vst [vmem:[%s325 + $0x40] sm:$0xff] %v5066
        %5099 = vst [vmem:[%s325 + $0x48] sm:$0xff] %v5067
        %5100 = vst [vmem:[%s325 + $0x50] sm:$0xff] %v5068
        %5101 = vst [vmem:[%s325 + $0x58] sm:$0xff] %v5069
        %5102 = vst [vmem:[%s325 + $0x60] sm:$0xff] %v5070
        %5103 = vst [vmem:[%s325 + $0x68] sm:$0xff] %v5071
        %5104 = vst [vmem:[%s325 + $0x70] sm:$0xff] %v5072
        %5105 = vst [vmem:[%s325 + $0x78] sm:$0xff] %v5073
        %5106 = vst [vmem:[%s325 + $0x80] sm:$0xff] %v5074
        %5107 = vst [vmem:[%s325 + $0x88] sm:$0xff] %v5075
        %5108 = vst [vmem:[%s325 + $0x90] sm:$0xff] %v5076
        %5109 = vst [vmem:[%s325 + $0x98] sm:$0xff] %v5077
        %5110 = vst [vmem:[%s325 + $0xa0] sm:$0xff] %v5078
        %5111 = vst [vmem:[%s325 + $0xa8] sm:$0xff] %v5079
        %5112 = vst [vmem:[%s325 + $0xb0] sm:$0xff] %v5080
        %5113 = vst [vmem:[%s325 + $0xb8] sm:$0xff] %v5081
        %5114 = vst [vmem:[%s325 + $0xc0] sm:$0xff] %v5082
        %5115 = vst [vmem:[%s325 + $0xc8] sm:$0xff] %v5083
        %5116 = vst [vmem:[%s325 + $0xd0] sm:$0xff] %v5084
        %5117 = vst [vmem:[%s325 + $0xd8] sm:$0xff] %v5085
        %5118 = vst [vmem:[%s325 + $0xe0] sm:$0xff] %v5086
        %5119 = vst [vmem:[%s325 + $0xe8] sm:$0xff] %v5087
        %5120 = vst [vmem:[%s325 + $0xf0] sm:$0xff] %v5088
        %5121 = vst [vmem:[%s325 + $0xf8] sm:$0xff] %v5089
        %s5122 = sand.u32 %s185, 1
        %s5123 = scalar_lea.sflag [#allocation7], %s5122
        %s5124 = sand.u32 %s185, 1
        %s5125 = smul.addr %s5124, 256
        %s5126 = scalar_lea.vmem [#allocation11], %s5125
        // Predicated region
        $region61: #{tpu_custom_call.1} parent=47 // pred_check
          %p5127 = pneg %p195
        $region62: #{tpu_custom_call.1} parent=47 // pred_check_branch
          %5129 = sbr.rel (%p5127) target = $region64
        $region63: #{tpu_custom_call.1} parent=47 // pred_region
          %s5131 = ssub.s32 4096, 4096
          %5132 = vsyncadd %s5123, %s5131
          %s5133 = smul.addr %s25, 32
          %s5134 = smul.addr %s5133, 128
          %s5135 = scalar_lea.hbm %s7, %s5134
          %s5136 = sshll.u32 %s5126, 4
          %s5137 = int_to_ptr.vmem [resolvable:$true] %s5136
          %5142 = dma.vmem_to_hbm [thread:$0]  %s5137, 4096, %s5135, %s5123, 128, 128, 8
        $region64: #{tpu_custom_call.1} parent=47 // pred_fallthru
          _
      $region48: #{tpu_custom_call.1} parent=5 // pred_fallthru
        _
      %p5143 = scmp.le.s32.totalorder 2, %s20
      // Predicated region
      $region65: #{tpu_custom_call.1} parent=5 // pred_check
        %p5144 = pneg %p5143
      $region66: #{tpu_custom_call.1} parent=5 // pred_check_branch
        %5146 = sbr.rel (%p5144) target = $region68
      $region67: #{tpu_custom_call.1} parent=5 // pred_region
        %s5147 = ssub.s32 %s20, 2
        // Predicated region
        $region69: #{tpu_custom_call.1} parent=67 // pred_check
          %p5148 = pneg %p201
        $region70: #{tpu_custom_call.1} parent=67 // pred_check_branch
          %5150 = sbr.rel (%p5148) target = $region72
        $region71: #{tpu_custom_call.1} parent=67 // pred_region
          %s5151 = sand.u32 %s186, 1
          %s5152 = scalar_lea.sflag [#allocation7], %s5151
          %s5153 = sand.u32 %s186, 1
          %s5154 = smul.addr %s5153, 256
          %s5155 = scalar_lea.vmem [#allocation11], %s5154
          %5156 = dma.done %s5152, 4096
        $region72: #{tpu_custom_call.1} parent=67 // pred_fallthru
          _
      $region68: #{tpu_custom_call.1} parent=5 // pred_fallthru
        _
    $region6: #{tpu_custom_call.1} parent=1 // loop_footer
      %s24 = sadd.s32 1, %s20
    $region7: #{tpu_custom_call.1} parent=1 // loop_footer_branch
      %19 = sbr.rel target = $region3
    $region8: #{tpu_custom_call.1} parent=1 // loop_exit
      _
    %5157 = vsyncpa [#allocation6], 1
    %s5158 = scalar_lea.sflag [#allocation6], 1
    %5159 = vsyncpa %s5158, 1
    %5160 = vsyncpa [#allocation9], 1
    %5161 = vsyncpa [#allocation7], 1
    %s5162 = scalar_lea.sflag [#allocation7], 1
    %5163 = vsyncpa %s5162, 1

</llo_original>
